<compile_context>
chip_gen: v7x
topology: tpu7x:2x2x1
jax: 0.10.0
libtpu: 0.0.40
codegen_flags: <defaults>
</compile_context>

<pallas_src>
import functools

import jax
import jax.numpy as jnp
from jax import lax
from jax.experimental import pallas as pl
from jax.experimental.pallas import tpu as pltpu

NEG = -1e9  # additive mask / tag-padding constant


# --------------------------------------------------------------------------- #
# pallas_call helper: single grid step, every operand fully VMEM-resident
# --------------------------------------------------------------------------- #
def _pcall(kernel, out_shape, *args):
    multi = isinstance(out_shape, (tuple, list))
    outs = tuple(out_shape) if multi else (out_shape,)
    in_specs = [pl.BlockSpec(tuple(a.shape), lambda i, n=a.ndim: (0,) * n) for a in args]
    out_specs = tuple(
        pl.BlockSpec(tuple(o.shape), lambda i, n=len(o.shape): (0,) * n) for o in outs
    )
    fn = pl.pallas_call(
        kernel,
        grid=(1,),
        in_specs=in_specs,
        out_specs=out_specs if multi else out_specs[0],
        out_shape=outs if multi else outs[0],
        compiler_params=pltpu.CompilerParams(dimension_semantics=("arbitrary",)),
    )
    return fn(*args)


# --------------------------------------------------------------------------- #
# shared feature pipeline (runs inside both kernels, everything in registers/VMEM)
#   embeddings -> emb-LN -> BERT layers -> fused BiLSTM -> SE -> tag projection
# --------------------------------------------------------------------------- #
def _features(nH, sent_ref, mask_ref, wrefs):
    (wemb_ref, pemb_ref, temb_ref, eg_ref, eb_ref,
     wqkv_ref, bqkv_ref, wo_ref, bo_ref,
     ln1g_ref, ln1b_ref, w1_ref, b1_ref, w2_ref, b2_ref,
     ln2g_ref, ln2b_ref,
     l0_wih_ref, l0_whh_ref, l0_b_ref,
     l1_wih_ref, l1_whh_ref, l1_b_ref,
     sew1_ref, sew2_ref, linw_ref, linb_ref) = wrefs

    B, S = mask_ref.shape
    V, D = wemb_ref.shape
    L = wqkv_ref.shape[0]
    dh = D // nH
    scale = 1.0 / float(dh) ** 0.5
    f32 = jnp.float32

    def ln(x, g, b):  # single-pass LayerNorm (two independent reductions)
        mu = jnp.mean(x, axis=-1, keepdims=True)
        var = jnp.maximum(jnp.mean(x * x, axis=-1, keepdims=True) - mu * mu, 0.0)
        return (x - mu) * lax.rsqrt(var + 1e-12) * g + b

    def gelu(x):  # tanh approximation (HF exact-erf GELU differs slightly)
        return 0.5 * x * (1.0 + jnp.tanh(0.7978845608028654 * (x + 0.044715 * x * x * x)))

    # ---- embeddings: one-hot MXU matmul gather + pos + type, then LN -------- #
    sent = sent_ref[...]                                                 # (B*S, 1) int32
    oh_tok = (lax.broadcasted_iota(jnp.int32, (B * S, V), 1) == sent).astype(f32)
    wemb = jnp.dot(oh_tok, wemb_ref[...], preferred_element_type=f32)    # (B*S, D)
    pos = pemb_ref[...][0:S, :]                                          # (S, D)
    typ = temb_ref[...][0:1, :]                                          # (1, D) (type id 0)
    x3 = wemb.reshape(B, S, D) + pos[None, :, :] + typ[None, :, :]
    x2 = ln(x3.reshape(B * S, D), eg_ref[...], eb_ref[...])

    maskf = mask_ref[...]                                                # (B, S) f32
    bias = ((maskf - 1.0) * 1e9)[:, None, :]                             # (B, 1, S)

    # ---- BERT encoder layers (weights stacked over L, fully unrolled) ------- #
    for l in range(L):
        qkv = jnp.dot(x2, wqkv_ref[l], preferred_element_type=f32) + bqkv_ref[l]
        ctxs = []
        for h in range(nH):
            qh = (qkv[:, h * dh:(h + 1) * dh] * scale).reshape(B, S, dh)
            kh = qkv[:, D + h * dh:D + (h + 1) * dh].reshape(B, S, dh)
            vh = qkv[:, 2 * D + h * dh:2 * D + (h + 1) * dh].reshape(B, S, dh)
            s = jnp.einsum("bqd,bkd->bqk", qh, kh, preferred_element_type=f32) + bias
            s = s - jnp.max(s, axis=-1, keepdims=True)
            p = jnp.exp(s)
            p = p * pl.reciprocal(jnp.sum(p, axis=-1, keepdims=True), approx=True)
            ctxs.append(jnp.einsum("bqk,bkd->bqd", p, vh, preferred_element_type=f32))
        ctx = jnp.concatenate(ctxs, axis=-1).reshape(B * S, D)           # all heads
        attn = jnp.dot(ctx, wo_ref[l], preferred_element_type=f32) + bo_ref[l]
        x2 = ln(x2 + attn, ln1g_ref[l], ln1b_ref[l])
        hmid = gelu(jnp.dot(x2, w1_ref[l], preferred_element_type=f32) + b1_ref[l])
        ffn = jnp.dot(hmid, w2_ref[l], preferred_element_type=f32) + b2_ref[l]
        x2 = ln(x2 + ffn, ln2g_ref[l], ln2b_ref[l])

    # ---- BiLSTM: fwd/bwd fused per step, gates pre-permuted to (i,f,o,g) ---- #
    Hh = l0_whh_ref.shape[0] // 2
    H = 2 * Hh

    def bilstm(x3_in, wih_ref, whh_ref, b_ref):
        Bv, Sv, Din = x3_in.shape
        xf = x3_in.reshape(Bv * Sv, Din)
        # input projections for all S at once (off the serial chain)
        zf = (jnp.dot(xf, wih_ref[0], preferred_element_type=f32) + b_ref[0]
              ).reshape(Bv, Sv, 4 * Hh)
        zb = (jnp.dot(xf, wih_ref[1], preferred_element_type=f32) + b_ref[1]
              ).reshape(Bv, Sv, 4 * Hh)
        zb_rev = jnp.concatenate([zb[:, Sv - 1 - t:Sv - t, :] for t in range(Sv)], axis=1)
        # interleave columns to [i_f i_b f_f f_b o_f o_b g_f g_b] (matches whh_big layout)
        z = jnp.concatenate(
            [zf[..., 0 * Hh:1 * Hh], zb_rev[..., 0 * Hh:1 * Hh],
             zf[..., 1 * Hh:2 * Hh], zb_rev[..., 1 * Hh:2 * Hh],
             zf[..., 2 * Hh:3 * Hh], zb_rev[..., 2 * Hh:3 * Hh],
             zf[..., 3 * Hh:4 * Hh], zb_rev[..., 3 * Hh:4 * Hh]], axis=-1)   # (B,S,8Hh)
        whh = whh_ref[...]                                               # (2Hh, 8Hh)
        h = jnp.zeros((Bv, 2 * Hh), f32)
        c = jnp.zeros((Bv, 2 * Hh), f32)
        hf = [None] * Sv
        hb = [None] * Sv
        for t in range(Sv):                                              # fully unrolled
            zt = z[:, t, :] + jnp.dot(h, whh, preferred_element_type=f32)  # (B, 8Hh)
            sg = jax.nn.sigmoid(zt[:, 0:6 * Hh])                         # i|f|o both dirs
            g = jnp.tanh(zt[:, 6 * Hh:8 * Hh])
            c = sg[:, 2 * Hh:4 * Hh] * c + sg[:, 0:2 * Hh] * g
            h = sg[:, 4 * Hh:6 * Hh] * jnp.tanh(c)                       # [h_f(t) | h_b(S-1-t)]
            hf[t] = h[:, 0:Hh]
            hb[Sv - 1 - t] = h[:, Hh:2 * Hh]
        # assemble output in registers (no VMEM scratch / masked stores)
        return jnp.concatenate(
            [jnp.concatenate([hf[t], hb[t]], axis=-1)[:, None, :] for t in range(Sv)],
            axis=1)                                                       # (B, S, 2Hh)

    cur = bilstm(x2.reshape(B, S, D), l0_wih_ref, l0_whh_ref, l0_b_ref)
    cur = bilstm(cur, l1_wih_ref, l1_whh_ref, l1_b_ref)

    # ---- SE layer (squeeze over sequence) + tag projection ------------------ #
    # nn.Dropout(p=0.1): identity in the deterministic / eval forward
    y = jnp.mean(cur, axis=1)                                            # (B, H)
    y = jnp.maximum(jnp.dot(y, sew1_ref[...], preferred_element_type=f32), 0.0)
    gate = jax.nn.sigmoid(jnp.dot(y, sew2_ref[...], preferred_element_type=f32))
    out = cur * gate[:, None, :]
    Tp = linw_ref.shape[1]
    feats = (jnp.dot(out.reshape(B * S, H), linw_ref[...], preferred_element_type=f32)
             + linb_ref[...]).reshape(B, S, Tp)
    return feats, maskf


# --------------------------------------------------------------------------- #
# fused forward kernels (features + CRF), one pallas_call per path
# tag axis padded to Tp=8; pad tags carry -1e9 so results match the 5-tag CRF
# --------------------------------------------------------------------------- #
def _forward_nll_kernel(nH, sent_ref, mask_ref, tags_ref, *rest):
    *wrefs, start_ref, trans_ref, end_ref, nll_ref = rest
    feats, m = _features(nH, sent_ref, mask_ref, tuple(wrefs))
    B, S, Tp = feats.shape
    f32 = jnp.float32
    start, trans, end = start_ref[...], trans_ref[...], end_ref[...]
    tg = tags_ref[...]
    iota = lax.broadcasted_iota(jnp.int32, (B, Tp), 1)

    def onehot(t):
        return (iota == tg[:, t:t + 1]).astype(f32)

    oh_prev = onehot(0)
    e0 = feats[:, 0, :]
    numer = jnp.sum((start + e0) * oh_prev, axis=-1, keepdims=True)      # [B,1]
    alpha = start + e0                                                   # [B,Tp]
    for t in range(1, S):                                                # unrolled
        oh = onehot(t)
        mt = m[:, t:t + 1]
        emit = feats[:, t, :]
        trans_sel = jnp.sum(jnp.dot(oh_prev, trans, preferred_element_type=f32) * oh,
                            axis=-1, keepdims=True)
        emit_sel = jnp.sum(emit * oh, axis=-1, keepdims=True)
        numer = numer + mt * (trans_sel + emit_sel)
        cand = alpha[:, :, None] + trans[None, :, :] + emit[:, None, :]
        mmax = jnp.max(cand, axis=1)
        alpha_new = mmax + jnp.log(jnp.sum(jnp.exp(cand - mmax[:, None, :]), axis=1))
        alpha = jnp.where(mt > 0, alpha_new, alpha)
        oh_prev = jnp.where(mt > 0, oh, oh_prev)
    numer = numer + jnp.sum(end * oh_prev, axis=-1, keepdims=True)
    final = alpha + end
    mx = jnp.max(final, axis=-1, keepdims=True)
    denom = mx + jnp.log(jnp.sum(jnp.exp(final - mx), axis=-1, keepdims=True))
    llh = numer - denom                                                  # [B,1]
    nll_ref[...] = -jnp.mean(llh, axis=0, keepdims=True)                 # crf reduction='mean'


def _forward_decode_kernel(nH, sent_ref, mask_ref, *rest):
    *wrefs, start_ref, trans_ref, end_ref, score_ref, bp_ref = rest
    feats, m = _features(nH, sent_ref, mask_ref, tuple(wrefs))
    B, S, Tp = feats.shape
    start, trans, end = start_ref[...], trans_ref[...], end_ref[...]
    ids = lax.broadcasted_iota(jnp.int32, (B, Tp, Tp), 1)
    score = start + feats[:, 0, :]
    bps = [jnp.zeros((B, Tp), jnp.int32)]                                # row 0 never read
    for t in range(1, S):                                                # unrolled
        cand = score[:, :, None] + trans[None, :, :]                     # [B, prev, next]
        best = jnp.max(cand, axis=1)
        is_best = cand >= best[:, None, :]
        bp = jnp.min(jnp.where(is_best, ids, Tp), axis=1).astype(jnp.int32)  # first argmax
        bps.append(bp)
        mt = m[:, t:t + 1]
        score = jnp.where(mt > 0, best + feats[:, t, :], score)
    score_ref[...] = score + end
    bp_ref[...] = jnp.concatenate([b_[:, None, :] for b_ in bps], axis=1)  # one store


# --------------------------------------------------------------------------- #
# jitted glue: one pallas_call per path + Viterbi back-tracking (plain JAX)
# --------------------------------------------------------------------------- #
@functools.partial(jax.jit, static_argnames=("is_test", "num_heads"))
def forward(params, sentence, tags, mask, epsilon=0.01, is_test=False, num_heads=2):
    p = params["bert"]
    B, S = sentence.shape
    Tp = params["lin_w"].shape[1]
    sent_col = sentence.reshape(B * S, 1).astype(jnp.int32)
    maskf = mask.astype(jnp.float32)

    wargs = (p["word_emb"], p["pos_emb"], p["type_emb"], p["emb_ln_g"], p["emb_ln_b"],
             p["wqkv"], p["bqkv"], p["wo"], p["bo"],
             p["ln1_g"], p["ln1_b"], p["w1"], p["b1"], p["w2"], p["b2"],
             p["ln2_g"], p["ln2_b"],
             params["lstm0_wih"], params["lstm0_whh"], params["lstm0_b"],
             params["lstm1_wih"], params["lstm1_whh"], params["lstm1_b"],
             params["se_w1"], params["se_w2"], params["lin_w"], params["lin_b"],
             params["crf_start"], params["crf_trans"], params["crf_end"])

    if is_test:
        score, bp = _pcall(
            functools.partial(_forward_decode_kernel, num_heads),
            (jax.ShapeDtypeStruct((B, Tp), jnp.float32),
             jax.ShapeDtypeStruct((B, S, Tp), jnp.int32)),
            sent_col, maskf, *wargs)

        lengths = jnp.sum(mask.astype(jnp.int32), axis=1)
        last_idx = lengths - 1
        best_last = jnp.argmax(score, axis=-1).astype(jnp.int32)

        def step(carry, t):
            nxt = jnp.minimum(t + 1, S - 1)
            bp_next = bp[:, nxt, :]                                      # [B, Tp]
            from_bp = jnp.take_along_axis(bp_next, carry[:, None], axis=1)[:, 0]
            cur = jnp.where(t == last_idx, best_last, from_bp)
            valid = t <= last_idx
            out_t = jnp.where(valid, cur, 0)
            new_carry = jnp.where(valid, cur, carry)
            return new_carry, out_t

        ts = jnp.arange(S - 1, -1, -1)
        _, tags_rev = lax.scan(step, best_last, ts)
        decoded = tags_rev[::-1].T                                       # [B, S] (0-padded)
        return decoded, lengths

    nll = _pcall(
        functools.partial(_forward_nll_kernel, num_heads),
        jax.ShapeDtypeStruct((1, 1), jnp.float32),
        sent_col, maskf, tags.astype(jnp.int32), *wargs)
    # TODO(synk): FGM adversarial step (loss.backward + word-embedding perturbation +
    # second backward) needs autograd-driven in-place parameter mutation and has no
    # forward-only Pallas equivalent; total_loss = (loss + perturbed_loss)/2 reduces to `loss`.
    del epsilon
    return nll[0, 0]


# --------------------------------------------------------------------------- #
# deterministic parameter initialization (synthetic — shapes follow __init__)
# LSTM weights are stored pre-fused: per-direction gate columns permuted to (i,f,o,g)
# and the recurrence matrix packed block-diagonally into whh_big (2Hh, 8Hh).
# --------------------------------------------------------------------------- #
def init_params(key, vocab=64, max_pos=32, embedding_dim=32, hidden_dim=32,
                num_layers=2, num_heads=2, ffn_dim=64, tagset_size=5, reduction=16,
                tag_pad=8):
    del num_heads  # passed statically to forward()
    keys = iter(jax.random.split(key, 256))

    def nrm(shape, scale=0.02):
        return (scale * jax.random.normal(next(keys), shape)).astype(jnp.float32)

    def zeros(shape):
        return jnp.zeros(shape, jnp.float32)

    def ones(shape):
        return jnp.ones(shape, jnp.float32)

    def unif(shape):
        return (0.1 * (2.0 * jax.random.uniform(next(keys), shape) - 1.0)).astype(jnp.float32)

    D, F = embedding_dim, ffn_dim

    bert = {
        "word_emb": nrm((vocab, D)),
        "pos_emb": nrm((max_pos, D)),
        "type_emb": nrm((2, D)),
        "emb_ln_g": ones((1, D)),
        "emb_ln_b": zeros((1, D)),
    }
    stacks = {k: [] for k in ("wqkv", "bqkv", "wo", "bo", "ln1_g", "ln1_b",
                              "w1", "b1", "w2", "b2", "ln2_g", "ln2_b")}
    for _ in range(num_layers):
        stacks["wqkv"].append(jnp.concatenate([nrm((D, D)), nrm((D, D)), nrm((D, D))], axis=1))
        stacks["bqkv"].append(zeros((1, 3 * D)))
        stacks["wo"].append(nrm((D, D)))
        stacks["bo"].append(zeros((1, D)))
        stacks["ln1_g"].append(ones((1, D)))
        stacks["ln1_b"].append(zeros((1, D)))
        stacks["w1"].append(nrm((D, F)))
        stacks["b1"].append(zeros((1, F)))
        stacks["w2"].append(nrm((F, D)))
        stacks["b2"].append(zeros((1, D)))
        stacks["ln2_g"].append(ones((1, D)))
        stacks["ln2_b"].append(zeros((1, D)))
    bert.update({k: jnp.stack(v) for k, v in stacks.items()})

    Hh = hidden_dim // 2

    def fuse_bilstm(din):
        # per-direction weights in PyTorch gate order (i, f, g, o); b = b_ih + b_hh fused
        wih_f, whh_f, b_f = nrm((din, 4 * Hh), 0.1), nrm((Hh, 4 * Hh), 0.1), nrm((1, 4 * Hh), 0.1)
        wih_b, whh_b, b_b = nrm((din, 4 * Hh), 0.1), nrm((Hh, 4 * Hh), 0.1), nrm((1, 4 * Hh), 0.1)

        def gblocks(w):
            return {"i": w[..., 0 * Hh:1 * Hh], "f": w[..., 1 * Hh:2 * Hh],
                    "g": w[..., 2 * Hh:3 * Hh], "o": w[..., 3 * Hh:4 * Hh]}

        order = ("i", "f", "o", "g")  # sigmoid gates contiguous, tanh gate last

        def perm(w):
            gb = gblocks(w)
            return jnp.concatenate([gb[k] for k in order], axis=-1)

        wih = jnp.stack([perm(wih_f), perm(wih_b)])                      # (2, din, 4Hh)
        b = jnp.stack([perm(b_f), perm(b_b)])                            # (2, 1, 4Hh)
        gf, gb_ = gblocks(whh_f), gblocks(whh_b)
        Z = jnp.zeros((Hh, Hh), jnp.float32)
        # column layout: [i_f i_b f_f f_b o_f o_b g_f g_b]; rows: [h_f | h_b]
        top = jnp.concatenate([gf["i"], Z, gf["f"], Z, gf["o"], Z, gf["g"], Z], axis=1)
        bot = jnp.concatenate([Z, gb_["i"], Z, gb_["f"], Z, gb_["o"], Z, gb_["g"]], axis=1)
        whh_big = jnp.concatenate([top, bot], axis=0)                    # (2Hh, 8Hh)
        return wih, whh_big, b

    l0_wih, l0_whh, l0_b = fuse_bilstm(embedding_dim)
    l1_wih, l1_whh, l1_b = fuse_bilstm(hidden_dim)

    Hr = max(hidden_dim // reduction, 1)

    # tag dim padded to tag_pad; pad emissions/transitions/start/end carry -1e9 so the
    # CRF forward / Viterbi never select (nor numerically feel) the padding tags.
    lin_w = jnp.concatenate(
        [nrm((hidden_dim, tagset_size), 0.1),
         jnp.zeros((hidden_dim, tag_pad - tagset_size), jnp.float32)], axis=1)
    lin_b = jnp.full((1, tag_pad), NEG, jnp.float32).at[0, :tagset_size].set(0.0)

    def pad_vec(v):
        return jnp.concatenate(
            [v, jnp.full((tag_pad - tagset_size,), NEG, jnp.float32)]).reshape(1, tag_pad)

    crf_trans = jnp.full((tag_pad, tag_pad), NEG, jnp.float32)
    crf_trans = crf_trans.at[:tagset_size, :tagset_size].set(unif((tagset_size, tagset_size)))

    return {
        "bert": bert,
        "lstm0_wih": l0_wih, "lstm0_whh": l0_whh, "lstm0_b": l0_b,
        "lstm1_wih": l1_wih, "lstm1_whh": l1_whh, "lstm1_b": l1_b,
        "se_w1": nrm((hidden_dim, Hr), 0.1),
        "se_w2": nrm((Hr, hidden_dim), 0.1),
        "lin_w": lin_w, "lin_b": lin_b,
        "crf_start": pad_vec(unif((tagset_size,))),
        "crf_end": pad_vec(unif((tagset_size,))),
        "crf_trans": crf_trans,
    }


# --------------------------------------------------------------------------- #
if __name__ == "__main__":
    key = jax.random.PRNGKey(0)
    pkey, dkey = jax.random.split(key)

    B, S = 2, 8
    tag2idx = {"O": 0, "B-DIS": 1, "I-DIS": 2, "B-SYM": 3, "I-SYM": 4}
    params = init_params(pkey, tagset_size=len(tag2idx))

    k1, k2 = jax.random.split(dkey)
    sentence = jax.random.randint(k1, (B, S), 0, 64, dtype=jnp.int32)
    tags = jax.random.randint(k2, (B, S), 0, len(tag2idx), dtype=jnp.int32)
    lengths = jnp.array([8, 6], dtype=jnp.int32)
    mask = (jnp.arange(S)[None, :] < lengths[:, None]).astype(jnp.int32)

    # training-style forward (CRF NLL loss; FGM/backward is a TODO above)
    loss = forward(params, sentence, tags, mask, is_test=False)
    # inference forward (CRF Viterbi decode)
    decoded, dec_lens = forward(params, sentence, tags, mask, is_test=True)

    jax.block_until_ready((loss, decoded, dec_lens))
    print("KERNEL_OK")
</pallas_src>

<mosaic_0001>
module attributes {stable_mosaic.version = 11 : i64} {
  func.func @_forward_nll_kernel(%arg0: i32, %arg1: memref<16x1xi32, #tpu.memory_space<vmem>>, %arg2: memref<2x8xf32, #tpu.memory_space<vmem>>, %arg3: memref<2x8xi32, #tpu.memory_space<vmem>>, %arg4: memref<64x32xf32, #tpu.memory_space<vmem>>, %arg5: memref<32x32xf32, #tpu.memory_space<vmem>>, %arg6: memref<2x32xf32, #tpu.memory_space<vmem>>, %arg7: memref<1x32xf32, #tpu.memory_space<vmem>>, %arg8: memref<1x32xf32, #tpu.memory_space<vmem>>, %arg9: memref<2x32x96xf32, #tpu.memory_space<vmem>>, %arg10: memref<2x1x96xf32, #tpu.memory_space<vmem>>, %arg11: memref<2x32x32xf32, #tpu.memory_space<vmem>>, %arg12: memref<2x1x32xf32, #tpu.memory_space<vmem>>, %arg13: memref<2x1x32xf32, #tpu.memory_space<vmem>>, %arg14: memref<2x1x32xf32, #tpu.memory_space<vmem>>, %arg15: memref<2x32x64xf32, #tpu.memory_space<vmem>>, %arg16: memref<2x1x64xf32, #tpu.memory_space<vmem>>, %arg17: memref<2x64x32xf32, #tpu.memory_space<vmem>>, %arg18: memref<2x1x32xf32, #tpu.memory_space<vmem>>, %arg19: memref<2x1x32xf32, #tpu.memory_space<vmem>>, %arg20: memref<2x1x32xf32, #tpu.memory_space<vmem>>, %arg21: memref<2x32x64xf32, #tpu.memory_space<vmem>>, %arg22: memref<32x128xf32, #tpu.memory_space<vmem>>, %arg23: memref<2x1x64xf32, #tpu.memory_space<vmem>>, %arg24: memref<2x32x64xf32, #tpu.memory_space<vmem>>, %arg25: memref<32x128xf32, #tpu.memory_space<vmem>>, %arg26: memref<2x1x64xf32, #tpu.memory_space<vmem>>, %arg27: memref<32x2xf32, #tpu.memory_space<vmem>>, %arg28: memref<2x32xf32, #tpu.memory_space<vmem>>, %arg29: memref<32x8xf32, #tpu.memory_space<vmem>>, %arg30: memref<1x8xf32, #tpu.memory_space<vmem>>, %arg31: memref<1x8xf32, #tpu.memory_space<vmem>>, %arg32: memref<8x8xf32, #tpu.memory_space<vmem>>, %arg33: memref<1x8xf32, #tpu.memory_space<vmem>>, %arg34: memref<1x1xf32, #tpu.memory_space<vmem>>) attributes {dimension_semantics = [#tpu.dimension_semantics<arbitrary>], iteration_bounds = array<i64: 1>, scalar_prefetch = 0 : i64, scratch_operands = 0 : i64, tpu.core_type = #tpu.core_type<tc>, window_params = [{pipeline_mode = #tpu.pipeline_mode<synchronous>, transform_indices = @transform_0, window_bounds = array<i64: 16, 1>}, {pipeline_mode = #tpu.pipeline_mode<synchronous>, transform_indices = @transform_1, window_bounds = array<i64: 2, 8>}, {pipeline_mode = #tpu.pipeline_mode<synchronous>, transform_indices = @transform_2, window_bounds = array<i64: 2, 8>}, {pipeline_mode = #tpu.pipeline_mode<synchronous>, transform_indices = @transform_3, window_bounds = array<i64: 64, 32>}, {pipeline_mode = #tpu.pipeline_mode<synchronous>, transform_indices = @transform_4, window_bounds = array<i64: 32, 32>}, {pipeline_mode = #tpu.pipeline_mode<synchronous>, transform_indices = @transform_5, window_bounds = array<i64: 2, 32>}, {pipeline_mode = #tpu.pipeline_mode<synchronous>, transform_indices = @transform_6, window_bounds = array<i64: 1, 32>}, {pipeline_mode = #tpu.pipeline_mode<synchronous>, transform_indices = @transform_7, window_bounds = array<i64: 1, 32>}, {pipeline_mode = #tpu.pipeline_mode<synchronous>, transform_indices = @transform_8, window_bounds = array<i64: 2, 32, 96>}, {pipeline_mode = #tpu.pipeline_mode<synchronous>, transform_indices = @transform_9, window_bounds = array<i64: 2, 1, 96>}, {pipeline_mode = #tpu.pipeline_mode<synchronous>, transform_indices = @transform_10, window_bounds = array<i64: 2, 32, 32>}, {pipeline_mode = #tpu.pipeline_mode<synchronous>, transform_indices = @transform_11, window_bounds = array<i64: 2, 1, 32>}, {pipeline_mode = #tpu.pipeline_mode<synchronous>, transform_indices = @transform_12, window_bounds = array<i64: 2, 1, 32>}, {pipeline_mode = #tpu.pipeline_mode<synchronous>, transform_indices = @transform_13, window_bounds = array<i64: 2, 1, 32>}, {pipeline_mode = #tpu.pipeline_mode<synchronous>, transform_indices = @transform_14, window_bounds = array<i64: 2, 32, 64>}, {pipeline_mode = #tpu.pipeline_mode<synchronous>, transform_indices = @transform_15, window_bounds = array<i64: 2, 1, 64>}, {pipeline_mode = #tpu.pipeline_mode<synchronous>, transform_indices = @transform_16, window_bounds = array<i64: 2, 64, 32>}, {pipeline_mode = #tpu.pipeline_mode<synchronous>, transform_indices = @transform_17, window_bounds = array<i64: 2, 1, 32>}, {pipeline_mode = #tpu.pipeline_mode<synchronous>, transform_indices = @transform_18, window_bounds = array<i64: 2, 1, 32>}, {pipeline_mode = #tpu.pipeline_mode<synchronous>, transform_indices = @transform_19, window_bounds = array<i64: 2, 1, 32>}, {pipeline_mode = #tpu.pipeline_mode<synchronous>, transform_indices = @transform_20, window_bounds = array<i64: 2, 32, 64>}, {pipeline_mode = #tpu.pipeline_mode<synchronous>, transform_indices = @transform_21, window_bounds = array<i64: 32, 128>}, {pipeline_mode = #tpu.pipeline_mode<synchronous>, transform_indices = @transform_22, window_bounds = array<i64: 2, 1, 64>}, {pipeline_mode = #tpu.pipeline_mode<synchronous>, transform_indices = @transform_23, window_bounds = array<i64: 2, 32, 64>}, {pipeline_mode = #tpu.pipeline_mode<synchronous>, transform_indices = @transform_24, window_bounds = array<i64: 32, 128>}, {pipeline_mode = #tpu.pipeline_mode<synchronous>, transform_indices = @transform_25, window_bounds = array<i64: 2, 1, 64>}, {pipeline_mode = #tpu.pipeline_mode<synchronous>, transform_indices = @transform_26, window_bounds = array<i64: 32, 2>}, {pipeline_mode = #tpu.pipeline_mode<synchronous>, transform_indices = @transform_27, window_bounds = array<i64: 2, 32>}, {pipeline_mode = #tpu.pipeline_mode<synchronous>, transform_indices = @transform_28, window_bounds = array<i64: 32, 8>}, {pipeline_mode = #tpu.pipeline_mode<synchronous>, transform_indices = @transform_29, window_bounds = array<i64: 1, 8>}, {pipeline_mode = #tpu.pipeline_mode<synchronous>, transform_indices = @transform_30, window_bounds = array<i64: 1, 8>}, {pipeline_mode = #tpu.pipeline_mode<synchronous>, transform_indices = @transform_31, window_bounds = array<i64: 8, 8>}, {pipeline_mode = #tpu.pipeline_mode<synchronous>, transform_indices = @transform_32, window_bounds = array<i64: 1, 8>}, {pipeline_mode = #tpu.pipeline_mode<synchronous>, transform_indices = @transform_33, window_bounds = array<i64: 1, 1>}]} {
    %c0 = arith.constant 0 : index
    %c0_0 = arith.constant 0 : index
    %0 = vector.load %arg1[%c0, %c0_0] : memref<16x1xi32, #tpu.memory_space<vmem>>, vector<16x1xi32>
    %1 = tpu.iota {dimensions = array<i32: 1>} : vector<16x64xi32>
    %2 = vector.broadcast %0 : vector<16x1xi32> to vector<16x64xi32>
    %3 = arith.cmpi eq, %1, %2 : vector<16x64xi32>
    %4 = arith.extui %3 : vector<16x64xi1> to vector<16x64xi32>
    %5 = arith.sitofp %4 : vector<16x64xi32> to vector<16x64xf32>
    %c0_1 = arith.constant 0 : index
    %c0_2 = arith.constant 0 : index
    %6 = vector.load %arg4[%c0_1, %c0_2] : memref<64x32xf32, #tpu.memory_space<vmem>>, vector<64x32xf32>
    %cst = arith.constant dense<0.000000e+00> : vector<16x32xf32>
    %7 = tpu.matmul %5, %6, %cst {dimension_numbers = #tpu.dot_dimension_numbers<[1], [0], [0], [1], [0, 0, 1, 1], [], []>} : vector<16x64xf32>, vector<64x32xf32>, vector<16x32xf32> -> vector<16x32xf32>
    %c0_3 = arith.constant 0 : index
    %c0_4 = arith.constant 0 : index
    %8 = vector.load %arg5[%c0_3, %c0_4] : memref<32x32xf32, #tpu.memory_space<vmem>>, vector<32x32xf32>
    %9 = vector.extract_strided_slice %8 {offsets = [0, 0], sizes = [8, 32], strides = [1, 1]} : vector<32x32xf32> to vector<8x32xf32>
    %c0_5 = arith.constant 0 : index
    %c0_6 = arith.constant 0 : index
    %10 = vector.load %arg6[%c0_5, %c0_6] : memref<2x32xf32, #tpu.memory_space<vmem>>, vector<2x32xf32>
    %11 = vector.extract_strided_slice %10 {offsets = [0, 0], sizes = [1, 32], strides = [1, 1]} : vector<2x32xf32> to vector<1x32xf32>
    %12 = vector.shape_cast %7 : vector<16x32xf32> to vector<2x8x32xf32>
    %13 = vector.shape_cast %9 : vector<8x32xf32> to vector<1x8x32xf32>
    %14 = vector.broadcast %13 : vector<1x8x32xf32> to vector<2x8x32xf32>
    %15 = arith.addf %12, %14 : vector<2x8x32xf32>
    %16 = vector.shape_cast %11 : vector<1x32xf32> to vector<1x1x32xf32>
    %17 = vector.broadcast %16 : vector<1x1x32xf32> to vector<2x8x32xf32>
    %18 = arith.addf %15, %17 : vector<2x8x32xf32>
    %19 = vector.shape_cast %18 : vector<2x8x32xf32> to vector<16x32xf32>
    %c0_7 = arith.constant 0 : index
    %c0_8 = arith.constant 0 : index
    %20 = vector.load %arg7[%c0_7, %c0_8] : memref<1x32xf32, #tpu.memory_space<vmem>>, vector<1x32xf32>
    %c0_9 = arith.constant 0 : index
    %c0_10 = arith.constant 0 : index
    %21 = vector.load %arg8[%c0_9, %c0_10] : memref<1x32xf32, #tpu.memory_space<vmem>>, vector<1x32xf32>
    %cst_11 = arith.constant dense<0.000000e+00> : vector<16xf32>
    %22 = vector.multi_reduction <add>, %19, %cst_11 [1] : vector<16x32xf32> to vector<16xf32>
    %23 = vector.shape_cast %22 : vector<16xf32> to vector<16x1xf32>
    %cst_12 = arith.constant 3.200000e+01 : f32
    %24 = vector.broadcast %cst_12 : f32 to vector<16x1xf32>
    %25 = arith.divf %23, %24 : vector<16x1xf32>
    %26 = arith.mulf %19, %19 : vector<16x32xf32>
    %cst_13 = arith.constant dense<0.000000e+00> : vector<16xf32>
    %27 = vector.multi_reduction <add>, %26, %cst_13 [1] : vector<16x32xf32> to vector<16xf32>
    %28 = vector.shape_cast %27 : vector<16xf32> to vector<16x1xf32>
    %cst_14 = arith.constant 3.200000e+01 : f32
    %29 = vector.broadcast %cst_14 : f32 to vector<16x1xf32>
    %30 = arith.divf %28, %29 : vector<16x1xf32>
    %31 = arith.mulf %25, %25 : vector<16x1xf32>
    %32 = arith.subf %30, %31 : vector<16x1xf32>
    %cst_15 = arith.constant 0.000000e+00 : f32
    %33 = vector.broadcast %cst_15 : f32 to vector<16x1xf32>
    %34 = arith.maximumf %32, %33 : vector<16x1xf32>
    %35 = vector.broadcast %25 : vector<16x1xf32> to vector<16x32xf32>
    %36 = arith.subf %19, %35 : vector<16x32xf32>
    %cst_16 = arith.constant 9.99999996E-13 : f32
    %37 = vector.broadcast %cst_16 : f32 to vector<16x1xf32>
    %38 = arith.addf %34, %37 : vector<16x1xf32>
    %39 = math.rsqrt %38 : vector<16x1xf32>
    %40 = vector.broadcast %39 : vector<16x1xf32> to vector<16x32xf32>
    %41 = arith.mulf %36, %40 : vector<16x32xf32>
    %42 = vector.broadcast %20 : vector<1x32xf32> to vector<16x32xf32>
    %43 = arith.mulf %41, %42 : vector<16x32xf32>
    %44 = vector.broadcast %21 : vector<1x32xf32> to vector<16x32xf32>
    %45 = arith.addf %43, %44 : vector<16x32xf32>
    %c0_17 = arith.constant 0 : index
    %c0_18 = arith.constant 0 : index
    %46 = vector.load %arg2[%c0_17, %c0_18] : memref<2x8xf32, #tpu.memory_space<vmem>>, vector<2x8xf32>
    %cst_19 = arith.constant 1.000000e+00 : f32
    %47 = vector.broadcast %cst_19 : f32 to vector<2x8xf32>
    %48 = arith.subf %46, %47 : vector<2x8xf32>
    %cst_20 = arith.constant 1.000000e+09 : f32
    %49 = vector.broadcast %cst_20 : f32 to vector<2x8xf32>
    %50 = arith.mulf %48, %49 : vector<2x8xf32>
    %51 = vector.shape_cast %50 : vector<2x8xf32> to vector<2x1x8xf32>
    %c0_21 = arith.constant 0 : index
    %c0_22 = arith.constant 0 : index
    %c0_23 = arith.constant 0 : index
    %52 = vector.load %arg9[%c0_21, %c0_22, %c0_23] : memref<2x32x96xf32, #tpu.memory_space<vmem>>, vector<1x32x96xf32>
    %53 = vector.shape_cast %52 : vector<1x32x96xf32> to vector<32x96xf32>
    %cst_24 = arith.constant dense<0.000000e+00> : vector<16x96xf32>
    %54 = tpu.matmul %45, %53, %cst_24 {dimension_numbers = #tpu.dot_dimension_numbers<[1], [0], [0], [1], [0, 0, 1, 1], [], []>} : vector<16x32xf32>, vector<32x96xf32>, vector<16x96xf32> -> vector<16x96xf32>
    %c0_25 = arith.constant 0 : index
    %c0_26 = arith.constant 0 : index
    %c0_27 = arith.constant 0 : index
    %55 = vector.load %arg10[%c0_25, %c0_26, %c0_27] : memref<2x1x96xf32, #tpu.memory_space<vmem>>, vector<1x1x96xf32>
    %56 = vector.shape_cast %55 : vector<1x1x96xf32> to vector<1x96xf32>
    %57 = vector.broadcast %56 : vector<1x96xf32> to vector<16x96xf32>
    %58 = arith.addf %54, %57 : vector<16x96xf32>
    %59 = vector.extract_strided_slice %58 {offsets = [0, 0], sizes = [16, 16], strides = [1, 1]} : vector<16x96xf32> to vector<16x16xf32>
    %cst_28 = arith.constant 2.500000e-01 : f32
    %60 = vector.broadcast %cst_28 : f32 to vector<16x16xf32>
    %61 = arith.mulf %59, %60 : vector<16x16xf32>
    %62 = vector.shape_cast %61 : vector<16x16xf32> to vector<2x8x16xf32>
    %63 = vector.extract_strided_slice %58 {offsets = [0, 32], sizes = [16, 16], strides = [1, 1]} : vector<16x96xf32> to vector<16x16xf32>
    %64 = vector.shape_cast %63 : vector<16x16xf32> to vector<2x8x16xf32>
    %65 = vector.extract_strided_slice %58 {offsets = [0, 64], sizes = [16, 16], strides = [1, 1]} : vector<16x96xf32> to vector<16x16xf32>
    %66 = vector.shape_cast %65 : vector<16x16xf32> to vector<2x8x16xf32>
    "tpu.trace_start"() <{level = 10 : i32, message = "bqd,bkd->bqk"}> : () -> ()
    %cst_29 = arith.constant dense<0.000000e+00> : vector<2x8x8xf32>
    %67 = tpu.matmul %62, %64, %cst_29 {dimension_numbers = #tpu.dot_dimension_numbers<[2], [2], [1], [1], [0, 0, 0, 1, 1, 1], [0], [0]>} : vector<2x8x16xf32>, vector<2x8x16xf32>, vector<2x8x8xf32> -> vector<2x8x8xf32>
    "tpu.trace_stop"() : () -> ()
    %68 = vector.broadcast %51 : vector<2x1x8xf32> to vector<2x8x8xf32>
    %69 = arith.addf %67, %68 : vector<2x8x8xf32>
    %cst_30 = arith.constant dense<0xFF800000> : vector<2x8xf32>
    %70 = vector.multi_reduction <maximumf>, %69, %cst_30 [2] : vector<2x8x8xf32> to vector<2x8xf32>
    %71 = vector.shape_cast %70 : vector<2x8xf32> to vector<2x8x1xf32>
    %72 = vector.broadcast %71 : vector<2x8x1xf32> to vector<2x8x8xf32>
    %73 = arith.subf %69, %72 : vector<2x8x8xf32>
    %74 = math.exp %73 : vector<2x8x8xf32>
    %cst_31 = arith.constant dense<0.000000e+00> : vector<2x8xf32>
    %75 = vector.multi_reduction <add>, %74, %cst_31 [2] : vector<2x8x8xf32> to vector<2x8xf32>
    %76 = vector.shape_cast %75 : vector<2x8xf32> to vector<2x8x1xf32>
    %77 = tpu.reciprocal %76 {approx = true} : vector<2x8x1xf32> -> vector<2x8x1xf32>
    %78 = vector.broadcast %77 : vector<2x8x1xf32> to vector<2x8x8xf32>
    %79 = arith.mulf %74, %78 : vector<2x8x8xf32>
    "tpu.trace_start"() <{level = 10 : i32, message = "bqk,bkd->bqd"}> : () -> ()
    %cst_32 = arith.constant dense<0.000000e+00> : vector<2x8x16xf32>
    %80 = tpu.matmul %79, %66, %cst_32 {dimension_numbers = #tpu.dot_dimension_numbers<[2], [1], [1], [2], [0, 0, 0, 1, 1, 2], [0], [0]>} : vector<2x8x8xf32>, vector<2x8x16xf32>, vector<2x8x16xf32> -> vector<2x8x16xf32>
    "tpu.trace_stop"() : () -> ()
    %81 = vector.extract_strided_slice %58 {offsets = [0, 16], sizes = [16, 16], strides = [1, 1]} : vector<16x96xf32> to vector<16x16xf32>
    %cst_33 = arith.constant 2.500000e-01 : f32
    %82 = vector.broadcast %cst_33 : f32 to vector<16x16xf32>
    %83 = arith.mulf %81, %82 : vector<16x16xf32>
    %84 = vector.shape_cast %83 : vector<16x16xf32> to vector<2x8x16xf32>
    %85 = vector.extract_strided_slice %58 {offsets = [0, 48], sizes = [16, 16], strides = [1, 1]} : vector<16x96xf32> to vector<16x16xf32>
    %86 = vector.shape_cast %85 : vector<16x16xf32> to vector<2x8x16xf32>
    %87 = vector.extract_strided_slice %58 {offsets = [0, 80], sizes = [16, 16], strides = [1, 1]} : vector<16x96xf32> to vector<16x16xf32>
    %88 = vector.shape_cast %87 : vector<16x16xf32> to vector<2x8x16xf32>
    "tpu.trace_start"() <{level = 10 : i32, message = "bqd,bkd->bqk"}> : () -> ()
    %cst_34 = arith.constant dense<0.000000e+00> : vector<2x8x8xf32>
    %89 = tpu.matmul %84, %86, %cst_34 {dimension_numbers = #tpu.dot_dimension_numbers<[2], [2], [1], [1], [0, 0, 0, 1, 1, 1], [0], [0]>} : vector<2x8x16xf32>, vector<2x8x16xf32>, vector<2x8x8xf32> -> vector<2x8x8xf32>
    "tpu.trace_stop"() : () -> ()
    %90 = vector.broadcast %51 : vector<2x1x8xf32> to vector<2x8x8xf32>
    %91 = arith.addf %89, %90 : vector<2x8x8xf32>
    %cst_35 = arith.constant dense<0xFF800000> : vector<2x8xf32>
    %92 = vector.multi_reduction <maximumf>, %91, %cst_35 [2] : vector<2x8x8xf32> to vector<2x8xf32>
    %93 = vector.shape_cast %92 : vector<2x8xf32> to vector<2x8x1xf32>
    %94 = vector.broadcast %93 : vector<2x8x1xf32> to vector<2x8x8xf32>
    %95 = arith.subf %91, %94 : vector<2x8x8xf32>
    %96 = math.exp %95 : vector<2x8x8xf32>
    %cst_36 = arith.constant dense<0.000000e+00> : vector<2x8xf32>
    %97 = vector.multi_reduction <add>, %96, %cst_36 [2] : vector<2x8x8xf32> to vector<2x8xf32>
    %98 = vector.shape_cast %97 : vector<2x8xf32> to vector<2x8x1xf32>
    %99 = tpu.reciprocal %98 {approx = true} : vector<2x8x1xf32> -> vector<2x8x1xf32>
    %100 = vector.broadcast %99 : vector<2x8x1xf32> to vector<2x8x8xf32>
    %101 = arith.mulf %96, %100 : vector<2x8x8xf32>
    "tpu.trace_start"() <{level = 10 : i32, message = "bqk,bkd->bqd"}> : () -> ()
    %cst_37 = arith.constant dense<0.000000e+00> : vector<2x8x16xf32>
    %102 = tpu.matmul %101, %88, %cst_37 {dimension_numbers = #tpu.dot_dimension_numbers<[2], [1], [1], [2], [0, 0, 0, 1, 1, 2], [0], [0]>} : vector<2x8x8xf32>, vector<2x8x16xf32>, vector<2x8x16xf32> -> vector<2x8x16xf32>
    "tpu.trace_stop"() : () -> ()
    %103 = tpu.concatenate %80, %102 in 2 : vector<2x8x16xf32>, vector<2x8x16xf32> -> vector<2x8x32xf32>
    %104 = vector.shape_cast %103 : vector<2x8x32xf32> to vector<16x32xf32>
    %c0_38 = arith.constant 0 : index
    %c0_39 = arith.constant 0 : index
    %c0_40 = arith.constant 0 : index
    %105 = vector.load %arg11[%c0_38, %c0_39, %c0_40] : memref<2x32x32xf32, #tpu.memory_space<vmem>>, vector<1x32x32xf32>
    %106 = vector.shape_cast %105 : vector<1x32x32xf32> to vector<32x32xf32>
    %cst_41 = arith.constant dense<0.000000e+00> : vector<16x32xf32>
    %107 = tpu.matmul %104, %106, %cst_41 {dimension_numbers = #tpu.dot_dimension_numbers<[1], [0], [0], [1], [0, 0, 1, 1], [], []>} : vector<16x32xf32>, vector<32x32xf32>, vector<16x32xf32> -> vector<16x32xf32>
    %c0_42 = arith.constant 0 : index
    %c0_43 = arith.constant 0 : index
    %c0_44 = arith.constant 0 : index
    %108 = vector.load %arg12[%c0_42, %c0_43, %c0_44] : memref<2x1x32xf32, #tpu.memory_space<vmem>>, vector<1x1x32xf32>
    %109 = vector.shape_cast %108 : vector<1x1x32xf32> to vector<1x32xf32>
    %110 = vector.broadcast %109 : vector<1x32xf32> to vector<16x32xf32>
    %111 = arith.addf %107, %110 : vector<16x32xf32>
    %112 = arith.addf %45, %111 : vector<16x32xf32>
    %c0_45 = arith.constant 0 : index
    %c0_46 = arith.constant 0 : index
    %c0_47 = arith.constant 0 : index
    %113 = vector.load %arg13[%c0_45, %c0_46, %c0_47] : memref<2x1x32xf32, #tpu.memory_space<vmem>>, vector<1x1x32xf32>
    %114 = vector.shape_cast %113 : vector<1x1x32xf32> to vector<1x32xf32>
    %c0_48 = arith.constant 0 : index
    %c0_49 = arith.constant 0 : index
    %c0_50 = arith.constant 0 : index
    %115 = vector.load %arg14[%c0_48, %c0_49, %c0_50] : memref<2x1x32xf32, #tpu.memory_space<vmem>>, vector<1x1x32xf32>
    %116 = vector.shape_cast %115 : vector<1x1x32xf32> to vector<1x32xf32>
    %cst_51 = arith.constant dense<0.000000e+00> : vector<16xf32>
    %117 = vector.multi_reduction <add>, %112, %cst_51 [1] : vector<16x32xf32> to vector<16xf32>
    %118 = vector.shape_cast %117 : vector<16xf32> to vector<16x1xf32>
    %cst_52 = arith.constant 3.200000e+01 : f32
    %119 = vector.broadcast %cst_52 : f32 to vector<16x1xf32>
    %120 = arith.divf %118, %119 : vector<16x1xf32>
    %121 = arith.mulf %112, %112 : vector<16x32xf32>
    %cst_53 = arith.constant dense<0.000000e+00> : vector<16xf32>
    %122 = vector.multi_reduction <add>, %121, %cst_53 [1] : vector<16x32xf32> to vector<16xf32>
    %123 = vector.shape_cast %122 : vector<16xf32> to vector<16x1xf32>
    %cst_54 = arith.constant 3.200000e+01 : f32
    %124 = vector.broadcast %cst_54 : f32 to vector<16x1xf32>
    %125 = arith.divf %123, %124 : vector<16x1xf32>
    %126 = arith.mulf %120, %120 : vector<16x1xf32>
    %127 = arith.subf %125, %126 : vector<16x1xf32>
    %cst_55 = arith.constant 0.000000e+00 : f32
    %128 = vector.broadcast %cst_55 : f32 to vector<16x1xf32>
    %129 = arith.maximumf %127, %128 : vector<16x1xf32>
    %130 = vector.broadcast %120 : vector<16x1xf32> to vector<16x32xf32>
    %131 = arith.subf %112, %130 : vector<16x32xf32>
    %cst_56 = arith.constant 9.99999996E-13 : f32
    %132 = vector.broadcast %cst_56 : f32 to vector<16x1xf32>
    %133 = arith.addf %129, %132 : vector<16x1xf32>
    %134 = math.rsqrt %133 : vector<16x1xf32>
    %135 = vector.broadcast %134 : vector<16x1xf32> to vector<16x32xf32>
    %136 = arith.mulf %131, %135 : vector<16x32xf32>
    %137 = vector.broadcast %114 : vector<1x32xf32> to vector<16x32xf32>
    %138 = arith.mulf %136, %137 : vector<16x32xf32>
    %139 = vector.broadcast %116 : vector<1x32xf32> to vector<16x32xf32>
    %140 = arith.addf %138, %139 : vector<16x32xf32>
    %c0_57 = arith.constant 0 : index
    %c0_58 = arith.constant 0 : index
    %c0_59 = arith.constant 0 : index
    %141 = vector.load %arg15[%c0_57, %c0_58, %c0_59] : memref<2x32x64xf32, #tpu.memory_space<vmem>>, vector<1x32x64xf32>
    %142 = vector.shape_cast %141 : vector<1x32x64xf32> to vector<32x64xf32>
    %cst_60 = arith.constant dense<0.000000e+00> : vector<16x64xf32>
    %143 = tpu.matmul %140, %142, %cst_60 {dimension_numbers = #tpu.dot_dimension_numbers<[1], [0], [0], [1], [0, 0, 1, 1], [], []>} : vector<16x32xf32>, vector<32x64xf32>, vector<16x64xf32> -> vector<16x64xf32>
    %c0_61 = arith.constant 0 : index
    %c0_62 = arith.constant 0 : index
    %c0_63 = arith.constant 0 : index
    %144 = vector.load %arg16[%c0_61, %c0_62, %c0_63] : memref<2x1x64xf32, #tpu.memory_space<vmem>>, vector<1x1x64xf32>
    %145 = vector.shape_cast %144 : vector<1x1x64xf32> to vector<1x64xf32>
    %146 = vector.broadcast %145 : vector<1x64xf32> to vector<16x64xf32>
    %147 = arith.addf %143, %146 : vector<16x64xf32>
    %cst_64 = arith.constant 5.000000e-01 : f32
    %148 = vector.broadcast %cst_64 : f32 to vector<16x64xf32>
    %149 = arith.mulf %148, %147 : vector<16x64xf32>
    %cst_65 = arith.constant 4.471500e-02 : f32
    %150 = vector.broadcast %cst_65 : f32 to vector<16x64xf32>
    %151 = arith.mulf %150, %147 : vector<16x64xf32>
    %152 = arith.mulf %151, %147 : vector<16x64xf32>
    %153 = arith.mulf %152, %147 : vector<16x64xf32>
    %154 = arith.addf %147, %153 : vector<16x64xf32>
    %cst_66 = arith.constant 0.797884583 : f32
    %155 = vector.broadcast %cst_66 : f32 to vector<16x64xf32>
    %156 = arith.mulf %155, %154 : vector<16x64xf32>
    %157 = math.tanh %156 : vector<16x64xf32>
    %cst_67 = arith.constant 1.000000e+00 : f32
    %158 = vector.broadcast %cst_67 : f32 to vector<16x64xf32>
    %159 = arith.addf %158, %157 : vector<16x64xf32>
    %160 = arith.mulf %149, %159 : vector<16x64xf32>
    %c0_68 = arith.constant 0 : index
    %c0_69 = arith.constant 0 : index
    %c0_70 = arith.constant 0 : index
    %161 = vector.load %arg17[%c0_68, %c0_69, %c0_70] : memref<2x64x32xf32, #tpu.memory_space<vmem>>, vector<1x64x32xf32>
    %162 = vector.shape_cast %161 : vector<1x64x32xf32> to vector<64x32xf32>
    %cst_71 = arith.constant dense<0.000000e+00> : vector<16x32xf32>
    %163 = tpu.matmul %160, %162, %cst_71 {dimension_numbers = #tpu.dot_dimension_numbers<[1], [0], [0], [1], [0, 0, 1, 1], [], []>} : vector<16x64xf32>, vector<64x32xf32>, vector<16x32xf32> -> vector<16x32xf32>
    %c0_72 = arith.constant 0 : index
    %c0_73 = arith.constant 0 : index
    %c0_74 = arith.constant 0 : index
    %164 = vector.load %arg18[%c0_72, %c0_73, %c0_74] : memref<2x1x32xf32, #tpu.memory_space<vmem>>, vector<1x1x32xf32>
    %165 = vector.shape_cast %164 : vector<1x1x32xf32> to vector<1x32xf32>
    %166 = vector.broadcast %165 : vector<1x32xf32> to vector<16x32xf32>
    %167 = arith.addf %163, %166 : vector<16x32xf32>
    %168 = arith.addf %140, %167 : vector<16x32xf32>
    %c0_75 = arith.constant 0 : index
    %c0_76 = arith.constant 0 : index
    %c0_77 = arith.constant 0 : index
    %169 = vector.load %arg19[%c0_75, %c0_76, %c0_77] : memref<2x1x32xf32, #tpu.memory_space<vmem>>, vector<1x1x32xf32>
    %170 = vector.shape_cast %169 : vector<1x1x32xf32> to vector<1x32xf32>
    %c0_78 = arith.constant 0 : index
    %c0_79 = arith.constant 0 : index
    %c0_80 = arith.constant 0 : index
    %171 = vector.load %arg20[%c0_78, %c0_79, %c0_80] : memref<2x1x32xf32, #tpu.memory_space<vmem>>, vector<1x1x32xf32>
    %172 = vector.shape_cast %171 : vector<1x1x32xf32> to vector<1x32xf32>
    %cst_81 = arith.constant dense<0.000000e+00> : vector<16xf32>
    %173 = vector.multi_reduction <add>, %168, %cst_81 [1] : vector<16x32xf32> to vector<16xf32>
    %174 = vector.shape_cast %173 : vector<16xf32> to vector<16x1xf32>
    %cst_82 = arith.constant 3.200000e+01 : f32
    %175 = vector.broadcast %cst_82 : f32 to vector<16x1xf32>
    %176 = arith.divf %174, %175 : vector<16x1xf32>
    %177 = arith.mulf %168, %168 : vector<16x32xf32>
    %cst_83 = arith.constant dense<0.000000e+00> : vector<16xf32>
    %178 = vector.multi_reduction <add>, %177, %cst_83 [1] : vector<16x32xf32> to vector<16xf32>
    %179 = vector.shape_cast %178 : vector<16xf32> to vector<16x1xf32>
    %cst_84 = arith.constant 3.200000e+01 : f32
    %180 = vector.broadcast %cst_84 : f32 to vector<16x1xf32>
    %181 = arith.divf %179, %180 : vector<16x1xf32>
    %182 = arith.mulf %176, %176 : vector<16x1xf32>
    %183 = arith.subf %181, %182 : vector<16x1xf32>
    %cst_85 = arith.constant 0.000000e+00 : f32
    %184 = vector.broadcast %cst_85 : f32 to vector<16x1xf32>
    %185 = arith.maximumf %183, %184 : vector<16x1xf32>
    %186 = vector.broadcast %176 : vector<16x1xf32> to vector<16x32xf32>
    %187 = arith.subf %168, %186 : vector<16x32xf32>
    %cst_86 = arith.constant 9.99999996E-13 : f32
    %188 = vector.broadcast %cst_86 : f32 to vector<16x1xf32>
    %189 = arith.addf %185, %188 : vector<16x1xf32>
    %190 = math.rsqrt %189 : vector<16x1xf32>
    %191 = vector.broadcast %190 : vector<16x1xf32> to vector<16x32xf32>
    %192 = arith.mulf %187, %191 : vector<16x32xf32>
    %193 = vector.broadcast %170 : vector<1x32xf32> to vector<16x32xf32>
    %194 = arith.mulf %192, %193 : vector<16x32xf32>
    %195 = vector.broadcast %172 : vector<1x32xf32> to vector<16x32xf32>
    %196 = arith.addf %194, %195 : vector<16x32xf32>
    %c1 = arith.constant 1 : index
    %c0_87 = arith.constant 0 : index
    %c0_88 = arith.constant 0 : index
    %197 = vector.load %arg9[%c1, %c0_87, %c0_88] : memref<2x32x96xf32, #tpu.memory_space<vmem>>, vector<1x32x96xf32>
    %198 = vector.shape_cast %197 : vector<1x32x96xf32> to vector<32x96xf32>
    %cst_89 = arith.constant dense<0.000000e+00> : vector<16x96xf32>
    %199 = tpu.matmul %196, %198, %cst_89 {dimension_numbers = #tpu.dot_dimension_numbers<[1], [0], [0], [1], [0, 0, 1, 1], [], []>} : vector<16x32xf32>, vector<32x96xf32>, vector<16x96xf32> -> vector<16x96xf32>
    %c1_90 = arith.constant 1 : index
    %c0_91 = arith.constant 0 : index
    %c0_92 = arith.constant 0 : index
    %200 = vector.load %arg10[%c1_90, %c0_91, %c0_92] : memref<2x1x96xf32, #tpu.memory_space<vmem>>, vector<1x1x96xf32>
    %201 = vector.shape_cast %200 : vector<1x1x96xf32> to vector<1x96xf32>
    %202 = vector.broadcast %201 : vector<1x96xf32> to vector<16x96xf32>
    %203 = arith.addf %199, %202 : vector<16x96xf32>
    %204 = vector.extract_strided_slice %203 {offsets = [0, 0], sizes = [16, 16], strides = [1, 1]} : vector<16x96xf32> to vector<16x16xf32>
    %cst_93 = arith.constant 2.500000e-01 : f32
    %205 = vector.broadcast %cst_93 : f32 to vector<16x16xf32>
    %206 = arith.mulf %204, %205 : vector<16x16xf32>
    %207 = vector.shape_cast %206 : vector<16x16xf32> to vector<2x8x16xf32>
    %208 = vector.extract_strided_slice %203 {offsets = [0, 32], sizes = [16, 16], strides = [1, 1]} : vector<16x96xf32> to vector<16x16xf32>
    %209 = vector.shape_cast %208 : vector<16x16xf32> to vector<2x8x16xf32>
    %210 = vector.extract_strided_slice %203 {offsets = [0, 64], sizes = [16, 16], strides = [1, 1]} : vector<16x96xf32> to vector<16x16xf32>
    %211 = vector.shape_cast %210 : vector<16x16xf32> to vector<2x8x16xf32>
    "tpu.trace_start"() <{level = 10 : i32, message = "bqd,bkd->bqk"}> : () -> ()
    %cst_94 = arith.constant dense<0.000000e+00> : vector<2x8x8xf32>
    %212 = tpu.matmul %207, %209, %cst_94 {dimension_numbers = #tpu.dot_dimension_numbers<[2], [2], [1], [1], [0, 0, 0, 1, 1, 1], [0], [0]>} : vector<2x8x16xf32>, vector<2x8x16xf32>, vector<2x8x8xf32> -> vector<2x8x8xf32>
    "tpu.trace_stop"() : () -> ()
    %213 = vector.broadcast %51 : vector<2x1x8xf32> to vector<2x8x8xf32>
    %214 = arith.addf %212, %213 : vector<2x8x8xf32>
    %cst_95 = arith.constant dense<0xFF800000> : vector<2x8xf32>
    %215 = vector.multi_reduction <maximumf>, %214, %cst_95 [2] : vector<2x8x8xf32> to vector<2x8xf32>
    %216 = vector.shape_cast %215 : vector<2x8xf32> to vector<2x8x1xf32>
    %217 = vector.broadcast %216 : vector<2x8x1xf32> to vector<2x8x8xf32>
    %218 = arith.subf %214, %217 : vector<2x8x8xf32>
    %219 = math.exp %218 : vector<2x8x8xf32>
    %cst_96 = arith.constant dense<0.000000e+00> : vector<2x8xf32>
    %220 = vector.multi_reduction <add>, %219, %cst_96 [2] : vector<2x8x8xf32> to vector<2x8xf32>
    %221 = vector.shape_cast %220 : vector<2x8xf32> to vector<2x8x1xf32>
    %222 = tpu.reciprocal %221 {approx = true} : vector<2x8x1xf32> -> vector<2x8x1xf32>
    %223 = vector.broadcast %222 : vector<2x8x1xf32> to vector<2x8x8xf32>
    %224 = arith.mulf %219, %223 : vector<2x8x8xf32>
    "tpu.trace_start"() <{level = 10 : i32, message = "bqk,bkd->bqd"}> : () -> ()
    %cst_97 = arith.constant dense<0.000000e+00> : vector<2x8x16xf32>
    %225 = tpu.matmul %224, %211, %cst_97 {dimension_numbers = #tpu.dot_dimension_numbers<[2], [1], [1], [2], [0, 0, 0, 1, 1, 2], [0], [0]>} : vector<2x8x8xf32>, vector<2x8x16xf32>, vector<2x8x16xf32> -> vector<2x8x16xf32>
    "tpu.trace_stop"() : () -> ()
    %226 = vector.extract_strided_slice %203 {offsets = [0, 16], sizes = [16, 16], strides = [1, 1]} : vector<16x96xf32> to vector<16x16xf32>
    %cst_98 = arith.constant 2.500000e-01 : f32
    %227 = vector.broadcast %cst_98 : f32 to vector<16x16xf32>
    %228 = arith.mulf %226, %227 : vector<16x16xf32>
    %229 = vector.shape_cast %228 : vector<16x16xf32> to vector<2x8x16xf32>
    %230 = vector.extract_strided_slice %203 {offsets = [0, 48], sizes = [16, 16], strides = [1, 1]} : vector<16x96xf32> to vector<16x16xf32>
    %231 = vector.shape_cast %230 : vector<16x16xf32> to vector<2x8x16xf32>
    %232 = vector.extract_strided_slice %203 {offsets = [0, 80], sizes = [16, 16], strides = [1, 1]} : vector<16x96xf32> to vector<16x16xf32>
    %233 = vector.shape_cast %232 : vector<16x16xf32> to vector<2x8x16xf32>
    "tpu.trace_start"() <{level = 10 : i32, message = "bqd,bkd->bqk"}> : () -> ()
    %cst_99 = arith.constant dense<0.000000e+00> : vector<2x8x8xf32>
    %234 = tpu.matmul %229, %231, %cst_99 {dimension_numbers = #tpu.dot_dimension_numbers<[2], [2], [1], [1], [0, 0, 0, 1, 1, 1], [0], [0]>} : vector<2x8x16xf32>, vector<2x8x16xf32>, vector<2x8x8xf32> -> vector<2x8x8xf32>
    "tpu.trace_stop"() : () -> ()
    %235 = vector.broadcast %51 : vector<2x1x8xf32> to vector<2x8x8xf32>
    %236 = arith.addf %234, %235 : vector<2x8x8xf32>
    %cst_100 = arith.constant dense<0xFF800000> : vector<2x8xf32>
    %237 = vector.multi_reduction <maximumf>, %236, %cst_100 [2] : vector<2x8x8xf32> to vector<2x8xf32>
    %238 = vector.shape_cast %237 : vector<2x8xf32> to vector<2x8x1xf32>
    %239 = vector.broadcast %238 : vector<2x8x1xf32> to vector<2x8x8xf32>
    %240 = arith.subf %236, %239 : vector<2x8x8xf32>
    %241 = math.exp %240 : vector<2x8x8xf32>
    %cst_101 = arith.constant dense<0.000000e+00> : vector<2x8xf32>
    %242 = vector.multi_reduction <add>, %241, %cst_101 [2] : vector<2x8x8xf32> to vector<2x8xf32>
    %243 = vector.shape_cast %242 : vector<2x8xf32> to vector<2x8x1xf32>
    %244 = tpu.reciprocal %243 {approx = true} : vector<2x8x1xf32> -> vector<2x8x1xf32>
    %245 = vector.broadcast %244 : vector<2x8x1xf32> to vector<2x8x8xf32>
    %246 = arith.mulf %241, %245 : vector<2x8x8xf32>
    "tpu.trace_start"() <{level = 10 : i32, message = "bqk,bkd->bqd"}> : () -> ()
    %cst_102 = arith.constant dense<0.000000e+00> : vector<2x8x16xf32>
    %247 = tpu.matmul %246, %233, %cst_102 {dimension_numbers = #tpu.dot_dimension_numbers<[2], [1], [1], [2], [0, 0, 0, 1, 1, 2], [0], [0]>} : vector<2x8x8xf32>, vector<2x8x16xf32>, vector<2x8x16xf32> -> vector<2x8x16xf32>
    "tpu.trace_stop"() : () -> ()
    %248 = tpu.concatenate %225, %247 in 2 : vector<2x8x16xf32>, vector<2x8x16xf32> -> vector<2x8x32xf32>
    %249 = vector.shape_cast %248 : vector<2x8x32xf32> to vector<16x32xf32>
    %c1_103 = arith.constant 1 : index
    %c0_104 = arith.constant 0 : index
    %c0_105 = arith.constant 0 : index
    %250 = vector.load %arg11[%c1_103, %c0_104, %c0_105] : memref<2x32x32xf32, #tpu.memory_space<vmem>>, vector<1x32x32xf32>
    %251 = vector.shape_cast %250 : vector<1x32x32xf32> to vector<32x32xf32>
    %cst_106 = arith.constant dense<0.000000e+00> : vector<16x32xf32>
    %252 = tpu.matmul %249, %251, %cst_106 {dimension_numbers = #tpu.dot_dimension_numbers<[1], [0], [0], [1], [0, 0, 1, 1], [], []>} : vector<16x32xf32>, vector<32x32xf32>, vector<16x32xf32> -> vector<16x32xf32>
    %c1_107 = arith.constant 1 : index
    %c0_108 = arith.constant 0 : index
    %c0_109 = arith.constant 0 : index
    %253 = vector.load %arg12[%c1_107, %c0_108, %c0_109] : memref<2x1x32xf32, #tpu.memory_space<vmem>>, vector<1x1x32xf32>
    %254 = vector.shape_cast %253 : vector<1x1x32xf32> to vector<1x32xf32>
    %255 = vector.broadcast %254 : vector<1x32xf32> to vector<16x32xf32>
    %256 = arith.addf %252, %255 : vector<16x32xf32>
    %257 = arith.addf %196, %256 : vector<16x32xf32>
    %c1_110 = arith.constant 1 : index
    %c0_111 = arith.constant 0 : index
    %c0_112 = arith.constant 0 : index
    %258 = vector.load %arg13[%c1_110, %c0_111, %c0_112] : memref<2x1x32xf32, #tpu.memory_space<vmem>>, vector<1x1x32xf32>
    %259 = vector.shape_cast %258 : vector<1x1x32xf32> to vector<1x32xf32>
    %c1_113 = arith.constant 1 : index
    %c0_114 = arith.constant 0 : index
    %c0_115 = arith.constant 0 : index
    %260 = vector.load %arg14[%c1_113, %c0_114, %c0_115] : memref<2x1x32xf32, #tpu.memory_space<vmem>>, vector<1x1x32xf32>
    %261 = vector.shape_cast %260 : vector<1x1x32xf32> to vector<1x32xf32>
    %cst_116 = arith.constant dense<0.000000e+00> : vector<16xf32>
    %262 = vector.multi_reduction <add>, %257, %cst_116 [1] : vector<16x32xf32> to vector<16xf32>
    %263 = vector.shape_cast %262 : vector<16xf32> to vector<16x1xf32>
    %cst_117 = arith.constant 3.200000e+01 : f32
    %264 = vector.broadcast %cst_117 : f32 to vector<16x1xf32>
    %265 = arith.divf %263, %264 : vector<16x1xf32>
    %266 = arith.mulf %257, %257 : vector<16x32xf32>
    %cst_118 = arith.constant dense<0.000000e+00> : vector<16xf32>
    %267 = vector.multi_reduction <add>, %266, %cst_118 [1] : vector<16x32xf32> to vector<16xf32>
    %268 = vector.shape_cast %267 : vector<16xf32> to vector<16x1xf32>
    %cst_119 = arith.constant 3.200000e+01 : f32
    %269 = vector.broadcast %cst_119 : f32 to vector<16x1xf32>
    %270 = arith.divf %268, %269 : vector<16x1xf32>
    %271 = arith.mulf %265, %265 : vector<16x1xf32>
    %272 = arith.subf %270, %271 : vector<16x1xf32>
    %cst_120 = arith.constant 0.000000e+00 : f32
    %273 = vector.broadcast %cst_120 : f32 to vector<16x1xf32>
    %274 = arith.maximumf %272, %273 : vector<16x1xf32>
    %275 = vector.broadcast %265 : vector<16x1xf32> to vector<16x32xf32>
    %276 = arith.subf %257, %275 : vector<16x32xf32>
    %cst_121 = arith.constant 9.99999996E-13 : f32
    %277 = vector.broadcast %cst_121 : f32 to vector<16x1xf32>
    %278 = arith.addf %274, %277 : vector<16x1xf32>
    %279 = math.rsqrt %278 : vector<16x1xf32>
    %280 = vector.broadcast %279 : vector<16x1xf32> to vector<16x32xf32>
    %281 = arith.mulf %276, %280 : vector<16x32xf32>
    %282 = vector.broadcast %259 : vector<1x32xf32> to vector<16x32xf32>
    %283 = arith.mulf %281, %282 : vector<16x32xf32>
    %284 = vector.broadcast %261 : vector<1x32xf32> to vector<16x32xf32>
    %285 = arith.addf %283, %284 : vector<16x32xf32>
    %c1_122 = arith.constant 1 : index
    %c0_123 = arith.constant 0 : index
    %c0_124 = arith.constant 0 : index
    %286 = vector.load %arg15[%c1_122, %c0_123, %c0_124] : memref<2x32x64xf32, #tpu.memory_space<vmem>>, vector<1x32x64xf32>
    %287 = vector.shape_cast %286 : vector<1x32x64xf32> to vector<32x64xf32>
    %cst_125 = arith.constant dense<0.000000e+00> : vector<16x64xf32>
    %288 = tpu.matmul %285, %287, %cst_125 {dimension_numbers = #tpu.dot_dimension_numbers<[1], [0], [0], [1], [0, 0, 1, 1], [], []>} : vector<16x32xf32>, vector<32x64xf32>, vector<16x64xf32> -> vector<16x64xf32>
    %c1_126 = arith.constant 1 : index
    %c0_127 = arith.constant 0 : index
    %c0_128 = arith.constant 0 : index
    %289 = vector.load %arg16[%c1_126, %c0_127, %c0_128] : memref<2x1x64xf32, #tpu.memory_space<vmem>>, vector<1x1x64xf32>
    %290 = vector.shape_cast %289 : vector<1x1x64xf32> to vector<1x64xf32>
    %291 = vector.broadcast %290 : vector<1x64xf32> to vector<16x64xf32>
    %292 = arith.addf %288, %291 : vector<16x64xf32>
    %cst_129 = arith.constant 5.000000e-01 : f32
    %293 = vector.broadcast %cst_129 : f32 to vector<16x64xf32>
    %294 = arith.mulf %293, %292 : vector<16x64xf32>
    %cst_130 = arith.constant 4.471500e-02 : f32
    %295 = vector.broadcast %cst_130 : f32 to vector<16x64xf32>
    %296 = arith.mulf %295, %292 : vector<16x64xf32>
    %297 = arith.mulf %296, %292 : vector<16x64xf32>
    %298 = arith.mulf %297, %292 : vector<16x64xf32>
    %299 = arith.addf %292, %298 : vector<16x64xf32>
    %cst_131 = arith.constant 0.797884583 : f32
    %300 = vector.broadcast %cst_131 : f32 to vector<16x64xf32>
    %301 = arith.mulf %300, %299 : vector<16x64xf32>
    %302 = math.tanh %301 : vector<16x64xf32>
    %cst_132 = arith.constant 1.000000e+00 : f32
    %303 = vector.broadcast %cst_132 : f32 to vector<16x64xf32>
    %304 = arith.addf %303, %302 : vector<16x64xf32>
    %305 = arith.mulf %294, %304 : vector<16x64xf32>
    %c1_133 = arith.constant 1 : index
    %c0_134 = arith.constant 0 : index
    %c0_135 = arith.constant 0 : index
    %306 = vector.load %arg17[%c1_133, %c0_134, %c0_135] : memref<2x64x32xf32, #tpu.memory_space<vmem>>, vector<1x64x32xf32>
    %307 = vector.shape_cast %306 : vector<1x64x32xf32> to vector<64x32xf32>
    %cst_136 = arith.constant dense<0.000000e+00> : vector<16x32xf32>
    %308 = tpu.matmul %305, %307, %cst_136 {dimension_numbers = #tpu.dot_dimension_numbers<[1], [0], [0], [1], [0, 0, 1, 1], [], []>} : vector<16x64xf32>, vector<64x32xf32>, vector<16x32xf32> -> vector<16x32xf32>
    %c1_137 = arith.constant 1 : index
    %c0_138 = arith.constant 0 : index
    %c0_139 = arith.constant 0 : index
    %309 = vector.load %arg18[%c1_137, %c0_138, %c0_139] : memref<2x1x32xf32, #tpu.memory_space<vmem>>, vector<1x1x32xf32>
    %310 = vector.shape_cast %309 : vector<1x1x32xf32> to vector<1x32xf32>
    %311 = vector.broadcast %310 : vector<1x32xf32> to vector<16x32xf32>
    %312 = arith.addf %308, %311 : vector<16x32xf32>
    %313 = arith.addf %285, %312 : vector<16x32xf32>
    %c1_140 = arith.constant 1 : index
    %c0_141 = arith.constant 0 : index
    %c0_142 = arith.constant 0 : index
    %314 = vector.load %arg19[%c1_140, %c0_141, %c0_142] : memref<2x1x32xf32, #tpu.memory_space<vmem>>, vector<1x1x32xf32>
    %315 = vector.shape_cast %314 : vector<1x1x32xf32> to vector<1x32xf32>
    %c1_143 = arith.constant 1 : index
    %c0_144 = arith.constant 0 : index
    %c0_145 = arith.constant 0 : index
    %316 = vector.load %arg20[%c1_143, %c0_144, %c0_145] : memref<2x1x32xf32, #tpu.memory_space<vmem>>, vector<1x1x32xf32>
    %317 = vector.shape_cast %316 : vector<1x1x32xf32> to vector<1x32xf32>
    %cst_146 = arith.constant dense<0.000000e+00> : vector<16xf32>
    %318 = vector.multi_reduction <add>, %313, %cst_146 [1] : vector<16x32xf32> to vector<16xf32>
    %319 = vector.shape_cast %318 : vector<16xf32> to vector<16x1xf32>
    %cst_147 = arith.constant 3.200000e+01 : f32
    %320 = vector.broadcast %cst_147 : f32 to vector<16x1xf32>
    %321 = arith.divf %319, %320 : vector<16x1xf32>
    %322 = arith.mulf %313, %313 : vector<16x32xf32>
    %cst_148 = arith.constant dense<0.000000e+00> : vector<16xf32>
    %323 = vector.multi_reduction <add>, %322, %cst_148 [1] : vector<16x32xf32> to vector<16xf32>
    %324 = vector.shape_cast %323 : vector<16xf32> to vector<16x1xf32>
    %cst_149 = arith.constant 3.200000e+01 : f32
    %325 = vector.broadcast %cst_149 : f32 to vector<16x1xf32>
    %326 = arith.divf %324, %325 : vector<16x1xf32>
    %327 = arith.mulf %321, %321 : vector<16x1xf32>
    %328 = arith.subf %326, %327 : vector<16x1xf32>
    %cst_150 = arith.constant 0.000000e+00 : f32
    %329 = vector.broadcast %cst_150 : f32 to vector<16x1xf32>
    %330 = arith.maximumf %328, %329 : vector<16x1xf32>
    %331 = vector.broadcast %321 : vector<16x1xf32> to vector<16x32xf32>
    %332 = arith.subf %313, %331 : vector<16x32xf32>
    %cst_151 = arith.constant 9.99999996E-13 : f32
    %333 = vector.broadcast %cst_151 : f32 to vector<16x1xf32>
    %334 = arith.addf %330, %333 : vector<16x1xf32>
    %335 = math.rsqrt %334 : vector<16x1xf32>
    %336 = vector.broadcast %335 : vector<16x1xf32> to vector<16x32xf32>
    %337 = arith.mulf %332, %336 : vector<16x32xf32>
    %338 = vector.broadcast %315 : vector<1x32xf32> to vector<16x32xf32>
    %339 = arith.mulf %337, %338 : vector<16x32xf32>
    %340 = vector.broadcast %317 : vector<1x32xf32> to vector<16x32xf32>
    %341 = arith.addf %339, %340 : vector<16x32xf32>
    %342 = vector.shape_cast %341 : vector<16x32xf32> to vector<2x8x32xf32>
    %343 = vector.shape_cast %342 : vector<2x8x32xf32> to vector<16x32xf32>
    %c0_152 = arith.constant 0 : index
    %c0_153 = arith.constant 0 : index
    %c0_154 = arith.constant 0 : index
    %344 = vector.load %arg21[%c0_152, %c0_153, %c0_154] : memref<2x32x64xf32, #tpu.memory_space<vmem>>, vector<1x32x64xf32>
    %345 = vector.shape_cast %344 : vector<1x32x64xf32> to vector<32x64xf32>
    %cst_155 = arith.constant dense<0.000000e+00> : vector<16x64xf32>
    %346 = tpu.matmul %343, %345, %cst_155 {dimension_numbers = #tpu.dot_dimension_numbers<[1], [0], [0], [1], [0, 0, 1, 1], [], []>} : vector<16x32xf32>, vector<32x64xf32>, vector<16x64xf32> -> vector<16x64xf32>
    %c0_156 = arith.constant 0 : index
    %c0_157 = arith.constant 0 : index
    %c0_158 = arith.constant 0 : index
    %347 = vector.load %arg23[%c0_156, %c0_157, %c0_158] : memref<2x1x64xf32, #tpu.memory_space<vmem>>, vector<1x1x64xf32>
    %348 = vector.shape_cast %347 : vector<1x1x64xf32> to vector<1x64xf32>
    %349 = vector.broadcast %348 : vector<1x64xf32> to vector<16x64xf32>
    %350 = arith.addf %346, %349 : vector<16x64xf32>
    %351 = vector.shape_cast %350 : vector<16x64xf32> to vector<2x8x64xf32>
    %c1_159 = arith.constant 1 : index
    %c0_160 = arith.constant 0 : index
    %c0_161 = arith.constant 0 : index
    %352 = vector.load %arg21[%c1_159, %c0_160, %c0_161] : memref<2x32x64xf32, #tpu.memory_space<vmem>>, vector<1x32x64xf32>
    %353 = vector.shape_cast %352 : vector<1x32x64xf32> to vector<32x64xf32>
    %cst_162 = arith.constant dense<0.000000e+00> : vector<16x64xf32>
    %354 = tpu.matmul %343, %353, %cst_162 {dimension_numbers = #tpu.dot_dimension_numbers<[1], [0], [0], [1], [0, 0, 1, 1], [], []>} : vector<16x32xf32>, vector<32x64xf32>, vector<16x64xf32> -> vector<16x64xf32>
    %c1_163 = arith.constant 1 : index
    %c0_164 = arith.constant 0 : index
    %c0_165 = arith.constant 0 : index
    %355 = vector.load %arg23[%c1_163, %c0_164, %c0_165] : memref<2x1x64xf32, #tpu.memory_space<vmem>>, vector<1x1x64xf32>
    %356 = vector.shape_cast %355 : vector<1x1x64xf32> to vector<1x64xf32>
    %357 = vector.broadcast %356 : vector<1x64xf32> to vector<16x64xf32>
    %358 = arith.addf %354, %357 : vector<16x64xf32>
    %359 = vector.shape_cast %358 : vector<16x64xf32> to vector<2x8x64xf32>
    %360 = vector.extract_strided_slice %359 {offsets = [0, 7, 0], sizes = [2, 1, 64], strides = [1, 1, 1]} : vector<2x8x64xf32> to vector<2x1x64xf32>
    %361 = vector.extract_strided_slice %359 {offsets = [0, 6, 0], sizes = [2, 1, 64], strides = [1, 1, 1]} : vector<2x8x64xf32> to vector<2x1x64xf32>
    %362 = vector.extract_strided_slice %359 {offsets = [0, 5, 0], sizes = [2, 1, 64], strides = [1, 1, 1]} : vector<2x8x64xf32> to vector<2x1x64xf32>
    %363 = vector.extract_strided_slice %359 {offsets = [0, 4, 0], sizes = [2, 1, 64], strides = [1, 1, 1]} : vector<2x8x64xf32> to vector<2x1x64xf32>
    %364 = vector.extract_strided_slice %359 {offsets = [0, 3, 0], sizes = [2, 1, 64], strides = [1, 1, 1]} : vector<2x8x64xf32> to vector<2x1x64xf32>
    %365 = vector.extract_strided_slice %359 {offsets = [0, 2, 0], sizes = [2, 1, 64], strides = [1, 1, 1]} : vector<2x8x64xf32> to vector<2x1x64xf32>
    %366 = vector.extract_strided_slice %359 {offsets = [0, 1, 0], sizes = [2, 1, 64], strides = [1, 1, 1]} : vector<2x8x64xf32> to vector<2x1x64xf32>
    %367 = vector.extract_strided_slice %359 {offsets = [0, 0, 0], sizes = [2, 1, 64], strides = [1, 1, 1]} : vector<2x8x64xf32> to vector<2x1x64xf32>
    %368 = tpu.concatenate %360, %361, %362, %363, %364, %365, %366, %367 in 1 : vector<2x1x64xf32>, vector<2x1x64xf32>, vector<2x1x64xf32>, vector<2x1x64xf32>, vector<2x1x64xf32>, vector<2x1x64xf32>, vector<2x1x64xf32>, vector<2x1x64xf32> -> vector<2x8x64xf32>
    %369 = vector.extract_strided_slice %351 {offsets = [0, 0, 0], sizes = [2, 8, 16], strides = [1, 1, 1]} : vector<2x8x64xf32> to vector<2x8x16xf32>
    %370 = vector.extract_strided_slice %368 {offsets = [0, 0, 0], sizes = [2, 8, 16], strides = [1, 1, 1]} : vector<2x8x64xf32> to vector<2x8x16xf32>
    %371 = vector.extract_strided_slice %351 {offsets = [0, 0, 16], sizes = [2, 8, 16], strides = [1, 1, 1]} : vector<2x8x64xf32> to vector<2x8x16xf32>
    %372 = vector.extract_strided_slice %368 {offsets = [0, 0, 16], sizes = [2, 8, 16], strides = [1, 1, 1]} : vector<2x8x64xf32> to vector<2x8x16xf32>
    %373 = vector.extract_strided_slice %351 {offsets = [0, 0, 32], sizes = [2, 8, 16], strides = [1, 1, 1]} : vector<2x8x64xf32> to vector<2x8x16xf32>
    %374 = vector.extract_strided_slice %368 {offsets = [0, 0, 32], sizes = [2, 8, 16], strides = [1, 1, 1]} : vector<2x8x64xf32> to vector<2x8x16xf32>
    %375 = vector.extract_strided_slice %351 {offsets = [0, 0, 48], sizes = [2, 8, 16], strides = [1, 1, 1]} : vector<2x8x64xf32> to vector<2x8x16xf32>
    %376 = vector.extract_strided_slice %368 {offsets = [0, 0, 48], sizes = [2, 8, 16], strides = [1, 1, 1]} : vector<2x8x64xf32> to vector<2x8x16xf32>
    %377 = tpu.concatenate %369, %370, %371, %372, %373, %374, %375, %376 in 2 : vector<2x8x16xf32>, vector<2x8x16xf32>, vector<2x8x16xf32>, vector<2x8x16xf32>, vector<2x8x16xf32>, vector<2x8x16xf32>, vector<2x8x16xf32>, vector<2x8x16xf32> -> vector<2x8x128xf32>
    %c0_166 = arith.constant 0 : index
    %c0_167 = arith.constant 0 : index
    %378 = vector.load %arg22[%c0_166, %c0_167] : memref<32x128xf32, #tpu.memory_space<vmem>>, vector<32x128xf32>
    %cst_168 = arith.constant 0.000000e+00 : f32
    %379 = vector.broadcast %cst_168 : f32 to vector<2x32xf32>
    %cst_169 = arith.constant 0.000000e+00 : f32
    %380 = vector.broadcast %cst_169 : f32 to vector<2x32xf32>
    %381 = vector.extract_strided_slice %377 {offsets = [0, 0, 0], sizes = [2, 1, 128], strides = [1, 1, 1]} : vector<2x8x128xf32> to vector<2x1x128xf32>
    %382 = vector.shape_cast %381 : vector<2x1x128xf32> to vector<2x128xf32>
    %cst_170 = arith.constant dense<0.000000e+00> : vector<2x128xf32>
    %383 = tpu.matmul %379, %378, %cst_170 {dimension_numbers = #tpu.dot_dimension_numbers<[1], [0], [0], [1], [0, 0, 1, 1], [], []>} : vector<2x32xf32>, vector<32x128xf32>, vector<2x128xf32> -> vector<2x128xf32>
    %384 = arith.addf %382, %383 : vector<2x128xf32>
    %385 = vector.extract_strided_slice %384 {offsets = [0, 0], sizes = [2, 96], strides = [1, 1]} : vector<2x128xf32> to vector<2x96xf32>
    %386 = arith.negf %385 : vector<2x96xf32>
    %387 = math.exp %386 : vector<2x96xf32>
    %cst_171 = arith.constant 1.000000e+00 : f32
    %388 = vector.broadcast %cst_171 : f32 to vector<2x96xf32>
    %389 = arith.addf %388, %387 : vector<2x96xf32>
    %390 = arith.divf %388, %389 : vector<2x96xf32>
    %391 = vector.extract_strided_slice %384 {offsets = [0, 96], sizes = [2, 32], strides = [1, 1]} : vector<2x128xf32> to vector<2x32xf32>
    %392 = math.tanh %391 : vector<2x32xf32>
    %393 = vector.extract_strided_slice %390 {offsets = [0, 32], sizes = [2, 32], strides = [1, 1]} : vector<2x96xf32> to vector<2x32xf32>
    %394 = arith.mulf %393, %380 : vector<2x32xf32>
    %395 = vector.extract_strided_slice %390 {offsets = [0, 0], sizes = [2, 32], strides = [1, 1]} : vector<2x96xf32> to vector<2x32xf32>
    %396 = arith.mulf %395, %392 : vector<2x32xf32>
    %397 = arith.addf %394, %396 : vector<2x32xf32>
    %398 = vector.extract_strided_slice %390 {offsets = [0, 64], sizes = [2, 32], strides = [1, 1]} : vector<2x96xf32> to vector<2x32xf32>
    %399 = math.tanh %397 : vector<2x32xf32>
    %400 = arith.mulf %398, %399 : vector<2x32xf32>
    %401 = vector.extract_strided_slice %400 {offsets = [0, 0], sizes = [2, 16], strides = [1, 1]} : vector<2x32xf32> to vector<2x16xf32>
    %402 = vector.extract_strided_slice %400 {offsets = [0, 16], sizes = [2, 16], strides = [1, 1]} : vector<2x32xf32> to vector<2x16xf32>
    %403 = vector.extract_strided_slice %377 {offsets = [0, 1, 0], sizes = [2, 1, 128], strides = [1, 1, 1]} : vector<2x8x128xf32> to vector<2x1x128xf32>
    %404 = vector.shape_cast %403 : vector<2x1x128xf32> to vector<2x128xf32>
    %cst_172 = arith.constant dense<0.000000e+00> : vector<2x128xf32>
    %405 = tpu.matmul %400, %378, %cst_172 {dimension_numbers = #tpu.dot_dimension_numbers<[1], [0], [0], [1], [0, 0, 1, 1], [], []>} : vector<2x32xf32>, vector<32x128xf32>, vector<2x128xf32> -> vector<2x128xf32>
    %406 = arith.addf %404, %405 : vector<2x128xf32>
    %407 = vector.extract_strided_slice %406 {offsets = [0, 0], sizes = [2, 96], strides = [1, 1]} : vector<2x128xf32> to vector<2x96xf32>
    %408 = arith.negf %407 : vector<2x96xf32>
    %409 = math.exp %408 : vector<2x96xf32>
    %cst_173 = arith.constant 1.000000e+00 : f32
    %410 = vector.broadcast %cst_173 : f32 to vector<2x96xf32>
    %411 = arith.addf %410, %409 : vector<2x96xf32>
    %412 = arith.divf %410, %411 : vector<2x96xf32>
    %413 = vector.extract_strided_slice %406 {offsets = [0, 96], sizes = [2, 32], strides = [1, 1]} : vector<2x128xf32> to vector<2x32xf32>
    %414 = math.tanh %413 : vector<2x32xf32>
    %415 = vector.extract_strided_slice %412 {offsets = [0, 32], sizes = [2, 32], strides = [1, 1]} : vector<2x96xf32> to vector<2x32xf32>
    %416 = arith.mulf %415, %397 : vector<2x32xf32>
    %417 = vector.extract_strided_slice %412 {offsets = [0, 0], sizes = [2, 32], strides = [1, 1]} : vector<2x96xf32> to vector<2x32xf32>
    %418 = arith.mulf %417, %414 : vector<2x32xf32>
    %419 = arith.addf %416, %418 : vector<2x32xf32>
    %420 = vector.extract_strided_slice %412 {offsets = [0, 64], sizes = [2, 32], strides = [1, 1]} : vector<2x96xf32> to vector<2x32xf32>
    %421 = math.tanh %419 : vector<2x32xf32>
    %422 = arith.mulf %420, %421 : vector<2x32xf32>
    %423 = vector.extract_strided_slice %422 {offsets = [0, 0], sizes = [2, 16], strides = [1, 1]} : vector<2x32xf32> to vector<2x16xf32>
    %424 = vector.extract_strided_slice %422 {offsets = [0, 16], sizes = [2, 16], strides = [1, 1]} : vector<2x32xf32> to vector<2x16xf32>
    %425 = vector.extract_strided_slice %377 {offsets = [0, 2, 0], sizes = [2, 1, 128], strides = [1, 1, 1]} : vector<2x8x128xf32> to vector<2x1x128xf32>
    %426 = vector.shape_cast %425 : vector<2x1x128xf32> to vector<2x128xf32>
    %cst_174 = arith.constant dense<0.000000e+00> : vector<2x128xf32>
    %427 = tpu.matmul %422, %378, %cst_174 {dimension_numbers = #tpu.dot_dimension_numbers<[1], [0], [0], [1], [0, 0, 1, 1], [], []>} : vector<2x32xf32>, vector<32x128xf32>, vector<2x128xf32> -> vector<2x128xf32>
    %428 = arith.addf %426, %427 : vector<2x128xf32>
    %429 = vector.extract_strided_slice %428 {offsets = [0, 0], sizes = [2, 96], strides = [1, 1]} : vector<2x128xf32> to vector<2x96xf32>
    %430 = arith.negf %429 : vector<2x96xf32>
    %431 = math.exp %430 : vector<2x96xf32>
    %cst_175 = arith.constant 1.000000e+00 : f32
    %432 = vector.broadcast %cst_175 : f32 to vector<2x96xf32>
    %433 = arith.addf %432, %431 : vector<2x96xf32>
    %434 = arith.divf %432, %433 : vector<2x96xf32>
    %435 = vector.extract_strided_slice %428 {offsets = [0, 96], sizes = [2, 32], strides = [1, 1]} : vector<2x128xf32> to vector<2x32xf32>
    %436 = math.tanh %435 : vector<2x32xf32>
    %437 = vector.extract_strided_slice %434 {offsets = [0, 32], sizes = [2, 32], strides = [1, 1]} : vector<2x96xf32> to vector<2x32xf32>
    %438 = arith.mulf %437, %419 : vector<2x32xf32>
    %439 = vector.extract_strided_slice %434 {offsets = [0, 0], sizes = [2, 32], strides = [1, 1]} : vector<2x96xf32> to vector<2x32xf32>
    %440 = arith.mulf %439, %436 : vector<2x32xf32>
    %441 = arith.addf %438, %440 : vector<2x32xf32>
    %442 = vector.extract_strided_slice %434 {offsets = [0, 64], sizes = [2, 32], strides = [1, 1]} : vector<2x96xf32> to vector<2x32xf32>
    %443 = math.tanh %441 : vector<2x32xf32>
    %444 = arith.mulf %442, %443 : vector<2x32xf32>
    %445 = vector.extract_strided_slice %444 {offsets = [0, 0], sizes = [2, 16], strides = [1, 1]} : vector<2x32xf32> to vector<2x16xf32>
    %446 = vector.extract_strided_slice %444 {offsets = [0, 16], sizes = [2, 16], strides = [1, 1]} : vector<2x32xf32> to vector<2x16xf32>
    %447 = vector.extract_strided_slice %377 {offsets = [0, 3, 0], sizes = [2, 1, 128], strides = [1, 1, 1]} : vector<2x8x128xf32> to vector<2x1x128xf32>
    %448 = vector.shape_cast %447 : vector<2x1x128xf32> to vector<2x128xf32>
    %cst_176 = arith.constant dense<0.000000e+00> : vector<2x128xf32>
    %449 = tpu.matmul %444, %378, %cst_176 {dimension_numbers = #tpu.dot_dimension_numbers<[1], [0], [0], [1], [0, 0, 1, 1], [], []>} : vector<2x32xf32>, vector<32x128xf32>, vector<2x128xf32> -> vector<2x128xf32>
    %450 = arith.addf %448, %449 : vector<2x128xf32>
    %451 = vector.extract_strided_slice %450 {offsets = [0, 0], sizes = [2, 96], strides = [1, 1]} : vector<2x128xf32> to vector<2x96xf32>
    %452 = arith.negf %451 : vector<2x96xf32>
    %453 = math.exp %452 : vector<2x96xf32>
    %cst_177 = arith.constant 1.000000e+00 : f32
    %454 = vector.broadcast %cst_177 : f32 to vector<2x96xf32>
    %455 = arith.addf %454, %453 : vector<2x96xf32>
    %456 = arith.divf %454, %455 : vector<2x96xf32>
    %457 = vector.extract_strided_slice %450 {offsets = [0, 96], sizes = [2, 32], strides = [1, 1]} : vector<2x128xf32> to vector<2x32xf32>
    %458 = math.tanh %457 : vector<2x32xf32>
    %459 = vector.extract_strided_slice %456 {offsets = [0, 32], sizes = [2, 32], strides = [1, 1]} : vector<2x96xf32> to vector<2x32xf32>
    %460 = arith.mulf %459, %441 : vector<2x32xf32>
    %461 = vector.extract_strided_slice %456 {offsets = [0, 0], sizes = [2, 32], strides = [1, 1]} : vector<2x96xf32> to vector<2x32xf32>
    %462 = arith.mulf %461, %458 : vector<2x32xf32>
    %463 = arith.addf %460, %462 : vector<2x32xf32>
    %464 = vector.extract_strided_slice %456 {offsets = [0, 64], sizes = [2, 32], strides = [1, 1]} : vector<2x96xf32> to vector<2x32xf32>
    %465 = math.tanh %463 : vector<2x32xf32>
    %466 = arith.mulf %464, %465 : vector<2x32xf32>
    %467 = vector.extract_strided_slice %466 {offsets = [0, 0], sizes = [2, 16], strides = [1, 1]} : vector<2x32xf32> to vector<2x16xf32>
    %468 = vector.extract_strided_slice %466 {offsets = [0, 16], sizes = [2, 16], strides = [1, 1]} : vector<2x32xf32> to vector<2x16xf32>
    %469 = vector.extract_strided_slice %377 {offsets = [0, 4, 0], sizes = [2, 1, 128], strides = [1, 1, 1]} : vector<2x8x128xf32> to vector<2x1x128xf32>
    %470 = vector.shape_cast %469 : vector<2x1x128xf32> to vector<2x128xf32>
    %cst_178 = arith.constant dense<0.000000e+00> : vector<2x128xf32>
    %471 = tpu.matmul %466, %378, %cst_178 {dimension_numbers = #tpu.dot_dimension_numbers<[1], [0], [0], [1], [0, 0, 1, 1], [], []>} : vector<2x32xf32>, vector<32x128xf32>, vector<2x128xf32> -> vector<2x128xf32>
    %472 = arith.addf %470, %471 : vector<2x128xf32>
    %473 = vector.extract_strided_slice %472 {offsets = [0, 0], sizes = [2, 96], strides = [1, 1]} : vector<2x128xf32> to vector<2x96xf32>
    %474 = arith.negf %473 : vector<2x96xf32>
    %475 = math.exp %474 : vector<2x96xf32>
    %cst_179 = arith.constant 1.000000e+00 : f32
    %476 = vector.broadcast %cst_179 : f32 to vector<2x96xf32>
    %477 = arith.addf %476, %475 : vector<2x96xf32>
    %478 = arith.divf %476, %477 : vector<2x96xf32>
    %479 = vector.extract_strided_slice %472 {offsets = [0, 96], sizes = [2, 32], strides = [1, 1]} : vector<2x128xf32> to vector<2x32xf32>
    %480 = math.tanh %479 : vector<2x32xf32>
    %481 = vector.extract_strided_slice %478 {offsets = [0, 32], sizes = [2, 32], strides = [1, 1]} : vector<2x96xf32> to vector<2x32xf32>
    %482 = arith.mulf %481, %463 : vector<2x32xf32>
    %483 = vector.extract_strided_slice %478 {offsets = [0, 0], sizes = [2, 32], strides = [1, 1]} : vector<2x96xf32> to vector<2x32xf32>
    %484 = arith.mulf %483, %480 : vector<2x32xf32>
    %485 = arith.addf %482, %484 : vector<2x32xf32>
    %486 = vector.extract_strided_slice %478 {offsets = [0, 64], sizes = [2, 32], strides = [1, 1]} : vector<2x96xf32> to vector<2x32xf32>
    %487 = math.tanh %485 : vector<2x32xf32>
    %488 = arith.mulf %486, %487 : vector<2x32xf32>
    %489 = vector.extract_strided_slice %488 {offsets = [0, 0], sizes = [2, 16], strides = [1, 1]} : vector<2x32xf32> to vector<2x16xf32>
    %490 = vector.extract_strided_slice %488 {offsets = [0, 16], sizes = [2, 16], strides = [1, 1]} : vector<2x32xf32> to vector<2x16xf32>
    %491 = vector.extract_strided_slice %377 {offsets = [0, 5, 0], sizes = [2, 1, 128], strides = [1, 1, 1]} : vector<2x8x128xf32> to vector<2x1x128xf32>
    %492 = vector.shape_cast %491 : vector<2x1x128xf32> to vector<2x128xf32>
    %cst_180 = arith.constant dense<0.000000e+00> : vector<2x128xf32>
    %493 = tpu.matmul %488, %378, %cst_180 {dimension_numbers = #tpu.dot_dimension_numbers<[1], [0], [0], [1], [0, 0, 1, 1], [], []>} : vector<2x32xf32>, vector<32x128xf32>, vector<2x128xf32> -> vector<2x128xf32>
    %494 = arith.addf %492, %493 : vector<2x128xf32>
    %495 = vector.extract_strided_slice %494 {offsets = [0, 0], sizes = [2, 96], strides = [1, 1]} : vector<2x128xf32> to vector<2x96xf32>
    %496 = arith.negf %495 : vector<2x96xf32>
    %497 = math.exp %496 : vector<2x96xf32>
    %cst_181 = arith.constant 1.000000e+00 : f32
    %498 = vector.broadcast %cst_181 : f32 to vector<2x96xf32>
    %499 = arith.addf %498, %497 : vector<2x96xf32>
    %500 = arith.divf %498, %499 : vector<2x96xf32>
    %501 = vector.extract_strided_slice %494 {offsets = [0, 96], sizes = [2, 32], strides = [1, 1]} : vector<2x128xf32> to vector<2x32xf32>
    %502 = math.tanh %501 : vector<2x32xf32>
    %503 = vector.extract_strided_slice %500 {offsets = [0, 32], sizes = [2, 32], strides = [1, 1]} : vector<2x96xf32> to vector<2x32xf32>
    %504 = arith.mulf %503, %485 : vector<2x32xf32>
    %505 = vector.extract_strided_slice %500 {offsets = [0, 0], sizes = [2, 32], strides = [1, 1]} : vector<2x96xf32> to vector<2x32xf32>
    %506 = arith.mulf %505, %502 : vector<2x32xf32>
    %507 = arith.addf %504, %506 : vector<2x32xf32>
    %508 = vector.extract_strided_slice %500 {offsets = [0, 64], sizes = [2, 32], strides = [1, 1]} : vector<2x96xf32> to vector<2x32xf32>
    %509 = math.tanh %507 : vector<2x32xf32>
    %510 = arith.mulf %508, %509 : vector<2x32xf32>
    %511 = vector.extract_strided_slice %510 {offsets = [0, 0], sizes = [2, 16], strides = [1, 1]} : vector<2x32xf32> to vector<2x16xf32>
    %512 = vector.extract_strided_slice %510 {offsets = [0, 16], sizes = [2, 16], strides = [1, 1]} : vector<2x32xf32> to vector<2x16xf32>
    %513 = vector.extract_strided_slice %377 {offsets = [0, 6, 0], sizes = [2, 1, 128], strides = [1, 1, 1]} : vector<2x8x128xf32> to vector<2x1x128xf32>
    %514 = vector.shape_cast %513 : vector<2x1x128xf32> to vector<2x128xf32>
    %cst_182 = arith.constant dense<0.000000e+00> : vector<2x128xf32>
    %515 = tpu.matmul %510, %378, %cst_182 {dimension_numbers = #tpu.dot_dimension_numbers<[1], [0], [0], [1], [0, 0, 1, 1], [], []>} : vector<2x32xf32>, vector<32x128xf32>, vector<2x128xf32> -> vector<2x128xf32>
    %516 = arith.addf %514, %515 : vector<2x128xf32>
    %517 = vector.extract_strided_slice %516 {offsets = [0, 0], sizes = [2, 96], strides = [1, 1]} : vector<2x128xf32> to vector<2x96xf32>
    %518 = arith.negf %517 : vector<2x96xf32>
    %519 = math.exp %518 : vector<2x96xf32>
    %cst_183 = arith.constant 1.000000e+00 : f32
    %520 = vector.broadcast %cst_183 : f32 to vector<2x96xf32>
    %521 = arith.addf %520, %519 : vector<2x96xf32>
    %522 = arith.divf %520, %521 : vector<2x96xf32>
    %523 = vector.extract_strided_slice %516 {offsets = [0, 96], sizes = [2, 32], strides = [1, 1]} : vector<2x128xf32> to vector<2x32xf32>
    %524 = math.tanh %523 : vector<2x32xf32>
    %525 = vector.extract_strided_slice %522 {offsets = [0, 32], sizes = [2, 32], strides = [1, 1]} : vector<2x96xf32> to vector<2x32xf32>
    %526 = arith.mulf %525, %507 : vector<2x32xf32>
    %527 = vector.extract_strided_slice %522 {offsets = [0, 0], sizes = [2, 32], strides = [1, 1]} : vector<2x96xf32> to vector<2x32xf32>
    %528 = arith.mulf %527, %524 : vector<2x32xf32>
    %529 = arith.addf %526, %528 : vector<2x32xf32>
    %530 = vector.extract_strided_slice %522 {offsets = [0, 64], sizes = [2, 32], strides = [1, 1]} : vector<2x96xf32> to vector<2x32xf32>
    %531 = math.tanh %529 : vector<2x32xf32>
    %532 = arith.mulf %530, %531 : vector<2x32xf32>
    %533 = vector.extract_strided_slice %532 {offsets = [0, 0], sizes = [2, 16], strides = [1, 1]} : vector<2x32xf32> to vector<2x16xf32>
    %534 = vector.extract_strided_slice %532 {offsets = [0, 16], sizes = [2, 16], strides = [1, 1]} : vector<2x32xf32> to vector<2x16xf32>
    %535 = vector.extract_strided_slice %377 {offsets = [0, 7, 0], sizes = [2, 1, 128], strides = [1, 1, 1]} : vector<2x8x128xf32> to vector<2x1x128xf32>
    %536 = vector.shape_cast %535 : vector<2x1x128xf32> to vector<2x128xf32>
    %cst_184 = arith.constant dense<0.000000e+00> : vector<2x128xf32>
    %537 = tpu.matmul %532, %378, %cst_184 {dimension_numbers = #tpu.dot_dimension_numbers<[1], [0], [0], [1], [0, 0, 1, 1], [], []>} : vector<2x32xf32>, vector<32x128xf32>, vector<2x128xf32> -> vector<2x128xf32>
    %538 = arith.addf %536, %537 : vector<2x128xf32>
    %539 = vector.extract_strided_slice %538 {offsets = [0, 0], sizes = [2, 96], strides = [1, 1]} : vector<2x128xf32> to vector<2x96xf32>
    %540 = arith.negf %539 : vector<2x96xf32>
    %541 = math.exp %540 : vector<2x96xf32>
    %cst_185 = arith.constant 1.000000e+00 : f32
    %542 = vector.broadcast %cst_185 : f32 to vector<2x96xf32>
    %543 = arith.addf %542, %541 : vector<2x96xf32>
    %544 = arith.divf %542, %543 : vector<2x96xf32>
    %545 = vector.extract_strided_slice %538 {offsets = [0, 96], sizes = [2, 32], strides = [1, 1]} : vector<2x128xf32> to vector<2x32xf32>
    %546 = math.tanh %545 : vector<2x32xf32>
    %547 = vector.extract_strided_slice %544 {offsets = [0, 32], sizes = [2, 32], strides = [1, 1]} : vector<2x96xf32> to vector<2x32xf32>
    %548 = arith.mulf %547, %529 : vector<2x32xf32>
    %549 = vector.extract_strided_slice %544 {offsets = [0, 0], sizes = [2, 32], strides = [1, 1]} : vector<2x96xf32> to vector<2x32xf32>
    %550 = arith.mulf %549, %546 : vector<2x32xf32>
    %551 = arith.addf %548, %550 : vector<2x32xf32>
    %552 = vector.extract_strided_slice %544 {offsets = [0, 64], sizes = [2, 32], strides = [1, 1]} : vector<2x96xf32> to vector<2x32xf32>
    %553 = math.tanh %551 : vector<2x32xf32>
    %554 = arith.mulf %552, %553 : vector<2x32xf32>
    %555 = vector.extract_strided_slice %554 {offsets = [0, 0], sizes = [2, 16], strides = [1, 1]} : vector<2x32xf32> to vector<2x16xf32>
    %556 = vector.extract_strided_slice %554 {offsets = [0, 16], sizes = [2, 16], strides = [1, 1]} : vector<2x32xf32> to vector<2x16xf32>
    %557 = tpu.concatenate %401, %556 in 1 : vector<2x16xf32>, vector<2x16xf32> -> vector<2x32xf32>
    %558 = vector.shape_cast %557 : vector<2x32xf32> to vector<2x1x32xf32>
    %559 = tpu.concatenate %423, %534 in 1 : vector<2x16xf32>, vector<2x16xf32> -> vector<2x32xf32>
    %560 = vector.shape_cast %559 : vector<2x32xf32> to vector<2x1x32xf32>
    %561 = tpu.concatenate %445, %512 in 1 : vector<2x16xf32>, vector<2x16xf32> -> vector<2x32xf32>
    %562 = vector.shape_cast %561 : vector<2x32xf32> to vector<2x1x32xf32>
    %563 = tpu.concatenate %467, %490 in 1 : vector<2x16xf32>, vector<2x16xf32> -> vector<2x32xf32>
    %564 = vector.shape_cast %563 : vector<2x32xf32> to vector<2x1x32xf32>
    %565 = tpu.concatenate %489, %468 in 1 : vector<2x16xf32>, vector<2x16xf32> -> vector<2x32xf32>
    %566 = vector.shape_cast %565 : vector<2x32xf32> to vector<2x1x32xf32>
    %567 = tpu.concatenate %511, %446 in 1 : vector<2x16xf32>, vector<2x16xf32> -> vector<2x32xf32>
    %568 = vector.shape_cast %567 : vector<2x32xf32> to vector<2x1x32xf32>
    %569 = tpu.concatenate %533, %424 in 1 : vector<2x16xf32>, vector<2x16xf32> -> vector<2x32xf32>
    %570 = vector.shape_cast %569 : vector<2x32xf32> to vector<2x1x32xf32>
    %571 = tpu.concatenate %555, %402 in 1 : vector<2x16xf32>, vector<2x16xf32> -> vector<2x32xf32>
    %572 = vector.shape_cast %571 : vector<2x32xf32> to vector<2x1x32xf32>
    %573 = tpu.concatenate %558, %560, %562, %564, %566, %568, %570, %572 in 1 : vector<2x1x32xf32>, vector<2x1x32xf32>, vector<2x1x32xf32>, vector<2x1x32xf32>, vector<2x1x32xf32>, vector<2x1x32xf32>, vector<2x1x32xf32>, vector<2x1x32xf32> -> vector<2x8x32xf32>
    %574 = vector.shape_cast %573 : vector<2x8x32xf32> to vector<16x32xf32>
    %c0_186 = arith.constant 0 : index
    %c0_187 = arith.constant 0 : index
    %c0_188 = arith.constant 0 : index
    %575 = vector.load %arg24[%c0_186, %c0_187, %c0_188] : memref<2x32x64xf32, #tpu.memory_space<vmem>>, vector<1x32x64xf32>
    %576 = vector.shape_cast %575 : vector<1x32x64xf32> to vector<32x64xf32>
    %cst_189 = arith.constant dense<0.000000e+00> : vector<16x64xf32>
    %577 = tpu.matmul %574, %576, %cst_189 {dimension_numbers = #tpu.dot_dimension_numbers<[1], [0], [0], [1], [0, 0, 1, 1], [], []>} : vector<16x32xf32>, vector<32x64xf32>, vector<16x64xf32> -> vector<16x64xf32>
    %c0_190 = arith.constant 0 : index
    %c0_191 = arith.constant 0 : index
    %c0_192 = arith.constant 0 : index
    %578 = vector.load %arg26[%c0_190, %c0_191, %c0_192] : memref<2x1x64xf32, #tpu.memory_space<vmem>>, vector<1x1x64xf32>
    %579 = vector.shape_cast %578 : vector<1x1x64xf32> to vector<1x64xf32>
    %580 = vector.broadcast %579 : vector<1x64xf32> to vector<16x64xf32>
    %581 = arith.addf %577, %580 : vector<16x64xf32>
    %582 = vector.shape_cast %581 : vector<16x64xf32> to vector<2x8x64xf32>
    %c1_193 = arith.constant 1 : index
    %c0_194 = arith.constant 0 : index
    %c0_195 = arith.constant 0 : index
    %583 = vector.load %arg24[%c1_193, %c0_194, %c0_195] : memref<2x32x64xf32, #tpu.memory_space<vmem>>, vector<1x32x64xf32>
    %584 = vector.shape_cast %583 : vector<1x32x64xf32> to vector<32x64xf32>
    %cst_196 = arith.constant dense<0.000000e+00> : vector<16x64xf32>
    %585 = tpu.matmul %574, %584, %cst_196 {dimension_numbers = #tpu.dot_dimension_numbers<[1], [0], [0], [1], [0, 0, 1, 1], [], []>} : vector<16x32xf32>, vector<32x64xf32>, vector<16x64xf32> -> vector<16x64xf32>
    %c1_197 = arith.constant 1 : index
    %c0_198 = arith.constant 0 : index
    %c0_199 = arith.constant 0 : index
    %586 = vector.load %arg26[%c1_197, %c0_198, %c0_199] : memref<2x1x64xf32, #tpu.memory_space<vmem>>, vector<1x1x64xf32>
    %587 = vector.shape_cast %586 : vector<1x1x64xf32> to vector<1x64xf32>
    %588 = vector.broadcast %587 : vector<1x64xf32> to vector<16x64xf32>
    %589 = arith.addf %585, %588 : vector<16x64xf32>
    %590 = vector.shape_cast %589 : vector<16x64xf32> to vector<2x8x64xf32>
    %591 = vector.extract_strided_slice %590 {offsets = [0, 7, 0], sizes = [2, 1, 64], strides = [1, 1, 1]} : vector<2x8x64xf32> to vector<2x1x64xf32>
    %592 = vector.extract_strided_slice %590 {offsets = [0, 6, 0], sizes = [2, 1, 64], strides = [1, 1, 1]} : vector<2x8x64xf32> to vector<2x1x64xf32>
    %593 = vector.extract_strided_slice %590 {offsets = [0, 5, 0], sizes = [2, 1, 64], strides = [1, 1, 1]} : vector<2x8x64xf32> to vector<2x1x64xf32>
    %594 = vector.extract_strided_slice %590 {offsets = [0, 4, 0], sizes = [2, 1, 64], strides = [1, 1, 1]} : vector<2x8x64xf32> to vector<2x1x64xf32>
    %595 = vector.extract_strided_slice %590 {offsets = [0, 3, 0], sizes = [2, 1, 64], strides = [1, 1, 1]} : vector<2x8x64xf32> to vector<2x1x64xf32>
    %596 = vector.extract_strided_slice %590 {offsets = [0, 2, 0], sizes = [2, 1, 64], strides = [1, 1, 1]} : vector<2x8x64xf32> to vector<2x1x64xf32>
    %597 = vector.extract_strided_slice %590 {offsets = [0, 1, 0], sizes = [2, 1, 64], strides = [1, 1, 1]} : vector<2x8x64xf32> to vector<2x1x64xf32>
    %598 = vector.extract_strided_slice %590 {offsets = [0, 0, 0], sizes = [2, 1, 64], strides = [1, 1, 1]} : vector<2x8x64xf32> to vector<2x1x64xf32>
    %599 = tpu.concatenate %591, %592, %593, %594, %595, %596, %597, %598 in 1 : vector<2x1x64xf32>, vector<2x1x64xf32>, vector<2x1x64xf32>, vector<2x1x64xf32>, vector<2x1x64xf32>, vector<2x1x64xf32>, vector<2x1x64xf32>, vector<2x1x64xf32> -> vector<2x8x64xf32>
    %600 = vector.extract_strided_slice %582 {offsets = [0, 0, 0], sizes = [2, 8, 16], strides = [1, 1, 1]} : vector<2x8x64xf32> to vector<2x8x16xf32>
    %601 = vector.extract_strided_slice %599 {offsets = [0, 0, 0], sizes = [2, 8, 16], strides = [1, 1, 1]} : vector<2x8x64xf32> to vector<2x8x16xf32>
    %602 = vector.extract_strided_slice %582 {offsets = [0, 0, 16], sizes = [2, 8, 16], strides = [1, 1, 1]} : vector<2x8x64xf32> to vector<2x8x16xf32>
    %603 = vector.extract_strided_slice %599 {offsets = [0, 0, 16], sizes = [2, 8, 16], strides = [1, 1, 1]} : vector<2x8x64xf32> to vector<2x8x16xf32>
    %604 = vector.extract_strided_slice %582 {offsets = [0, 0, 32], sizes = [2, 8, 16], strides = [1, 1, 1]} : vector<2x8x64xf32> to vector<2x8x16xf32>
    %605 = vector.extract_strided_slice %599 {offsets = [0, 0, 32], sizes = [2, 8, 16], strides = [1, 1, 1]} : vector<2x8x64xf32> to vector<2x8x16xf32>
    %606 = vector.extract_strided_slice %582 {offsets = [0, 0, 48], sizes = [2, 8, 16], strides = [1, 1, 1]} : vector<2x8x64xf32> to vector<2x8x16xf32>
    %607 = vector.extract_strided_slice %599 {offsets = [0, 0, 48], sizes = [2, 8, 16], strides = [1, 1, 1]} : vector<2x8x64xf32> to vector<2x8x16xf32>
    %608 = tpu.concatenate %600, %601, %602, %603, %604, %605, %606, %607 in 2 : vector<2x8x16xf32>, vector<2x8x16xf32>, vector<2x8x16xf32>, vector<2x8x16xf32>, vector<2x8x16xf32>, vector<2x8x16xf32>, vector<2x8x16xf32>, vector<2x8x16xf32> -> vector<2x8x128xf32>
    %c0_200 = arith.constant 0 : index
    %c0_201 = arith.constant 0 : index
    %609 = vector.load %arg25[%c0_200, %c0_201] : memref<32x128xf32, #tpu.memory_space<vmem>>, vector<32x128xf32>
    %cst_202 = arith.constant 0.000000e+00 : f32
    %610 = vector.broadcast %cst_202 : f32 to vector<2x32xf32>
    %cst_203 = arith.constant 0.000000e+00 : f32
    %611 = vector.broadcast %cst_203 : f32 to vector<2x32xf32>
    %612 = vector.extract_strided_slice %608 {offsets = [0, 0, 0], sizes = [2, 1, 128], strides = [1, 1, 1]} : vector<2x8x128xf32> to vector<2x1x128xf32>
    %613 = vector.shape_cast %612 : vector<2x1x128xf32> to vector<2x128xf32>
    %cst_204 = arith.constant dense<0.000000e+00> : vector<2x128xf32>
    %614 = tpu.matmul %610, %609, %cst_204 {dimension_numbers = #tpu.dot_dimension_numbers<[1], [0], [0], [1], [0, 0, 1, 1], [], []>} : vector<2x32xf32>, vector<32x128xf32>, vector<2x128xf32> -> vector<2x128xf32>
    %615 = arith.addf %613, %614 : vector<2x128xf32>
    %616 = vector.extract_strided_slice %615 {offsets = [0, 0], sizes = [2, 96], strides = [1, 1]} : vector<2x128xf32> to vector<2x96xf32>
    %617 = arith.negf %616 : vector<2x96xf32>
    %618 = math.exp %617 : vector<2x96xf32>
    %cst_205 = arith.constant 1.000000e+00 : f32
    %619 = vector.broadcast %cst_205 : f32 to vector<2x96xf32>
    %620 = arith.addf %619, %618 : vector<2x96xf32>
    %621 = arith.divf %619, %620 : vector<2x96xf32>
    %622 = vector.extract_strided_slice %615 {offsets = [0, 96], sizes = [2, 32], strides = [1, 1]} : vector<2x128xf32> to vector<2x32xf32>
    %623 = math.tanh %622 : vector<2x32xf32>
    %624 = vector.extract_strided_slice %621 {offsets = [0, 32], sizes = [2, 32], strides = [1, 1]} : vector<2x96xf32> to vector<2x32xf32>
    %625 = arith.mulf %624, %611 : vector<2x32xf32>
    %626 = vector.extract_strided_slice %621 {offsets = [0, 0], sizes = [2, 32], strides = [1, 1]} : vector<2x96xf32> to vector<2x32xf32>
    %627 = arith.mulf %626, %623 : vector<2x32xf32>
    %628 = arith.addf %625, %627 : vector<2x32xf32>
    %629 = vector.extract_strided_slice %621 {offsets = [0, 64], sizes = [2, 32], strides = [1, 1]} : vector<2x96xf32> to vector<2x32xf32>
    %630 = math.tanh %628 : vector<2x32xf32>
    %631 = arith.mulf %629, %630 : vector<2x32xf32>
    %632 = vector.extract_strided_slice %631 {offsets = [0, 0], sizes = [2, 16], strides = [1, 1]} : vector<2x32xf32> to vector<2x16xf32>
    %633 = vector.extract_strided_slice %631 {offsets = [0, 16], sizes = [2, 16], strides = [1, 1]} : vector<2x32xf32> to vector<2x16xf32>
    %634 = vector.extract_strided_slice %608 {offsets = [0, 1, 0], sizes = [2, 1, 128], strides = [1, 1, 1]} : vector<2x8x128xf32> to vector<2x1x128xf32>
    %635 = vector.shape_cast %634 : vector<2x1x128xf32> to vector<2x128xf32>
    %cst_206 = arith.constant dense<0.000000e+00> : vector<2x128xf32>
    %636 = tpu.matmul %631, %609, %cst_206 {dimension_numbers = #tpu.dot_dimension_numbers<[1], [0], [0], [1], [0, 0, 1, 1], [], []>} : vector<2x32xf32>, vector<32x128xf32>, vector<2x128xf32> -> vector<2x128xf32>
    %637 = arith.addf %635, %636 : vector<2x128xf32>
    %638 = vector.extract_strided_slice %637 {offsets = [0, 0], sizes = [2, 96], strides = [1, 1]} : vector<2x128xf32> to vector<2x96xf32>
    %639 = arith.negf %638 : vector<2x96xf32>
    %640 = math.exp %639 : vector<2x96xf32>
    %cst_207 = arith.constant 1.000000e+00 : f32
    %641 = vector.broadcast %cst_207 : f32 to vector<2x96xf32>
    %642 = arith.addf %641, %640 : vector<2x96xf32>
    %643 = arith.divf %641, %642 : vector<2x96xf32>
    %644 = vector.extract_strided_slice %637 {offsets = [0, 96], sizes = [2, 32], strides = [1, 1]} : vector<2x128xf32> to vector<2x32xf32>
    %645 = math.tanh %644 : vector<2x32xf32>
    %646 = vector.extract_strided_slice %643 {offsets = [0, 32], sizes = [2, 32], strides = [1, 1]} : vector<2x96xf32> to vector<2x32xf32>
    %647 = arith.mulf %646, %628 : vector<2x32xf32>
    %648 = vector.extract_strided_slice %643 {offsets = [0, 0], sizes = [2, 32], strides = [1, 1]} : vector<2x96xf32> to vector<2x32xf32>
    %649 = arith.mulf %648, %645 : vector<2x32xf32>
    %650 = arith.addf %647, %649 : vector<2x32xf32>
    %651 = vector.extract_strided_slice %643 {offsets = [0, 64], sizes = [2, 32], strides = [1, 1]} : vector<2x96xf32> to vector<2x32xf32>
    %652 = math.tanh %650 : vector<2x32xf32>
    %653 = arith.mulf %651, %652 : vector<2x32xf32>
    %654 = vector.extract_strided_slice %653 {offsets = [0, 0], sizes = [2, 16], strides = [1, 1]} : vector<2x32xf32> to vector<2x16xf32>
    %655 = vector.extract_strided_slice %653 {offsets = [0, 16], sizes = [2, 16], strides = [1, 1]} : vector<2x32xf32> to vector<2x16xf32>
    %656 = vector.extract_strided_slice %608 {offsets = [0, 2, 0], sizes = [2, 1, 128], strides = [1, 1, 1]} : vector<2x8x128xf32> to vector<2x1x128xf32>
    %657 = vector.shape_cast %656 : vector<2x1x128xf32> to vector<2x128xf32>
    %cst_208 = arith.constant dense<0.000000e+00> : vector<2x128xf32>
    %658 = tpu.matmul %653, %609, %cst_208 {dimension_numbers = #tpu.dot_dimension_numbers<[1], [0], [0], [1], [0, 0, 1, 1], [], []>} : vector<2x32xf32>, vector<32x128xf32>, vector<2x128xf32> -> vector<2x128xf32>
    %659 = arith.addf %657, %658 : vector<2x128xf32>
    %660 = vector.extract_strided_slice %659 {offsets = [0, 0], sizes = [2, 96], strides = [1, 1]} : vector<2x128xf32> to vector<2x96xf32>
    %661 = arith.negf %660 : vector<2x96xf32>
    %662 = math.exp %661 : vector<2x96xf32>
    %cst_209 = arith.constant 1.000000e+00 : f32
    %663 = vector.broadcast %cst_209 : f32 to vector<2x96xf32>
    %664 = arith.addf %663, %662 : vector<2x96xf32>
    %665 = arith.divf %663, %664 : vector<2x96xf32>
    %666 = vector.extract_strided_slice %659 {offsets = [0, 96], sizes = [2, 32], strides = [1, 1]} : vector<2x128xf32> to vector<2x32xf32>
    %667 = math.tanh %666 : vector<2x32xf32>
    %668 = vector.extract_strided_slice %665 {offsets = [0, 32], sizes = [2, 32], strides = [1, 1]} : vector<2x96xf32> to vector<2x32xf32>
    %669 = arith.mulf %668, %650 : vector<2x32xf32>
    %670 = vector.extract_strided_slice %665 {offsets = [0, 0], sizes = [2, 32], strides = [1, 1]} : vector<2x96xf32> to vector<2x32xf32>
    %671 = arith.mulf %670, %667 : vector<2x32xf32>
    %672 = arith.addf %669, %671 : vector<2x32xf32>
    %673 = vector.extract_strided_slice %665 {offsets = [0, 64], sizes = [2, 32], strides = [1, 1]} : vector<2x96xf32> to vector<2x32xf32>
    %674 = math.tanh %672 : vector<2x32xf32>
    %675 = arith.mulf %673, %674 : vector<2x32xf32>
    %676 = vector.extract_strided_slice %675 {offsets = [0, 0], sizes = [2, 16], strides = [1, 1]} : vector<2x32xf32> to vector<2x16xf32>
    %677 = vector.extract_strided_slice %675 {offsets = [0, 16], sizes = [2, 16], strides = [1, 1]} : vector<2x32xf32> to vector<2x16xf32>
    %678 = vector.extract_strided_slice %608 {offsets = [0, 3, 0], sizes = [2, 1, 128], strides = [1, 1, 1]} : vector<2x8x128xf32> to vector<2x1x128xf32>
    %679 = vector.shape_cast %678 : vector<2x1x128xf32> to vector<2x128xf32>
    %cst_210 = arith.constant dense<0.000000e+00> : vector<2x128xf32>
    %680 = tpu.matmul %675, %609, %cst_210 {dimension_numbers = #tpu.dot_dimension_numbers<[1], [0], [0], [1], [0, 0, 1, 1], [], []>} : vector<2x32xf32>, vector<32x128xf32>, vector<2x128xf32> -> vector<2x128xf32>
    %681 = arith.addf %679, %680 : vector<2x128xf32>
    %682 = vector.extract_strided_slice %681 {offsets = [0, 0], sizes = [2, 96], strides = [1, 1]} : vector<2x128xf32> to vector<2x96xf32>
    %683 = arith.negf %682 : vector<2x96xf32>
    %684 = math.exp %683 : vector<2x96xf32>
    %cst_211 = arith.constant 1.000000e+00 : f32
    %685 = vector.broadcast %cst_211 : f32 to vector<2x96xf32>
    %686 = arith.addf %685, %684 : vector<2x96xf32>
    %687 = arith.divf %685, %686 : vector<2x96xf32>
    %688 = vector.extract_strided_slice %681 {offsets = [0, 96], sizes = [2, 32], strides = [1, 1]} : vector<2x128xf32> to vector<2x32xf32>
    %689 = math.tanh %688 : vector<2x32xf32>
    %690 = vector.extract_strided_slice %687 {offsets = [0, 32], sizes = [2, 32], strides = [1, 1]} : vector<2x96xf32> to vector<2x32xf32>
    %691 = arith.mulf %690, %672 : vector<2x32xf32>
    %692 = vector.extract_strided_slice %687 {offsets = [0, 0], sizes = [2, 32], strides = [1, 1]} : vector<2x96xf32> to vector<2x32xf32>
    %693 = arith.mulf %692, %689 : vector<2x32xf32>
    %694 = arith.addf %691, %693 : vector<2x32xf32>
    %695 = vector.extract_strided_slice %687 {offsets = [0, 64], sizes = [2, 32], strides = [1, 1]} : vector<2x96xf32> to vector<2x32xf32>
    %696 = math.tanh %694 : vector<2x32xf32>
    %697 = arith.mulf %695, %696 : vector<2x32xf32>
    %698 = vector.extract_strided_slice %697 {offsets = [0, 0], sizes = [2, 16], strides = [1, 1]} : vector<2x32xf32> to vector<2x16xf32>
    %699 = vector.extract_strided_slice %697 {offsets = [0, 16], sizes = [2, 16], strides = [1, 1]} : vector<2x32xf32> to vector<2x16xf32>
    %700 = vector.extract_strided_slice %608 {offsets = [0, 4, 0], sizes = [2, 1, 128], strides = [1, 1, 1]} : vector<2x8x128xf32> to vector<2x1x128xf32>
    %701 = vector.shape_cast %700 : vector<2x1x128xf32> to vector<2x128xf32>
    %cst_212 = arith.constant dense<0.000000e+00> : vector<2x128xf32>
    %702 = tpu.matmul %697, %609, %cst_212 {dimension_numbers = #tpu.dot_dimension_numbers<[1], [0], [0], [1], [0, 0, 1, 1], [], []>} : vector<2x32xf32>, vector<32x128xf32>, vector<2x128xf32> -> vector<2x128xf32>
    %703 = arith.addf %701, %702 : vector<2x128xf32>
    %704 = vector.extract_strided_slice %703 {offsets = [0, 0], sizes = [2, 96], strides = [1, 1]} : vector<2x128xf32> to vector<2x96xf32>
    %705 = arith.negf %704 : vector<2x96xf32>
    %706 = math.exp %705 : vector<2x96xf32>
    %cst_213 = arith.constant 1.000000e+00 : f32
    %707 = vector.broadcast %cst_213 : f32 to vector<2x96xf32>
    %708 = arith.addf %707, %706 : vector<2x96xf32>
    %709 = arith.divf %707, %708 : vector<2x96xf32>
    %710 = vector.extract_strided_slice %703 {offsets = [0, 96], sizes = [2, 32], strides = [1, 1]} : vector<2x128xf32> to vector<2x32xf32>
    %711 = math.tanh %710 : vector<2x32xf32>
    %712 = vector.extract_strided_slice %709 {offsets = [0, 32], sizes = [2, 32], strides = [1, 1]} : vector<2x96xf32> to vector<2x32xf32>
    %713 = arith.mulf %712, %694 : vector<2x32xf32>
    %714 = vector.extract_strided_slice %709 {offsets = [0, 0], sizes = [2, 32], strides = [1, 1]} : vector<2x96xf32> to vector<2x32xf32>
    %715 = arith.mulf %714, %711 : vector<2x32xf32>
    %716 = arith.addf %713, %715 : vector<2x32xf32>
    %717 = vector.extract_strided_slice %709 {offsets = [0, 64], sizes = [2, 32], strides = [1, 1]} : vector<2x96xf32> to vector<2x32xf32>
    %718 = math.tanh %716 : vector<2x32xf32>
    %719 = arith.mulf %717, %718 : vector<2x32xf32>
    %720 = vector.extract_strided_slice %719 {offsets = [0, 0], sizes = [2, 16], strides = [1, 1]} : vector<2x32xf32> to vector<2x16xf32>
    %721 = vector.extract_strided_slice %719 {offsets = [0, 16], sizes = [2, 16], strides = [1, 1]} : vector<2x32xf32> to vector<2x16xf32>
    %722 = vector.extract_strided_slice %608 {offsets = [0, 5, 0], sizes = [2, 1, 128], strides = [1, 1, 1]} : vector<2x8x128xf32> to vector<2x1x128xf32>
    %723 = vector.shape_cast %722 : vector<2x1x128xf32> to vector<2x128xf32>
    %cst_214 = arith.constant dense<0.000000e+00> : vector<2x128xf32>
    %724 = tpu.matmul %719, %609, %cst_214 {dimension_numbers = #tpu.dot_dimension_numbers<[1], [0], [0], [1], [0, 0, 1, 1], [], []>} : vector<2x32xf32>, vector<32x128xf32>, vector<2x128xf32> -> vector<2x128xf32>
    %725 = arith.addf %723, %724 : vector<2x128xf32>
    %726 = vector.extract_strided_slice %725 {offsets = [0, 0], sizes = [2, 96], strides = [1, 1]} : vector<2x128xf32> to vector<2x96xf32>
    %727 = arith.negf %726 : vector<2x96xf32>
    %728 = math.exp %727 : vector<2x96xf32>
    %cst_215 = arith.constant 1.000000e+00 : f32
    %729 = vector.broadcast %cst_215 : f32 to vector<2x96xf32>
    %730 = arith.addf %729, %728 : vector<2x96xf32>
    %731 = arith.divf %729, %730 : vector<2x96xf32>
    %732 = vector.extract_strided_slice %725 {offsets = [0, 96], sizes = [2, 32], strides = [1, 1]} : vector<2x128xf32> to vector<2x32xf32>
    %733 = math.tanh %732 : vector<2x32xf32>
    %734 = vector.extract_strided_slice %731 {offsets = [0, 32], sizes = [2, 32], strides = [1, 1]} : vector<2x96xf32> to vector<2x32xf32>
    %735 = arith.mulf %734, %716 : vector<2x32xf32>
    %736 = vector.extract_strided_slice %731 {offsets = [0, 0], sizes = [2, 32], strides = [1, 1]} : vector<2x96xf32> to vector<2x32xf32>
    %737 = arith.mulf %736, %733 : vector<2x32xf32>
    %738 = arith.addf %735, %737 : vector<2x32xf32>
    %739 = vector.extract_strided_slice %731 {offsets = [0, 64], sizes = [2, 32], strides = [1, 1]} : vector<2x96xf32> to vector<2x32xf32>
    %740 = math.tanh %738 : vector<2x32xf32>
    %741 = arith.mulf %739, %740 : vector<2x32xf32>
    %742 = vector.extract_strided_slice %741 {offsets = [0, 0], sizes = [2, 16], strides = [1, 1]} : vector<2x32xf32> to vector<2x16xf32>
    %743 = vector.extract_strided_slice %741 {offsets = [0, 16], sizes = [2, 16], strides = [1, 1]} : vector<2x32xf32> to vector<2x16xf32>
    %744 = vector.extract_strided_slice %608 {offsets = [0, 6, 0], sizes = [2, 1, 128], strides = [1, 1, 1]} : vector<2x8x128xf32> to vector<2x1x128xf32>
    %745 = vector.shape_cast %744 : vector<2x1x128xf32> to vector<2x128xf32>
    %cst_216 = arith.constant dense<0.000000e+00> : vector<2x128xf32>
    %746 = tpu.matmul %741, %609, %cst_216 {dimension_numbers = #tpu.dot_dimension_numbers<[1], [0], [0], [1], [0, 0, 1, 1], [], []>} : vector<2x32xf32>, vector<32x128xf32>, vector<2x128xf32> -> vector<2x128xf32>
    %747 = arith.addf %745, %746 : vector<2x128xf32>
    %748 = vector.extract_strided_slice %747 {offsets = [0, 0], sizes = [2, 96], strides = [1, 1]} : vector<2x128xf32> to vector<2x96xf32>
    %749 = arith.negf %748 : vector<2x96xf32>
    %750 = math.exp %749 : vector<2x96xf32>
    %cst_217 = arith.constant 1.000000e+00 : f32
    %751 = vector.broadcast %cst_217 : f32 to vector<2x96xf32>
    %752 = arith.addf %751, %750 : vector<2x96xf32>
    %753 = arith.divf %751, %752 : vector<2x96xf32>
    %754 = vector.extract_strided_slice %747 {offsets = [0, 96], sizes = [2, 32], strides = [1, 1]} : vector<2x128xf32> to vector<2x32xf32>
    %755 = math.tanh %754 : vector<2x32xf32>
    %756 = vector.extract_strided_slice %753 {offsets = [0, 32], sizes = [2, 32], strides = [1, 1]} : vector<2x96xf32> to vector<2x32xf32>
    %757 = arith.mulf %756, %738 : vector<2x32xf32>
    %758 = vector.extract_strided_slice %753 {offsets = [0, 0], sizes = [2, 32], strides = [1, 1]} : vector<2x96xf32> to vector<2x32xf32>
    %759 = arith.mulf %758, %755 : vector<2x32xf32>
    %760 = arith.addf %757, %759 : vector<2x32xf32>
    %761 = vector.extract_strided_slice %753 {offsets = [0, 64], sizes = [2, 32], strides = [1, 1]} : vector<2x96xf32> to vector<2x32xf32>
    %762 = math.tanh %760 : vector<2x32xf32>
    %763 = arith.mulf %761, %762 : vector<2x32xf32>
    %764 = vector.extract_strided_slice %763 {offsets = [0, 0], sizes = [2, 16], strides = [1, 1]} : vector<2x32xf32> to vector<2x16xf32>
    %765 = vector.extract_strided_slice %763 {offsets = [0, 16], sizes = [2, 16], strides = [1, 1]} : vector<2x32xf32> to vector<2x16xf32>
    %766 = vector.extract_strided_slice %608 {offsets = [0, 7, 0], sizes = [2, 1, 128], strides = [1, 1, 1]} : vector<2x8x128xf32> to vector<2x1x128xf32>
    %767 = vector.shape_cast %766 : vector<2x1x128xf32> to vector<2x128xf32>
    %cst_218 = arith.constant dense<0.000000e+00> : vector<2x128xf32>
    %768 = tpu.matmul %763, %609, %cst_218 {dimension_numbers = #tpu.dot_dimension_numbers<[1], [0], [0], [1], [0, 0, 1, 1], [], []>} : vector<2x32xf32>, vector<32x128xf32>, vector<2x128xf32> -> vector<2x128xf32>
    %769 = arith.addf %767, %768 : vector<2x128xf32>
    %770 = vector.extract_strided_slice %769 {offsets = [0, 0], sizes = [2, 96], strides = [1, 1]} : vector<2x128xf32> to vector<2x96xf32>
    %771 = arith.negf %770 : vector<2x96xf32>
    %772 = math.exp %771 : vector<2x96xf32>
    %cst_219 = arith.constant 1.000000e+00 : f32
    %773 = vector.broadcast %cst_219 : f32 to vector<2x96xf32>
    %774 = arith.addf %773, %772 : vector<2x96xf32>
    %775 = arith.divf %773, %774 : vector<2x96xf32>
    %776 = vector.extract_strided_slice %769 {offsets = [0, 96], sizes = [2, 32], strides = [1, 1]} : vector<2x128xf32> to vector<2x32xf32>
    %777 = math.tanh %776 : vector<2x32xf32>
    %778 = vector.extract_strided_slice %775 {offsets = [0, 32], sizes = [2, 32], strides = [1, 1]} : vector<2x96xf32> to vector<2x32xf32>
    %779 = arith.mulf %778, %760 : vector<2x32xf32>
    %780 = vector.extract_strided_slice %775 {offsets = [0, 0], sizes = [2, 32], strides = [1, 1]} : vector<2x96xf32> to vector<2x32xf32>
    %781 = arith.mulf %780, %777 : vector<2x32xf32>
    %782 = arith.addf %779, %781 : vector<2x32xf32>
    %783 = vector.extract_strided_slice %775 {offsets = [0, 64], sizes = [2, 32], strides = [1, 1]} : vector<2x96xf32> to vector<2x32xf32>
    %784 = math.tanh %782 : vector<2x32xf32>
    %785 = arith.mulf %783, %784 : vector<2x32xf32>
    %786 = vector.extract_strided_slice %785 {offsets = [0, 0], sizes = [2, 16], strides = [1, 1]} : vector<2x32xf32> to vector<2x16xf32>
    %787 = vector.extract_strided_slice %785 {offsets = [0, 16], sizes = [2, 16], strides = [1, 1]} : vector<2x32xf32> to vector<2x16xf32>
    %788 = tpu.concatenate %632, %787 in 1 : vector<2x16xf32>, vector<2x16xf32> -> vector<2x32xf32>
    %789 = vector.shape_cast %788 : vector<2x32xf32> to vector<2x1x32xf32>
    %790 = tpu.concatenate %654, %765 in 1 : vector<2x16xf32>, vector<2x16xf32> -> vector<2x32xf32>
    %791 = vector.shape_cast %790 : vector<2x32xf32> to vector<2x1x32xf32>
    %792 = tpu.concatenate %676, %743 in 1 : vector<2x16xf32>, vector<2x16xf32> -> vector<2x32xf32>
    %793 = vector.shape_cast %792 : vector<2x32xf32> to vector<2x1x32xf32>
    %794 = tpu.concatenate %698, %721 in 1 : vector<2x16xf32>, vector<2x16xf32> -> vector<2x32xf32>
    %795 = vector.shape_cast %794 : vector<2x32xf32> to vector<2x1x32xf32>
    %796 = tpu.concatenate %720, %699 in 1 : vector<2x16xf32>, vector<2x16xf32> -> vector<2x32xf32>
    %797 = vector.shape_cast %796 : vector<2x32xf32> to vector<2x1x32xf32>
    %798 = tpu.concatenate %742, %677 in 1 : vector<2x16xf32>, vector<2x16xf32> -> vector<2x32xf32>
    %799 = vector.shape_cast %798 : vector<2x32xf32> to vector<2x1x32xf32>
    %800 = tpu.concatenate %764, %655 in 1 : vector<2x16xf32>, vector<2x16xf32> -> vector<2x32xf32>
    %801 = vector.shape_cast %800 : vector<2x32xf32> to vector<2x1x32xf32>
    %802 = tpu.concatenate %786, %633 in 1 : vector<2x16xf32>, vector<2x16xf32> -> vector<2x32xf32>
    %803 = vector.shape_cast %802 : vector<2x32xf32> to vector<2x1x32xf32>
    %804 = tpu.concatenate %789, %791, %793, %795, %797, %799, %801, %803 in 1 : vector<2x1x32xf32>, vector<2x1x32xf32>, vector<2x1x32xf32>, vector<2x1x32xf32>, vector<2x1x32xf32>, vector<2x1x32xf32>, vector<2x1x32xf32>, vector<2x1x32xf32> -> vector<2x8x32xf32>
    %cst_220 = arith.constant dense<0.000000e+00> : vector<2x32xf32>
    %805 = vector.multi_reduction <add>, %804, %cst_220 [1] : vector<2x8x32xf32> to vector<2x32xf32>
    %cst_221 = arith.constant 8.000000e+00 : f32
    %806 = vector.broadcast %cst_221 : f32 to vector<2x32xf32>
    %807 = arith.divf %805, %806 : vector<2x32xf32>
    %c0_222 = arith.constant 0 : index
    %c0_223 = arith.constant 0 : index
    %808 = vector.load %arg27[%c0_222, %c0_223] : memref<32x2xf32, #tpu.memory_space<vmem>>, vector<32x2xf32>
    %cst_224 = arith.constant dense<0.000000e+00> : vector<2x2xf32>
    %809 = tpu.matmul %807, %808, %cst_224 {dimension_numbers = #tpu.dot_dimension_numbers<[1], [0], [0], [1], [0, 0, 1, 1], [], []>} : vector<2x32xf32>, vector<32x2xf32>, vector<2x2xf32> -> vector<2x2xf32>
    %cst_225 = arith.constant 0.000000e+00 : f32
    %810 = vector.broadcast %cst_225 : f32 to vector<2x2xf32>
    %811 = arith.maximumf %809, %810 : vector<2x2xf32>
    %c0_226 = arith.constant 0 : index
    %c0_227 = arith.constant 0 : index
    %812 = vector.load %arg28[%c0_226, %c0_227] : memref<2x32xf32, #tpu.memory_space<vmem>>, vector<2x32xf32>
    %cst_228 = arith.constant dense<0.000000e+00> : vector<2x32xf32>
    %813 = tpu.matmul %811, %812, %cst_228 {dimension_numbers = #tpu.dot_dimension_numbers<[1], [0], [0], [1], [0, 0, 1, 1], [], []>} : vector<2x2xf32>, vector<2x32xf32>, vector<2x32xf32> -> vector<2x32xf32>
    %814 = arith.negf %813 : vector<2x32xf32>
    %815 = math.exp %814 : vector<2x32xf32>
    %cst_229 = arith.constant 1.000000e+00 : f32
    %816 = vector.broadcast %cst_229 : f32 to vector<2x32xf32>
    %817 = arith.addf %816, %815 : vector<2x32xf32>
    %818 = arith.divf %816, %817 : vector<2x32xf32>
    %819 = vector.shape_cast %818 : vector<2x32xf32> to vector<2x1x32xf32>
    %820 = vector.broadcast %819 : vector<2x1x32xf32> to vector<2x8x32xf32>
    %821 = arith.mulf %804, %820 : vector<2x8x32xf32>
    %822 = vector.shape_cast %821 : vector<2x8x32xf32> to vector<16x32xf32>
    %c0_230 = arith.constant 0 : index
    %c0_231 = arith.constant 0 : index
    %823 = vector.load %arg29[%c0_230, %c0_231] : memref<32x8xf32, #tpu.memory_space<vmem>>, vector<32x8xf32>
    %cst_232 = arith.constant dense<0.000000e+00> : vector<16x8xf32>
    %824 = tpu.matmul %822, %823, %cst_232 {dimension_numbers = #tpu.dot_dimension_numbers<[1], [0], [0], [1], [0, 0, 1, 1], [], []>} : vector<16x32xf32>, vector<32x8xf32>, vector<16x8xf32> -> vector<16x8xf32>
    %c0_233 = arith.constant 0 : index
    %c0_234 = arith.constant 0 : index
    %825 = vector.load %arg30[%c0_233, %c0_234] : memref<1x8xf32, #tpu.memory_space<vmem>>, vector<1x8xf32>
    %826 = vector.broadcast %825 : vector<1x8xf32> to vector<16x8xf32>
    %827 = arith.addf %824, %826 : vector<16x8xf32>
    %828 = vector.shape_cast %827 : vector<16x8xf32> to vector<2x8x8xf32>
    %c0_235 = arith.constant 0 : index
    %c0_236 = arith.constant 0 : index
    %829 = vector.load %arg31[%c0_235, %c0_236] : memref<1x8xf32, #tpu.memory_space<vmem>>, vector<1x8xf32>
    %c0_237 = arith.constant 0 : index
    %c0_238 = arith.constant 0 : index
    %830 = vector.load %arg32[%c0_237, %c0_238] : memref<8x8xf32, #tpu.memory_space<vmem>>, vector<8x8xf32>
    %c0_239 = arith.constant 0 : index
    %c0_240 = arith.constant 0 : index
    %831 = vector.load %arg33[%c0_239, %c0_240] : memref<1x8xf32, #tpu.memory_space<vmem>>, vector<1x8xf32>
    %c0_241 = arith.constant 0 : index
    %c0_242 = arith.constant 0 : index
    %832 = vector.load %arg3[%c0_241, %c0_242] : memref<2x8xi32, #tpu.memory_space<vmem>>, vector<2x8xi32>
    %833 = tpu.iota {dimensions = array<i32: 1>} : vector<2x8xi32>
    %834 = vector.extract_strided_slice %832 {offsets = [0, 0], sizes = [2, 1], strides = [1, 1]} : vector<2x8xi32> to vector<2x1xi32>
    %835 = vector.broadcast %834 : vector<2x1xi32> to vector<2x8xi32>
    %836 = arith.cmpi eq, %833, %835 : vector<2x8xi32>
    %837 = arith.extui %836 : vector<2x8xi1> to vector<2x8xi32>
    %838 = arith.sitofp %837 : vector<2x8xi32> to vector<2x8xf32>
    %839 = vector.extract_strided_slice %828 {offsets = [0, 0, 0], sizes = [2, 1, 8], strides = [1, 1, 1]} : vector<2x8x8xf32> to vector<2x1x8xf32>
    %840 = vector.shape_cast %839 : vector<2x1x8xf32> to vector<2x8xf32>
    %841 = vector.broadcast %829 : vector<1x8xf32> to vector<2x8xf32>
    %842 = arith.addf %841, %840 : vector<2x8xf32>
    %843 = arith.mulf %842, %838 : vector<2x8xf32>
    %cst_243 = arith.constant dense<0.000000e+00> : vector<2xf32>
    %844 = vector.multi_reduction <add>, %843, %cst_243 [1] : vector<2x8xf32> to vector<2xf32>
    %845 = vector.shape_cast %844 : vector<2xf32> to vector<2x1xf32>
    %846 = vector.broadcast %829 : vector<1x8xf32> to vector<2x8xf32>
    %847 = arith.addf %846, %840 : vector<2x8xf32>
    %848 = vector.extract_strided_slice %832 {offsets = [0, 1], sizes = [2, 1], strides = [1, 1]} : vector<2x8xi32> to vector<2x1xi32>
    %849 = vector.broadcast %848 : vector<2x1xi32> to vector<2x8xi32>
    %850 = arith.cmpi eq, %833, %849 : vector<2x8xi32>
    %851 = arith.extui %850 : vector<2x8xi1> to vector<2x8xi32>
    %852 = arith.sitofp %851 : vector<2x8xi32> to vector<2x8xf32>
    %853 = vector.extract_strided_slice %46 {offsets = [0, 1], sizes = [2, 1], strides = [1, 1]} : vector<2x8xf32> to vector<2x1xf32>
    %854 = vector.extract_strided_slice %828 {offsets = [0, 1, 0], sizes = [2, 1, 8], strides = [1, 1, 1]} : vector<2x8x8xf32> to vector<2x1x8xf32>
    %855 = vector.shape_cast %854 : vector<2x1x8xf32> to vector<2x8xf32>
    %cst_244 = arith.constant dense<0.000000e+00> : vector<2x8xf32>
    %856 = tpu.matmul %838, %830, %cst_244 {dimension_numbers = #tpu.dot_dimension_numbers<[1], [0], [0], [1], [0, 0, 1, 1], [], []>} : vector<2x8xf32>, vector<8x8xf32>, vector<2x8xf32> -> vector<2x8xf32>
    %857 = arith.mulf %856, %852 : vector<2x8xf32>
    %cst_245 = arith.constant dense<0.000000e+00> : vector<2xf32>
    %858 = vector.multi_reduction <add>, %857, %cst_245 [1] : vector<2x8xf32> to vector<2xf32>
    %859 = vector.shape_cast %858 : vector<2xf32> to vector<2x1xf32>
    %860 = arith.mulf %855, %852 : vector<2x8xf32>
    %cst_246 = arith.constant dense<0.000000e+00> : vector<2xf32>
    %861 = vector.multi_reduction <add>, %860, %cst_246 [1] : vector<2x8xf32> to vector<2xf32>
    %862 = vector.shape_cast %861 : vector<2xf32> to vector<2x1xf32>
    %863 = arith.addf %859, %862 : vector<2x1xf32>
    %864 = arith.mulf %853, %863 : vector<2x1xf32>
    %865 = arith.addf %845, %864 : vector<2x1xf32>
    %866 = vector.shape_cast %847 : vector<2x8xf32> to vector<2x8x1xf32>
    %867 = vector.shape_cast %830 : vector<8x8xf32> to vector<1x8x8xf32>
    %868 = vector.broadcast %866 : vector<2x8x1xf32> to vector<2x8x8xf32>
    %869 = vector.broadcast %867 : vector<1x8x8xf32> to vector<2x8x8xf32>
    %870 = arith.addf %868, %869 : vector<2x8x8xf32>
    %871 = vector.shape_cast %855 : vector<2x8xf32> to vector<2x1x8xf32>
    %872 = vector.broadcast %871 : vector<2x1x8xf32> to vector<2x8x8xf32>
    %873 = arith.addf %870, %872 : vector<2x8x8xf32>
    %cst_247 = arith.constant dense<0xFF800000> : vector<2x8xf32>
    %874 = vector.multi_reduction <maximumf>, %873, %cst_247 [1] : vector<2x8x8xf32> to vector<2x8xf32>
    %875 = vector.shape_cast %874 : vector<2x8xf32> to vector<2x1x8xf32>
    %876 = vector.broadcast %875 : vector<2x1x8xf32> to vector<2x8x8xf32>
    %877 = arith.subf %873, %876 : vector<2x8x8xf32>
    %878 = math.exp %877 : vector<2x8x8xf32>
    %cst_248 = arith.constant dense<0.000000e+00> : vector<2x8xf32>
    %879 = vector.multi_reduction <add>, %878, %cst_248 [1] : vector<2x8x8xf32> to vector<2x8xf32>
    %880 = math.log %879 : vector<2x8xf32>
    %881 = arith.addf %874, %880 : vector<2x8xf32>
    %cst_249 = arith.constant 0.000000e+00 : f32
    %882 = vector.broadcast %cst_249 : f32 to vector<2x1xf32>
    %883 = arith.cmpf ogt, %853, %882 : vector<2x1xf32>
    %884 = vector.shape_cast %883 : vector<2x1xi1> to vector<2x1xi1>
    %885 = vector.broadcast %884 : vector<2x1xi1> to vector<2x8xi1>
    %886 = arith.select %885, %881, %847 : vector<2x8xi1>, vector<2x8xf32>
    %cst_250 = arith.constant 0.000000e+00 : f32
    %887 = vector.broadcast %cst_250 : f32 to vector<2x1xf32>
    %888 = arith.cmpf ogt, %853, %887 : vector<2x1xf32>
    %889 = vector.shape_cast %888 : vector<2x1xi1> to vector<2x1xi1>
    %890 = vector.broadcast %889 : vector<2x1xi1> to vector<2x8xi1>
    %891 = arith.select %890, %852, %838 : vector<2x8xi1>, vector<2x8xf32>
    %892 = vector.extract_strided_slice %832 {offsets = [0, 2], sizes = [2, 1], strides = [1, 1]} : vector<2x8xi32> to vector<2x1xi32>
    %893 = vector.broadcast %892 : vector<2x1xi32> to vector<2x8xi32>
    %894 = arith.cmpi eq, %833, %893 : vector<2x8xi32>
    %895 = arith.extui %894 : vector<2x8xi1> to vector<2x8xi32>
    %896 = arith.sitofp %895 : vector<2x8xi32> to vector<2x8xf32>
    %897 = vector.extract_strided_slice %46 {offsets = [0, 2], sizes = [2, 1], strides = [1, 1]} : vector<2x8xf32> to vector<2x1xf32>
    %898 = vector.extract_strided_slice %828 {offsets = [0, 2, 0], sizes = [2, 1, 8], strides = [1, 1, 1]} : vector<2x8x8xf32> to vector<2x1x8xf32>
    %899 = vector.shape_cast %898 : vector<2x1x8xf32> to vector<2x8xf32>
    %cst_251 = arith.constant dense<0.000000e+00> : vector<2x8xf32>
    %900 = tpu.matmul %891, %830, %cst_251 {dimension_numbers = #tpu.dot_dimension_numbers<[1], [0], [0], [1], [0, 0, 1, 1], [], []>} : vector<2x8xf32>, vector<8x8xf32>, vector<2x8xf32> -> vector<2x8xf32>
    %901 = arith.mulf %900, %896 : vector<2x8xf32>
    %cst_252 = arith.constant dense<0.000000e+00> : vector<2xf32>
    %902 = vector.multi_reduction <add>, %901, %cst_252 [1] : vector<2x8xf32> to vector<2xf32>
    %903 = vector.shape_cast %902 : vector<2xf32> to vector<2x1xf32>
    %904 = arith.mulf %899, %896 : vector<2x8xf32>
    %cst_253 = arith.constant dense<0.000000e+00> : vector<2xf32>
    %905 = vector.multi_reduction <add>, %904, %cst_253 [1] : vector<2x8xf32> to vector<2xf32>
    %906 = vector.shape_cast %905 : vector<2xf32> to vector<2x1xf32>
    %907 = arith.addf %903, %906 : vector<2x1xf32>
    %908 = arith.mulf %897, %907 : vector<2x1xf32>
    %909 = arith.addf %865, %908 : vector<2x1xf32>
    %910 = vector.shape_cast %886 : vector<2x8xf32> to vector<2x8x1xf32>
    %911 = vector.shape_cast %830 : vector<8x8xf32> to vector<1x8x8xf32>
    %912 = vector.broadcast %910 : vector<2x8x1xf32> to vector<2x8x8xf32>
    %913 = vector.broadcast %911 : vector<1x8x8xf32> to vector<2x8x8xf32>
    %914 = arith.addf %912, %913 : vector<2x8x8xf32>
    %915 = vector.shape_cast %899 : vector<2x8xf32> to vector<2x1x8xf32>
    %916 = vector.broadcast %915 : vector<2x1x8xf32> to vector<2x8x8xf32>
    %917 = arith.addf %914, %916 : vector<2x8x8xf32>
    %cst_254 = arith.constant dense<0xFF800000> : vector<2x8xf32>
    %918 = vector.multi_reduction <maximumf>, %917, %cst_254 [1] : vector<2x8x8xf32> to vector<2x8xf32>
    %919 = vector.shape_cast %918 : vector<2x8xf32> to vector<2x1x8xf32>
    %920 = vector.broadcast %919 : vector<2x1x8xf32> to vector<2x8x8xf32>
    %921 = arith.subf %917, %920 : vector<2x8x8xf32>
    %922 = math.exp %921 : vector<2x8x8xf32>
    %cst_255 = arith.constant dense<0.000000e+00> : vector<2x8xf32>
    %923 = vector.multi_reduction <add>, %922, %cst_255 [1] : vector<2x8x8xf32> to vector<2x8xf32>
    %924 = math.log %923 : vector<2x8xf32>
    %925 = arith.addf %918, %924 : vector<2x8xf32>
    %cst_256 = arith.constant 0.000000e+00 : f32
    %926 = vector.broadcast %cst_256 : f32 to vector<2x1xf32>
    %927 = arith.cmpf ogt, %897, %926 : vector<2x1xf32>
    %928 = vector.shape_cast %927 : vector<2x1xi1> to vector<2x1xi1>
    %929 = vector.broadcast %928 : vector<2x1xi1> to vector<2x8xi1>
    %930 = arith.select %929, %925, %886 : vector<2x8xi1>, vector<2x8xf32>
    %cst_257 = arith.constant 0.000000e+00 : f32
    %931 = vector.broadcast %cst_257 : f32 to vector<2x1xf32>
    %932 = arith.cmpf ogt, %897, %931 : vector<2x1xf32>
    %933 = vector.shape_cast %932 : vector<2x1xi1> to vector<2x1xi1>
    %934 = vector.broadcast %933 : vector<2x1xi1> to vector<2x8xi1>
    %935 = arith.select %934, %896, %891 : vector<2x8xi1>, vector<2x8xf32>
    %936 = vector.extract_strided_slice %832 {offsets = [0, 3], sizes = [2, 1], strides = [1, 1]} : vector<2x8xi32> to vector<2x1xi32>
    %937 = vector.broadcast %936 : vector<2x1xi32> to vector<2x8xi32>
    %938 = arith.cmpi eq, %833, %937 : vector<2x8xi32>
    %939 = arith.extui %938 : vector<2x8xi1> to vector<2x8xi32>
    %940 = arith.sitofp %939 : vector<2x8xi32> to vector<2x8xf32>
    %941 = vector.extract_strided_slice %46 {offsets = [0, 3], sizes = [2, 1], strides = [1, 1]} : vector<2x8xf32> to vector<2x1xf32>
    %942 = vector.extract_strided_slice %828 {offsets = [0, 3, 0], sizes = [2, 1, 8], strides = [1, 1, 1]} : vector<2x8x8xf32> to vector<2x1x8xf32>
    %943 = vector.shape_cast %942 : vector<2x1x8xf32> to vector<2x8xf32>
    %cst_258 = arith.constant dense<0.000000e+00> : vector<2x8xf32>
    %944 = tpu.matmul %935, %830, %cst_258 {dimension_numbers = #tpu.dot_dimension_numbers<[1], [0], [0], [1], [0, 0, 1, 1], [], []>} : vector<2x8xf32>, vector<8x8xf32>, vector<2x8xf32> -> vector<2x8xf32>
    %945 = arith.mulf %944, %940 : vector<2x8xf32>
    %cst_259 = arith.constant dense<0.000000e+00> : vector<2xf32>
    %946 = vector.multi_reduction <add>, %945, %cst_259 [1] : vector<2x8xf32> to vector<2xf32>
    %947 = vector.shape_cast %946 : vector<2xf32> to vector<2x1xf32>
    %948 = arith.mulf %943, %940 : vector<2x8xf32>
    %cst_260 = arith.constant dense<0.000000e+00> : vector<2xf32>
    %949 = vector.multi_reduction <add>, %948, %cst_260 [1] : vector<2x8xf32> to vector<2xf32>
    %950 = vector.shape_cast %949 : vector<2xf32> to vector<2x1xf32>
    %951 = arith.addf %947, %950 : vector<2x1xf32>
    %952 = arith.mulf %941, %951 : vector<2x1xf32>
    %953 = arith.addf %909, %952 : vector<2x1xf32>
    %954 = vector.shape_cast %930 : vector<2x8xf32> to vector<2x8x1xf32>
    %955 = vector.shape_cast %830 : vector<8x8xf32> to vector<1x8x8xf32>
    %956 = vector.broadcast %954 : vector<2x8x1xf32> to vector<2x8x8xf32>
    %957 = vector.broadcast %955 : vector<1x8x8xf32> to vector<2x8x8xf32>
    %958 = arith.addf %956, %957 : vector<2x8x8xf32>
    %959 = vector.shape_cast %943 : vector<2x8xf32> to vector<2x1x8xf32>
    %960 = vector.broadcast %959 : vector<2x1x8xf32> to vector<2x8x8xf32>
    %961 = arith.addf %958, %960 : vector<2x8x8xf32>
    %cst_261 = arith.constant dense<0xFF800000> : vector<2x8xf32>
    %962 = vector.multi_reduction <maximumf>, %961, %cst_261 [1] : vector<2x8x8xf32> to vector<2x8xf32>
    %963 = vector.shape_cast %962 : vector<2x8xf32> to vector<2x1x8xf32>
    %964 = vector.broadcast %963 : vector<2x1x8xf32> to vector<2x8x8xf32>
    %965 = arith.subf %961, %964 : vector<2x8x8xf32>
    %966 = math.exp %965 : vector<2x8x8xf32>
    %cst_262 = arith.constant dense<0.000000e+00> : vector<2x8xf32>
    %967 = vector.multi_reduction <add>, %966, %cst_262 [1] : vector<2x8x8xf32> to vector<2x8xf32>
    %968 = math.log %967 : vector<2x8xf32>
    %969 = arith.addf %962, %968 : vector<2x8xf32>
    %cst_263 = arith.constant 0.000000e+00 : f32
    %970 = vector.broadcast %cst_263 : f32 to vector<2x1xf32>
    %971 = arith.cmpf ogt, %941, %970 : vector<2x1xf32>
    %972 = vector.shape_cast %971 : vector<2x1xi1> to vector<2x1xi1>
    %973 = vector.broadcast %972 : vector<2x1xi1> to vector<2x8xi1>
    %974 = arith.select %973, %969, %930 : vector<2x8xi1>, vector<2x8xf32>
    %cst_264 = arith.constant 0.000000e+00 : f32
    %975 = vector.broadcast %cst_264 : f32 to vector<2x1xf32>
    %976 = arith.cmpf ogt, %941, %975 : vector<2x1xf32>
    %977 = vector.shape_cast %976 : vector<2x1xi1> to vector<2x1xi1>
    %978 = vector.broadcast %977 : vector<2x1xi1> to vector<2x8xi1>
    %979 = arith.select %978, %940, %935 : vector<2x8xi1>, vector<2x8xf32>
    %980 = vector.extract_strided_slice %832 {offsets = [0, 4], sizes = [2, 1], strides = [1, 1]} : vector<2x8xi32> to vector<2x1xi32>
    %981 = vector.broadcast %980 : vector<2x1xi32> to vector<2x8xi32>
    %982 = arith.cmpi eq, %833, %981 : vector<2x8xi32>
    %983 = arith.extui %982 : vector<2x8xi1> to vector<2x8xi32>
    %984 = arith.sitofp %983 : vector<2x8xi32> to vector<2x8xf32>
    %985 = vector.extract_strided_slice %46 {offsets = [0, 4], sizes = [2, 1], strides = [1, 1]} : vector<2x8xf32> to vector<2x1xf32>
    %986 = vector.extract_strided_slice %828 {offsets = [0, 4, 0], sizes = [2, 1, 8], strides = [1, 1, 1]} : vector<2x8x8xf32> to vector<2x1x8xf32>
    %987 = vector.shape_cast %986 : vector<2x1x8xf32> to vector<2x8xf32>
    %cst_265 = arith.constant dense<0.000000e+00> : vector<2x8xf32>
    %988 = tpu.matmul %979, %830, %cst_265 {dimension_numbers = #tpu.dot_dimension_numbers<[1], [0], [0], [1], [0, 0, 1, 1], [], []>} : vector<2x8xf32>, vector<8x8xf32>, vector<2x8xf32> -> vector<2x8xf32>
    %989 = arith.mulf %988, %984 : vector<2x8xf32>
    %cst_266 = arith.constant dense<0.000000e+00> : vector<2xf32>
    %990 = vector.multi_reduction <add>, %989, %cst_266 [1] : vector<2x8xf32> to vector<2xf32>
    %991 = vector.shape_cast %990 : vector<2xf32> to vector<2x1xf32>
    %992 = arith.mulf %987, %984 : vector<2x8xf32>
    %cst_267 = arith.constant dense<0.000000e+00> : vector<2xf32>
    %993 = vector.multi_reduction <add>, %992, %cst_267 [1] : vector<2x8xf32> to vector<2xf32>
    %994 = vector.shape_cast %993 : vector<2xf32> to vector<2x1xf32>
    %995 = arith.addf %991, %994 : vector<2x1xf32>
    %996 = arith.mulf %985, %995 : vector<2x1xf32>
    %997 = arith.addf %953, %996 : vector<2x1xf32>
    %998 = vector.shape_cast %974 : vector<2x8xf32> to vector<2x8x1xf32>
    %999 = vector.shape_cast %830 : vector<8x8xf32> to vector<1x8x8xf32>
    %1000 = vector.broadcast %998 : vector<2x8x1xf32> to vector<2x8x8xf32>
    %1001 = vector.broadcast %999 : vector<1x8x8xf32> to vector<2x8x8xf32>
    %1002 = arith.addf %1000, %1001 : vector<2x8x8xf32>
    %1003 = vector.shape_cast %987 : vector<2x8xf32> to vector<2x1x8xf32>
    %1004 = vector.broadcast %1003 : vector<2x1x8xf32> to vector<2x8x8xf32>
    %1005 = arith.addf %1002, %1004 : vector<2x8x8xf32>
    %cst_268 = arith.constant dense<0xFF800000> : vector<2x8xf32>
    %1006 = vector.multi_reduction <maximumf>, %1005, %cst_268 [1] : vector<2x8x8xf32> to vector<2x8xf32>
    %1007 = vector.shape_cast %1006 : vector<2x8xf32> to vector<2x1x8xf32>
    %1008 = vector.broadcast %1007 : vector<2x1x8xf32> to vector<2x8x8xf32>
    %1009 = arith.subf %1005, %1008 : vector<2x8x8xf32>
    %1010 = math.exp %1009 : vector<2x8x8xf32>
    %cst_269 = arith.constant dense<0.000000e+00> : vector<2x8xf32>
    %1011 = vector.multi_reduction <add>, %1010, %cst_269 [1] : vector<2x8x8xf32> to vector<2x8xf32>
    %1012 = math.log %1011 : vector<2x8xf32>
    %1013 = arith.addf %1006, %1012 : vector<2x8xf32>
    %cst_270 = arith.constant 0.000000e+00 : f32
    %1014 = vector.broadcast %cst_270 : f32 to vector<2x1xf32>
    %1015 = arith.cmpf ogt, %985, %1014 : vector<2x1xf32>
    %1016 = vector.shape_cast %1015 : vector<2x1xi1> to vector<2x1xi1>
    %1017 = vector.broadcast %1016 : vector<2x1xi1> to vector<2x8xi1>
    %1018 = arith.select %1017, %1013, %974 : vector<2x8xi1>, vector<2x8xf32>
    %cst_271 = arith.constant 0.000000e+00 : f32
    %1019 = vector.broadcast %cst_271 : f32 to vector<2x1xf32>
    %1020 = arith.cmpf ogt, %985, %1019 : vector<2x1xf32>
    %1021 = vector.shape_cast %1020 : vector<2x1xi1> to vector<2x1xi1>
    %1022 = vector.broadcast %1021 : vector<2x1xi1> to vector<2x8xi1>
    %1023 = arith.select %1022, %984, %979 : vector<2x8xi1>, vector<2x8xf32>
    %1024 = vector.extract_strided_slice %832 {offsets = [0, 5], sizes = [2, 1], strides = [1, 1]} : vector<2x8xi32> to vector<2x1xi32>
    %1025 = vector.broadcast %1024 : vector<2x1xi32> to vector<2x8xi32>
    %1026 = arith.cmpi eq, %833, %1025 : vector<2x8xi32>
    %1027 = arith.extui %1026 : vector<2x8xi1> to vector<2x8xi32>
    %1028 = arith.sitofp %1027 : vector<2x8xi32> to vector<2x8xf32>
    %1029 = vector.extract_strided_slice %46 {offsets = [0, 5], sizes = [2, 1], strides = [1, 1]} : vector<2x8xf32> to vector<2x1xf32>
    %1030 = vector.extract_strided_slice %828 {offsets = [0, 5, 0], sizes = [2, 1, 8], strides = [1, 1, 1]} : vector<2x8x8xf32> to vector<2x1x8xf32>
    %1031 = vector.shape_cast %1030 : vector<2x1x8xf32> to vector<2x8xf32>
    %cst_272 = arith.constant dense<0.000000e+00> : vector<2x8xf32>
    %1032 = tpu.matmul %1023, %830, %cst_272 {dimension_numbers = #tpu.dot_dimension_numbers<[1], [0], [0], [1], [0, 0, 1, 1], [], []>} : vector<2x8xf32>, vector<8x8xf32>, vector<2x8xf32> -> vector<2x8xf32>
    %1033 = arith.mulf %1032, %1028 : vector<2x8xf32>
    %cst_273 = arith.constant dense<0.000000e+00> : vector<2xf32>
    %1034 = vector.multi_reduction <add>, %1033, %cst_273 [1] : vector<2x8xf32> to vector<2xf32>
    %1035 = vector.shape_cast %1034 : vector<2xf32> to vector<2x1xf32>
    %1036 = arith.mulf %1031, %1028 : vector<2x8xf32>
    %cst_274 = arith.constant dense<0.000000e+00> : vector<2xf32>
    %1037 = vector.multi_reduction <add>, %1036, %cst_274 [1] : vector<2x8xf32> to vector<2xf32>
    %1038 = vector.shape_cast %1037 : vector<2xf32> to vector<2x1xf32>
    %1039 = arith.addf %1035, %1038 : vector<2x1xf32>
    %1040 = arith.mulf %1029, %1039 : vector<2x1xf32>
    %1041 = arith.addf %997, %1040 : vector<2x1xf32>
    %1042 = vector.shape_cast %1018 : vector<2x8xf32> to vector<2x8x1xf32>
    %1043 = vector.shape_cast %830 : vector<8x8xf32> to vector<1x8x8xf32>
    %1044 = vector.broadcast %1042 : vector<2x8x1xf32> to vector<2x8x8xf32>
    %1045 = vector.broadcast %1043 : vector<1x8x8xf32> to vector<2x8x8xf32>
    %1046 = arith.addf %1044, %1045 : vector<2x8x8xf32>
    %1047 = vector.shape_cast %1031 : vector<2x8xf32> to vector<2x1x8xf32>
    %1048 = vector.broadcast %1047 : vector<2x1x8xf32> to vector<2x8x8xf32>
    %1049 = arith.addf %1046, %1048 : vector<2x8x8xf32>
    %cst_275 = arith.constant dense<0xFF800000> : vector<2x8xf32>
    %1050 = vector.multi_reduction <maximumf>, %1049, %cst_275 [1] : vector<2x8x8xf32> to vector<2x8xf32>
    %1051 = vector.shape_cast %1050 : vector<2x8xf32> to vector<2x1x8xf32>
    %1052 = vector.broadcast %1051 : vector<2x1x8xf32> to vector<2x8x8xf32>
    %1053 = arith.subf %1049, %1052 : vector<2x8x8xf32>
    %1054 = math.exp %1053 : vector<2x8x8xf32>
    %cst_276 = arith.constant dense<0.000000e+00> : vector<2x8xf32>
    %1055 = vector.multi_reduction <add>, %1054, %cst_276 [1] : vector<2x8x8xf32> to vector<2x8xf32>
    %1056 = math.log %1055 : vector<2x8xf32>
    %1057 = arith.addf %1050, %1056 : vector<2x8xf32>
    %cst_277 = arith.constant 0.000000e+00 : f32
    %1058 = vector.broadcast %cst_277 : f32 to vector<2x1xf32>
    %1059 = arith.cmpf ogt, %1029, %1058 : vector<2x1xf32>
    %1060 = vector.shape_cast %1059 : vector<2x1xi1> to vector<2x1xi1>
    %1061 = vector.broadcast %1060 : vector<2x1xi1> to vector<2x8xi1>
    %1062 = arith.select %1061, %1057, %1018 : vector<2x8xi1>, vector<2x8xf32>
    %cst_278 = arith.constant 0.000000e+00 : f32
    %1063 = vector.broadcast %cst_278 : f32 to vector<2x1xf32>
    %1064 = arith.cmpf ogt, %1029, %1063 : vector<2x1xf32>
    %1065 = vector.shape_cast %1064 : vector<2x1xi1> to vector<2x1xi1>
    %1066 = vector.broadcast %1065 : vector<2x1xi1> to vector<2x8xi1>
    %1067 = arith.select %1066, %1028, %1023 : vector<2x8xi1>, vector<2x8xf32>
    %1068 = vector.extract_strided_slice %832 {offsets = [0, 6], sizes = [2, 1], strides = [1, 1]} : vector<2x8xi32> to vector<2x1xi32>
    %1069 = vector.broadcast %1068 : vector<2x1xi32> to vector<2x8xi32>
    %1070 = arith.cmpi eq, %833, %1069 : vector<2x8xi32>
    %1071 = arith.extui %1070 : vector<2x8xi1> to vector<2x8xi32>
    %1072 = arith.sitofp %1071 : vector<2x8xi32> to vector<2x8xf32>
    %1073 = vector.extract_strided_slice %46 {offsets = [0, 6], sizes = [2, 1], strides = [1, 1]} : vector<2x8xf32> to vector<2x1xf32>
    %1074 = vector.extract_strided_slice %828 {offsets = [0, 6, 0], sizes = [2, 1, 8], strides = [1, 1, 1]} : vector<2x8x8xf32> to vector<2x1x8xf32>
    %1075 = vector.shape_cast %1074 : vector<2x1x8xf32> to vector<2x8xf32>
    %cst_279 = arith.constant dense<0.000000e+00> : vector<2x8xf32>
    %1076 = tpu.matmul %1067, %830, %cst_279 {dimension_numbers = #tpu.dot_dimension_numbers<[1], [0], [0], [1], [0, 0, 1, 1], [], []>} : vector<2x8xf32>, vector<8x8xf32>, vector<2x8xf32> -> vector<2x8xf32>
    %1077 = arith.mulf %1076, %1072 : vector<2x8xf32>
    %cst_280 = arith.constant dense<0.000000e+00> : vector<2xf32>
    %1078 = vector.multi_reduction <add>, %1077, %cst_280 [1] : vector<2x8xf32> to vector<2xf32>
    %1079 = vector.shape_cast %1078 : vector<2xf32> to vector<2x1xf32>
    %1080 = arith.mulf %1075, %1072 : vector<2x8xf32>
    %cst_281 = arith.constant dense<0.000000e+00> : vector<2xf32>
    %1081 = vector.multi_reduction <add>, %1080, %cst_281 [1] : vector<2x8xf32> to vector<2xf32>
    %1082 = vector.shape_cast %1081 : vector<2xf32> to vector<2x1xf32>
    %1083 = arith.addf %1079, %1082 : vector<2x1xf32>
    %1084 = arith.mulf %1073, %1083 : vector<2x1xf32>
    %1085 = arith.addf %1041, %1084 : vector<2x1xf32>
    %1086 = vector.shape_cast %1062 : vector<2x8xf32> to vector<2x8x1xf32>
    %1087 = vector.shape_cast %830 : vector<8x8xf32> to vector<1x8x8xf32>
    %1088 = vector.broadcast %1086 : vector<2x8x1xf32> to vector<2x8x8xf32>
    %1089 = vector.broadcast %1087 : vector<1x8x8xf32> to vector<2x8x8xf32>
    %1090 = arith.addf %1088, %1089 : vector<2x8x8xf32>
    %1091 = vector.shape_cast %1075 : vector<2x8xf32> to vector<2x1x8xf32>
    %1092 = vector.broadcast %1091 : vector<2x1x8xf32> to vector<2x8x8xf32>
    %1093 = arith.addf %1090, %1092 : vector<2x8x8xf32>
    %cst_282 = arith.constant dense<0xFF800000> : vector<2x8xf32>
    %1094 = vector.multi_reduction <maximumf>, %1093, %cst_282 [1] : vector<2x8x8xf32> to vector<2x8xf32>
    %1095 = vector.shape_cast %1094 : vector<2x8xf32> to vector<2x1x8xf32>
    %1096 = vector.broadcast %1095 : vector<2x1x8xf32> to vector<2x8x8xf32>
    %1097 = arith.subf %1093, %1096 : vector<2x8x8xf32>
    %1098 = math.exp %1097 : vector<2x8x8xf32>
    %cst_283 = arith.constant dense<0.000000e+00> : vector<2x8xf32>
    %1099 = vector.multi_reduction <add>, %1098, %cst_283 [1] : vector<2x8x8xf32> to vector<2x8xf32>
    %1100 = math.log %1099 : vector<2x8xf32>
    %1101 = arith.addf %1094, %1100 : vector<2x8xf32>
    %cst_284 = arith.constant 0.000000e+00 : f32
    %1102 = vector.broadcast %cst_284 : f32 to vector<2x1xf32>
    %1103 = arith.cmpf ogt, %1073, %1102 : vector<2x1xf32>
    %1104 = vector.shape_cast %1103 : vector<2x1xi1> to vector<2x1xi1>
    %1105 = vector.broadcast %1104 : vector<2x1xi1> to vector<2x8xi1>
    %1106 = arith.select %1105, %1101, %1062 : vector<2x8xi1>, vector<2x8xf32>
    %cst_285 = arith.constant 0.000000e+00 : f32
    %1107 = vector.broadcast %cst_285 : f32 to vector<2x1xf32>
    %1108 = arith.cmpf ogt, %1073, %1107 : vector<2x1xf32>
    %1109 = vector.shape_cast %1108 : vector<2x1xi1> to vector<2x1xi1>
    %1110 = vector.broadcast %1109 : vector<2x1xi1> to vector<2x8xi1>
    %1111 = arith.select %1110, %1072, %1067 : vector<2x8xi1>, vector<2x8xf32>
    %1112 = vector.extract_strided_slice %832 {offsets = [0, 7], sizes = [2, 1], strides = [1, 1]} : vector<2x8xi32> to vector<2x1xi32>
    %1113 = vector.broadcast %1112 : vector<2x1xi32> to vector<2x8xi32>
    %1114 = arith.cmpi eq, %833, %1113 : vector<2x8xi32>
    %1115 = arith.extui %1114 : vector<2x8xi1> to vector<2x8xi32>
    %1116 = arith.sitofp %1115 : vector<2x8xi32> to vector<2x8xf32>
    %1117 = vector.extract_strided_slice %46 {offsets = [0, 7], sizes = [2, 1], strides = [1, 1]} : vector<2x8xf32> to vector<2x1xf32>
    %1118 = vector.extract_strided_slice %828 {offsets = [0, 7, 0], sizes = [2, 1, 8], strides = [1, 1, 1]} : vector<2x8x8xf32> to vector<2x1x8xf32>
    %1119 = vector.shape_cast %1118 : vector<2x1x8xf32> to vector<2x8xf32>
    %cst_286 = arith.constant dense<0.000000e+00> : vector<2x8xf32>
    %1120 = tpu.matmul %1111, %830, %cst_286 {dimension_numbers = #tpu.dot_dimension_numbers<[1], [0], [0], [1], [0, 0, 1, 1], [], []>} : vector<2x8xf32>, vector<8x8xf32>, vector<2x8xf32> -> vector<2x8xf32>
    %1121 = arith.mulf %1120, %1116 : vector<2x8xf32>
    %cst_287 = arith.constant dense<0.000000e+00> : vector<2xf32>
    %1122 = vector.multi_reduction <add>, %1121, %cst_287 [1] : vector<2x8xf32> to vector<2xf32>
    %1123 = vector.shape_cast %1122 : vector<2xf32> to vector<2x1xf32>
    %1124 = arith.mulf %1119, %1116 : vector<2x8xf32>
    %cst_288 = arith.constant dense<0.000000e+00> : vector<2xf32>
    %1125 = vector.multi_reduction <add>, %1124, %cst_288 [1] : vector<2x8xf32> to vector<2xf32>
    %1126 = vector.shape_cast %1125 : vector<2xf32> to vector<2x1xf32>
    %1127 = arith.addf %1123, %1126 : vector<2x1xf32>
    %1128 = arith.mulf %1117, %1127 : vector<2x1xf32>
    %1129 = arith.addf %1085, %1128 : vector<2x1xf32>
    %1130 = vector.shape_cast %1106 : vector<2x8xf32> to vector<2x8x1xf32>
    %1131 = vector.shape_cast %830 : vector<8x8xf32> to vector<1x8x8xf32>
    %1132 = vector.broadcast %1130 : vector<2x8x1xf32> to vector<2x8x8xf32>
    %1133 = vector.broadcast %1131 : vector<1x8x8xf32> to vector<2x8x8xf32>
    %1134 = arith.addf %1132, %1133 : vector<2x8x8xf32>
    %1135 = vector.shape_cast %1119 : vector<2x8xf32> to vector<2x1x8xf32>
    %1136 = vector.broadcast %1135 : vector<2x1x8xf32> to vector<2x8x8xf32>
    %1137 = arith.addf %1134, %1136 : vector<2x8x8xf32>
    %cst_289 = arith.constant dense<0xFF800000> : vector<2x8xf32>
    %1138 = vector.multi_reduction <maximumf>, %1137, %cst_289 [1] : vector<2x8x8xf32> to vector<2x8xf32>
    %1139 = vector.shape_cast %1138 : vector<2x8xf32> to vector<2x1x8xf32>
    %1140 = vector.broadcast %1139 : vector<2x1x8xf32> to vector<2x8x8xf32>
    %1141 = arith.subf %1137, %1140 : vector<2x8x8xf32>
    %1142 = math.exp %1141 : vector<2x8x8xf32>
    %cst_290 = arith.constant dense<0.000000e+00> : vector<2x8xf32>
    %1143 = vector.multi_reduction <add>, %1142, %cst_290 [1] : vector<2x8x8xf32> to vector<2x8xf32>
    %1144 = math.log %1143 : vector<2x8xf32>
    %1145 = arith.addf %1138, %1144 : vector<2x8xf32>
    %cst_291 = arith.constant 0.000000e+00 : f32
    %1146 = vector.broadcast %cst_291 : f32 to vector<2x1xf32>
    %1147 = arith.cmpf ogt, %1117, %1146 : vector<2x1xf32>
    %1148 = vector.shape_cast %1147 : vector<2x1xi1> to vector<2x1xi1>
    %1149 = vector.broadcast %1148 : vector<2x1xi1> to vector<2x8xi1>
    %1150 = arith.select %1149, %1145, %1106 : vector<2x8xi1>, vector<2x8xf32>
    %cst_292 = arith.constant 0.000000e+00 : f32
    %1151 = vector.broadcast %cst_292 : f32 to vector<2x1xf32>
    %1152 = arith.cmpf ogt, %1117, %1151 : vector<2x1xf32>
    %1153 = vector.shape_cast %1152 : vector<2x1xi1> to vector<2x1xi1>
    %1154 = vector.broadcast %1153 : vector<2x1xi1> to vector<2x8xi1>
    %1155 = arith.select %1154, %1116, %1111 : vector<2x8xi1>, vector<2x8xf32>
    %1156 = vector.broadcast %831 : vector<1x8xf32> to vector<2x8xf32>
    %1157 = arith.mulf %1156, %1155 : vector<2x8xf32>
    %cst_293 = arith.constant dense<0.000000e+00> : vector<2xf32>
    %1158 = vector.multi_reduction <add>, %1157, %cst_293 [1] : vector<2x8xf32> to vector<2xf32>
    %1159 = vector.shape_cast %1158 : vector<2xf32> to vector<2x1xf32>
    %1160 = arith.addf %1129, %1159 : vector<2x1xf32>
    %1161 = vector.broadcast %831 : vector<1x8xf32> to vector<2x8xf32>
    %1162 = arith.addf %1150, %1161 : vector<2x8xf32>
    %cst_294 = arith.constant dense<0xFF800000> : vector<2xf32>
    %1163 = vector.multi_reduction <maximumf>, %1162, %cst_294 [1] : vector<2x8xf32> to vector<2xf32>
    %1164 = vector.shape_cast %1163 : vector<2xf32> to vector<2x1xf32>
    %1165 = vector.broadcast %1164 : vector<2x1xf32> to vector<2x8xf32>
    %1166 = arith.subf %1162, %1165 : vector<2x8xf32>
    %1167 = math.exp %1166 : vector<2x8xf32>
    %cst_295 = arith.constant dense<0.000000e+00> : vector<2xf32>
    %1168 = vector.multi_reduction <add>, %1167, %cst_295 [1] : vector<2x8xf32> to vector<2xf32>
    %1169 = vector.shape_cast %1168 : vector<2xf32> to vector<2x1xf32>
    %1170 = math.log %1169 : vector<2x1xf32>
    %1171 = arith.addf %1164, %1170 : vector<2x1xf32>
    %1172 = arith.subf %1160, %1171 : vector<2x1xf32>
    %cst_296 = arith.constant dense<0.000000e+00> : vector<1xf32>
    %1173 = vector.multi_reduction <add>, %1172, %cst_296 [0] : vector<2x1xf32> to vector<1xf32>
    %1174 = vector.shape_cast %1173 : vector<1xf32> to vector<1x1xf32>
    %cst_297 = arith.constant 2.000000e+00 : f32
    %1175 = vector.broadcast %cst_297 : f32 to vector<1x1xf32>
    %1176 = arith.divf %1174, %1175 : vector<1x1xf32>
    %cst_298 = arith.constant 0.000000e+00 : f32
    %1177 = vector.broadcast %cst_298 : f32 to vector<1x1xf32>
    %1178 = arith.subf %1177, %1176 : vector<1x1xf32>
    %c0_299 = arith.constant 0 : index
    %c0_300 = arith.constant 0 : index
    %1179 = vector.load %arg34[%c0_299, %c0_300] : memref<1x1xf32, #tpu.memory_space<vmem>>, vector<1x1xf32>
    tpu.vector_store %arg34[%c0_299, %c0_300], %1178 {strides = array<i32>} : memref<1x1xf32, #tpu.memory_space<vmem>>, vector<1x1xf32>,
    return
  }
  func.func @transform_0(%arg0: i32) -> (i32, i32) {
    %c0_i32 = arith.constant 0 : i32
    %c0_i32_0 = arith.constant 0 : i32
    %c0_i32_1 = arith.constant 0 : i32
    return %c0_i32, %c0_i32_0 : i32, i32
  }
  func.func @transform_1(%arg0: i32) -> (i32, i32) {
    %c0_i32 = arith.constant 0 : i32
    %c0_i32_0 = arith.constant 0 : i32
    %c0_i32_1 = arith.constant 0 : i32
    return %c0_i32, %c0_i32_0 : i32, i32
  }
  func.func @transform_2(%arg0: i32) -> (i32, i32) {
    %c0_i32 = arith.constant 0 : i32
    %c0_i32_0 = arith.constant 0 : i32
    %c0_i32_1 = arith.constant 0 : i32
    return %c0_i32, %c0_i32_0 : i32, i32
  }
  func.func @transform_3(%arg0: i32) -> (i32, i32) {
    %c0_i32 = arith.constant 0 : i32
    %c0_i32_0 = arith.constant 0 : i32
    %c0_i32_1 = arith.constant 0 : i32
    return %c0_i32, %c0_i32_0 : i32, i32
  }
  func.func @transform_4(%arg0: i32) -> (i32, i32) {
    %c0_i32 = arith.constant 0 : i32
    %c0_i32_0 = arith.constant 0 : i32
    %c0_i32_1 = arith.constant 0 : i32
    return %c0_i32, %c0_i32_0 : i32, i32
  }
  func.func @transform_5(%arg0: i32) -> (i32, i32) {
    %c0_i32 = arith.constant 0 : i32
    %c0_i32_0 = arith.constant 0 : i32
    %c0_i32_1 = arith.constant 0 : i32
    return %c0_i32, %c0_i32_0 : i32, i32
  }
  func.func @transform_6(%arg0: i32) -> (i32, i32) {
    %c0_i32 = arith.constant 0 : i32
    %c0_i32_0 = arith.constant 0 : i32
    %c0_i32_1 = arith.constant 0 : i32
    return %c0_i32, %c0_i32_0 : i32, i32
  }
  func.func @transform_7(%arg0: i32) -> (i32, i32) {
    %c0_i32 = arith.constant 0 : i32
    %c0_i32_0 = arith.constant 0 : i32
    %c0_i32_1 = arith.constant 0 : i32
    return %c0_i32, %c0_i32_0 : i32, i32
  }
  func.func @transform_8(%arg0: i32) -> (i32, i32, i32) {
    %c0_i32 = arith.constant 0 : i32
    %c0_i32_0 = arith.constant 0 : i32
    %c0_i32_1 = arith.constant 0 : i32
    %c0_i32_2 = arith.constant 0 : i32
    return %c0_i32, %c0_i32_0, %c0_i32_1 : i32, i32, i32
  }
  func.func @transform_9(%arg0: i32) -> (i32, i32, i32) {
    %c0_i32 = arith.constant 0 : i32
    %c0_i32_0 = arith.constant 0 : i32
    %c0_i32_1 = arith.constant 0 : i32
    %c0_i32_2 = arith.constant 0 : i32
    return %c0_i32, %c0_i32_0, %c0_i32_1 : i32, i32, i32
  }
  func.func @transform_10(%arg0: i32) -> (i32, i32, i32) {
    %c0_i32 = arith.constant 0 : i32
    %c0_i32_0 = arith.constant 0 : i32
    %c0_i32_1 = arith.constant 0 : i32
    %c0_i32_2 = arith.constant 0 : i32
    return %c0_i32, %c0_i32_0, %c0_i32_1 : i32, i32, i32
  }
  func.func @transform_11(%arg0: i32) -> (i32, i32, i32) {
    %c0_i32 = arith.constant 0 : i32
    %c0_i32_0 = arith.constant 0 : i32
    %c0_i32_1 = arith.constant 0 : i32
    %c0_i32_2 = arith.constant 0 : i32
    return %c0_i32, %c0_i32_0, %c0_i32_1 : i32, i32, i32
  }
  func.func @transform_12(%arg0: i32) -> (i32, i32, i32) {
    %c0_i32 = arith.constant 0 : i32
    %c0_i32_0 = arith.constant 0 : i32
    %c0_i32_1 = arith.constant 0 : i32
    %c0_i32_2 = arith.constant 0 : i32
    return %c0_i32, %c0_i32_0, %c0_i32_1 : i32, i32, i32
  }
  func.func @transform_13(%arg0: i32) -> (i32, i32, i32) {
    %c0_i32 = arith.constant 0 : i32
    %c0_i32_0 = arith.constant 0 : i32
    %c0_i32_1 = arith.constant 0 : i32
    %c0_i32_2 = arith.constant 0 : i32
    return %c0_i32, %c0_i32_0, %c0_i32_1 : i32, i32, i32
  }
  func.func @transform_14(%arg0: i32) -> (i32, i32, i32) {
    %c0_i32 = arith.constant 0 : i32
    %c0_i32_0 = arith.constant 0 : i32
    %c0_i32_1 = arith.constant 0 : i32
    %c0_i32_2 = arith.constant 0 : i32
    return %c0_i32, %c0_i32_0, %c0_i32_1 : i32, i32, i32
  }
  func.func @transform_15(%arg0: i32) -> (i32, i32, i32) {
    %c0_i32 = arith.constant 0 : i32
    %c0_i32_0 = arith.constant 0 : i32
    %c0_i32_1 = arith.constant 0 : i32
    %c0_i32_2 = arith.constant 0 : i32
    return %c0_i32, %c0_i32_0, %c0_i32_1 : i32, i32, i32
  }
  func.func @transform_16(%arg0: i32) -> (i32, i32, i32) {
    %c0_i32 = arith.constant 0 : i32
    %c0_i32_0 = arith.constant 0 : i32
    %c0_i32_1 = arith.constant 0 : i32
    %c0_i32_2 = arith.constant 0 : i32
    return %c0_i32, %c0_i32_0, %c0_i32_1 : i32, i32, i32
  }
  func.func @transform_17(%arg0: i32) -> (i32, i32, i32) {
    %c0_i32 = arith.constant 0 : i32
    %c0_i32_0 = arith.constant 0 : i32
    %c0_i32_1 = arith.constant 0 : i32
    %c0_i32_2 = arith.constant 0 : i32
    return %c0_i32, %c0_i32_0, %c0_i32_1 : i32, i32, i32
  }
  func.func @transform_18(%arg0: i32) -> (i32, i32, i32) {
    %c0_i32 = arith.constant 0 : i32
    %c0_i32_0 = arith.constant 0 : i32
    %c0_i32_1 = arith.constant 0 : i32
    %c0_i32_2 = arith.constant 0 : i32
    return %c0_i32, %c0_i32_0, %c0_i32_1 : i32, i32, i32
  }
  func.func @transform_19(%arg0: i32) -> (i32, i32, i32) {
    %c0_i32 = arith.constant 0 : i32
    %c0_i32_0 = arith.constant 0 : i32
    %c0_i32_1 = arith.constant 0 : i32
    %c0_i32_2 = arith.constant 0 : i32
    return %c0_i32, %c0_i32_0, %c0_i32_1 : i32, i32, i32
  }
  func.func @transform_20(%arg0: i32) -> (i32, i32, i32) {
    %c0_i32 = arith.constant 0 : i32
    %c0_i32_0 = arith.constant 0 : i32
    %c0_i32_1 = arith.constant 0 : i32
    %c0_i32_2 = arith.constant 0 : i32
    return %c0_i32, %c0_i32_0, %c0_i32_1 : i32, i32, i32
  }
  func.func @transform_21(%arg0: i32) -> (i32, i32) {
    %c0_i32 = arith.constant 0 : i32
    %c0_i32_0 = arith.constant 0 : i32
    %c0_i32_1 = arith.constant 0 : i32
    return %c0_i32, %c0_i32_0 : i32, i32
  }
  func.func @transform_22(%arg0: i32) -> (i32, i32, i32) {
    %c0_i32 = arith.constant 0 : i32
    %c0_i32_0 = arith.constant 0 : i32
    %c0_i32_1 = arith.constant 0 : i32
    %c0_i32_2 = arith.constant 0 : i32
    return %c0_i32, %c0_i32_0, %c0_i32_1 : i32, i32, i32
  }
  func.func @transform_23(%arg0: i32) -> (i32, i32, i32) {
    %c0_i32 = arith.constant 0 : i32
    %c0_i32_0 = arith.constant 0 : i32
    %c0_i32_1 = arith.constant 0 : i32
    %c0_i32_2 = arith.constant 0 : i32
    return %c0_i32, %c0_i32_0, %c0_i32_1 : i32, i32, i32
  }
  func.func @transform_24(%arg0: i32) -> (i32, i32) {
    %c0_i32 = arith.constant 0 : i32
    %c0_i32_0 = arith.constant 0 : i32
    %c0_i32_1 = arith.constant 0 : i32
    return %c0_i32, %c0_i32_0 : i32, i32
  }
  func.func @transform_25(%arg0: i32) -> (i32, i32, i32) {
    %c0_i32 = arith.constant 0 : i32
    %c0_i32_0 = arith.constant 0 : i32
    %c0_i32_1 = arith.constant 0 : i32
    %c0_i32_2 = arith.constant 0 : i32
    return %c0_i32, %c0_i32_0, %c0_i32_1 : i32, i32, i32
  }
  func.func @transform_26(%arg0: i32) -> (i32, i32) {
    %c0_i32 = arith.constant 0 : i32
    %c0_i32_0 = arith.constant 0 : i32
    %c0_i32_1 = arith.constant 0 : i32
    return %c0_i32, %c0_i32_0 : i32, i32
  }
  func.func @transform_27(%arg0: i32) -> (i32, i32) {
    %c0_i32 = arith.constant 0 : i32
    %c0_i32_0 = arith.constant 0 : i32
    %c0_i32_1 = arith.constant 0 : i32
    return %c0_i32, %c0_i32_0 : i32, i32
  }
  func.func @transform_28(%arg0: i32) -> (i32, i32) {
    %c0_i32 = arith.constant 0 : i32
    %c0_i32_0 = arith.constant 0 : i32
    %c0_i32_1 = arith.constant 0 : i32
    return %c0_i32, %c0_i32_0 : i32, i32
  }
  func.func @transform_29(%arg0: i32) -> (i32, i32) {
    %c0_i32 = arith.constant 0 : i32
    %c0_i32_0 = arith.constant 0 : i32
    %c0_i32_1 = arith.constant 0 : i32
    return %c0_i32, %c0_i32_0 : i32, i32
  }
  func.func @transform_30(%arg0: i32) -> (i32, i32) {
    %c0_i32 = arith.constant 0 : i32
    %c0_i32_0 = arith.constant 0 : i32
    %c0_i32_1 = arith.constant 0 : i32
    return %c0_i32, %c0_i32_0 : i32, i32
  }
  func.func @transform_31(%arg0: i32) -> (i32, i32) {
    %c0_i32 = arith.constant 0 : i32
    %c0_i32_0 = arith.constant 0 : i32
    %c0_i32_1 = arith.constant 0 : i32
    return %c0_i32, %c0_i32_0 : i32, i32
  }
  func.func @transform_32(%arg0: i32) -> (i32, i32) {
    %c0_i32 = arith.constant 0 : i32
    %c0_i32_0 = arith.constant 0 : i32
    %c0_i32_1 = arith.constant 0 : i32
    return %c0_i32, %c0_i32_0 : i32, i32
  }
  func.func @transform_33(%arg0: i32) -> (i32, i32) {
    %c0_i32 = arith.constant 0 : i32
    %c0_i32_0 = arith.constant 0 : i32
    %c0_i32_1 = arith.constant 0 : i32
    return %c0_i32, %c0_i32_0 : i32, i32
  }
}

</mosaic_0001>

<llo_original>
// kernel: forward.1
$region0: #{forward.1}
  #allocation0 [shape = 'u32[]', space=smem, size = 0x4, offset = 0x4, fixed_abs, tag = 'smem constant byte address 0x4 - core index']
  #allocation1 [shape = 'u32[144,128]{1,0:T(1,128)}', space=vmem, size = 0x12000, scoped, tag = 'internal scratch']
  %s0 = inlined_call_operand.smem [shape: u32[34], index: -1, kind: input, shape index: {}]
  %s1 = sld [smem:[%s0]]
  %s2 = scalar_lea.smem %s0, 1
  %s3 = sld [smem:[%s2]]
  %s4 = scalar_lea.smem %s0, 2
  %s5 = sld [smem:[%s4]]
  %s6 = scalar_lea.smem %s0, 3
  %s7 = sld [smem:[%s6]]
  %s8 = scalar_lea.smem %s0, 4
  %s9 = sld [smem:[%s8]]
  %s10 = scalar_lea.smem %s0, 5
  %s11 = sld [smem:[%s10]]
  %s12 = scalar_lea.smem %s0, 6
  %s13 = sld [smem:[%s12]]
  %s14 = scalar_lea.smem %s0, 7
  %s15 = sld [smem:[%s14]]
  %s16 = scalar_lea.smem %s0, 8
  %s17 = sld [smem:[%s16]]
  %s18 = scalar_lea.smem %s0, 9
  %s19 = sld [smem:[%s18]]
  %s20 = scalar_lea.smem %s0, 10
  %s21 = sld [smem:[%s20]]
  %s22 = scalar_lea.smem %s0, 11
  %s23 = sld [smem:[%s22]]
  %s24 = scalar_lea.smem %s0, 12
  %s25 = sld [smem:[%s24]]
  %s26 = scalar_lea.smem %s0, 13
  %s27 = sld [smem:[%s26]]
  %s28 = scalar_lea.smem %s0, 14
  %s29 = sld [smem:[%s28]]
  %s30 = scalar_lea.smem %s0, 15
  %s31 = sld [smem:[%s30]]
  %s32 = scalar_lea.smem %s0, 16
  %s33 = sld [smem:[%s32]]
  %s34 = scalar_lea.smem %s0, 17
  %s35 = sld [smem:[%s34]]
  %s36 = scalar_lea.smem %s0, 18
  %s37 = sld [smem:[%s36]]
  %s38 = scalar_lea.smem %s0, 19
  %s39 = sld [smem:[%s38]]
  %s40 = scalar_lea.smem %s0, 20
  %s41 = sld [smem:[%s40]]
  %s42 = scalar_lea.smem %s0, 21
  %s43 = sld [smem:[%s42]]
  %s44 = scalar_lea.smem %s0, 22
  %s45 = sld [smem:[%s44]]
  %s46 = scalar_lea.smem %s0, 23
  %s47 = sld [smem:[%s46]]
  %s48 = scalar_lea.smem %s0, 24
  %s49 = sld [smem:[%s48]]
  %s50 = scalar_lea.smem %s0, 25
  %s51 = sld [smem:[%s50]]
  %s52 = scalar_lea.smem %s0, 26
  %s53 = sld [smem:[%s52]]
  %s54 = scalar_lea.smem %s0, 27
  %s55 = sld [smem:[%s54]]
  %s56 = scalar_lea.smem %s0, 28
  %s57 = sld [smem:[%s56]]
  %s58 = scalar_lea.smem %s0, 29
  %s59 = sld [smem:[%s58]]
  %s60 = scalar_lea.smem %s0, 30
  %s61 = sld [smem:[%s60]]
  %s62 = scalar_lea.smem %s0, 31
  %s63 = sld [smem:[%s62]]
  %s64 = scalar_lea.smem %s0, 32
  %s65 = sld [smem:[%s64]]
  %s66 = scalar_lea.smem %s0, 33
  %s67 = sld [smem:[%s66]]
  %s68 = sld [smem:[#allocation0]]
  $region206: #{forward.1} parent=0
    _
  %s70 = ssub.s32 1, %s68
  %s71 = scalar_select 0, %s70, %s68
  $region1: #{forward.1} parent=0
    #allocation2 [shape = 'u8[16384]{0}', space=vmem, size = 0x4000, scoped, tag = 'input window, operand 4, single buffered']
    #allocation3 [shape = 's32[1]{0}', space=sflag, size = 0x4, scoped, tag = 'scoped memory for forward.1']
    #allocation4 [shape = 's32[1]{0}', space=sflag, size = 0x4, scoped, tag = 'scoped memory for forward.1']
    #allocation5 [shape = 'u8[1024]{0}', space=vmem, size = 0x400, scoped, tag = 'input window, operand 5, single buffered']
    #allocation6 [shape = 's32[1]{0}', space=sflag, size = 0x4, scoped, tag = 'scoped memory for forward.1']
    #allocation7 [shape = 'u8[512]{0}', space=vmem, size = 0x400, scoped, tag = 'input window, operand 6, single buffered']
    #allocation8 [shape = 'u8[512]{0}', space=vmem, size = 0x400, scoped, tag = 'input window, operand 7, single buffered']
    #allocation9 [shape = 's32[1]{0}', space=sflag, size = 0x4, scoped, tag = 'scoped memory for forward.1']
    #allocation10 [shape = 'u8[1024]{0}', space=vmem, size = 0x400, scoped, tag = 'input window, operand 9, single buffered']
    #allocation11 [shape = 'u8[1024]{0}', space=vmem, size = 0x400, scoped, tag = 'input window, operand 11, single buffered']
    #allocation12 [shape = 's32[1]{0}', space=sflag, size = 0x4, scoped, tag = 'scoped memory for forward.1']
    #allocation13 [shape = 'u8[1024]{0}', space=vmem, size = 0x400, scoped, tag = 'input window, operand 12, single buffered']
    #allocation14 [shape = 'u8[1024]{0}', space=vmem, size = 0x400, scoped, tag = 'input window, operand 13, single buffered']
    #allocation15 [shape = 's32[1]{0}', space=sflag, size = 0x4, scoped, tag = 'scoped memory for forward.1']
    #allocation16 [shape = 'u8[1024]{0}', space=vmem, size = 0x400, scoped, tag = 'input window, operand 15, single buffered']
    #allocation17 [shape = 'u8[1024]{0}', space=vmem, size = 0x400, scoped, tag = 'input window, operand 17, single buffered']
    #allocation18 [shape = 's32[1]{0}', space=sflag, size = 0x4, scoped, tag = 'scoped memory for forward.1']
    #allocation19 [shape = 'u8[1024]{0}', space=vmem, size = 0x400, scoped, tag = 'input window, operand 18, single buffered']
    #allocation20 [shape = 'u8[1024]{0}', space=vmem, size = 0x400, scoped, tag = 'input window, operand 19, single buffered']
    #allocation21 [shape = 's32[1]{0}', space=sflag, size = 0x4, scoped, tag = 'scoped memory for forward.1']
    #allocation22 [shape = 'u8[16384]{0}', space=vmem, size = 0x4000, scoped, tag = 'input window, operand 24, single buffered']
    #allocation23 [shape = 'u8[512]{0}', space=vmem, size = 0x400, scoped, tag = 'input window, operand 30, single buffered']
    #allocation24 [shape = 's32[1]{0}', space=sflag, size = 0x4, scoped, tag = 'scoped memory for forward.1']
    #allocation25 [shape = 'u8[4096]{0}', space=vmem, size = 0x1000, scoped, tag = 'input window, operand 31, single buffered']
    #allocation26 [shape = 'u8[512]{0}', space=vmem, size = 0x400, scoped, tag = 'input window, operand 32, single buffered']
    #allocation27 [shape = 's32[1]{0}', space=sflag, size = 0x4, scoped, tag = 'scoped memory for forward.1']
    #allocation28 [shape = 'u8[512]{0}', space=vmem, size = 0x400, scoped, tag = 'output window, operand 0, single buffered']
    %72 = vsyncpa [#allocation3], 0
    %73 = vsyncpa [#allocation6], 0
    %74 = vsyncpa [#allocation9], 0
    %75 = vsyncpa [#allocation12], 0
    %76 = vsyncpa [#allocation15], 0
    %77 = vsyncpa [#allocation18], 0
    %78 = vsyncpa [#allocation21], 0
    %79 = vsyncpa [#allocation24], 0
    %80 = vsyncpa [#allocation27], 0
    %81 = vsyncpa [#allocation4], 0
    // Predicated region
    $region2: #{forward.1} parent=1 // pred_check
      _
    $region3: #{forward.1} parent=1 // pred_check_branch
      %83 = sbr.rel (0) target = $region5
    $region4: #{forward.1} parent=1 // pred_region
      _
    $region5: #{forward.1} parent=1 // pred_fallthru
      _
    // Predicated region
    $region6: #{forward.1} parent=1 // pred_check
      _
    $region7: #{forward.1} parent=1 // pred_check_branch
      %85 = sbr.rel (0) target = $region9
    $region8: #{forward.1} parent=1 // pred_region
      _
    $region9: #{forward.1} parent=1 // pred_fallthru
      _
    // Predicated region
    $region10: #{forward.1} parent=1 // pred_check
      _
    $region11: #{forward.1} parent=1 // pred_check_branch
      %87 = sbr.rel (0) target = $region13
    $region12: #{forward.1} parent=1 // pred_region
      _
    $region13: #{forward.1} parent=1 // pred_fallthru
      _
    // Predicated region
    $region14: #{forward.1} parent=1 // pred_check
      _
    $region15: #{forward.1} parent=1 // pred_check_branch
      %89 = sbr.rel (0) target = $region17
    $region16: #{forward.1} parent=1 // pred_region
      _
    $region17: #{forward.1} parent=1 // pred_fallthru
      _
    // Predicated region
    $region18: #{forward.1} parent=1 // pred_check
      _
    $region19: #{forward.1} parent=1 // pred_check_branch
      %91 = sbr.rel (0) target = $region21
    $region20: #{forward.1} parent=1 // pred_region
      %s93 = ssub.s32 512, 512
      %94 = vsyncadd [#allocation3], %s93
      %s95 = sshll.u32 [#allocation2], 4
      %s96 = int_to_ptr.vmem [resolvable:$true] %s95
      %101 = dma.hbm_to_vmem [thread:$0]  %s9, 512, %s96, [#allocation3], 128, 128, 8
    $region21: #{forward.1} parent=1 // pred_fallthru
      _
    // Predicated region
    $region22: #{forward.1} parent=1 // pred_check
      _
    $region23: #{forward.1} parent=1 // pred_check_branch
      %103 = sbr.rel (0) target = $region25
    $region24: #{forward.1} parent=1 // pred_region
      %s105 = ssub.s32 32, 32
      %106 = vsyncadd [#allocation6], %s105
      %s108 = sshll.u32 [#allocation5], 4
      %s109 = int_to_ptr.vmem [resolvable:$true] %s108
      %111 = dma.hbm_to_vmem [thread:$0]  %s11, 32, %s109, [#allocation6]
    $region25: #{forward.1} parent=1 // pred_fallthru
      _
    // Predicated region
    $region26: #{forward.1} parent=1 // pred_check
      _
    $region27: #{forward.1} parent=1 // pred_check_branch
      %113 = sbr.rel (0) target = $region29
    $region28: #{forward.1} parent=1 // pred_region
      %s115 = ssub.s32 16, 16
      %116 = vsyncadd [#allocation6], %s115
      %s118 = sshll.u32 [#allocation7], 4
      %s119 = int_to_ptr.vmem [resolvable:$true] %s118
      %121 = dma.hbm_to_vmem [thread:$0]  %s13, 16, %s119, [#allocation6]
    $region29: #{forward.1} parent=1 // pred_fallthru
      _
    // Predicated region
    $region30: #{forward.1} parent=1 // pred_check
      _
    $region31: #{forward.1} parent=1 // pred_check_branch
      %123 = sbr.rel (0) target = $region33
    $region32: #{forward.1} parent=1 // pred_region
      %s125 = ssub.s32 16, 16
      %126 = vsyncadd [#allocation9], %s125
      %s128 = sshll.u32 [#allocation8], 4
      %s129 = int_to_ptr.vmem [resolvable:$true] %s128
      %131 = dma.hbm_to_vmem [thread:$0]  %s15, 16, %s129, [#allocation9]
    $region33: #{forward.1} parent=1 // pred_fallthru
      _
    // Predicated region
    $region34: #{forward.1} parent=1 // pred_check
      _
    $region35: #{forward.1} parent=1 // pred_check_branch
      %133 = sbr.rel (0) target = $region37
    $region36: #{forward.1} parent=1 // pred_region
      _
    $region37: #{forward.1} parent=1 // pred_fallthru
      _
    // Predicated region
    $region38: #{forward.1} parent=1 // pred_check
      _
    $region39: #{forward.1} parent=1 // pred_check_branch
      %135 = sbr.rel (0) target = $region41
    $region40: #{forward.1} parent=1 // pred_region
      %s137 = ssub.s32 32, 32
      %138 = vsyncadd [#allocation9], %s137
      %s139 = sshll.u32 [#allocation10], 4
      %s140 = int_to_ptr.vmem [resolvable:$true] %s139
      %145 = dma.hbm_to_vmem [thread:$0]  %s19, 32, %s140, [#allocation9], 16, 16, 1
    $region41: #{forward.1} parent=1 // pred_fallthru
      _
    // Predicated region
    $region42: #{forward.1} parent=1 // pred_check
      _
    $region43: #{forward.1} parent=1 // pred_check_branch
      %147 = sbr.rel (0) target = $region45
    $region44: #{forward.1} parent=1 // pred_region
      _
    $region45: #{forward.1} parent=1 // pred_fallthru
      _
    // Predicated region
    $region46: #{forward.1} parent=1 // pred_check
      _
    $region47: #{forward.1} parent=1 // pred_check_branch
      %149 = sbr.rel (0) target = $region49
    $region48: #{forward.1} parent=1 // pred_region
      %s151 = ssub.s32 32, 32
      %152 = vsyncadd [#allocation12], %s151
      %s153 = sshll.u32 [#allocation11], 4
      %s154 = int_to_ptr.vmem [resolvable:$true] %s153
      %159 = dma.hbm_to_vmem [thread:$0]  %s23, 32, %s154, [#allocation12], 16, 16, 1
    $region49: #{forward.1} parent=1 // pred_fallthru
      _
    // Predicated region
    $region50: #{forward.1} parent=1 // pred_check
      _
    $region51: #{forward.1} parent=1 // pred_check_branch
      %161 = sbr.rel (0) target = $region53
    $region52: #{forward.1} parent=1 // pred_region
      %s163 = ssub.s32 32, 32
      %164 = vsyncadd [#allocation12], %s163
      %s165 = sshll.u32 [#allocation13], 4
      %s166 = int_to_ptr.vmem [resolvable:$true] %s165
      %171 = dma.hbm_to_vmem [thread:$0]  %s25, 32, %s166, [#allocation12], 16, 16, 1
    $region53: #{forward.1} parent=1 // pred_fallthru
      _
    // Predicated region
    $region54: #{forward.1} parent=1 // pred_check
      _
    $region55: #{forward.1} parent=1 // pred_check_branch
      %173 = sbr.rel (0) target = $region57
    $region56: #{forward.1} parent=1 // pred_region
      %s175 = ssub.s32 32, 32
      %176 = vsyncadd [#allocation15], %s175
      %s177 = sshll.u32 [#allocation14], 4
      %s178 = int_to_ptr.vmem [resolvable:$true] %s177
      %183 = dma.hbm_to_vmem [thread:$0]  %s27, 32, %s178, [#allocation15], 16, 16, 1
    $region57: #{forward.1} parent=1 // pred_fallthru
      _
    // Predicated region
    $region58: #{forward.1} parent=1 // pred_check
      _
    $region59: #{forward.1} parent=1 // pred_check_branch
      %185 = sbr.rel (0) target = $region61
    $region60: #{forward.1} parent=1 // pred_region
      _
    $region61: #{forward.1} parent=1 // pred_fallthru
      _
    // Predicated region
    $region62: #{forward.1} parent=1 // pred_check
      _
    $region63: #{forward.1} parent=1 // pred_check_branch
      %187 = sbr.rel (0) target = $region65
    $region64: #{forward.1} parent=1 // pred_region
      %s189 = ssub.s32 32, 32
      %190 = vsyncadd [#allocation15], %s189
      %s191 = sshll.u32 [#allocation16], 4
      %s192 = int_to_ptr.vmem [resolvable:$true] %s191
      %197 = dma.hbm_to_vmem [thread:$0]  %s31, 32, %s192, [#allocation15], 16, 16, 1
    $region65: #{forward.1} parent=1 // pred_fallthru
      _
    // Predicated region
    $region66: #{forward.1} parent=1 // pred_check
      _
    $region67: #{forward.1} parent=1 // pred_check_branch
      %199 = sbr.rel (0) target = $region69
    $region68: #{forward.1} parent=1 // pred_region
      _
    $region69: #{forward.1} parent=1 // pred_fallthru
      _
    // Predicated region
    $region70: #{forward.1} parent=1 // pred_check
      _
    $region71: #{forward.1} parent=1 // pred_check_branch
      %201 = sbr.rel (0) target = $region73
    $region72: #{forward.1} parent=1 // pred_region
      %s203 = ssub.s32 32, 32
      %204 = vsyncadd [#allocation18], %s203
      %s205 = sshll.u32 [#allocation17], 4
      %s206 = int_to_ptr.vmem [resolvable:$true] %s205
      %211 = dma.hbm_to_vmem [thread:$0]  %s35, 32, %s206, [#allocation18], 16, 16, 1
    $region73: #{forward.1} parent=1 // pred_fallthru
      _
    // Predicated region
    $region74: #{forward.1} parent=1 // pred_check
      _
    $region75: #{forward.1} parent=1 // pred_check_branch
      %213 = sbr.rel (0) target = $region77
    $region76: #{forward.1} parent=1 // pred_region
      %s215 = ssub.s32 32, 32
      %216 = vsyncadd [#allocation18], %s215
      %s217 = sshll.u32 [#allocation19], 4
      %s218 = int_to_ptr.vmem [resolvable:$true] %s217
      %223 = dma.hbm_to_vmem [thread:$0]  %s37, 32, %s218, [#allocation18], 16, 16, 1
    $region77: #{forward.1} parent=1 // pred_fallthru
      _
    // Predicated region
    $region78: #{forward.1} parent=1 // pred_check
      _
    $region79: #{forward.1} parent=1 // pred_check_branch
      %225 = sbr.rel (0) target = $region81
    $region80: #{forward.1} parent=1 // pred_region
      %s227 = ssub.s32 32, 32
      %228 = vsyncadd [#allocation21], %s227
      %s229 = sshll.u32 [#allocation20], 4
      %s230 = int_to_ptr.vmem [resolvable:$true] %s229
      %235 = dma.hbm_to_vmem [thread:$0]  %s39, 32, %s230, [#allocation21], 16, 16, 1
    $region81: #{forward.1} parent=1 // pred_fallthru
      _
    // Predicated region
    $region82: #{forward.1} parent=1 // pred_check
      _
    $region83: #{forward.1} parent=1 // pred_check_branch
      %237 = sbr.rel (0) target = $region85
    $region84: #{forward.1} parent=1 // pred_region
      _
    $region85: #{forward.1} parent=1 // pred_fallthru
      _
    // Predicated region
    $region86: #{forward.1} parent=1 // pred_check
      _
    $region87: #{forward.1} parent=1 // pred_check_branch
      %239 = sbr.rel (0) target = $region89
    $region88: #{forward.1} parent=1 // pred_region
      _
    $region89: #{forward.1} parent=1 // pred_fallthru
      _
    // Predicated region
    $region90: #{forward.1} parent=1 // pred_check
      _
    $region91: #{forward.1} parent=1 // pred_check_branch
      %241 = sbr.rel (0) target = $region93
    $region92: #{forward.1} parent=1 // pred_region
      _
    $region93: #{forward.1} parent=1 // pred_fallthru
      _
    // Predicated region
    $region94: #{forward.1} parent=1 // pred_check
      _
    $region95: #{forward.1} parent=1 // pred_check_branch
      %243 = sbr.rel (0) target = $region97
    $region96: #{forward.1} parent=1 // pred_region
      _
    $region97: #{forward.1} parent=1 // pred_fallthru
      _
    // Predicated region
    $region98: #{forward.1} parent=1 // pred_check
      _
    $region99: #{forward.1} parent=1 // pred_check_branch
      %245 = sbr.rel (0) target = $region101
    $region100: #{forward.1} parent=1 // pred_region
      %s247 = ssub.s32 512, 512
      %248 = vsyncadd [#allocation21], %s247
      %s249 = sshll.u32 [#allocation22], 4
      %s250 = int_to_ptr.vmem [resolvable:$true] %s249
      %255 = dma.hbm_to_vmem [thread:$0]  %s49, 512, %s250, [#allocation21], 128, 128, 8
    $region101: #{forward.1} parent=1 // pred_fallthru
      _
    // Predicated region
    $region102: #{forward.1} parent=1 // pred_check
      _
    $region103: #{forward.1} parent=1 // pred_check_branch
      %257 = sbr.rel (0) target = $region105
    $region104: #{forward.1} parent=1 // pred_region
      _
    $region105: #{forward.1} parent=1 // pred_fallthru
      _
    // Predicated region
    $region106: #{forward.1} parent=1 // pred_check
      _
    $region107: #{forward.1} parent=1 // pred_check_branch
      %259 = sbr.rel (0) target = $region109
    $region108: #{forward.1} parent=1 // pred_region
      _
    $region109: #{forward.1} parent=1 // pred_fallthru
      _
    // Predicated region
    $region110: #{forward.1} parent=1 // pred_check
      _
    $region111: #{forward.1} parent=1 // pred_check_branch
      %261 = sbr.rel (0) target = $region113
    $region112: #{forward.1} parent=1 // pred_region
      _
    $region113: #{forward.1} parent=1 // pred_fallthru
      _
    // Predicated region
    $region114: #{forward.1} parent=1 // pred_check
      _
    $region115: #{forward.1} parent=1 // pred_check_branch
      %263 = sbr.rel (0) target = $region117
    $region116: #{forward.1} parent=1 // pred_region
      _
    $region117: #{forward.1} parent=1 // pred_fallthru
      _
    // Predicated region
    $region118: #{forward.1} parent=1 // pred_check
      _
    $region119: #{forward.1} parent=1 // pred_check_branch
      %265 = sbr.rel (0) target = $region121
    $region120: #{forward.1} parent=1 // pred_region
      _
    $region121: #{forward.1} parent=1 // pred_fallthru
      _
    // Predicated region
    $region122: #{forward.1} parent=1 // pred_check
      _
    $region123: #{forward.1} parent=1 // pred_check_branch
      %267 = sbr.rel (0) target = $region125
    $region124: #{forward.1} parent=1 // pred_region
      %s269 = ssub.s32 16, 16
      %270 = vsyncadd [#allocation24], %s269
      %s272 = sshll.u32 [#allocation23], 4
      %s273 = int_to_ptr.vmem [resolvable:$true] %s272
      %275 = dma.hbm_to_vmem [thread:$0]  %s61, 16, %s273, [#allocation24]
    $region125: #{forward.1} parent=1 // pred_fallthru
      _
    // Predicated region
    $region126: #{forward.1} parent=1 // pred_check
      _
    $region127: #{forward.1} parent=1 // pred_check_branch
      %277 = sbr.rel (0) target = $region129
    $region128: #{forward.1} parent=1 // pred_region
      %s279 = ssub.s32 128, 128
      %280 = vsyncadd [#allocation24], %s279
      %s282 = sshll.u32 [#allocation25], 4
      %s283 = int_to_ptr.vmem [resolvable:$true] %s282
      %285 = dma.hbm_to_vmem [thread:$0]  %s63, 128, %s283, [#allocation24]
    $region129: #{forward.1} parent=1 // pred_fallthru
      _
    // Predicated region
    $region130: #{forward.1} parent=1 // pred_check
      _
    $region131: #{forward.1} parent=1 // pred_check_branch
      %287 = sbr.rel (0) target = $region133
    $region132: #{forward.1} parent=1 // pred_region
      %s289 = ssub.s32 16, 16
      %290 = vsyncadd [#allocation27], %s289
      %s292 = sshll.u32 [#allocation26], 4
      %s293 = int_to_ptr.vmem [resolvable:$true] %s292
      %295 = dma.hbm_to_vmem [thread:$0]  %s65, 16, %s293, [#allocation27]
    $region133: #{forward.1} parent=1 // pred_fallthru
      _
    // Predicated region
    $region134: #{forward.1} parent=1 // pred_check
      _
    $region135: #{forward.1} parent=1 // pred_check_branch
      %297 = sbr.rel (0) target = $region137
    $region136: #{forward.1} parent=1 // pred_region
      %298 = dma.done [#allocation3], 512
    $region137: #{forward.1} parent=1 // pred_fallthru
      _
    // Predicated region
    $region138: #{forward.1} parent=1 // pred_check
      _
    $region139: #{forward.1} parent=1 // pred_check_branch
      %300 = sbr.rel (0) target = $region141
    $region140: #{forward.1} parent=1 // pred_region
      %301 = dma.done [#allocation6], 32
    $region141: #{forward.1} parent=1 // pred_fallthru
      _
    // Predicated region
    $region142: #{forward.1} parent=1 // pred_check
      _
    $region143: #{forward.1} parent=1 // pred_check_branch
      %303 = sbr.rel (0) target = $region145
    $region144: #{forward.1} parent=1 // pred_region
      %304 = dma.done [#allocation6], 16
    $region145: #{forward.1} parent=1 // pred_fallthru
      _
    // Predicated region
    $region146: #{forward.1} parent=1 // pred_check
      _
    $region147: #{forward.1} parent=1 // pred_check_branch
      %306 = sbr.rel (0) target = $region149
    $region148: #{forward.1} parent=1 // pred_region
      %307 = dma.done [#allocation9], 16
    $region149: #{forward.1} parent=1 // pred_fallthru
      _
    // Predicated region
    $region150: #{forward.1} parent=1 // pred_check
      _
    $region151: #{forward.1} parent=1 // pred_check_branch
      %309 = sbr.rel (0) target = $region153
    $region152: #{forward.1} parent=1 // pred_region
      %310 = dma.done [#allocation9], 32
    $region153: #{forward.1} parent=1 // pred_fallthru
      _
    // Predicated region
    $region154: #{forward.1} parent=1 // pred_check
      _
    $region155: #{forward.1} parent=1 // pred_check_branch
      %312 = sbr.rel (0) target = $region157
    $region156: #{forward.1} parent=1 // pred_region
      %313 = dma.done [#allocation12], 32
    $region157: #{forward.1} parent=1 // pred_fallthru
      _
    // Predicated region
    $region158: #{forward.1} parent=1 // pred_check
      _
    $region159: #{forward.1} parent=1 // pred_check_branch
      %315 = sbr.rel (0) target = $region161
    $region160: #{forward.1} parent=1 // pred_region
      %316 = dma.done [#allocation12], 32
    $region161: #{forward.1} parent=1 // pred_fallthru
      _
    // Predicated region
    $region162: #{forward.1} parent=1 // pred_check
      _
    $region163: #{forward.1} parent=1 // pred_check_branch
      %318 = sbr.rel (0) target = $region165
    $region164: #{forward.1} parent=1 // pred_region
      %319 = dma.done [#allocation15], 32
    $region165: #{forward.1} parent=1 // pred_fallthru
      _
    // Predicated region
    $region166: #{forward.1} parent=1 // pred_check
      _
    $region167: #{forward.1} parent=1 // pred_check_branch
      %321 = sbr.rel (0) target = $region169
    $region168: #{forward.1} parent=1 // pred_region
      %322 = dma.done [#allocation15], 32
    $region169: #{forward.1} parent=1 // pred_fallthru
      _
    // Predicated region
    $region170: #{forward.1} parent=1 // pred_check
      _
    $region171: #{forward.1} parent=1 // pred_check_branch
      %324 = sbr.rel (0) target = $region173
    $region172: #{forward.1} parent=1 // pred_region
      %325 = dma.done [#allocation18], 32
    $region173: #{forward.1} parent=1 // pred_fallthru
      _
    // Predicated region
    $region174: #{forward.1} parent=1 // pred_check
      _
    $region175: #{forward.1} parent=1 // pred_check_branch
      %327 = sbr.rel (0) target = $region177
    $region176: #{forward.1} parent=1 // pred_region
      %328 = dma.done [#allocation18], 32
    $region177: #{forward.1} parent=1 // pred_fallthru
      _
    // Predicated region
    $region178: #{forward.1} parent=1 // pred_check
      _
    $region179: #{forward.1} parent=1 // pred_check_branch
      %330 = sbr.rel (0) target = $region181
    $region180: #{forward.1} parent=1 // pred_region
      %331 = dma.done [#allocation21], 32
    $region181: #{forward.1} parent=1 // pred_fallthru
      _
    // Predicated region
    $region182: #{forward.1} parent=1 // pred_check
      _
    $region183: #{forward.1} parent=1 // pred_check_branch
      %333 = sbr.rel (0) target = $region185
    $region184: #{forward.1} parent=1 // pred_region
      %334 = dma.done [#allocation21], 512
    $region185: #{forward.1} parent=1 // pred_fallthru
      _
    // Predicated region
    $region186: #{forward.1} parent=1 // pred_check
      _
    $region187: #{forward.1} parent=1 // pred_check_branch
      %336 = sbr.rel (0) target = $region189
    $region188: #{forward.1} parent=1 // pred_region
      %337 = dma.done [#allocation24], 16
    $region189: #{forward.1} parent=1 // pred_fallthru
      _
    // Predicated region
    $region190: #{forward.1} parent=1 // pred_check
      _
    $region191: #{forward.1} parent=1 // pred_check_branch
      %339 = sbr.rel (0) target = $region193
    $region192: #{forward.1} parent=1 // pred_region
      %340 = dma.done [#allocation24], 128
    $region193: #{forward.1} parent=1 // pred_fallthru
      _
    // Predicated region
    $region194: #{forward.1} parent=1 // pred_check
      _
    $region195: #{forward.1} parent=1 // pred_check_branch
      %342 = sbr.rel (0) target = $region197
    $region196: #{forward.1} parent=1 // pred_region
      %343 = dma.done [#allocation27], 16
    $region197: #{forward.1} parent=1 // pred_fallthru
      _
    %v344 = vld [vmem:[%s1] sm:$0xff]
    %v345 = vld [vmem:[%s1 + $0x8] sm:$0xff]
    %v346 = vlaneseq
    %v347 = vand.u32 %v346, 127
    %348 = vset.pattern.permute.xlu0 0
    %349 = vperm.xlu0 %348, %v344
    %v350 = vpop.permute.xlu0 %349
    %351 = vset.pattern.permute.xlu0 0
    %352 = vperm.xlu0 %351, %v345
    %v353 = vpop.permute.xlu0 %352
    %vm354 = vcmp.eq.s32.totalorder %v347, %v350
    %vm355 = vcmp.eq.s32.totalorder %v347, %v353
    %v356 = vsel %vm354, 1, 0
    %v357 = vsel %vm355, 1, 0
    %v358 = vcvt.s32.f32 %v356
    %v359 = vcvt.s32.f32 %v357
    %v360 = vld [vmem:[%s7] sm:$0xff]
    %v361 = vld [vmem:[%s7 + $0x8] sm:$0xff]
    %v362 = vld [vmem:[%s7 + $0x10] sm:$0xff]
    %v363 = vld [vmem:[%s7 + $0x18] sm:$0xff]
    %v364 = vld [vmem:[%s7 + $0x20] sm:$0xff]
    %v365 = vld [vmem:[%s7 + $0x28] sm:$0xff]
    %v366 = vld [vmem:[%s7 + $0x30] sm:$0xff]
    %v367 = vld [vmem:[%s7 + $0x38] sm:$0xff]
    %vm368 = vcmask 523264
    %v370 = vsel %vm368, %v358, 0
    %v373 = vsel %vm368, %v359, 0
    %375 = vmatprep.subr.mxu0 0.0
    %376 = vmatpush1.msra.mxu0 %v360
    %377 = vmatprep.subr.mxu0 0.0
    %378 = vmatpush1.msra.mxu0 %v361
    %379 = vmatprep.subr.mxu0 0.0
    %380 = vmatpush1.msra.mxu0 %v362
    %381 = vmatprep.subr.mxu0 0.0
    %382 = vmatpush1.msra.mxu0 %v363
    %383 = vmatprep.subr.mxu0 0.0
    %384 = vmatpush1.msra.mxu0 %v364
    %385 = vmatprep.subr.mxu0 0.0
    %386 = vmatpush1.msra.mxu0 %v365
    %387 = vmatprep.subr.mxu0 0.0
    %388 = vmatpush1.msra.mxu0 %v366
    %389 = vmatprep.subr.mxu0 0.0
    %390 = vmatpush1.msra.mxu0 %v367
    %391 = vmatprep.subr.mxu0 0.0
    %392 = vmatpush1.msra.mxu0 0.0
    %393 = vmatprep.subr.mxu0 0.0
    %394 = vmatpush1.msra.mxu0 0.0
    %395 = vmatprep.subr.mxu0 0.0
    %396 = vmatpush1.msra.mxu0 0.0
    %397 = vmatprep.subr.mxu0 0.0
    %398 = vmatpush1.msra.mxu0 0.0
    %399 = vmatprep.subr.mxu0 0.0
    %400 = vmatpush1.msra.mxu0 0.0
    %401 = vmatprep.subr.mxu0 0.0
    %402 = vmatpush1.msra.mxu0 0.0
    %403 = vmatprep.subr.mxu0 0.0
    %404 = vmatpush1.msra.mxu0 0.0
    %405 = vmatprep.subr.mxu0 0.0
    %406 = vmatpush1.msra.mxu0 0.0
    %407 = vmatprep.subr.mxu0 0.0
    %408 = vmatpush1.msra.mxu0 0.0
    %409 = vmatprep.subr.mxu0 0.0
    %410 = vmatpush1.msra.mxu0 0.0
    %411 = vmatprep.subr.mxu0 0.0
    %412 = vmatpush1.msra.mxu0 0.0
    %413 = vmatprep.subr.mxu0 0.0
    %414 = vmatpush1.msra.mxu0 0.0
    %415 = vmatprep.subr.mxu0 0.0
    %416 = vmatpush1.msra.mxu0 0.0
    %417 = vmatprep.subr.mxu0 0.0
    %418 = vmatpush1.msra.mxu0 0.0
    %419 = vmatprep.subr.mxu0 0.0
    %420 = vmatpush1.msra.mxu0 0.0
    %421 = vmatprep.subr.mxu0 0.0
    %422 = vmatpush1.msra.mxu0 0.0
    %423 = vmatprep.subr.mxu0 0.0
    %424 = vmatpush1.msra.mxu0 0.0
    %425 = vmatprep.subr.mxu0 0.0
    %426 = vmatpush1.msra.mxu0 0.0
    %427 = vmatprep.subr.mxu0 0.0
    %428 = vmatpush1.msra.mxu0 0.0
    %429 = vmatprep.subr.mxu0 0.0
    %430 = vmatpush1.msra.mxu0 0.0
    %431 = vmatprep.subr.mxu0 0.0
    %432 = vmatpush1.msra.mxu0 0.0
    %433 = vmatprep.subr.mxu0 0.0
    %434 = vmatpush1.msra.mxu0 0.0
    %435 = vmatprep.subr.mxu0 0.0
    %436 = vmatpush1.msra.mxu0 0.0
    %437 = vmatprep.subr.mxu0 0.0
    %438 = vmatpush1.msra.mxu0 0.0
    %439 = vmatprep.mubr.f32.mxu0 0.0
    %440 = vmatmul.mubr.f32.gmra.mrb[0].mxu0 %v370
    %v441 = vpop.f32.mrb[0].mxu0
    %v442 = vadd.f32 0.0, %v441
    %v443 = vpop.f32.mrb[0].mxu0
    %444 = vmatprep.mubr.f32.mxu0 0.0
    %445 = vmatmul.mubr.f32.gmra.mrb[0].mxu0 %v373
    %v446 = vpop.f32.mrb[0].mxu0
    %v447 = vadd.f32 0.0, %v446
    %v448 = vpop.f32.mrb[0].mxu0
    %449 = vdwg.mxu0
    %v450 = vld [vmem:[#allocation2] sm:$0xff]
    %v451 = vld [vmem:[#allocation5] sm:$0x3]
    %v452 = vadd.f32 %v442, %v450
    %v453 = vadd.f32 %v447, %v450
    %v454 = vlaneseq
    %v455 = vshrl.u32 %v454, 7
    %v456 = vsub.s32 0, %v455
    %v457 = vrot.slane %v451, %v456
    %v458 = vadd.f32 %v452, %v457
    %v459 = vadd.f32 %v453, %v457
    %v460 = vld [vmem:[#allocation7] sm:$0x1]
    %v461 = vld [vmem:[#allocation8] sm:$0x1]
    %vm462 = vcmask 261120
    %v463 = vsel %vm462, %v458, 0.0
    %464 = vadd.xlane.f32.xlu0 %v463
    %v465 = vpop.xlane.xlu0 %464
    %v466 = vsel %vm462, %v459, 0.0
    %467 = vadd.xlane.f32.xlu0 %v466
    %v468 = vpop.xlane.xlu0 %467
    %v469 = vrcp.pop 32.0
    %v470 = vmul.f32 %v465, %v469
    %v471 = vmul.f32 %v468, %v469
    %v472 = vmul.f32 %v458, %v458
    %v473 = vmul.f32 %v459, %v459
    %v474 = vsel %vm462, %v472, 0.0
    %475 = vadd.xlane.f32.xlu0 %v474
    %v476 = vpop.xlane.xlu0 %475
    %v477 = vsel %vm462, %v473, 0.0
    %478 = vadd.xlane.f32.xlu0 %v477
    %v479 = vpop.xlane.xlu0 %478
    %v480 = vmul.f32 %v476, %v469
    %v481 = vmul.f32 %v479, %v469
    %v482 = vmul.f32 %v470, %v470
    %v483 = vmul.f32 %v471, %v471
    %v484 = vsub.f32 %v480, %v482
    %v485 = vsub.f32 %v481, %v483
    %v486 = vmax.f32 %v484, 0.0
    %v487 = vmax.f32 %v485, 0.0
    %v488 = vsub.f32 %v458, %v470
    %v489 = vsub.f32 %v459, %v471
    %v490 = vadd.f32 %v486, 1e-12
    %v491 = vadd.f32 %v487, 1e-12
    %v492 = vrsqrt.pop %v490
    %v493 = vrsqrt.pop %v491
    %v494 = vmul.f32 %v488, %v492
    %v495 = vmul.f32 %v489, %v493
    %v497 = vlaneseq
    %v498 = vshrl.u32 %v497, 7
    %v499 = vsub.s32 0, %v498
    %v500 = vrot.slane %v460, %v499
    %v502 = vmul.f32 %v494, %v500
    %v503 = vmul.f32 %v495, %v500
    %v505 = vlaneseq
    %v506 = vshrl.u32 %v505, 7
    %v507 = vsub.s32 0, %v506
    %v508 = vrot.slane %v461, %v507
    %v510 = vadd.f32 %v502, %v508
    %v511 = vadd.f32 %v503, %v508
    %v512 = vld [vmem:[%s3] sm:$0x3]
    %v513 = vsub.f32 %v512, 1.0
    %v514 = vmul.f32 %v513, 1e+09
    %v517 = vunpack.c.l.s4 1966171168
    %v518 = vunpack.c.0.s8 %v517
    %v519 = vlaneseq
    %v520 = vshrl.u32 %v519, 7
    %v521 = vsub.s32 %v518, %v520
    %v522 = vrot.slane %v514, %v521
    %v523 = vcombine.high %v522, %v522
    %v525 = vunpack.c.l.s4 1966171168
    %v526 = vunpack.c.0.s8 %v525
    %v527 = vlaneseq
    %v528 = vshrl.u32 %v527, 7
    %v529 = vsub.s32 %v526, %v528
    %v530 = vrot.slane %v522, %v529
    %v532 = vunpack.c.l.s4 1966171168
    %v533 = vunpack.c.0.s8 %v532
    %v534 = vlaneseq
    %v535 = vshrl.u32 %v534, 7
    %v536 = vsub.s32 %v533, %v535
    %v537 = vrot.slane %v523, %v536
    %v538 = vld [vmem:[%s17] sm:$0xff]
    %v539 = vld [vmem:[%s17 + $0x8] sm:$0xff]
    %v540 = vld [vmem:[%s17 + $0x10] sm:$0xff]
    %v541 = vld [vmem:[%s17 + $0x18] sm:$0xff]
    %v542 = vld [vmem:[#allocation10] sm:$0x1]
    %v544 = vlaneseq
    %v545 = vshrl.u32 %v544, 7
    %v546 = vsub.s32 0, %v545
    %v547 = vrot.slane %v542, %v546
    %v550 = vsel %vm462, %v510, 0
    %v553 = vsel %vm462, %v511, 0
    %555 = vmatprep.subr.mxu0 0.0
    %556 = vmatpush1.msra.mxu0 %v538
    %557 = vmatprep.subr.mxu0 0.0
    %558 = vmatpush1.msra.mxu0 %v539
    %559 = vmatprep.subr.mxu0 0.0
    %560 = vmatpush1.msra.mxu0 %v540
    %561 = vmatprep.subr.mxu0 0.0
    %562 = vmatpush1.msra.mxu0 %v541
    %563 = vmatprep.subr.mxu0 0.0
    %564 = vmatpush1.msra.mxu0 0.0
    %565 = vmatprep.subr.mxu0 0.0
    %566 = vmatpush1.msra.mxu0 0.0
    %567 = vmatprep.subr.mxu0 0.0
    %568 = vmatpush1.msra.mxu0 0.0
    %569 = vmatprep.subr.mxu0 0.0
    %570 = vmatpush1.msra.mxu0 0.0
    %571 = vmatprep.subr.mxu0 0.0
    %572 = vmatpush1.msra.mxu0 0.0
    %573 = vmatprep.subr.mxu0 0.0
    %574 = vmatpush1.msra.mxu0 0.0
    %575 = vmatprep.subr.mxu0 0.0
    %576 = vmatpush1.msra.mxu0 0.0
    %577 = vmatprep.subr.mxu0 0.0
    %578 = vmatpush1.msra.mxu0 0.0
    %579 = vmatprep.subr.mxu0 0.0
    %580 = vmatpush1.msra.mxu0 0.0
    %581 = vmatprep.subr.mxu0 0.0
    %582 = vmatpush1.msra.mxu0 0.0
    %583 = vmatprep.subr.mxu0 0.0
    %584 = vmatpush1.msra.mxu0 0.0
    %585 = vmatprep.subr.mxu0 0.0
    %586 = vmatpush1.msra.mxu0 0.0
    %587 = vmatprep.subr.mxu0 0.0
    %588 = vmatpush1.msra.mxu0 0.0
    %589 = vmatprep.subr.mxu0 0.0
    %590 = vmatpush1.msra.mxu0 0.0
    %591 = vmatprep.subr.mxu0 0.0
    %592 = vmatpush1.msra.mxu0 0.0
    %593 = vmatprep.subr.mxu0 0.0
    %594 = vmatpush1.msra.mxu0 0.0
    %595 = vmatprep.subr.mxu0 0.0
    %596 = vmatpush1.msra.mxu0 0.0
    %597 = vmatprep.subr.mxu0 0.0
    %598 = vmatpush1.msra.mxu0 0.0
    %599 = vmatprep.subr.mxu0 0.0
    %600 = vmatpush1.msra.mxu0 0.0
    %601 = vmatprep.subr.mxu0 0.0
    %602 = vmatpush1.msra.mxu0 0.0
    %603 = vmatprep.subr.mxu0 0.0
    %604 = vmatpush1.msra.mxu0 0.0
    %605 = vmatprep.subr.mxu0 0.0
    %606 = vmatpush1.msra.mxu0 0.0
    %607 = vmatprep.subr.mxu0 0.0
    %608 = vmatpush1.msra.mxu0 0.0
    %609 = vmatprep.subr.mxu0 0.0
    %610 = vmatpush1.msra.mxu0 0.0
    %611 = vmatprep.subr.mxu0 0.0
    %612 = vmatpush1.msra.mxu0 0.0
    %613 = vmatprep.subr.mxu0 0.0
    %614 = vmatpush1.msra.mxu0 0.0
    %615 = vmatprep.subr.mxu0 0.0
    %616 = vmatpush1.msra.mxu0 0.0
    %617 = vmatprep.subr.mxu0 0.0
    %618 = vmatpush1.msra.mxu0 0.0
    %619 = vmatprep.mubr.f32.mxu0 0.0
    %620 = vmatmul.mubr.f32.gmra.mrb[0].mxu0 %v550
    %v621 = vpop.f32.mrb[0].mxu0
    %v622 = vadd.f32 %v547, %v621
    %v623 = vpop.f32.mrb[0].mxu0
    %624 = vmatprep.mubr.f32.mxu0 0.0
    %625 = vmatmul.mubr.f32.gmra.mrb[0].mxu0 %v553
    %v626 = vpop.f32.mrb[0].mxu0
    %v627 = vadd.f32 %v547, %v626
    %v628 = vpop.f32.mrb[0].mxu0
    %629 = vdwg.mxu0
    %v630 = vmul.f32 %v622, 0.25
    %v631 = vmul.f32 %v627, 0.25
    %v632 = vlaneseq
    %v633 = vshrl.u32 %v632, 7
    %v634 = vsub.s32 0, %v633
    %v635 = vrot.slane %v530, %v634
    %v636 = vlaneseq
    %v637 = vshrl.u32 %v636, 7
    %v638 = vsub.s32 0, %v637
    %v639 = vrot.slane %v537, %v638
    %643 = vrot.lane.b32.xlu0 %v622, 96
    %v644 = vpop.permute.xlu0 %643
    %vm645 = vcmask 130048
    %v647 = vsel %vm645, %v630, 0
    %v649 = vsel %vm645, %v644, 0
    %651 = vmatprep.subr.mxu0 0.0
    %652 = vmatpush1.xpose.msra.mxu0 %v649
    %653 = vmatprep.subr.mxu0 0.0
    %654 = vmatpush1.xpose.msra.mxu0 0.0
    %655 = vmatprep.subr.mxu0 0.0
    %656 = vmatpush1.xpose.msra.mxu0 0.0
    %657 = vmatprep.subr.mxu0 0.0
    %658 = vmatpush1.xpose.msra.mxu0 0.0
    %659 = vmatprep.subr.mxu0 0.0
    %660 = vmatpush1.xpose.msra.mxu0 0.0
    %661 = vmatprep.subr.mxu0 0.0
    %662 = vmatpush1.xpose.msra.mxu0 0.0
    %663 = vmatprep.subr.mxu0 0.0
    %664 = vmatpush1.xpose.msra.mxu0 0.0
    %665 = vmatprep.subr.mxu0 0.0
    %666 = vmatpush1.xpose.msra.mxu0 0.0
    %667 = vmatprep.subr.mxu0 0.0
    %668 = vmatpush1.xpose.msra.mxu0 0.0
    %669 = vmatprep.subr.mxu0 0.0
    %670 = vmatpush1.xpose.msra.mxu0 0.0
    %671 = vmatprep.subr.mxu0 0.0
    %672 = vmatpush1.xpose.msra.mxu0 0.0
    %673 = vmatprep.subr.mxu0 0.0
    %674 = vmatpush1.xpose.msra.mxu0 0.0
    %675 = vmatprep.subr.mxu0 0.0
    %676 = vmatpush1.xpose.msra.mxu0 0.0
    %677 = vmatprep.subr.mxu0 0.0
    %678 = vmatpush1.xpose.msra.mxu0 0.0
    %679 = vmatprep.subr.mxu0 0.0
    %680 = vmatpush1.xpose.msra.mxu0 0.0
    %681 = vmatprep.subr.mxu0 0.0
    %682 = vmatpush1.xpose.msra.mxu0 0.0
    %683 = vmatprep.subr.mxu0 0.0
    %684 = vmatpush1.xpose.msra.mxu0 0.0
    %685 = vmatprep.subr.mxu0 0.0
    %686 = vmatpush1.xpose.msra.mxu0 0.0
    %687 = vmatprep.subr.mxu0 0.0
    %688 = vmatpush1.xpose.msra.mxu0 0.0
    %689 = vmatprep.subr.mxu0 0.0
    %690 = vmatpush1.xpose.msra.mxu0 0.0
    %691 = vmatprep.subr.mxu0 0.0
    %692 = vmatpush1.xpose.msra.mxu0 0.0
    %693 = vmatprep.subr.mxu0 0.0
    %694 = vmatpush1.xpose.msra.mxu0 0.0
    %695 = vmatprep.subr.mxu0 0.0
    %696 = vmatpush1.xpose.msra.mxu0 0.0
    %697 = vmatprep.subr.mxu0 0.0
    %698 = vmatpush1.xpose.msra.mxu0 0.0
    %699 = vmatprep.subr.mxu0 0.0
    %700 = vmatpush1.xpose.msra.mxu0 0.0
    %701 = vmatprep.subr.mxu0 0.0
    %702 = vmatpush1.xpose.msra.mxu0 0.0
    %703 = vmatprep.subr.mxu0 0.0
    %704 = vmatpush1.xpose.msra.mxu0 0.0
    %705 = vmatprep.subr.mxu0 0.0
    %706 = vmatpush1.xpose.msra.mxu0 0.0
    %707 = vmatprep.subr.mxu0 0.0
    %708 = vmatpush1.xpose.msra.mxu0 0.0
    %709 = vmatprep.subr.mxu0 0.0
    %710 = vmatpush1.xpose.msra.mxu0 0.0
    %711 = vmatprep.subr.mxu0 0.0
    %712 = vmatpush1.xpose.msra.mxu0 0.0
    %713 = vmatprep.subr.mxu0 0.0
    %714 = vmatpush1.xpose.msra.mxu0 0.0
    %715 = vmatprep.mubr.f32.mxu0 0.0
    %716 = vmatmul.mubr.f32.gmra.mrb[0].mxu0 %v647
    %v717 = vpop.f32.mrb[0].mxu0
    %v718 = vadd.f32 %v635, %v717
    %v719 = vpop.f32.mrb[0].mxu0
    %720 = vdwg.mxu0
    %722 = vrot.lane.b32.xlu0 %v627, 96
    %v723 = vpop.permute.xlu0 %722
    %v725 = vsel %vm645, %v631, 0
    %v727 = vsel %vm645, %v723, 0
    %729 = vmatprep.subr.mxu0 0.0
    %730 = vmatpush1.xpose.msra.mxu0 %v727
    %731 = vmatprep.subr.mxu0 0.0
    %732 = vmatpush1.xpose.msra.mxu0 0.0
    %733 = vmatprep.subr.mxu0 0.0
    %734 = vmatpush1.xpose.msra.mxu0 0.0
    %735 = vmatprep.subr.mxu0 0.0
    %736 = vmatpush1.xpose.msra.mxu0 0.0
    %737 = vmatprep.subr.mxu0 0.0
    %738 = vmatpush1.xpose.msra.mxu0 0.0
    %739 = vmatprep.subr.mxu0 0.0
    %740 = vmatpush1.xpose.msra.mxu0 0.0
    %741 = vmatprep.subr.mxu0 0.0
    %742 = vmatpush1.xpose.msra.mxu0 0.0
    %743 = vmatprep.subr.mxu0 0.0
    %744 = vmatpush1.xpose.msra.mxu0 0.0
    %745 = vmatprep.subr.mxu0 0.0
    %746 = vmatpush1.xpose.msra.mxu0 0.0
    %747 = vmatprep.subr.mxu0 0.0
    %748 = vmatpush1.xpose.msra.mxu0 0.0
    %749 = vmatprep.subr.mxu0 0.0
    %750 = vmatpush1.xpose.msra.mxu0 0.0
    %751 = vmatprep.subr.mxu0 0.0
    %752 = vmatpush1.xpose.msra.mxu0 0.0
    %753 = vmatprep.subr.mxu0 0.0
    %754 = vmatpush1.xpose.msra.mxu0 0.0
    %755 = vmatprep.subr.mxu0 0.0
    %756 = vmatpush1.xpose.msra.mxu0 0.0
    %757 = vmatprep.subr.mxu0 0.0
    %758 = vmatpush1.xpose.msra.mxu0 0.0
    %759 = vmatprep.subr.mxu0 0.0
    %760 = vmatpush1.xpose.msra.mxu0 0.0
    %761 = vmatprep.subr.mxu0 0.0
    %762 = vmatpush1.xpose.msra.mxu0 0.0
    %763 = vmatprep.subr.mxu0 0.0
    %764 = vmatpush1.xpose.msra.mxu0 0.0
    %765 = vmatprep.subr.mxu0 0.0
    %766 = vmatpush1.xpose.msra.mxu0 0.0
    %767 = vmatprep.subr.mxu0 0.0
    %768 = vmatpush1.xpose.msra.mxu0 0.0
    %769 = vmatprep.subr.mxu0 0.0
    %770 = vmatpush1.xpose.msra.mxu0 0.0
    %771 = vmatprep.subr.mxu0 0.0
    %772 = vmatpush1.xpose.msra.mxu0 0.0
    %773 = vmatprep.subr.mxu0 0.0
    %774 = vmatpush1.xpose.msra.mxu0 0.0
    %775 = vmatprep.subr.mxu0 0.0
    %776 = vmatpush1.xpose.msra.mxu0 0.0
    %777 = vmatprep.subr.mxu0 0.0
    %778 = vmatpush1.xpose.msra.mxu0 0.0
    %779 = vmatprep.subr.mxu0 0.0
    %780 = vmatpush1.xpose.msra.mxu0 0.0
    %781 = vmatprep.subr.mxu0 0.0
    %782 = vmatpush1.xpose.msra.mxu0 0.0
    %783 = vmatprep.subr.mxu0 0.0
    %784 = vmatpush1.xpose.msra.mxu0 0.0
    %785 = vmatprep.subr.mxu0 0.0
    %786 = vmatpush1.xpose.msra.mxu0 0.0
    %787 = vmatprep.subr.mxu0 0.0
    %788 = vmatpush1.xpose.msra.mxu0 0.0
    %789 = vmatprep.subr.mxu0 0.0
    %790 = vmatpush1.xpose.msra.mxu0 0.0
    %791 = vmatprep.subr.mxu0 0.0
    %792 = vmatpush1.xpose.msra.mxu0 0.0
    %793 = vmatprep.mubr.f32.mxu0 0.0
    %794 = vmatmul.mubr.f32.gmra.mrb[0].mxu0 %v725
    %v795 = vpop.f32.mrb[0].mxu0
    %v796 = vadd.f32 %v639, %v795
    %v797 = vpop.f32.mrb[0].mxu0
    %798 = vdwg.mxu0
    %vm799 = vcmask 64512
    %v800 = vsel %vm799, %v718, -inf
    %801 = vmax.xlane.f32.xlu0 %v800
    %v802 = vpop.xlane.xlu0 %801
    %v803 = vsel %vm799, %v796, -inf
    %804 = vmax.xlane.f32.xlu0 %v803
    %v805 = vpop.xlane.xlu0 %804
    %v806 = vsub.f32 %v718, %v802
    %v807 = vsub.f32 %v796, %v805
    %v808 = vmul.f32 %v806, 1.442695
    %v809 = vpow.pop %v808
    %v810 = vmul.f32 %v807, 1.442695
    %v811 = vpow.pop %v810
    %v812 = vsel %vm799, %v809, 0.0
    %813 = vadd.xlane.f32.xlu0 %v812
    %v814 = vpop.xlane.xlu0 %813
    %v815 = vsel %vm799, %v811, 0.0
    %816 = vadd.xlane.f32.xlu0 %v815
    %v817 = vpop.xlane.xlu0 %816
    %v818 = vrcp.pop %v814
    %v819 = vrcp.pop %v817
    %v820 = vmul.f32 %v809, %v818
    %v821 = vmul.f32 %v811, %v819
    %822 = vrot.lane.b32.xlu0 %v622, 64
    %v823 = vpop.permute.xlu0 %822
    %v826 = vsel %vm799, %v820, 0
    %828 = vmatprep.subr.mxu0 0.0
    %829 = vmatpush1.msra.mxu0 %v823
    %830 = vmatprep.subr.mxu0 0.0
    %831 = vmatpush1.msra.mxu0 0.0
    %832 = vmatprep.subr.mxu0 0.0
    %833 = vmatpush1.msra.mxu0 0.0
    %834 = vmatprep.subr.mxu0 0.0
    %835 = vmatpush1.msra.mxu0 0.0
    %836 = vmatprep.subr.mxu0 0.0
    %837 = vmatpush1.msra.mxu0 0.0
    %838 = vmatprep.subr.mxu0 0.0
    %839 = vmatpush1.msra.mxu0 0.0
    %840 = vmatprep.subr.mxu0 0.0
    %841 = vmatpush1.msra.mxu0 0.0
    %842 = vmatprep.subr.mxu0 0.0
    %843 = vmatpush1.msra.mxu0 0.0
    %844 = vmatprep.subr.mxu0 0.0
    %845 = vmatpush1.msra.mxu0 0.0
    %846 = vmatprep.subr.mxu0 0.0
    %847 = vmatpush1.msra.mxu0 0.0
    %848 = vmatprep.subr.mxu0 0.0
    %849 = vmatpush1.msra.mxu0 0.0
    %850 = vmatprep.subr.mxu0 0.0
    %851 = vmatpush1.msra.mxu0 0.0
    %852 = vmatprep.subr.mxu0 0.0
    %853 = vmatpush1.msra.mxu0 0.0
    %854 = vmatprep.subr.mxu0 0.0
    %855 = vmatpush1.msra.mxu0 0.0
    %856 = vmatprep.subr.mxu0 0.0
    %857 = vmatpush1.msra.mxu0 0.0
    %858 = vmatprep.subr.mxu0 0.0
    %859 = vmatpush1.msra.mxu0 0.0
    %860 = vmatprep.subr.mxu0 0.0
    %861 = vmatpush1.msra.mxu0 0.0
    %862 = vmatprep.subr.mxu0 0.0
    %863 = vmatpush1.msra.mxu0 0.0
    %864 = vmatprep.subr.mxu0 0.0
    %865 = vmatpush1.msra.mxu0 0.0
    %866 = vmatprep.subr.mxu0 0.0
    %867 = vmatpush1.msra.mxu0 0.0
    %868 = vmatprep.subr.mxu0 0.0
    %869 = vmatpush1.msra.mxu0 0.0
    %870 = vmatprep.subr.mxu0 0.0
    %871 = vmatpush1.msra.mxu0 0.0
    %872 = vmatprep.subr.mxu0 0.0
    %873 = vmatpush1.msra.mxu0 0.0
    %874 = vmatprep.subr.mxu0 0.0
    %875 = vmatpush1.msra.mxu0 0.0
    %876 = vmatprep.subr.mxu0 0.0
    %877 = vmatpush1.msra.mxu0 0.0
    %878 = vmatprep.subr.mxu0 0.0
    %879 = vmatpush1.msra.mxu0 0.0
    %880 = vmatprep.subr.mxu0 0.0
    %881 = vmatpush1.msra.mxu0 0.0
    %882 = vmatprep.subr.mxu0 0.0
    %883 = vmatpush1.msra.mxu0 0.0
    %884 = vmatprep.subr.mxu0 0.0
    %885 = vmatpush1.msra.mxu0 0.0
    %886 = vmatprep.subr.mxu0 0.0
    %887 = vmatpush1.msra.mxu0 0.0
    %888 = vmatprep.subr.mxu0 0.0
    %889 = vmatpush1.msra.mxu0 0.0
    %890 = vmatprep.subr.mxu0 0.0
    %891 = vmatpush1.msra.mxu0 0.0
    %892 = vmatprep.mubr.f32.mxu0 0.0
    %893 = vmatmul.mubr.f32.gmra.mrb[0].mxu0 %v826
    %v894 = vpop.f32.mrb[0].mxu0
    %v895 = vadd.f32 0.0, %v894
    %v896 = vpop.f32.mrb[0].mxu0
    %897 = vdwg.mxu0
    %898 = vrot.lane.b32.xlu0 %v627, 64
    %v899 = vpop.permute.xlu0 %898
    %v902 = vsel %vm799, %v821, 0
    %904 = vmatprep.subr.mxu0 0.0
    %905 = vmatpush1.msra.mxu0 %v899
    %906 = vmatprep.subr.mxu0 0.0
    %907 = vmatpush1.msra.mxu0 0.0
    %908 = vmatprep.subr.mxu0 0.0
    %909 = vmatpush1.msra.mxu0 0.0
    %910 = vmatprep.subr.mxu0 0.0
    %911 = vmatpush1.msra.mxu0 0.0
    %912 = vmatprep.subr.mxu0 0.0
    %913 = vmatpush1.msra.mxu0 0.0
    %914 = vmatprep.subr.mxu0 0.0
    %915 = vmatpush1.msra.mxu0 0.0
    %916 = vmatprep.subr.mxu0 0.0
    %917 = vmatpush1.msra.mxu0 0.0
    %918 = vmatprep.subr.mxu0 0.0
    %919 = vmatpush1.msra.mxu0 0.0
    %920 = vmatprep.subr.mxu0 0.0
    %921 = vmatpush1.msra.mxu0 0.0
    %922 = vmatprep.subr.mxu0 0.0
    %923 = vmatpush1.msra.mxu0 0.0
    %924 = vmatprep.subr.mxu0 0.0
    %925 = vmatpush1.msra.mxu0 0.0
    %926 = vmatprep.subr.mxu0 0.0
    %927 = vmatpush1.msra.mxu0 0.0
    %928 = vmatprep.subr.mxu0 0.0
    %929 = vmatpush1.msra.mxu0 0.0
    %930 = vmatprep.subr.mxu0 0.0
    %931 = vmatpush1.msra.mxu0 0.0
    %932 = vmatprep.subr.mxu0 0.0
    %933 = vmatpush1.msra.mxu0 0.0
    %934 = vmatprep.subr.mxu0 0.0
    %935 = vmatpush1.msra.mxu0 0.0
    %936 = vmatprep.subr.mxu0 0.0
    %937 = vmatpush1.msra.mxu0 0.0
    %938 = vmatprep.subr.mxu0 0.0
    %939 = vmatpush1.msra.mxu0 0.0
    %940 = vmatprep.subr.mxu0 0.0
    %941 = vmatpush1.msra.mxu0 0.0
    %942 = vmatprep.subr.mxu0 0.0
    %943 = vmatpush1.msra.mxu0 0.0
    %944 = vmatprep.subr.mxu0 0.0
    %945 = vmatpush1.msra.mxu0 0.0
    %946 = vmatprep.subr.mxu0 0.0
    %947 = vmatpush1.msra.mxu0 0.0
    %948 = vmatprep.subr.mxu0 0.0
    %949 = vmatpush1.msra.mxu0 0.0
    %950 = vmatprep.subr.mxu0 0.0
    %951 = vmatpush1.msra.mxu0 0.0
    %952 = vmatprep.subr.mxu0 0.0
    %953 = vmatpush1.msra.mxu0 0.0
    %954 = vmatprep.subr.mxu0 0.0
    %955 = vmatpush1.msra.mxu0 0.0
    %956 = vmatprep.subr.mxu0 0.0
    %957 = vmatpush1.msra.mxu0 0.0
    %958 = vmatprep.subr.mxu0 0.0
    %959 = vmatpush1.msra.mxu0 0.0
    %960 = vmatprep.subr.mxu0 0.0
    %961 = vmatpush1.msra.mxu0 0.0
    %962 = vmatprep.subr.mxu0 0.0
    %963 = vmatpush1.msra.mxu0 0.0
    %964 = vmatprep.subr.mxu0 0.0
    %965 = vmatpush1.msra.mxu0 0.0
    %966 = vmatprep.subr.mxu0 0.0
    %967 = vmatpush1.msra.mxu0 0.0
    %968 = vmatprep.mubr.f32.mxu0 0.0
    %969 = vmatmul.mubr.f32.gmra.mrb[0].mxu0 %v902
    %v970 = vpop.f32.mrb[0].mxu0
    %v971 = vadd.f32 0.0, %v970
    %v972 = vpop.f32.mrb[0].mxu0
    %973 = vdwg.mxu0
    %974 = vrot.lane.b32.xlu0 %v630, 112
    %v975 = vpop.permute.xlu0 %974
    %976 = vrot.lane.b32.xlu0 %v622, 80
    %v977 = vpop.permute.xlu0 %976
    %v978 = vsel %vm645, %v975, 0
    %v980 = vsel %vm645, %v977, 0
    %982 = vmatprep.subr.mxu0 0.0
    %983 = vmatpush1.xpose.msra.mxu0 %v980
    %984 = vmatprep.subr.mxu0 0.0
    %985 = vmatpush1.xpose.msra.mxu0 0.0
    %986 = vmatprep.subr.mxu0 0.0
    %987 = vmatpush1.xpose.msra.mxu0 0.0
    %988 = vmatprep.subr.mxu0 0.0
    %989 = vmatpush1.xpose.msra.mxu0 0.0
    %990 = vmatprep.subr.mxu0 0.0
    %991 = vmatpush1.xpose.msra.mxu0 0.0
    %992 = vmatprep.subr.mxu0 0.0
    %993 = vmatpush1.xpose.msra.mxu0 0.0
    %994 = vmatprep.subr.mxu0 0.0
    %995 = vmatpush1.xpose.msra.mxu0 0.0
    %996 = vmatprep.subr.mxu0 0.0
    %997 = vmatpush1.xpose.msra.mxu0 0.0
    %998 = vmatprep.subr.mxu0 0.0
    %999 = vmatpush1.xpose.msra.mxu0 0.0
    %1000 = vmatprep.subr.mxu0 0.0
    %1001 = vmatpush1.xpose.msra.mxu0 0.0
    %1002 = vmatprep.subr.mxu0 0.0
    %1003 = vmatpush1.xpose.msra.mxu0 0.0
    %1004 = vmatprep.subr.mxu0 0.0
    %1005 = vmatpush1.xpose.msra.mxu0 0.0
    %1006 = vmatprep.subr.mxu0 0.0
    %1007 = vmatpush1.xpose.msra.mxu0 0.0
    %1008 = vmatprep.subr.mxu0 0.0
    %1009 = vmatpush1.xpose.msra.mxu0 0.0
    %1010 = vmatprep.subr.mxu0 0.0
    %1011 = vmatpush1.xpose.msra.mxu0 0.0
    %1012 = vmatprep.subr.mxu0 0.0
    %1013 = vmatpush1.xpose.msra.mxu0 0.0
    %1014 = vmatprep.subr.mxu0 0.0
    %1015 = vmatpush1.xpose.msra.mxu0 0.0
    %1016 = vmatprep.subr.mxu0 0.0
    %1017 = vmatpush1.xpose.msra.mxu0 0.0
    %1018 = vmatprep.subr.mxu0 0.0
    %1019 = vmatpush1.xpose.msra.mxu0 0.0
    %1020 = vmatprep.subr.mxu0 0.0
    %1021 = vmatpush1.xpose.msra.mxu0 0.0
    %1022 = vmatprep.subr.mxu0 0.0
    %1023 = vmatpush1.xpose.msra.mxu0 0.0
    %1024 = vmatprep.subr.mxu0 0.0
    %1025 = vmatpush1.xpose.msra.mxu0 0.0
    %1026 = vmatprep.subr.mxu0 0.0
    %1027 = vmatpush1.xpose.msra.mxu0 0.0
    %1028 = vmatprep.subr.mxu0 0.0
    %1029 = vmatpush1.xpose.msra.mxu0 0.0
    %1030 = vmatprep.subr.mxu0 0.0
    %1031 = vmatpush1.xpose.msra.mxu0 0.0
    %1032 = vmatprep.subr.mxu0 0.0
    %1033 = vmatpush1.xpose.msra.mxu0 0.0
    %1034 = vmatprep.subr.mxu0 0.0
    %1035 = vmatpush1.xpose.msra.mxu0 0.0
    %1036 = vmatprep.subr.mxu0 0.0
    %1037 = vmatpush1.xpose.msra.mxu0 0.0
    %1038 = vmatprep.subr.mxu0 0.0
    %1039 = vmatpush1.xpose.msra.mxu0 0.0
    %1040 = vmatprep.subr.mxu0 0.0
    %1041 = vmatpush1.xpose.msra.mxu0 0.0
    %1042 = vmatprep.subr.mxu0 0.0
    %1043 = vmatpush1.xpose.msra.mxu0 0.0
    %1044 = vmatprep.subr.mxu0 0.0
    %1045 = vmatpush1.xpose.msra.mxu0 0.0
    %1046 = vmatprep.mubr.f32.mxu0 0.0
    %1047 = vmatmul.mubr.f32.gmra.mrb[0].mxu0 %v978
    %v1048 = vpop.f32.mrb[0].mxu0
    %v1049 = vadd.f32 %v635, %v1048
    %v1050 = vpop.f32.mrb[0].mxu0
    %1051 = vdwg.mxu0
    %1052 = vrot.lane.b32.xlu0 %v631, 112
    %v1053 = vpop.permute.xlu0 %1052
    %1054 = vrot.lane.b32.xlu0 %v627, 80
    %v1055 = vpop.permute.xlu0 %1054
    %v1056 = vsel %vm645, %v1053, 0
    %v1058 = vsel %vm645, %v1055, 0
    %1060 = vmatprep.subr.mxu0 0.0
    %1061 = vmatpush1.xpose.msra.mxu0 %v1058
    %1062 = vmatprep.subr.mxu0 0.0
    %1063 = vmatpush1.xpose.msra.mxu0 0.0
    %1064 = vmatprep.subr.mxu0 0.0
    %1065 = vmatpush1.xpose.msra.mxu0 0.0
    %1066 = vmatprep.subr.mxu0 0.0
    %1067 = vmatpush1.xpose.msra.mxu0 0.0
    %1068 = vmatprep.subr.mxu0 0.0
    %1069 = vmatpush1.xpose.msra.mxu0 0.0
    %1070 = vmatprep.subr.mxu0 0.0
    %1071 = vmatpush1.xpose.msra.mxu0 0.0
    %1072 = vmatprep.subr.mxu0 0.0
    %1073 = vmatpush1.xpose.msra.mxu0 0.0
    %1074 = vmatprep.subr.mxu0 0.0
    %1075 = vmatpush1.xpose.msra.mxu0 0.0
    %1076 = vmatprep.subr.mxu0 0.0
    %1077 = vmatpush1.xpose.msra.mxu0 0.0
    %1078 = vmatprep.subr.mxu0 0.0
    %1079 = vmatpush1.xpose.msra.mxu0 0.0
    %1080 = vmatprep.subr.mxu0 0.0
    %1081 = vmatpush1.xpose.msra.mxu0 0.0
    %1082 = vmatprep.subr.mxu0 0.0
    %1083 = vmatpush1.xpose.msra.mxu0 0.0
    %1084 = vmatprep.subr.mxu0 0.0
    %1085 = vmatpush1.xpose.msra.mxu0 0.0
    %1086 = vmatprep.subr.mxu0 0.0
    %1087 = vmatpush1.xpose.msra.mxu0 0.0
    %1088 = vmatprep.subr.mxu0 0.0
    %1089 = vmatpush1.xpose.msra.mxu0 0.0
    %1090 = vmatprep.subr.mxu0 0.0
    %1091 = vmatpush1.xpose.msra.mxu0 0.0
    %1092 = vmatprep.subr.mxu0 0.0
    %1093 = vmatpush1.xpose.msra.mxu0 0.0
    %1094 = vmatprep.subr.mxu0 0.0
    %1095 = vmatpush1.xpose.msra.mxu0 0.0
    %1096 = vmatprep.subr.mxu0 0.0
    %1097 = vmatpush1.xpose.msra.mxu0 0.0
    %1098 = vmatprep.subr.mxu0 0.0
    %1099 = vmatpush1.xpose.msra.mxu0 0.0
    %1100 = vmatprep.subr.mxu0 0.0
    %1101 = vmatpush1.xpose.msra.mxu0 0.0
    %1102 = vmatprep.subr.mxu0 0.0
    %1103 = vmatpush1.xpose.msra.mxu0 0.0
    %1104 = vmatprep.subr.mxu0 0.0
    %1105 = vmatpush1.xpose.msra.mxu0 0.0
    %1106 = vmatprep.subr.mxu0 0.0
    %1107 = vmatpush1.xpose.msra.mxu0 0.0
    %1108 = vmatprep.subr.mxu0 0.0
    %1109 = vmatpush1.xpose.msra.mxu0 0.0
    %1110 = vmatprep.subr.mxu0 0.0
    %1111 = vmatpush1.xpose.msra.mxu0 0.0
    %1112 = vmatprep.subr.mxu0 0.0
    %1113 = vmatpush1.xpose.msra.mxu0 0.0
    %1114 = vmatprep.subr.mxu0 0.0
    %1115 = vmatpush1.xpose.msra.mxu0 0.0
    %1116 = vmatprep.subr.mxu0 0.0
    %1117 = vmatpush1.xpose.msra.mxu0 0.0
    %1118 = vmatprep.subr.mxu0 0.0
    %1119 = vmatpush1.xpose.msra.mxu0 0.0
    %1120 = vmatprep.subr.mxu0 0.0
    %1121 = vmatpush1.xpose.msra.mxu0 0.0
    %1122 = vmatprep.subr.mxu0 0.0
    %1123 = vmatpush1.xpose.msra.mxu0 0.0
    %1124 = vmatprep.mubr.f32.mxu0 0.0
    %1125 = vmatmul.mubr.f32.gmra.mrb[0].mxu0 %v1056
    %v1126 = vpop.f32.mrb[0].mxu0
    %v1127 = vadd.f32 %v639, %v1126
    %v1128 = vpop.f32.mrb[0].mxu0
    %1129 = vdwg.mxu0
    %v1130 = vsel %vm799, %v1049, -inf
    %1131 = vmax.xlane.f32.xlu0 %v1130
    %v1132 = vpop.xlane.xlu0 %1131
    %v1133 = vsel %vm799, %v1127, -inf
    %1134 = vmax.xlane.f32.xlu0 %v1133
    %v1135 = vpop.xlane.xlu0 %1134
    %v1136 = vsub.f32 %v1049, %v1132
    %v1137 = vsub.f32 %v1127, %v1135
    %v1138 = vmul.f32 %v1136, 1.442695
    %v1139 = vpow.pop %v1138
    %v1140 = vmul.f32 %v1137, 1.442695
    %v1141 = vpow.pop %v1140
    %v1142 = vsel %vm799, %v1139, 0.0
    %1143 = vadd.xlane.f32.xlu0 %v1142
    %v1144 = vpop.xlane.xlu0 %1143
    %v1145 = vsel %vm799, %v1141, 0.0
    %1146 = vadd.xlane.f32.xlu0 %v1145
    %v1147 = vpop.xlane.xlu0 %1146
    %v1148 = vrcp.pop %v1144
    %v1149 = vrcp.pop %v1147
    %v1150 = vmul.f32 %v1139, %v1148
    %v1151 = vmul.f32 %v1141, %v1149
    %1152 = vrot.lane.b32.xlu0 %v622, 48
    %v1153 = vpop.permute.xlu0 %1152
    %v1156 = vsel %vm799, %v1150, 0
    %1158 = vmatprep.subr.mxu0 0.0
    %1159 = vmatpush1.msra.mxu0 %v1153
    %1160 = vmatprep.subr.mxu0 0.0
    %1161 = vmatpush1.msra.mxu0 0.0
    %1162 = vmatprep.subr.mxu0 0.0
    %1163 = vmatpush1.msra.mxu0 0.0
    %1164 = vmatprep.subr.mxu0 0.0
    %1165 = vmatpush1.msra.mxu0 0.0
    %1166 = vmatprep.subr.mxu0 0.0
    %1167 = vmatpush1.msra.mxu0 0.0
    %1168 = vmatprep.subr.mxu0 0.0
    %1169 = vmatpush1.msra.mxu0 0.0
    %1170 = vmatprep.subr.mxu0 0.0
    %1171 = vmatpush1.msra.mxu0 0.0
    %1172 = vmatprep.subr.mxu0 0.0
    %1173 = vmatpush1.msra.mxu0 0.0
    %1174 = vmatprep.subr.mxu0 0.0
    %1175 = vmatpush1.msra.mxu0 0.0
    %1176 = vmatprep.subr.mxu0 0.0
    %1177 = vmatpush1.msra.mxu0 0.0
    %1178 = vmatprep.subr.mxu0 0.0
    %1179 = vmatpush1.msra.mxu0 0.0
    %1180 = vmatprep.subr.mxu0 0.0
    %1181 = vmatpush1.msra.mxu0 0.0
    %1182 = vmatprep.subr.mxu0 0.0
    %1183 = vmatpush1.msra.mxu0 0.0
    %1184 = vmatprep.subr.mxu0 0.0
    %1185 = vmatpush1.msra.mxu0 0.0
    %1186 = vmatprep.subr.mxu0 0.0
    %1187 = vmatpush1.msra.mxu0 0.0
    %1188 = vmatprep.subr.mxu0 0.0
    %1189 = vmatpush1.msra.mxu0 0.0
    %1190 = vmatprep.subr.mxu0 0.0
    %1191 = vmatpush1.msra.mxu0 0.0
    %1192 = vmatprep.subr.mxu0 0.0
    %1193 = vmatpush1.msra.mxu0 0.0
    %1194 = vmatprep.subr.mxu0 0.0
    %1195 = vmatpush1.msra.mxu0 0.0
    %1196 = vmatprep.subr.mxu0 0.0
    %1197 = vmatpush1.msra.mxu0 0.0
    %1198 = vmatprep.subr.mxu0 0.0
    %1199 = vmatpush1.msra.mxu0 0.0
    %1200 = vmatprep.subr.mxu0 0.0
    %1201 = vmatpush1.msra.mxu0 0.0
    %1202 = vmatprep.subr.mxu0 0.0
    %1203 = vmatpush1.msra.mxu0 0.0
    %1204 = vmatprep.subr.mxu0 0.0
    %1205 = vmatpush1.msra.mxu0 0.0
    %1206 = vmatprep.subr.mxu0 0.0
    %1207 = vmatpush1.msra.mxu0 0.0
    %1208 = vmatprep.subr.mxu0 0.0
    %1209 = vmatpush1.msra.mxu0 0.0
    %1210 = vmatprep.subr.mxu0 0.0
    %1211 = vmatpush1.msra.mxu0 0.0
    %1212 = vmatprep.subr.mxu0 0.0
    %1213 = vmatpush1.msra.mxu0 0.0
    %1214 = vmatprep.subr.mxu0 0.0
    %1215 = vmatpush1.msra.mxu0 0.0
    %1216 = vmatprep.subr.mxu0 0.0
    %1217 = vmatpush1.msra.mxu0 0.0
    %1218 = vmatprep.subr.mxu0 0.0
    %1219 = vmatpush1.msra.mxu0 0.0
    %1220 = vmatprep.subr.mxu0 0.0
    %1221 = vmatpush1.msra.mxu0 0.0
    %1222 = vmatprep.mubr.f32.mxu0 0.0
    %1223 = vmatmul.mubr.f32.gmra.mrb[0].mxu0 %v1156
    %v1224 = vpop.f32.mrb[0].mxu0
    %v1225 = vadd.f32 0.0, %v1224
    %v1226 = vpop.f32.mrb[0].mxu0
    %1227 = vdwg.mxu0
    %1228 = vrot.lane.b32.xlu0 %v627, 48
    %v1229 = vpop.permute.xlu0 %1228
    %v1232 = vsel %vm799, %v1151, 0
    %1234 = vmatprep.subr.mxu0 0.0
    %1235 = vmatpush1.msra.mxu0 %v1229
    %1236 = vmatprep.subr.mxu0 0.0
    %1237 = vmatpush1.msra.mxu0 0.0
    %1238 = vmatprep.subr.mxu0 0.0
    %1239 = vmatpush1.msra.mxu0 0.0
    %1240 = vmatprep.subr.mxu0 0.0
    %1241 = vmatpush1.msra.mxu0 0.0
    %1242 = vmatprep.subr.mxu0 0.0
    %1243 = vmatpush1.msra.mxu0 0.0
    %1244 = vmatprep.subr.mxu0 0.0
    %1245 = vmatpush1.msra.mxu0 0.0
    %1246 = vmatprep.subr.mxu0 0.0
    %1247 = vmatpush1.msra.mxu0 0.0
    %1248 = vmatprep.subr.mxu0 0.0
    %1249 = vmatpush1.msra.mxu0 0.0
    %1250 = vmatprep.subr.mxu0 0.0
    %1251 = vmatpush1.msra.mxu0 0.0
    %1252 = vmatprep.subr.mxu0 0.0
    %1253 = vmatpush1.msra.mxu0 0.0
    %1254 = vmatprep.subr.mxu0 0.0
    %1255 = vmatpush1.msra.mxu0 0.0
    %1256 = vmatprep.subr.mxu0 0.0
    %1257 = vmatpush1.msra.mxu0 0.0
    %1258 = vmatprep.subr.mxu0 0.0
    %1259 = vmatpush1.msra.mxu0 0.0
    %1260 = vmatprep.subr.mxu0 0.0
    %1261 = vmatpush1.msra.mxu0 0.0
    %1262 = vmatprep.subr.mxu0 0.0
    %1263 = vmatpush1.msra.mxu0 0.0
    %1264 = vmatprep.subr.mxu0 0.0
    %1265 = vmatpush1.msra.mxu0 0.0
    %1266 = vmatprep.subr.mxu0 0.0
    %1267 = vmatpush1.msra.mxu0 0.0
    %1268 = vmatprep.subr.mxu0 0.0
    %1269 = vmatpush1.msra.mxu0 0.0
    %1270 = vmatprep.subr.mxu0 0.0
    %1271 = vmatpush1.msra.mxu0 0.0
    %1272 = vmatprep.subr.mxu0 0.0
    %1273 = vmatpush1.msra.mxu0 0.0
    %1274 = vmatprep.subr.mxu0 0.0
    %1275 = vmatpush1.msra.mxu0 0.0
    %1276 = vmatprep.subr.mxu0 0.0
    %1277 = vmatpush1.msra.mxu0 0.0
    %1278 = vmatprep.subr.mxu0 0.0
    %1279 = vmatpush1.msra.mxu0 0.0
    %1280 = vmatprep.subr.mxu0 0.0
    %1281 = vmatpush1.msra.mxu0 0.0
    %1282 = vmatprep.subr.mxu0 0.0
    %1283 = vmatpush1.msra.mxu0 0.0
    %1284 = vmatprep.subr.mxu0 0.0
    %1285 = vmatpush1.msra.mxu0 0.0
    %1286 = vmatprep.subr.mxu0 0.0
    %1287 = vmatpush1.msra.mxu0 0.0
    %1288 = vmatprep.subr.mxu0 0.0
    %1289 = vmatpush1.msra.mxu0 0.0
    %1290 = vmatprep.subr.mxu0 0.0
    %1291 = vmatpush1.msra.mxu0 0.0
    %1292 = vmatprep.subr.mxu0 0.0
    %1293 = vmatpush1.msra.mxu0 0.0
    %1294 = vmatprep.subr.mxu0 0.0
    %1295 = vmatpush1.msra.mxu0 0.0
    %1296 = vmatprep.subr.mxu0 0.0
    %1297 = vmatpush1.msra.mxu0 0.0
    %1298 = vmatprep.mubr.f32.mxu0 0.0
    %1299 = vmatmul.mubr.f32.gmra.mrb[0].mxu0 %v1232
    %v1300 = vpop.f32.mrb[0].mxu0
    %v1301 = vadd.f32 0.0, %v1300
    %v1302 = vpop.f32.mrb[0].mxu0
    %1303 = vdwg.mxu0
    %1306 = vrot.lane.b32.xlu0 %v1225, 16
    %v1307 = vpop.permute.xlu0 %1306
    %1308 = vrot.lane.b32.xlu0 %v1301, 16
    %v1309 = vpop.permute.xlu0 %1308
    %v1312 = vsel %vm645, %v895, %v1307
    %v1313 = vsel %vm645, %v971, %v1309
    %v1314 = vld [vmem:[%s21] sm:$0xff]
    %v1315 = vld [vmem:[%s21 + $0x8] sm:$0xff]
    %v1316 = vld [vmem:[%s21 + $0x10] sm:$0xff]
    %v1317 = vld [vmem:[%s21 + $0x18] sm:$0xff]
    %v1318 = vld [vmem:[#allocation11] sm:$0x1]
    %v1320 = vlaneseq
    %v1321 = vshrl.u32 %v1320, 7
    %v1322 = vsub.s32 0, %v1321
    %v1323 = vrot.slane %v1318, %v1322
    %v1326 = vsel %vm462, %v1312, 0
    %v1329 = vsel %vm462, %v1313, 0
    %1331 = vmatprep.subr.mxu0 0.0
    %1332 = vmatpush1.msra.mxu0 %v1314
    %1333 = vmatprep.subr.mxu0 0.0
    %1334 = vmatpush1.msra.mxu0 %v1315
    %1335 = vmatprep.subr.mxu0 0.0
    %1336 = vmatpush1.msra.mxu0 %v1316
    %1337 = vmatprep.subr.mxu0 0.0
    %1338 = vmatpush1.msra.mxu0 %v1317
    %1339 = vmatprep.subr.mxu0 0.0
    %1340 = vmatpush1.msra.mxu0 0.0
    %1341 = vmatprep.subr.mxu0 0.0
    %1342 = vmatpush1.msra.mxu0 0.0
    %1343 = vmatprep.subr.mxu0 0.0
    %1344 = vmatpush1.msra.mxu0 0.0
    %1345 = vmatprep.subr.mxu0 0.0
    %1346 = vmatpush1.msra.mxu0 0.0
    %1347 = vmatprep.subr.mxu0 0.0
    %1348 = vmatpush1.msra.mxu0 0.0
    %1349 = vmatprep.subr.mxu0 0.0
    %1350 = vmatpush1.msra.mxu0 0.0
    %1351 = vmatprep.subr.mxu0 0.0
    %1352 = vmatpush1.msra.mxu0 0.0
    %1353 = vmatprep.subr.mxu0 0.0
    %1354 = vmatpush1.msra.mxu0 0.0
    %1355 = vmatprep.subr.mxu0 0.0
    %1356 = vmatpush1.msra.mxu0 0.0
    %1357 = vmatprep.subr.mxu0 0.0
    %1358 = vmatpush1.msra.mxu0 0.0
    %1359 = vmatprep.subr.mxu0 0.0
    %1360 = vmatpush1.msra.mxu0 0.0
    %1361 = vmatprep.subr.mxu0 0.0
    %1362 = vmatpush1.msra.mxu0 0.0
    %1363 = vmatprep.subr.mxu0 0.0
    %1364 = vmatpush1.msra.mxu0 0.0
    %1365 = vmatprep.subr.mxu0 0.0
    %1366 = vmatpush1.msra.mxu0 0.0
    %1367 = vmatprep.subr.mxu0 0.0
    %1368 = vmatpush1.msra.mxu0 0.0
    %1369 = vmatprep.subr.mxu0 0.0
    %1370 = vmatpush1.msra.mxu0 0.0
    %1371 = vmatprep.subr.mxu0 0.0
    %1372 = vmatpush1.msra.mxu0 0.0
    %1373 = vmatprep.subr.mxu0 0.0
    %1374 = vmatpush1.msra.mxu0 0.0
    %1375 = vmatprep.subr.mxu0 0.0
    %1376 = vmatpush1.msra.mxu0 0.0
    %1377 = vmatprep.subr.mxu0 0.0
    %1378 = vmatpush1.msra.mxu0 0.0
    %1379 = vmatprep.subr.mxu0 0.0
    %1380 = vmatpush1.msra.mxu0 0.0
    %1381 = vmatprep.subr.mxu0 0.0
    %1382 = vmatpush1.msra.mxu0 0.0
    %1383 = vmatprep.subr.mxu0 0.0
    %1384 = vmatpush1.msra.mxu0 0.0
    %1385 = vmatprep.subr.mxu0 0.0
    %1386 = vmatpush1.msra.mxu0 0.0
    %1387 = vmatprep.subr.mxu0 0.0
    %1388 = vmatpush1.msra.mxu0 0.0
    %1389 = vmatprep.subr.mxu0 0.0
    %1390 = vmatpush1.msra.mxu0 0.0
    %1391 = vmatprep.subr.mxu0 0.0
    %1392 = vmatpush1.msra.mxu0 0.0
    %1393 = vmatprep.subr.mxu0 0.0
    %1394 = vmatpush1.msra.mxu0 0.0
    %1395 = vmatprep.mubr.f32.mxu0 0.0
    %1396 = vmatmul.mubr.f32.gmra.mrb[0].mxu0 %v1326
    %v1397 = vpop.f32.mrb[0].mxu0
    %v1398 = vadd.f32 %v1323, %v1397
    %v1399 = vpop.f32.mrb[0].mxu0
    %1400 = vmatprep.mubr.f32.mxu0 0.0
    %1401 = vmatmul.mubr.f32.gmra.mrb[0].mxu0 %v1329
    %v1402 = vpop.f32.mrb[0].mxu0
    %v1403 = vadd.f32 %v1323, %v1402
    %v1404 = vpop.f32.mrb[0].mxu0
    %1405 = vdwg.mxu0
    %v1406 = vadd.f32 %v510, %v1398
    %v1407 = vadd.f32 %v511, %v1403
    %v1408 = vld [vmem:[#allocation13] sm:$0x1]
    %v1409 = vld [vmem:[#allocation14] sm:$0x1]
    %v1410 = vsel %vm462, %v1406, 0.0
    %1411 = vadd.xlane.f32.xlu0 %v1410
    %v1412 = vpop.xlane.xlu0 %1411
    %v1413 = vsel %vm462, %v1407, 0.0
    %1414 = vadd.xlane.f32.xlu0 %v1413
    %v1415 = vpop.xlane.xlu0 %1414
    %v1416 = vmul.f32 %v1412, %v469
    %v1417 = vmul.f32 %v1415, %v469
    %v1418 = vmul.f32 %v1406, %v1406
    %v1419 = vmul.f32 %v1407, %v1407
    %v1420 = vsel %vm462, %v1418, 0.0
    %1421 = vadd.xlane.f32.xlu0 %v1420
    %v1422 = vpop.xlane.xlu0 %1421
    %v1423 = vsel %vm462, %v1419, 0.0
    %1424 = vadd.xlane.f32.xlu0 %v1423
    %v1425 = vpop.xlane.xlu0 %1424
    %v1426 = vmul.f32 %v1422, %v469
    %v1427 = vmul.f32 %v1425, %v469
    %v1428 = vmul.f32 %v1416, %v1416
    %v1429 = vmul.f32 %v1417, %v1417
    %v1430 = vsub.f32 %v1426, %v1428
    %v1431 = vsub.f32 %v1427, %v1429
    %v1432 = vmax.f32 %v1430, 0.0
    %v1433 = vmax.f32 %v1431, 0.0
    %v1434 = vsub.f32 %v1406, %v1416
    %v1435 = vsub.f32 %v1407, %v1417
    %v1436 = vadd.f32 %v1432, 1e-12
    %v1437 = vadd.f32 %v1433, 1e-12
    %v1438 = vrsqrt.pop %v1436
    %v1439 = vrsqrt.pop %v1437
    %v1440 = vmul.f32 %v1434, %v1438
    %v1441 = vmul.f32 %v1435, %v1439
    %v1443 = vlaneseq
    %v1444 = vshrl.u32 %v1443, 7
    %v1445 = vsub.s32 0, %v1444
    %v1446 = vrot.slane %v1408, %v1445
    %v1448 = vmul.f32 %v1440, %v1446
    %v1449 = vmul.f32 %v1441, %v1446
    %v1451 = vlaneseq
    %v1452 = vshrl.u32 %v1451, 7
    %v1453 = vsub.s32 0, %v1452
    %v1454 = vrot.slane %v1409, %v1453
    %v1456 = vadd.f32 %v1448, %v1454
    %v1457 = vadd.f32 %v1449, %v1454
    %v1458 = vld [vmem:[%s29] sm:$0xff]
    %v1459 = vld [vmem:[%s29 + $0x8] sm:$0xff]
    %v1460 = vld [vmem:[%s29 + $0x10] sm:$0xff]
    %v1461 = vld [vmem:[%s29 + $0x18] sm:$0xff]
    %v1462 = vld [vmem:[#allocation16] sm:$0x1]
    %v1464 = vlaneseq
    %v1465 = vshrl.u32 %v1464, 7
    %v1466 = vsub.s32 0, %v1465
    %v1467 = vrot.slane %v1462, %v1466
    %v1470 = vsel %vm462, %v1456, 0
    %v1473 = vsel %vm462, %v1457, 0
    %1475 = vmatprep.subr.mxu0 0.0
    %1476 = vmatpush1.msra.mxu0 %v1458
    %1477 = vmatprep.subr.mxu0 0.0
    %1478 = vmatpush1.msra.mxu0 %v1459
    %1479 = vmatprep.subr.mxu0 0.0
    %1480 = vmatpush1.msra.mxu0 %v1460
    %1481 = vmatprep.subr.mxu0 0.0
    %1482 = vmatpush1.msra.mxu0 %v1461
    %1483 = vmatprep.subr.mxu0 0.0
    %1484 = vmatpush1.msra.mxu0 0.0
    %1485 = vmatprep.subr.mxu0 0.0
    %1486 = vmatpush1.msra.mxu0 0.0
    %1487 = vmatprep.subr.mxu0 0.0
    %1488 = vmatpush1.msra.mxu0 0.0
    %1489 = vmatprep.subr.mxu0 0.0
    %1490 = vmatpush1.msra.mxu0 0.0
    %1491 = vmatprep.subr.mxu0 0.0
    %1492 = vmatpush1.msra.mxu0 0.0
    %1493 = vmatprep.subr.mxu0 0.0
    %1494 = vmatpush1.msra.mxu0 0.0
    %1495 = vmatprep.subr.mxu0 0.0
    %1496 = vmatpush1.msra.mxu0 0.0
    %1497 = vmatprep.subr.mxu0 0.0
    %1498 = vmatpush1.msra.mxu0 0.0
    %1499 = vmatprep.subr.mxu0 0.0
    %1500 = vmatpush1.msra.mxu0 0.0
    %1501 = vmatprep.subr.mxu0 0.0
    %1502 = vmatpush1.msra.mxu0 0.0
    %1503 = vmatprep.subr.mxu0 0.0
    %1504 = vmatpush1.msra.mxu0 0.0
    %1505 = vmatprep.subr.mxu0 0.0
    %1506 = vmatpush1.msra.mxu0 0.0
    %1507 = vmatprep.subr.mxu0 0.0
    %1508 = vmatpush1.msra.mxu0 0.0
    %1509 = vmatprep.subr.mxu0 0.0
    %1510 = vmatpush1.msra.mxu0 0.0
    %1511 = vmatprep.subr.mxu0 0.0
    %1512 = vmatpush1.msra.mxu0 0.0
    %1513 = vmatprep.subr.mxu0 0.0
    %1514 = vmatpush1.msra.mxu0 0.0
    %1515 = vmatprep.subr.mxu0 0.0
    %1516 = vmatpush1.msra.mxu0 0.0
    %1517 = vmatprep.subr.mxu0 0.0
    %1518 = vmatpush1.msra.mxu0 0.0
    %1519 = vmatprep.subr.mxu0 0.0
    %1520 = vmatpush1.msra.mxu0 0.0
    %1521 = vmatprep.subr.mxu0 0.0
    %1522 = vmatpush1.msra.mxu0 0.0
    %1523 = vmatprep.subr.mxu0 0.0
    %1524 = vmatpush1.msra.mxu0 0.0
    %1525 = vmatprep.subr.mxu0 0.0
    %1526 = vmatpush1.msra.mxu0 0.0
    %1527 = vmatprep.subr.mxu0 0.0
    %1528 = vmatpush1.msra.mxu0 0.0
    %1529 = vmatprep.subr.mxu0 0.0
    %1530 = vmatpush1.msra.mxu0 0.0
    %1531 = vmatprep.subr.mxu0 0.0
    %1532 = vmatpush1.msra.mxu0 0.0
    %1533 = vmatprep.subr.mxu0 0.0
    %1534 = vmatpush1.msra.mxu0 0.0
    %1535 = vmatprep.subr.mxu0 0.0
    %1536 = vmatpush1.msra.mxu0 0.0
    %1537 = vmatprep.subr.mxu0 0.0
    %1538 = vmatpush1.msra.mxu0 0.0
    %1539 = vmatprep.mubr.f32.mxu0 0.0
    %1540 = vmatmul.mubr.f32.gmra.mrb[0].mxu0 %v1470
    %v1541 = vpop.f32.mrb[0].mxu0
    %v1542 = vadd.f32 %v1467, %v1541
    %v1543 = vpop.f32.mrb[0].mxu0
    %1544 = vmatprep.mubr.f32.mxu0 0.0
    %1545 = vmatmul.mubr.f32.gmra.mrb[0].mxu0 %v1473
    %v1546 = vpop.f32.mrb[0].mxu0
    %v1547 = vadd.f32 %v1467, %v1546
    %v1548 = vpop.f32.mrb[0].mxu0
    %1549 = vdwg.mxu0
    %v1550 = vmul.f32 %v1542, 0.5
    %v1551 = vmul.f32 %v1547, 0.5
    %v1552 = vmul.f32 %v1542, 0.044715
    %v1553 = vmul.f32 %v1547, 0.044715
    %v1554 = vmul.f32 %v1552, %v1542
    %v1555 = vmul.f32 %v1553, %v1547
    %v1556 = vmul.f32 %v1554, %v1542
    %v1557 = vmul.f32 %v1555, %v1547
    %v1558 = vadd.f32 %v1542, %v1556
    %v1559 = vadd.f32 %v1547, %v1557
    %v1560 = vmul.f32 %v1558, 0.7978846
    %v1561 = vmul.f32 %v1559, 0.7978846
    %v1562 = vtanh.pop %v1560
    %v1563 = vtanh.pop %v1561
    %v1564 = vadd.f32 %v1562, 1.0
    %v1565 = vadd.f32 %v1563, 1.0
    %v1566 = vmul.f32 %v1550, %v1564
    %v1567 = vmul.f32 %v1551, %v1565
    %v1568 = vld [vmem:[%s33] sm:$0xff]
    %v1569 = vld [vmem:[%s33 + $0x8] sm:$0xff]
    %v1570 = vld [vmem:[%s33 + $0x10] sm:$0xff]
    %v1571 = vld [vmem:[%s33 + $0x18] sm:$0xff]
    %v1572 = vld [vmem:[%s33 + $0x20] sm:$0xff]
    %v1573 = vld [vmem:[%s33 + $0x28] sm:$0xff]
    %v1574 = vld [vmem:[%s33 + $0x30] sm:$0xff]
    %v1575 = vld [vmem:[%s33 + $0x38] sm:$0xff]
    %v1576 = vld [vmem:[#allocation17] sm:$0x1]
    %v1578 = vlaneseq
    %v1579 = vshrl.u32 %v1578, 7
    %v1580 = vsub.s32 0, %v1579
    %v1581 = vrot.slane %v1576, %v1580
    %v1584 = vsel %vm368, %v1566, 0
    %v1587 = vsel %vm368, %v1567, 0
    %1589 = vmatprep.subr.mxu0 0.0
    %1590 = vmatpush1.msra.mxu0 %v1568
    %1591 = vmatprep.subr.mxu0 0.0
    %1592 = vmatpush1.msra.mxu0 %v1569
    %1593 = vmatprep.subr.mxu0 0.0
    %1594 = vmatpush1.msra.mxu0 %v1570
    %1595 = vmatprep.subr.mxu0 0.0
    %1596 = vmatpush1.msra.mxu0 %v1571
    %1597 = vmatprep.subr.mxu0 0.0
    %1598 = vmatpush1.msra.mxu0 %v1572
    %1599 = vmatprep.subr.mxu0 0.0
    %1600 = vmatpush1.msra.mxu0 %v1573
    %1601 = vmatprep.subr.mxu0 0.0
    %1602 = vmatpush1.msra.mxu0 %v1574
    %1603 = vmatprep.subr.mxu0 0.0
    %1604 = vmatpush1.msra.mxu0 %v1575
    %1605 = vmatprep.subr.mxu0 0.0
    %1606 = vmatpush1.msra.mxu0 0.0
    %1607 = vmatprep.subr.mxu0 0.0
    %1608 = vmatpush1.msra.mxu0 0.0
    %1609 = vmatprep.subr.mxu0 0.0
    %1610 = vmatpush1.msra.mxu0 0.0
    %1611 = vmatprep.subr.mxu0 0.0
    %1612 = vmatpush1.msra.mxu0 0.0
    %1613 = vmatprep.subr.mxu0 0.0
    %1614 = vmatpush1.msra.mxu0 0.0
    %1615 = vmatprep.subr.mxu0 0.0
    %1616 = vmatpush1.msra.mxu0 0.0
    %1617 = vmatprep.subr.mxu0 0.0
    %1618 = vmatpush1.msra.mxu0 0.0
    %1619 = vmatprep.subr.mxu0 0.0
    %1620 = vmatpush1.msra.mxu0 0.0
    %1621 = vmatprep.subr.mxu0 0.0
    %1622 = vmatpush1.msra.mxu0 0.0
    %1623 = vmatprep.subr.mxu0 0.0
    %1624 = vmatpush1.msra.mxu0 0.0
    %1625 = vmatprep.subr.mxu0 0.0
    %1626 = vmatpush1.msra.mxu0 0.0
    %1627 = vmatprep.subr.mxu0 0.0
    %1628 = vmatpush1.msra.mxu0 0.0
    %1629 = vmatprep.subr.mxu0 0.0
    %1630 = vmatpush1.msra.mxu0 0.0
    %1631 = vmatprep.subr.mxu0 0.0
    %1632 = vmatpush1.msra.mxu0 0.0
    %1633 = vmatprep.subr.mxu0 0.0
    %1634 = vmatpush1.msra.mxu0 0.0
    %1635 = vmatprep.subr.mxu0 0.0
    %1636 = vmatpush1.msra.mxu0 0.0
    %1637 = vmatprep.subr.mxu0 0.0
    %1638 = vmatpush1.msra.mxu0 0.0
    %1639 = vmatprep.subr.mxu0 0.0
    %1640 = vmatpush1.msra.mxu0 0.0
    %1641 = vmatprep.subr.mxu0 0.0
    %1642 = vmatpush1.msra.mxu0 0.0
    %1643 = vmatprep.subr.mxu0 0.0
    %1644 = vmatpush1.msra.mxu0 0.0
    %1645 = vmatprep.subr.mxu0 0.0
    %1646 = vmatpush1.msra.mxu0 0.0
    %1647 = vmatprep.subr.mxu0 0.0
    %1648 = vmatpush1.msra.mxu0 0.0
    %1649 = vmatprep.subr.mxu0 0.0
    %1650 = vmatpush1.msra.mxu0 0.0
    %1651 = vmatprep.subr.mxu0 0.0
    %1652 = vmatpush1.msra.mxu0 0.0
    %1653 = vmatprep.mubr.f32.mxu0 0.0
    %1654 = vmatmul.mubr.f32.gmra.mrb[0].mxu0 %v1584
    %v1655 = vpop.f32.mrb[0].mxu0
    %v1656 = vadd.f32 %v1581, %v1655
    %v1657 = vpop.f32.mrb[0].mxu0
    %1658 = vmatprep.mubr.f32.mxu0 0.0
    %1659 = vmatmul.mubr.f32.gmra.mrb[0].mxu0 %v1587
    %v1660 = vpop.f32.mrb[0].mxu0
    %v1661 = vadd.f32 %v1581, %v1660
    %v1662 = vpop.f32.mrb[0].mxu0
    %1663 = vdwg.mxu0
    %v1664 = vadd.f32 %v1456, %v1656
    %v1665 = vadd.f32 %v1457, %v1661
    %v1666 = vld [vmem:[#allocation19] sm:$0x1]
    %v1667 = vld [vmem:[#allocation20] sm:$0x1]
    %v1668 = vsel %vm462, %v1664, 0.0
    %1669 = vadd.xlane.f32.xlu0 %v1668
    %v1670 = vpop.xlane.xlu0 %1669
    %v1671 = vsel %vm462, %v1665, 0.0
    %1672 = vadd.xlane.f32.xlu0 %v1671
    %v1673 = vpop.xlane.xlu0 %1672
    %v1674 = vmul.f32 %v1670, %v469
    %v1675 = vmul.f32 %v1673, %v469
    %v1676 = vmul.f32 %v1664, %v1664
    %v1677 = vmul.f32 %v1665, %v1665
    %v1678 = vsel %vm462, %v1676, 0.0
    %1679 = vadd.xlane.f32.xlu0 %v1678
    %v1680 = vpop.xlane.xlu0 %1679
    %v1681 = vsel %vm462, %v1677, 0.0
    %1682 = vadd.xlane.f32.xlu0 %v1681
    %v1683 = vpop.xlane.xlu0 %1682
    %v1684 = vmul.f32 %v1680, %v469
    %v1685 = vmul.f32 %v1683, %v469
    %v1686 = vmul.f32 %v1674, %v1674
    %v1687 = vmul.f32 %v1675, %v1675
    %v1688 = vsub.f32 %v1684, %v1686
    %v1689 = vsub.f32 %v1685, %v1687
    %v1690 = vmax.f32 %v1688, 0.0
    %v1691 = vmax.f32 %v1689, 0.0
    %v1692 = vsub.f32 %v1664, %v1674
    %v1693 = vsub.f32 %v1665, %v1675
    %v1694 = vadd.f32 %v1690, 1e-12
    %v1695 = vadd.f32 %v1691, 1e-12
    %v1696 = vrsqrt.pop %v1694
    %v1697 = vrsqrt.pop %v1695
    %v1698 = vmul.f32 %v1692, %v1696
    %v1699 = vmul.f32 %v1693, %v1697
    %v1701 = vlaneseq
    %v1702 = vshrl.u32 %v1701, 7
    %v1703 = vsub.s32 0, %v1702
    %v1704 = vrot.slane %v1666, %v1703
    %v1706 = vmul.f32 %v1698, %v1704
    %v1707 = vmul.f32 %v1699, %v1704
    %v1709 = vlaneseq
    %v1710 = vshrl.u32 %v1709, 7
    %v1711 = vsub.s32 0, %v1710
    %v1712 = vrot.slane %v1667, %v1711
    %v1714 = vadd.f32 %v1706, %v1712
    %v1715 = vadd.f32 %v1707, %v1712
    %s1716 = scalar_lea.vmem %s17, 32
    %v1717 = vld [vmem:[%s1716] sm:$0xff]
    %v1718 = vld [vmem:[%s1716 + $0x8] sm:$0xff]
    %v1719 = vld [vmem:[%s1716 + $0x10] sm:$0xff]
    %v1720 = vld [vmem:[%s1716 + $0x18] sm:$0xff]
    %s1721 = scalar_lea.vmem [#allocation10], 1
    %v1722 = vld [vmem:[%s1721] sm:$0x1]
    %v1724 = vlaneseq
    %v1725 = vshrl.u32 %v1724, 7
    %v1726 = vsub.s32 0, %v1725
    %v1727 = vrot.slane %v1722, %v1726
    %v1730 = vsel %vm462, %v1714, 0
    %v1733 = vsel %vm462, %v1715, 0
    %1735 = vmatprep.subr.mxu0 0.0
    %1736 = vmatpush1.msra.mxu0 %v1717
    %1737 = vmatprep.subr.mxu0 0.0
    %1738 = vmatpush1.msra.mxu0 %v1718
    %1739 = vmatprep.subr.mxu0 0.0
    %1740 = vmatpush1.msra.mxu0 %v1719
    %1741 = vmatprep.subr.mxu0 0.0
    %1742 = vmatpush1.msra.mxu0 %v1720
    %1743 = vmatprep.subr.mxu0 0.0
    %1744 = vmatpush1.msra.mxu0 0.0
    %1745 = vmatprep.subr.mxu0 0.0
    %1746 = vmatpush1.msra.mxu0 0.0
    %1747 = vmatprep.subr.mxu0 0.0
    %1748 = vmatpush1.msra.mxu0 0.0
    %1749 = vmatprep.subr.mxu0 0.0
    %1750 = vmatpush1.msra.mxu0 0.0
    %1751 = vmatprep.subr.mxu0 0.0
    %1752 = vmatpush1.msra.mxu0 0.0
    %1753 = vmatprep.subr.mxu0 0.0
    %1754 = vmatpush1.msra.mxu0 0.0
    %1755 = vmatprep.subr.mxu0 0.0
    %1756 = vmatpush1.msra.mxu0 0.0
    %1757 = vmatprep.subr.mxu0 0.0
    %1758 = vmatpush1.msra.mxu0 0.0
    %1759 = vmatprep.subr.mxu0 0.0
    %1760 = vmatpush1.msra.mxu0 0.0
    %1761 = vmatprep.subr.mxu0 0.0
    %1762 = vmatpush1.msra.mxu0 0.0
    %1763 = vmatprep.subr.mxu0 0.0
    %1764 = vmatpush1.msra.mxu0 0.0
    %1765 = vmatprep.subr.mxu0 0.0
    %1766 = vmatpush1.msra.mxu0 0.0
    %1767 = vmatprep.subr.mxu0 0.0
    %1768 = vmatpush1.msra.mxu0 0.0
    %1769 = vmatprep.subr.mxu0 0.0
    %1770 = vmatpush1.msra.mxu0 0.0
    %1771 = vmatprep.subr.mxu0 0.0
    %1772 = vmatpush1.msra.mxu0 0.0
    %1773 = vmatprep.subr.mxu0 0.0
    %1774 = vmatpush1.msra.mxu0 0.0
    %1775 = vmatprep.subr.mxu0 0.0
    %1776 = vmatpush1.msra.mxu0 0.0
    %1777 = vmatprep.subr.mxu0 0.0
    %1778 = vmatpush1.msra.mxu0 0.0
    %1779 = vmatprep.subr.mxu0 0.0
    %1780 = vmatpush1.msra.mxu0 0.0
    %1781 = vmatprep.subr.mxu0 0.0
    %1782 = vmatpush1.msra.mxu0 0.0
    %1783 = vmatprep.subr.mxu0 0.0
    %1784 = vmatpush1.msra.mxu0 0.0
    %1785 = vmatprep.subr.mxu0 0.0
    %1786 = vmatpush1.msra.mxu0 0.0
    %1787 = vmatprep.subr.mxu0 0.0
    %1788 = vmatpush1.msra.mxu0 0.0
    %1789 = vmatprep.subr.mxu0 0.0
    %1790 = vmatpush1.msra.mxu0 0.0
    %1791 = vmatprep.subr.mxu0 0.0
    %1792 = vmatpush1.msra.mxu0 0.0
    %1793 = vmatprep.subr.mxu0 0.0
    %1794 = vmatpush1.msra.mxu0 0.0
    %1795 = vmatprep.subr.mxu0 0.0
    %1796 = vmatpush1.msra.mxu0 0.0
    %1797 = vmatprep.subr.mxu0 0.0
    %1798 = vmatpush1.msra.mxu0 0.0
    %1799 = vmatprep.mubr.f32.mxu0 0.0
    %1800 = vmatmul.mubr.f32.gmra.mrb[0].mxu0 %v1730
    %v1801 = vpop.f32.mrb[0].mxu0
    %v1802 = vadd.f32 %v1727, %v1801
    %v1803 = vpop.f32.mrb[0].mxu0
    %1804 = vmatprep.mubr.f32.mxu0 0.0
    %1805 = vmatmul.mubr.f32.gmra.mrb[0].mxu0 %v1733
    %v1806 = vpop.f32.mrb[0].mxu0
    %v1807 = vadd.f32 %v1727, %v1806
    %v1808 = vpop.f32.mrb[0].mxu0
    %1809 = vdwg.mxu0
    %v1810 = vmul.f32 %v1802, 0.25
    %v1811 = vmul.f32 %v1807, 0.25
    %1813 = vrot.lane.b32.xlu0 %v1802, 96
    %v1814 = vpop.permute.xlu0 %1813
    %v1816 = vsel %vm645, %v1810, 0
    %v1818 = vsel %vm645, %v1814, 0
    %1820 = vmatprep.subr.mxu0 0.0
    %1821 = vmatpush1.xpose.msra.mxu0 %v1818
    %1822 = vmatprep.subr.mxu0 0.0
    %1823 = vmatpush1.xpose.msra.mxu0 0.0
    %1824 = vmatprep.subr.mxu0 0.0
    %1825 = vmatpush1.xpose.msra.mxu0 0.0
    %1826 = vmatprep.subr.mxu0 0.0
    %1827 = vmatpush1.xpose.msra.mxu0 0.0
    %1828 = vmatprep.subr.mxu0 0.0
    %1829 = vmatpush1.xpose.msra.mxu0 0.0
    %1830 = vmatprep.subr.mxu0 0.0
    %1831 = vmatpush1.xpose.msra.mxu0 0.0
    %1832 = vmatprep.subr.mxu0 0.0
    %1833 = vmatpush1.xpose.msra.mxu0 0.0
    %1834 = vmatprep.subr.mxu0 0.0
    %1835 = vmatpush1.xpose.msra.mxu0 0.0
    %1836 = vmatprep.subr.mxu0 0.0
    %1837 = vmatpush1.xpose.msra.mxu0 0.0
    %1838 = vmatprep.subr.mxu0 0.0
    %1839 = vmatpush1.xpose.msra.mxu0 0.0
    %1840 = vmatprep.subr.mxu0 0.0
    %1841 = vmatpush1.xpose.msra.mxu0 0.0
    %1842 = vmatprep.subr.mxu0 0.0
    %1843 = vmatpush1.xpose.msra.mxu0 0.0
    %1844 = vmatprep.subr.mxu0 0.0
    %1845 = vmatpush1.xpose.msra.mxu0 0.0
    %1846 = vmatprep.subr.mxu0 0.0
    %1847 = vmatpush1.xpose.msra.mxu0 0.0
    %1848 = vmatprep.subr.mxu0 0.0
    %1849 = vmatpush1.xpose.msra.mxu0 0.0
    %1850 = vmatprep.subr.mxu0 0.0
    %1851 = vmatpush1.xpose.msra.mxu0 0.0
    %1852 = vmatprep.subr.mxu0 0.0
    %1853 = vmatpush1.xpose.msra.mxu0 0.0
    %1854 = vmatprep.subr.mxu0 0.0
    %1855 = vmatpush1.xpose.msra.mxu0 0.0
    %1856 = vmatprep.subr.mxu0 0.0
    %1857 = vmatpush1.xpose.msra.mxu0 0.0
    %1858 = vmatprep.subr.mxu0 0.0
    %1859 = vmatpush1.xpose.msra.mxu0 0.0
    %1860 = vmatprep.subr.mxu0 0.0
    %1861 = vmatpush1.xpose.msra.mxu0 0.0
    %1862 = vmatprep.subr.mxu0 0.0
    %1863 = vmatpush1.xpose.msra.mxu0 0.0
    %1864 = vmatprep.subr.mxu0 0.0
    %1865 = vmatpush1.xpose.msra.mxu0 0.0
    %1866 = vmatprep.subr.mxu0 0.0
    %1867 = vmatpush1.xpose.msra.mxu0 0.0
    %1868 = vmatprep.subr.mxu0 0.0
    %1869 = vmatpush1.xpose.msra.mxu0 0.0
    %1870 = vmatprep.subr.mxu0 0.0
    %1871 = vmatpush1.xpose.msra.mxu0 0.0
    %1872 = vmatprep.subr.mxu0 0.0
    %1873 = vmatpush1.xpose.msra.mxu0 0.0
    %1874 = vmatprep.subr.mxu0 0.0
    %1875 = vmatpush1.xpose.msra.mxu0 0.0
    %1876 = vmatprep.subr.mxu0 0.0
    %1877 = vmatpush1.xpose.msra.mxu0 0.0
    %1878 = vmatprep.subr.mxu0 0.0
    %1879 = vmatpush1.xpose.msra.mxu0 0.0
    %1880 = vmatprep.subr.mxu0 0.0
    %1881 = vmatpush1.xpose.msra.mxu0 0.0
    %1882 = vmatprep.subr.mxu0 0.0
    %1883 = vmatpush1.xpose.msra.mxu0 0.0
    %1884 = vmatprep.mubr.f32.mxu0 0.0
    %1885 = vmatmul.mubr.f32.gmra.mrb[0].mxu0 %v1816
    %v1886 = vpop.f32.mrb[0].mxu0
    %v1887 = vadd.f32 %v635, %v1886
    %v1888 = vpop.f32.mrb[0].mxu0
    %1889 = vdwg.mxu0
    %1891 = vrot.lane.b32.xlu0 %v1807, 96
    %v1892 = vpop.permute.xlu0 %1891
    %v1894 = vsel %vm645, %v1811, 0
    %v1896 = vsel %vm645, %v1892, 0
    %1898 = vmatprep.subr.mxu0 0.0
    %1899 = vmatpush1.xpose.msra.mxu0 %v1896
    %1900 = vmatprep.subr.mxu0 0.0
    %1901 = vmatpush1.xpose.msra.mxu0 0.0
    %1902 = vmatprep.subr.mxu0 0.0
    %1903 = vmatpush1.xpose.msra.mxu0 0.0
    %1904 = vmatprep.subr.mxu0 0.0
    %1905 = vmatpush1.xpose.msra.mxu0 0.0
    %1906 = vmatprep.subr.mxu0 0.0
    %1907 = vmatpush1.xpose.msra.mxu0 0.0
    %1908 = vmatprep.subr.mxu0 0.0
    %1909 = vmatpush1.xpose.msra.mxu0 0.0
    %1910 = vmatprep.subr.mxu0 0.0
    %1911 = vmatpush1.xpose.msra.mxu0 0.0
    %1912 = vmatprep.subr.mxu0 0.0
    %1913 = vmatpush1.xpose.msra.mxu0 0.0
    %1914 = vmatprep.subr.mxu0 0.0
    %1915 = vmatpush1.xpose.msra.mxu0 0.0
    %1916 = vmatprep.subr.mxu0 0.0
    %1917 = vmatpush1.xpose.msra.mxu0 0.0
    %1918 = vmatprep.subr.mxu0 0.0
    %1919 = vmatpush1.xpose.msra.mxu0 0.0
    %1920 = vmatprep.subr.mxu0 0.0
    %1921 = vmatpush1.xpose.msra.mxu0 0.0
    %1922 = vmatprep.subr.mxu0 0.0
    %1923 = vmatpush1.xpose.msra.mxu0 0.0
    %1924 = vmatprep.subr.mxu0 0.0
    %1925 = vmatpush1.xpose.msra.mxu0 0.0
    %1926 = vmatprep.subr.mxu0 0.0
    %1927 = vmatpush1.xpose.msra.mxu0 0.0
    %1928 = vmatprep.subr.mxu0 0.0
    %1929 = vmatpush1.xpose.msra.mxu0 0.0
    %1930 = vmatprep.subr.mxu0 0.0
    %1931 = vmatpush1.xpose.msra.mxu0 0.0
    %1932 = vmatprep.subr.mxu0 0.0
    %1933 = vmatpush1.xpose.msra.mxu0 0.0
    %1934 = vmatprep.subr.mxu0 0.0
    %1935 = vmatpush1.xpose.msra.mxu0 0.0
    %1936 = vmatprep.subr.mxu0 0.0
    %1937 = vmatpush1.xpose.msra.mxu0 0.0
    %1938 = vmatprep.subr.mxu0 0.0
    %1939 = vmatpush1.xpose.msra.mxu0 0.0
    %1940 = vmatprep.subr.mxu0 0.0
    %1941 = vmatpush1.xpose.msra.mxu0 0.0
    %1942 = vmatprep.subr.mxu0 0.0
    %1943 = vmatpush1.xpose.msra.mxu0 0.0
    %1944 = vmatprep.subr.mxu0 0.0
    %1945 = vmatpush1.xpose.msra.mxu0 0.0
    %1946 = vmatprep.subr.mxu0 0.0
    %1947 = vmatpush1.xpose.msra.mxu0 0.0
    %1948 = vmatprep.subr.mxu0 0.0
    %1949 = vmatpush1.xpose.msra.mxu0 0.0
    %1950 = vmatprep.subr.mxu0 0.0
    %1951 = vmatpush1.xpose.msra.mxu0 0.0
    %1952 = vmatprep.subr.mxu0 0.0
    %1953 = vmatpush1.xpose.msra.mxu0 0.0
    %1954 = vmatprep.subr.mxu0 0.0
    %1955 = vmatpush1.xpose.msra.mxu0 0.0
    %1956 = vmatprep.subr.mxu0 0.0
    %1957 = vmatpush1.xpose.msra.mxu0 0.0
    %1958 = vmatprep.subr.mxu0 0.0
    %1959 = vmatpush1.xpose.msra.mxu0 0.0
    %1960 = vmatprep.subr.mxu0 0.0
    %1961 = vmatpush1.xpose.msra.mxu0 0.0
    %1962 = vmatprep.mubr.f32.mxu0 0.0
    %1963 = vmatmul.mubr.f32.gmra.mrb[0].mxu0 %v1894
    %v1964 = vpop.f32.mrb[0].mxu0
    %v1965 = vadd.f32 %v639, %v1964
    %v1966 = vpop.f32.mrb[0].mxu0
    %1967 = vdwg.mxu0
    %v1968 = vsel %vm799, %v1887, -inf
    %1969 = vmax.xlane.f32.xlu0 %v1968
    %v1970 = vpop.xlane.xlu0 %1969
    %v1971 = vsel %vm799, %v1965, -inf
    %1972 = vmax.xlane.f32.xlu0 %v1971
    %v1973 = vpop.xlane.xlu0 %1972
    %v1974 = vsub.f32 %v1887, %v1970
    %v1975 = vsub.f32 %v1965, %v1973
    %v1976 = vmul.f32 %v1974, 1.442695
    %v1977 = vpow.pop %v1976
    %v1978 = vmul.f32 %v1975, 1.442695
    %v1979 = vpow.pop %v1978
    %v1980 = vsel %vm799, %v1977, 0.0
    %1981 = vadd.xlane.f32.xlu0 %v1980
    %v1982 = vpop.xlane.xlu0 %1981
    %v1983 = vsel %vm799, %v1979, 0.0
    %1984 = vadd.xlane.f32.xlu0 %v1983
    %v1985 = vpop.xlane.xlu0 %1984
    %v1986 = vrcp.pop %v1982
    %v1987 = vrcp.pop %v1985
    %v1988 = vmul.f32 %v1977, %v1986
    %v1989 = vmul.f32 %v1979, %v1987
    %1990 = vrot.lane.b32.xlu0 %v1802, 64
    %v1991 = vpop.permute.xlu0 %1990
    %v1994 = vsel %vm799, %v1988, 0
    %1996 = vmatprep.subr.mxu0 0.0
    %1997 = vmatpush1.msra.mxu0 %v1991
    %1998 = vmatprep.subr.mxu0 0.0
    %1999 = vmatpush1.msra.mxu0 0.0
    %2000 = vmatprep.subr.mxu0 0.0
    %2001 = vmatpush1.msra.mxu0 0.0
    %2002 = vmatprep.subr.mxu0 0.0
    %2003 = vmatpush1.msra.mxu0 0.0
    %2004 = vmatprep.subr.mxu0 0.0
    %2005 = vmatpush1.msra.mxu0 0.0
    %2006 = vmatprep.subr.mxu0 0.0
    %2007 = vmatpush1.msra.mxu0 0.0
    %2008 = vmatprep.subr.mxu0 0.0
    %2009 = vmatpush1.msra.mxu0 0.0
    %2010 = vmatprep.subr.mxu0 0.0
    %2011 = vmatpush1.msra.mxu0 0.0
    %2012 = vmatprep.subr.mxu0 0.0
    %2013 = vmatpush1.msra.mxu0 0.0
    %2014 = vmatprep.subr.mxu0 0.0
    %2015 = vmatpush1.msra.mxu0 0.0
    %2016 = vmatprep.subr.mxu0 0.0
    %2017 = vmatpush1.msra.mxu0 0.0
    %2018 = vmatprep.subr.mxu0 0.0
    %2019 = vmatpush1.msra.mxu0 0.0
    %2020 = vmatprep.subr.mxu0 0.0
    %2021 = vmatpush1.msra.mxu0 0.0
    %2022 = vmatprep.subr.mxu0 0.0
    %2023 = vmatpush1.msra.mxu0 0.0
    %2024 = vmatprep.subr.mxu0 0.0
    %2025 = vmatpush1.msra.mxu0 0.0
    %2026 = vmatprep.subr.mxu0 0.0
    %2027 = vmatpush1.msra.mxu0 0.0
    %2028 = vmatprep.subr.mxu0 0.0
    %2029 = vmatpush1.msra.mxu0 0.0
    %2030 = vmatprep.subr.mxu0 0.0
    %2031 = vmatpush1.msra.mxu0 0.0
    %2032 = vmatprep.subr.mxu0 0.0
    %2033 = vmatpush1.msra.mxu0 0.0
    %2034 = vmatprep.subr.mxu0 0.0
    %2035 = vmatpush1.msra.mxu0 0.0
    %2036 = vmatprep.subr.mxu0 0.0
    %2037 = vmatpush1.msra.mxu0 0.0
    %2038 = vmatprep.subr.mxu0 0.0
    %2039 = vmatpush1.msra.mxu0 0.0
    %2040 = vmatprep.subr.mxu0 0.0
    %2041 = vmatpush1.msra.mxu0 0.0
    %2042 = vmatprep.subr.mxu0 0.0
    %2043 = vmatpush1.msra.mxu0 0.0
    %2044 = vmatprep.subr.mxu0 0.0
    %2045 = vmatpush1.msra.mxu0 0.0
    %2046 = vmatprep.subr.mxu0 0.0
    %2047 = vmatpush1.msra.mxu0 0.0
    %2048 = vmatprep.subr.mxu0 0.0
    %2049 = vmatpush1.msra.mxu0 0.0
    %2050 = vmatprep.subr.mxu0 0.0
    %2051 = vmatpush1.msra.mxu0 0.0
    %2052 = vmatprep.subr.mxu0 0.0
    %2053 = vmatpush1.msra.mxu0 0.0
    %2054 = vmatprep.subr.mxu0 0.0
    %2055 = vmatpush1.msra.mxu0 0.0
    %2056 = vmatprep.subr.mxu0 0.0
    %2057 = vmatpush1.msra.mxu0 0.0
    %2058 = vmatprep.subr.mxu0 0.0
    %2059 = vmatpush1.msra.mxu0 0.0
    %2060 = vmatprep.mubr.f32.mxu0 0.0
    %2061 = vmatmul.mubr.f32.gmra.mrb[0].mxu0 %v1994
    %v2062 = vpop.f32.mrb[0].mxu0
    %v2063 = vadd.f32 0.0, %v2062
    %v2064 = vpop.f32.mrb[0].mxu0
    %2065 = vdwg.mxu0
    %2066 = vrot.lane.b32.xlu0 %v1807, 64
    %v2067 = vpop.permute.xlu0 %2066
    %v2070 = vsel %vm799, %v1989, 0
    %2072 = vmatprep.subr.mxu0 0.0
    %2073 = vmatpush1.msra.mxu0 %v2067
    %2074 = vmatprep.subr.mxu0 0.0
    %2075 = vmatpush1.msra.mxu0 0.0
    %2076 = vmatprep.subr.mxu0 0.0
    %2077 = vmatpush1.msra.mxu0 0.0
    %2078 = vmatprep.subr.mxu0 0.0
    %2079 = vmatpush1.msra.mxu0 0.0
    %2080 = vmatprep.subr.mxu0 0.0
    %2081 = vmatpush1.msra.mxu0 0.0
    %2082 = vmatprep.subr.mxu0 0.0
    %2083 = vmatpush1.msra.mxu0 0.0
    %2084 = vmatprep.subr.mxu0 0.0
    %2085 = vmatpush1.msra.mxu0 0.0
    %2086 = vmatprep.subr.mxu0 0.0
    %2087 = vmatpush1.msra.mxu0 0.0
    %2088 = vmatprep.subr.mxu0 0.0
    %2089 = vmatpush1.msra.mxu0 0.0
    %2090 = vmatprep.subr.mxu0 0.0
    %2091 = vmatpush1.msra.mxu0 0.0
    %2092 = vmatprep.subr.mxu0 0.0
    %2093 = vmatpush1.msra.mxu0 0.0
    %2094 = vmatprep.subr.mxu0 0.0
    %2095 = vmatpush1.msra.mxu0 0.0
    %2096 = vmatprep.subr.mxu0 0.0
    %2097 = vmatpush1.msra.mxu0 0.0
    %2098 = vmatprep.subr.mxu0 0.0
    %2099 = vmatpush1.msra.mxu0 0.0
    %2100 = vmatprep.subr.mxu0 0.0
    %2101 = vmatpush1.msra.mxu0 0.0
    %2102 = vmatprep.subr.mxu0 0.0
    %2103 = vmatpush1.msra.mxu0 0.0
    %2104 = vmatprep.subr.mxu0 0.0
    %2105 = vmatpush1.msra.mxu0 0.0
    %2106 = vmatprep.subr.mxu0 0.0
    %2107 = vmatpush1.msra.mxu0 0.0
    %2108 = vmatprep.subr.mxu0 0.0
    %2109 = vmatpush1.msra.mxu0 0.0
    %2110 = vmatprep.subr.mxu0 0.0
    %2111 = vmatpush1.msra.mxu0 0.0
    %2112 = vmatprep.subr.mxu0 0.0
    %2113 = vmatpush1.msra.mxu0 0.0
    %2114 = vmatprep.subr.mxu0 0.0
    %2115 = vmatpush1.msra.mxu0 0.0
    %2116 = vmatprep.subr.mxu0 0.0
    %2117 = vmatpush1.msra.mxu0 0.0
    %2118 = vmatprep.subr.mxu0 0.0
    %2119 = vmatpush1.msra.mxu0 0.0
    %2120 = vmatprep.subr.mxu0 0.0
    %2121 = vmatpush1.msra.mxu0 0.0
    %2122 = vmatprep.subr.mxu0 0.0
    %2123 = vmatpush1.msra.mxu0 0.0
    %2124 = vmatprep.subr.mxu0 0.0
    %2125 = vmatpush1.msra.mxu0 0.0
    %2126 = vmatprep.subr.mxu0 0.0
    %2127 = vmatpush1.msra.mxu0 0.0
    %2128 = vmatprep.subr.mxu0 0.0
    %2129 = vmatpush1.msra.mxu0 0.0
    %2130 = vmatprep.subr.mxu0 0.0
    %2131 = vmatpush1.msra.mxu0 0.0
    %2132 = vmatprep.subr.mxu0 0.0
    %2133 = vmatpush1.msra.mxu0 0.0
    %2134 = vmatprep.subr.mxu0 0.0
    %2135 = vmatpush1.msra.mxu0 0.0
    %2136 = vmatprep.mubr.f32.mxu0 0.0
    %2137 = vmatmul.mubr.f32.gmra.mrb[0].mxu0 %v2070
    %v2138 = vpop.f32.mrb[0].mxu0
    %v2139 = vadd.f32 0.0, %v2138
    %v2140 = vpop.f32.mrb[0].mxu0
    %2141 = vdwg.mxu0
    %2142 = vrot.lane.b32.xlu0 %v1810, 112
    %v2143 = vpop.permute.xlu0 %2142
    %2144 = vrot.lane.b32.xlu0 %v1802, 80
    %v2145 = vpop.permute.xlu0 %2144
    %v2146 = vsel %vm645, %v2143, 0
    %v2148 = vsel %vm645, %v2145, 0
    %2150 = vmatprep.subr.mxu0 0.0
    %2151 = vmatpush1.xpose.msra.mxu0 %v2148
    %2152 = vmatprep.subr.mxu0 0.0
    %2153 = vmatpush1.xpose.msra.mxu0 0.0
    %2154 = vmatprep.subr.mxu0 0.0
    %2155 = vmatpush1.xpose.msra.mxu0 0.0
    %2156 = vmatprep.subr.mxu0 0.0
    %2157 = vmatpush1.xpose.msra.mxu0 0.0
    %2158 = vmatprep.subr.mxu0 0.0
    %2159 = vmatpush1.xpose.msra.mxu0 0.0
    %2160 = vmatprep.subr.mxu0 0.0
    %2161 = vmatpush1.xpose.msra.mxu0 0.0
    %2162 = vmatprep.subr.mxu0 0.0
    %2163 = vmatpush1.xpose.msra.mxu0 0.0
    %2164 = vmatprep.subr.mxu0 0.0
    %2165 = vmatpush1.xpose.msra.mxu0 0.0
    %2166 = vmatprep.subr.mxu0 0.0
    %2167 = vmatpush1.xpose.msra.mxu0 0.0
    %2168 = vmatprep.subr.mxu0 0.0
    %2169 = vmatpush1.xpose.msra.mxu0 0.0
    %2170 = vmatprep.subr.mxu0 0.0
    %2171 = vmatpush1.xpose.msra.mxu0 0.0
    %2172 = vmatprep.subr.mxu0 0.0
    %2173 = vmatpush1.xpose.msra.mxu0 0.0
    %2174 = vmatprep.subr.mxu0 0.0
    %2175 = vmatpush1.xpose.msra.mxu0 0.0
    %2176 = vmatprep.subr.mxu0 0.0
    %2177 = vmatpush1.xpose.msra.mxu0 0.0
    %2178 = vmatprep.subr.mxu0 0.0
    %2179 = vmatpush1.xpose.msra.mxu0 0.0
    %2180 = vmatprep.subr.mxu0 0.0
    %2181 = vmatpush1.xpose.msra.mxu0 0.0
    %2182 = vmatprep.subr.mxu0 0.0
    %2183 = vmatpush1.xpose.msra.mxu0 0.0
    %2184 = vmatprep.subr.mxu0 0.0
    %2185 = vmatpush1.xpose.msra.mxu0 0.0
    %2186 = vmatprep.subr.mxu0 0.0
    %2187 = vmatpush1.xpose.msra.mxu0 0.0
    %2188 = vmatprep.subr.mxu0 0.0
    %2189 = vmatpush1.xpose.msra.mxu0 0.0
    %2190 = vmatprep.subr.mxu0 0.0
    %2191 = vmatpush1.xpose.msra.mxu0 0.0
    %2192 = vmatprep.subr.mxu0 0.0
    %2193 = vmatpush1.xpose.msra.mxu0 0.0
    %2194 = vmatprep.subr.mxu0 0.0
    %2195 = vmatpush1.xpose.msra.mxu0 0.0
    %2196 = vmatprep.subr.mxu0 0.0
    %2197 = vmatpush1.xpose.msra.mxu0 0.0
    %2198 = vmatprep.subr.mxu0 0.0
    %2199 = vmatpush1.xpose.msra.mxu0 0.0
    %2200 = vmatprep.subr.mxu0 0.0
    %2201 = vmatpush1.xpose.msra.mxu0 0.0
    %2202 = vmatprep.subr.mxu0 0.0
    %2203 = vmatpush1.xpose.msra.mxu0 0.0
    %2204 = vmatprep.subr.mxu0 0.0
    %2205 = vmatpush1.xpose.msra.mxu0 0.0
    %2206 = vmatprep.subr.mxu0 0.0
    %2207 = vmatpush1.xpose.msra.mxu0 0.0
    %2208 = vmatprep.subr.mxu0 0.0
    %2209 = vmatpush1.xpose.msra.mxu0 0.0
    %2210 = vmatprep.subr.mxu0 0.0
    %2211 = vmatpush1.xpose.msra.mxu0 0.0
    %2212 = vmatprep.subr.mxu0 0.0
    %2213 = vmatpush1.xpose.msra.mxu0 0.0
    %2214 = vmatprep.mubr.f32.mxu0 0.0
    %2215 = vmatmul.mubr.f32.gmra.mrb[0].mxu0 %v2146
    %v2216 = vpop.f32.mrb[0].mxu0
    %v2217 = vadd.f32 %v635, %v2216
    %v2218 = vpop.f32.mrb[0].mxu0
    %2219 = vdwg.mxu0
    %2220 = vrot.lane.b32.xlu0 %v1811, 112
    %v2221 = vpop.permute.xlu0 %2220
    %2222 = vrot.lane.b32.xlu0 %v1807, 80
    %v2223 = vpop.permute.xlu0 %2222
    %v2224 = vsel %vm645, %v2221, 0
    %v2226 = vsel %vm645, %v2223, 0
    %2228 = vmatprep.subr.mxu0 0.0
    %2229 = vmatpush1.xpose.msra.mxu0 %v2226
    %2230 = vmatprep.subr.mxu0 0.0
    %2231 = vmatpush1.xpose.msra.mxu0 0.0
    %2232 = vmatprep.subr.mxu0 0.0
    %2233 = vmatpush1.xpose.msra.mxu0 0.0
    %2234 = vmatprep.subr.mxu0 0.0
    %2235 = vmatpush1.xpose.msra.mxu0 0.0
    %2236 = vmatprep.subr.mxu0 0.0
    %2237 = vmatpush1.xpose.msra.mxu0 0.0
    %2238 = vmatprep.subr.mxu0 0.0
    %2239 = vmatpush1.xpose.msra.mxu0 0.0
    %2240 = vmatprep.subr.mxu0 0.0
    %2241 = vmatpush1.xpose.msra.mxu0 0.0
    %2242 = vmatprep.subr.mxu0 0.0
    %2243 = vmatpush1.xpose.msra.mxu0 0.0
    %2244 = vmatprep.subr.mxu0 0.0
    %2245 = vmatpush1.xpose.msra.mxu0 0.0
    %2246 = vmatprep.subr.mxu0 0.0
    %2247 = vmatpush1.xpose.msra.mxu0 0.0
    %2248 = vmatprep.subr.mxu0 0.0
    %2249 = vmatpush1.xpose.msra.mxu0 0.0
    %2250 = vmatprep.subr.mxu0 0.0
    %2251 = vmatpush1.xpose.msra.mxu0 0.0
    %2252 = vmatprep.subr.mxu0 0.0
    %2253 = vmatpush1.xpose.msra.mxu0 0.0
    %2254 = vmatprep.subr.mxu0 0.0
    %2255 = vmatpush1.xpose.msra.mxu0 0.0
    %2256 = vmatprep.subr.mxu0 0.0
    %2257 = vmatpush1.xpose.msra.mxu0 0.0
    %2258 = vmatprep.subr.mxu0 0.0
    %2259 = vmatpush1.xpose.msra.mxu0 0.0
    %2260 = vmatprep.subr.mxu0 0.0
    %2261 = vmatpush1.xpose.msra.mxu0 0.0
    %2262 = vmatprep.subr.mxu0 0.0
    %2263 = vmatpush1.xpose.msra.mxu0 0.0
    %2264 = vmatprep.subr.mxu0 0.0
    %2265 = vmatpush1.xpose.msra.mxu0 0.0
    %2266 = vmatprep.subr.mxu0 0.0
    %2267 = vmatpush1.xpose.msra.mxu0 0.0
    %2268 = vmatprep.subr.mxu0 0.0
    %2269 = vmatpush1.xpose.msra.mxu0 0.0
    %2270 = vmatprep.subr.mxu0 0.0
    %2271 = vmatpush1.xpose.msra.mxu0 0.0
    %2272 = vmatprep.subr.mxu0 0.0
    %2273 = vmatpush1.xpose.msra.mxu0 0.0
    %2274 = vmatprep.subr.mxu0 0.0
    %2275 = vmatpush1.xpose.msra.mxu0 0.0
    %2276 = vmatprep.subr.mxu0 0.0
    %2277 = vmatpush1.xpose.msra.mxu0 0.0
    %2278 = vmatprep.subr.mxu0 0.0
    %2279 = vmatpush1.xpose.msra.mxu0 0.0
    %2280 = vmatprep.subr.mxu0 0.0
    %2281 = vmatpush1.xpose.msra.mxu0 0.0
    %2282 = vmatprep.subr.mxu0 0.0
    %2283 = vmatpush1.xpose.msra.mxu0 0.0
    %2284 = vmatprep.subr.mxu0 0.0
    %2285 = vmatpush1.xpose.msra.mxu0 0.0
    %2286 = vmatprep.subr.mxu0 0.0
    %2287 = vmatpush1.xpose.msra.mxu0 0.0
    %2288 = vmatprep.subr.mxu0 0.0
    %2289 = vmatpush1.xpose.msra.mxu0 0.0
    %2290 = vmatprep.subr.mxu0 0.0
    %2291 = vmatpush1.xpose.msra.mxu0 0.0
    %2292 = vmatprep.mubr.f32.mxu0 0.0
    %2293 = vmatmul.mubr.f32.gmra.mrb[0].mxu0 %v2224
    %v2294 = vpop.f32.mrb[0].mxu0
    %v2295 = vadd.f32 %v639, %v2294
    %v2296 = vpop.f32.mrb[0].mxu0
    %2297 = vdwg.mxu0
    %v2298 = vsel %vm799, %v2217, -inf
    %2299 = vmax.xlane.f32.xlu0 %v2298
    %v2300 = vpop.xlane.xlu0 %2299
    %v2301 = vsel %vm799, %v2295, -inf
    %2302 = vmax.xlane.f32.xlu0 %v2301
    %v2303 = vpop.xlane.xlu0 %2302
    %v2304 = vsub.f32 %v2217, %v2300
    %v2305 = vsub.f32 %v2295, %v2303
    %v2306 = vmul.f32 %v2304, 1.442695
    %v2307 = vpow.pop %v2306
    %v2308 = vmul.f32 %v2305, 1.442695
    %v2309 = vpow.pop %v2308
    %v2310 = vsel %vm799, %v2307, 0.0
    %2311 = vadd.xlane.f32.xlu0 %v2310
    %v2312 = vpop.xlane.xlu0 %2311
    %v2313 = vsel %vm799, %v2309, 0.0
    %2314 = vadd.xlane.f32.xlu0 %v2313
    %v2315 = vpop.xlane.xlu0 %2314
    %v2316 = vrcp.pop %v2312
    %v2317 = vrcp.pop %v2315
    %v2318 = vmul.f32 %v2307, %v2316
    %v2319 = vmul.f32 %v2309, %v2317
    %2320 = vrot.lane.b32.xlu0 %v1802, 48
    %v2321 = vpop.permute.xlu0 %2320
    %v2324 = vsel %vm799, %v2318, 0
    %2326 = vmatprep.subr.mxu0 0.0
    %2327 = vmatpush1.msra.mxu0 %v2321
    %2328 = vmatprep.subr.mxu0 0.0
    %2329 = vmatpush1.msra.mxu0 0.0
    %2330 = vmatprep.subr.mxu0 0.0
    %2331 = vmatpush1.msra.mxu0 0.0
    %2332 = vmatprep.subr.mxu0 0.0
    %2333 = vmatpush1.msra.mxu0 0.0
    %2334 = vmatprep.subr.mxu0 0.0
    %2335 = vmatpush1.msra.mxu0 0.0
    %2336 = vmatprep.subr.mxu0 0.0
    %2337 = vmatpush1.msra.mxu0 0.0
    %2338 = vmatprep.subr.mxu0 0.0
    %2339 = vmatpush1.msra.mxu0 0.0
    %2340 = vmatprep.subr.mxu0 0.0
    %2341 = vmatpush1.msra.mxu0 0.0
    %2342 = vmatprep.subr.mxu0 0.0
    %2343 = vmatpush1.msra.mxu0 0.0
    %2344 = vmatprep.subr.mxu0 0.0
    %2345 = vmatpush1.msra.mxu0 0.0
    %2346 = vmatprep.subr.mxu0 0.0
    %2347 = vmatpush1.msra.mxu0 0.0
    %2348 = vmatprep.subr.mxu0 0.0
    %2349 = vmatpush1.msra.mxu0 0.0
    %2350 = vmatprep.subr.mxu0 0.0
    %2351 = vmatpush1.msra.mxu0 0.0
    %2352 = vmatprep.subr.mxu0 0.0
    %2353 = vmatpush1.msra.mxu0 0.0
    %2354 = vmatprep.subr.mxu0 0.0
    %2355 = vmatpush1.msra.mxu0 0.0
    %2356 = vmatprep.subr.mxu0 0.0
    %2357 = vmatpush1.msra.mxu0 0.0
    %2358 = vmatprep.subr.mxu0 0.0
    %2359 = vmatpush1.msra.mxu0 0.0
    %2360 = vmatprep.subr.mxu0 0.0
    %2361 = vmatpush1.msra.mxu0 0.0
    %2362 = vmatprep.subr.mxu0 0.0
    %2363 = vmatpush1.msra.mxu0 0.0
    %2364 = vmatprep.subr.mxu0 0.0
    %2365 = vmatpush1.msra.mxu0 0.0
    %2366 = vmatprep.subr.mxu0 0.0
    %2367 = vmatpush1.msra.mxu0 0.0
    %2368 = vmatprep.subr.mxu0 0.0
    %2369 = vmatpush1.msra.mxu0 0.0
    %2370 = vmatprep.subr.mxu0 0.0
    %2371 = vmatpush1.msra.mxu0 0.0
    %2372 = vmatprep.subr.mxu0 0.0
    %2373 = vmatpush1.msra.mxu0 0.0
    %2374 = vmatprep.subr.mxu0 0.0
    %2375 = vmatpush1.msra.mxu0 0.0
    %2376 = vmatprep.subr.mxu0 0.0
    %2377 = vmatpush1.msra.mxu0 0.0
    %2378 = vmatprep.subr.mxu0 0.0
    %2379 = vmatpush1.msra.mxu0 0.0
    %2380 = vmatprep.subr.mxu0 0.0
    %2381 = vmatpush1.msra.mxu0 0.0
    %2382 = vmatprep.subr.mxu0 0.0
    %2383 = vmatpush1.msra.mxu0 0.0
    %2384 = vmatprep.subr.mxu0 0.0
    %2385 = vmatpush1.msra.mxu0 0.0
    %2386 = vmatprep.subr.mxu0 0.0
    %2387 = vmatpush1.msra.mxu0 0.0
    %2388 = vmatprep.subr.mxu0 0.0
    %2389 = vmatpush1.msra.mxu0 0.0
    %2390 = vmatprep.mubr.f32.mxu0 0.0
    %2391 = vmatmul.mubr.f32.gmra.mrb[0].mxu0 %v2324
    %v2392 = vpop.f32.mrb[0].mxu0
    %v2393 = vadd.f32 0.0, %v2392
    %v2394 = vpop.f32.mrb[0].mxu0
    %2395 = vdwg.mxu0
    %2396 = vrot.lane.b32.xlu0 %v1807, 48
    %v2397 = vpop.permute.xlu0 %2396
    %v2400 = vsel %vm799, %v2319, 0
    %2402 = vmatprep.subr.mxu0 0.0
    %2403 = vmatpush1.msra.mxu0 %v2397
    %2404 = vmatprep.subr.mxu0 0.0
    %2405 = vmatpush1.msra.mxu0 0.0
    %2406 = vmatprep.subr.mxu0 0.0
    %2407 = vmatpush1.msra.mxu0 0.0
    %2408 = vmatprep.subr.mxu0 0.0
    %2409 = vmatpush1.msra.mxu0 0.0
    %2410 = vmatprep.subr.mxu0 0.0
    %2411 = vmatpush1.msra.mxu0 0.0
    %2412 = vmatprep.subr.mxu0 0.0
    %2413 = vmatpush1.msra.mxu0 0.0
    %2414 = vmatprep.subr.mxu0 0.0
    %2415 = vmatpush1.msra.mxu0 0.0
    %2416 = vmatprep.subr.mxu0 0.0
    %2417 = vmatpush1.msra.mxu0 0.0
    %2418 = vmatprep.subr.mxu0 0.0
    %2419 = vmatpush1.msra.mxu0 0.0
    %2420 = vmatprep.subr.mxu0 0.0
    %2421 = vmatpush1.msra.mxu0 0.0
    %2422 = vmatprep.subr.mxu0 0.0
    %2423 = vmatpush1.msra.mxu0 0.0
    %2424 = vmatprep.subr.mxu0 0.0
    %2425 = vmatpush1.msra.mxu0 0.0
    %2426 = vmatprep.subr.mxu0 0.0
    %2427 = vmatpush1.msra.mxu0 0.0
    %2428 = vmatprep.subr.mxu0 0.0
    %2429 = vmatpush1.msra.mxu0 0.0
    %2430 = vmatprep.subr.mxu0 0.0
    %2431 = vmatpush1.msra.mxu0 0.0
    %2432 = vmatprep.subr.mxu0 0.0
    %2433 = vmatpush1.msra.mxu0 0.0
    %2434 = vmatprep.subr.mxu0 0.0
    %2435 = vmatpush1.msra.mxu0 0.0
    %2436 = vmatprep.subr.mxu0 0.0
    %2437 = vmatpush1.msra.mxu0 0.0
    %2438 = vmatprep.subr.mxu0 0.0
    %2439 = vmatpush1.msra.mxu0 0.0
    %2440 = vmatprep.subr.mxu0 0.0
    %2441 = vmatpush1.msra.mxu0 0.0
    %2442 = vmatprep.subr.mxu0 0.0
    %2443 = vmatpush1.msra.mxu0 0.0
    %2444 = vmatprep.subr.mxu0 0.0
    %2445 = vmatpush1.msra.mxu0 0.0
    %2446 = vmatprep.subr.mxu0 0.0
    %2447 = vmatpush1.msra.mxu0 0.0
    %2448 = vmatprep.subr.mxu0 0.0
    %2449 = vmatpush1.msra.mxu0 0.0
    %2450 = vmatprep.subr.mxu0 0.0
    %2451 = vmatpush1.msra.mxu0 0.0
    %2452 = vmatprep.subr.mxu0 0.0
    %2453 = vmatpush1.msra.mxu0 0.0
    %2454 = vmatprep.subr.mxu0 0.0
    %2455 = vmatpush1.msra.mxu0 0.0
    %2456 = vmatprep.subr.mxu0 0.0
    %2457 = vmatpush1.msra.mxu0 0.0
    %2458 = vmatprep.subr.mxu0 0.0
    %2459 = vmatpush1.msra.mxu0 0.0
    %2460 = vmatprep.subr.mxu0 0.0
    %2461 = vmatpush1.msra.mxu0 0.0
    %2462 = vmatprep.subr.mxu0 0.0
    %2463 = vmatpush1.msra.mxu0 0.0
    %2464 = vmatprep.subr.mxu0 0.0
    %2465 = vmatpush1.msra.mxu0 0.0
    %2466 = vmatprep.mubr.f32.mxu0 0.0
    %2467 = vmatmul.mubr.f32.gmra.mrb[0].mxu0 %v2400
    %v2468 = vpop.f32.mrb[0].mxu0
    %v2469 = vadd.f32 0.0, %v2468
    %v2470 = vpop.f32.mrb[0].mxu0
    %2471 = vdwg.mxu0
    %2474 = vrot.lane.b32.xlu0 %v2393, 16
    %v2475 = vpop.permute.xlu0 %2474
    %2476 = vrot.lane.b32.xlu0 %v2469, 16
    %v2477 = vpop.permute.xlu0 %2476
    %v2480 = vsel %vm645, %v2063, %v2475
    %v2481 = vsel %vm645, %v2139, %v2477
    %s2482 = scalar_lea.vmem %s21, 32
    %v2483 = vld [vmem:[%s2482] sm:$0xff]
    %v2484 = vld [vmem:[%s2482 + $0x8] sm:$0xff]
    %v2485 = vld [vmem:[%s2482 + $0x10] sm:$0xff]
    %v2486 = vld [vmem:[%s2482 + $0x18] sm:$0xff]
    %s2487 = scalar_lea.vmem [#allocation11], 1
    %v2488 = vld [vmem:[%s2487] sm:$0x1]
    %v2490 = vlaneseq
    %v2491 = vshrl.u32 %v2490, 7
    %v2492 = vsub.s32 0, %v2491
    %v2493 = vrot.slane %v2488, %v2492
    %v2496 = vsel %vm462, %v2480, 0
    %v2499 = vsel %vm462, %v2481, 0
    %2501 = vmatprep.subr.mxu0 0.0
    %2502 = vmatpush1.msra.mxu0 %v2483
    %2503 = vmatprep.subr.mxu0 0.0
    %2504 = vmatpush1.msra.mxu0 %v2484
    %2505 = vmatprep.subr.mxu0 0.0
    %2506 = vmatpush1.msra.mxu0 %v2485
    %2507 = vmatprep.subr.mxu0 0.0
    %2508 = vmatpush1.msra.mxu0 %v2486
    %2509 = vmatprep.subr.mxu0 0.0
    %2510 = vmatpush1.msra.mxu0 0.0
    %2511 = vmatprep.subr.mxu0 0.0
    %2512 = vmatpush1.msra.mxu0 0.0
    %2513 = vmatprep.subr.mxu0 0.0
    %2514 = vmatpush1.msra.mxu0 0.0
    %2515 = vmatprep.subr.mxu0 0.0
    %2516 = vmatpush1.msra.mxu0 0.0
    %2517 = vmatprep.subr.mxu0 0.0
    %2518 = vmatpush1.msra.mxu0 0.0
    %2519 = vmatprep.subr.mxu0 0.0
    %2520 = vmatpush1.msra.mxu0 0.0
    %2521 = vmatprep.subr.mxu0 0.0
    %2522 = vmatpush1.msra.mxu0 0.0
    %2523 = vmatprep.subr.mxu0 0.0
    %2524 = vmatpush1.msra.mxu0 0.0
    %2525 = vmatprep.subr.mxu0 0.0
    %2526 = vmatpush1.msra.mxu0 0.0
    %2527 = vmatprep.subr.mxu0 0.0
    %2528 = vmatpush1.msra.mxu0 0.0
    %2529 = vmatprep.subr.mxu0 0.0
    %2530 = vmatpush1.msra.mxu0 0.0
    %2531 = vmatprep.subr.mxu0 0.0
    %2532 = vmatpush1.msra.mxu0 0.0
    %2533 = vmatprep.subr.mxu0 0.0
    %2534 = vmatpush1.msra.mxu0 0.0
    %2535 = vmatprep.subr.mxu0 0.0
    %2536 = vmatpush1.msra.mxu0 0.0
    %2537 = vmatprep.subr.mxu0 0.0
    %2538 = vmatpush1.msra.mxu0 0.0
    %2539 = vmatprep.subr.mxu0 0.0
    %2540 = vmatpush1.msra.mxu0 0.0
    %2541 = vmatprep.subr.mxu0 0.0
    %2542 = vmatpush1.msra.mxu0 0.0
    %2543 = vmatprep.subr.mxu0 0.0
    %2544 = vmatpush1.msra.mxu0 0.0
    %2545 = vmatprep.subr.mxu0 0.0
    %2546 = vmatpush1.msra.mxu0 0.0
    %2547 = vmatprep.subr.mxu0 0.0
    %2548 = vmatpush1.msra.mxu0 0.0
    %2549 = vmatprep.subr.mxu0 0.0
    %2550 = vmatpush1.msra.mxu0 0.0
    %2551 = vmatprep.subr.mxu0 0.0
    %2552 = vmatpush1.msra.mxu0 0.0
    %2553 = vmatprep.subr.mxu0 0.0
    %2554 = vmatpush1.msra.mxu0 0.0
    %2555 = vmatprep.subr.mxu0 0.0
    %2556 = vmatpush1.msra.mxu0 0.0
    %2557 = vmatprep.subr.mxu0 0.0
    %2558 = vmatpush1.msra.mxu0 0.0
    %2559 = vmatprep.subr.mxu0 0.0
    %2560 = vmatpush1.msra.mxu0 0.0
    %2561 = vmatprep.subr.mxu0 0.0
    %2562 = vmatpush1.msra.mxu0 0.0
    %2563 = vmatprep.subr.mxu0 0.0
    %2564 = vmatpush1.msra.mxu0 0.0
    %2565 = vmatprep.mubr.f32.mxu0 0.0
    %2566 = vmatmul.mubr.f32.gmra.mrb[0].mxu0 %v2496
    %v2567 = vpop.f32.mrb[0].mxu0
    %v2568 = vadd.f32 %v2493, %v2567
    %v2569 = vpop.f32.mrb[0].mxu0
    %2570 = vmatprep.mubr.f32.mxu0 0.0
    %2571 = vmatmul.mubr.f32.gmra.mrb[0].mxu0 %v2499
    %v2572 = vpop.f32.mrb[0].mxu0
    %v2573 = vadd.f32 %v2493, %v2572
    %v2574 = vpop.f32.mrb[0].mxu0
    %2575 = vdwg.mxu0
    %v2576 = vadd.f32 %v1714, %v2568
    %v2577 = vadd.f32 %v1715, %v2573
    %s2578 = scalar_lea.vmem [#allocation13], 1
    %v2579 = vld [vmem:[%s2578] sm:$0x1]
    %s2580 = scalar_lea.vmem [#allocation14], 1
    %v2581 = vld [vmem:[%s2580] sm:$0x1]
    %v2582 = vsel %vm462, %v2576, 0.0
    %2583 = vadd.xlane.f32.xlu0 %v2582
    %v2584 = vpop.xlane.xlu0 %2583
    %v2585 = vsel %vm462, %v2577, 0.0
    %2586 = vadd.xlane.f32.xlu0 %v2585
    %v2587 = vpop.xlane.xlu0 %2586
    %v2588 = vmul.f32 %v2584, %v469
    %v2589 = vmul.f32 %v2587, %v469
    %v2590 = vmul.f32 %v2576, %v2576
    %v2591 = vmul.f32 %v2577, %v2577
    %v2592 = vsel %vm462, %v2590, 0.0
    %2593 = vadd.xlane.f32.xlu0 %v2592
    %v2594 = vpop.xlane.xlu0 %2593
    %v2595 = vsel %vm462, %v2591, 0.0
    %2596 = vadd.xlane.f32.xlu0 %v2595
    %v2597 = vpop.xlane.xlu0 %2596
    %v2598 = vmul.f32 %v2594, %v469
    %v2599 = vmul.f32 %v2597, %v469
    %v2600 = vmul.f32 %v2588, %v2588
    %v2601 = vmul.f32 %v2589, %v2589
    %v2602 = vsub.f32 %v2598, %v2600
    %v2603 = vsub.f32 %v2599, %v2601
    %v2604 = vmax.f32 %v2602, 0.0
    %v2605 = vmax.f32 %v2603, 0.0
    %v2606 = vsub.f32 %v2576, %v2588
    %v2607 = vsub.f32 %v2577, %v2589
    %v2608 = vadd.f32 %v2604, 1e-12
    %v2609 = vadd.f32 %v2605, 1e-12
    %v2610 = vrsqrt.pop %v2608
    %v2611 = vrsqrt.pop %v2609
    %v2612 = vmul.f32 %v2606, %v2610
    %v2613 = vmul.f32 %v2607, %v2611
    %v2615 = vlaneseq
    %v2616 = vshrl.u32 %v2615, 7
    %v2617 = vsub.s32 0, %v2616
    %v2618 = vrot.slane %v2579, %v2617
    %v2620 = vmul.f32 %v2612, %v2618
    %v2621 = vmul.f32 %v2613, %v2618
    %v2623 = vlaneseq
    %v2624 = vshrl.u32 %v2623, 7
    %v2625 = vsub.s32 0, %v2624
    %v2626 = vrot.slane %v2581, %v2625
    %v2628 = vadd.f32 %v2620, %v2626
    %v2629 = vadd.f32 %v2621, %v2626
    %s2630 = scalar_lea.vmem %s29, 32
    %v2631 = vld [vmem:[%s2630] sm:$0xff]
    %v2632 = vld [vmem:[%s2630 + $0x8] sm:$0xff]
    %v2633 = vld [vmem:[%s2630 + $0x10] sm:$0xff]
    %v2634 = vld [vmem:[%s2630 + $0x18] sm:$0xff]
    %s2635 = scalar_lea.vmem [#allocation16], 1
    %v2636 = vld [vmem:[%s2635] sm:$0x1]
    %v2638 = vlaneseq
    %v2639 = vshrl.u32 %v2638, 7
    %v2640 = vsub.s32 0, %v2639
    %v2641 = vrot.slane %v2636, %v2640
    %v2644 = vsel %vm462, %v2628, 0
    %v2647 = vsel %vm462, %v2629, 0
    %2649 = vmatprep.subr.mxu0 0.0
    %2650 = vmatpush1.msra.mxu0 %v2631
    %2651 = vmatprep.subr.mxu0 0.0
    %2652 = vmatpush1.msra.mxu0 %v2632
    %2653 = vmatprep.subr.mxu0 0.0
    %2654 = vmatpush1.msra.mxu0 %v2633
    %2655 = vmatprep.subr.mxu0 0.0
    %2656 = vmatpush1.msra.mxu0 %v2634
    %2657 = vmatprep.subr.mxu0 0.0
    %2658 = vmatpush1.msra.mxu0 0.0
    %2659 = vmatprep.subr.mxu0 0.0
    %2660 = vmatpush1.msra.mxu0 0.0
    %2661 = vmatprep.subr.mxu0 0.0
    %2662 = vmatpush1.msra.mxu0 0.0
    %2663 = vmatprep.subr.mxu0 0.0
    %2664 = vmatpush1.msra.mxu0 0.0
    %2665 = vmatprep.subr.mxu0 0.0
    %2666 = vmatpush1.msra.mxu0 0.0
    %2667 = vmatprep.subr.mxu0 0.0
    %2668 = vmatpush1.msra.mxu0 0.0
    %2669 = vmatprep.subr.mxu0 0.0
    %2670 = vmatpush1.msra.mxu0 0.0
    %2671 = vmatprep.subr.mxu0 0.0
    %2672 = vmatpush1.msra.mxu0 0.0
    %2673 = vmatprep.subr.mxu0 0.0
    %2674 = vmatpush1.msra.mxu0 0.0
    %2675 = vmatprep.subr.mxu0 0.0
    %2676 = vmatpush1.msra.mxu0 0.0
    %2677 = vmatprep.subr.mxu0 0.0
    %2678 = vmatpush1.msra.mxu0 0.0
    %2679 = vmatprep.subr.mxu0 0.0
    %2680 = vmatpush1.msra.mxu0 0.0
    %2681 = vmatprep.subr.mxu0 0.0
    %2682 = vmatpush1.msra.mxu0 0.0
    %2683 = vmatprep.subr.mxu0 0.0
    %2684 = vmatpush1.msra.mxu0 0.0
    %2685 = vmatprep.subr.mxu0 0.0
    %2686 = vmatpush1.msra.mxu0 0.0
    %2687 = vmatprep.subr.mxu0 0.0
    %2688 = vmatpush1.msra.mxu0 0.0
    %2689 = vmatprep.subr.mxu0 0.0
    %2690 = vmatpush1.msra.mxu0 0.0
    %2691 = vmatprep.subr.mxu0 0.0
    %2692 = vmatpush1.msra.mxu0 0.0
    %2693 = vmatprep.subr.mxu0 0.0
    %2694 = vmatpush1.msra.mxu0 0.0
    %2695 = vmatprep.subr.mxu0 0.0
    %2696 = vmatpush1.msra.mxu0 0.0
    %2697 = vmatprep.subr.mxu0 0.0
    %2698 = vmatpush1.msra.mxu0 0.0
    %2699 = vmatprep.subr.mxu0 0.0
    %2700 = vmatpush1.msra.mxu0 0.0
    %2701 = vmatprep.subr.mxu0 0.0
    %2702 = vmatpush1.msra.mxu0 0.0
    %2703 = vmatprep.subr.mxu0 0.0
    %2704 = vmatpush1.msra.mxu0 0.0
    %2705 = vmatprep.subr.mxu0 0.0
    %2706 = vmatpush1.msra.mxu0 0.0
    %2707 = vmatprep.subr.mxu0 0.0
    %2708 = vmatpush1.msra.mxu0 0.0
    %2709 = vmatprep.subr.mxu0 0.0
    %2710 = vmatpush1.msra.mxu0 0.0
    %2711 = vmatprep.subr.mxu0 0.0
    %2712 = vmatpush1.msra.mxu0 0.0
    %2713 = vmatprep.mubr.f32.mxu0 0.0
    %2714 = vmatmul.mubr.f32.gmra.mrb[0].mxu0 %v2644
    %v2715 = vpop.f32.mrb[0].mxu0
    %v2716 = vadd.f32 %v2641, %v2715
    %v2717 = vpop.f32.mrb[0].mxu0
    %2718 = vmatprep.mubr.f32.mxu0 0.0
    %2719 = vmatmul.mubr.f32.gmra.mrb[0].mxu0 %v2647
    %v2720 = vpop.f32.mrb[0].mxu0
    %v2721 = vadd.f32 %v2641, %v2720
    %v2722 = vpop.f32.mrb[0].mxu0
    %2723 = vdwg.mxu0
    %v2724 = vmul.f32 %v2716, 0.5
    %v2725 = vmul.f32 %v2721, 0.5
    %v2726 = vmul.f32 %v2716, 0.044715
    %v2727 = vmul.f32 %v2721, 0.044715
    %v2728 = vmul.f32 %v2726, %v2716
    %v2729 = vmul.f32 %v2727, %v2721
    %v2730 = vmul.f32 %v2728, %v2716
    %v2731 = vmul.f32 %v2729, %v2721
    %v2732 = vadd.f32 %v2716, %v2730
    %v2733 = vadd.f32 %v2721, %v2731
    %v2734 = vmul.f32 %v2732, 0.7978846
    %v2735 = vmul.f32 %v2733, 0.7978846
    %v2736 = vtanh.pop %v2734
    %v2737 = vtanh.pop %v2735
    %v2738 = vadd.f32 %v2736, 1.0
    %v2739 = vadd.f32 %v2737, 1.0
    %v2740 = vmul.f32 %v2724, %v2738
    %v2741 = vmul.f32 %v2725, %v2739
    %s2742 = scalar_lea.vmem %s33, 64
    %v2743 = vld [vmem:[%s2742] sm:$0xff]
    %v2744 = vld [vmem:[%s2742 + $0x8] sm:$0xff]
    %v2745 = vld [vmem:[%s2742 + $0x10] sm:$0xff]
    %v2746 = vld [vmem:[%s2742 + $0x18] sm:$0xff]
    %v2747 = vld [vmem:[%s2742 + $0x20] sm:$0xff]
    %v2748 = vld [vmem:[%s2742 + $0x28] sm:$0xff]
    %v2749 = vld [vmem:[%s2742 + $0x30] sm:$0xff]
    %v2750 = vld [vmem:[%s2742 + $0x38] sm:$0xff]
    %s2751 = scalar_lea.vmem [#allocation17], 1
    %v2752 = vld [vmem:[%s2751] sm:$0x1]
    %v2754 = vlaneseq
    %v2755 = vshrl.u32 %v2754, 7
    %v2756 = vsub.s32 0, %v2755
    %v2757 = vrot.slane %v2752, %v2756
    %v2760 = vsel %vm368, %v2740, 0
    %v2763 = vsel %vm368, %v2741, 0
    %2765 = vmatprep.subr.mxu0 0.0
    %2766 = vmatpush1.msra.mxu0 %v2743
    %2767 = vmatprep.subr.mxu0 0.0
    %2768 = vmatpush1.msra.mxu0 %v2744
    %2769 = vmatprep.subr.mxu0 0.0
    %2770 = vmatpush1.msra.mxu0 %v2745
    %2771 = vmatprep.subr.mxu0 0.0
    %2772 = vmatpush1.msra.mxu0 %v2746
    %2773 = vmatprep.subr.mxu0 0.0
    %2774 = vmatpush1.msra.mxu0 %v2747
    %2775 = vmatprep.subr.mxu0 0.0
    %2776 = vmatpush1.msra.mxu0 %v2748
    %2777 = vmatprep.subr.mxu0 0.0
    %2778 = vmatpush1.msra.mxu0 %v2749
    %2779 = vmatprep.subr.mxu0 0.0
    %2780 = vmatpush1.msra.mxu0 %v2750
    %2781 = vmatprep.subr.mxu0 0.0
    %2782 = vmatpush1.msra.mxu0 0.0
    %2783 = vmatprep.subr.mxu0 0.0
    %2784 = vmatpush1.msra.mxu0 0.0
    %2785 = vmatprep.subr.mxu0 0.0
    %2786 = vmatpush1.msra.mxu0 0.0
    %2787 = vmatprep.subr.mxu0 0.0
    %2788 = vmatpush1.msra.mxu0 0.0
    %2789 = vmatprep.subr.mxu0 0.0
    %2790 = vmatpush1.msra.mxu0 0.0
    %2791 = vmatprep.subr.mxu0 0.0
    %2792 = vmatpush1.msra.mxu0 0.0
    %2793 = vmatprep.subr.mxu0 0.0
    %2794 = vmatpush1.msra.mxu0 0.0
    %2795 = vmatprep.subr.mxu0 0.0
    %2796 = vmatpush1.msra.mxu0 0.0
    %2797 = vmatprep.subr.mxu0 0.0
    %2798 = vmatpush1.msra.mxu0 0.0
    %2799 = vmatprep.subr.mxu0 0.0
    %2800 = vmatpush1.msra.mxu0 0.0
    %2801 = vmatprep.subr.mxu0 0.0
    %2802 = vmatpush1.msra.mxu0 0.0
    %2803 = vmatprep.subr.mxu0 0.0
    %2804 = vmatpush1.msra.mxu0 0.0
    %2805 = vmatprep.subr.mxu0 0.0
    %2806 = vmatpush1.msra.mxu0 0.0
    %2807 = vmatprep.subr.mxu0 0.0
    %2808 = vmatpush1.msra.mxu0 0.0
    %2809 = vmatprep.subr.mxu0 0.0
    %2810 = vmatpush1.msra.mxu0 0.0
    %2811 = vmatprep.subr.mxu0 0.0
    %2812 = vmatpush1.msra.mxu0 0.0
    %2813 = vmatprep.subr.mxu0 0.0
    %2814 = vmatpush1.msra.mxu0 0.0
    %2815 = vmatprep.subr.mxu0 0.0
    %2816 = vmatpush1.msra.mxu0 0.0
    %2817 = vmatprep.subr.mxu0 0.0
    %2818 = vmatpush1.msra.mxu0 0.0
    %2819 = vmatprep.subr.mxu0 0.0
    %2820 = vmatpush1.msra.mxu0 0.0
    %2821 = vmatprep.subr.mxu0 0.0
    %2822 = vmatpush1.msra.mxu0 0.0
    %2823 = vmatprep.subr.mxu0 0.0
    %2824 = vmatpush1.msra.mxu0 0.0
    %2825 = vmatprep.subr.mxu0 0.0
    %2826 = vmatpush1.msra.mxu0 0.0
    %2827 = vmatprep.subr.mxu0 0.0
    %2828 = vmatpush1.msra.mxu0 0.0
    %2829 = vmatprep.mubr.f32.mxu0 0.0
    %2830 = vmatmul.mubr.f32.gmra.mrb[0].mxu0 %v2760
    %v2831 = vpop.f32.mrb[0].mxu0
    %v2832 = vadd.f32 %v2757, %v2831
    %v2833 = vpop.f32.mrb[0].mxu0
    %2834 = vmatprep.mubr.f32.mxu0 0.0
    %2835 = vmatmul.mubr.f32.gmra.mrb[0].mxu0 %v2763
    %v2836 = vpop.f32.mrb[0].mxu0
    %v2837 = vadd.f32 %v2757, %v2836
    %v2838 = vpop.f32.mrb[0].mxu0
    %2839 = vdwg.mxu0
    %v2840 = vadd.f32 %v2628, %v2832
    %v2841 = vadd.f32 %v2629, %v2837
    %s2842 = scalar_lea.vmem [#allocation19], 1
    %v2843 = vld [vmem:[%s2842] sm:$0x1]
    %s2844 = scalar_lea.vmem [#allocation20], 1
    %v2845 = vld [vmem:[%s2844] sm:$0x1]
    %v2846 = vsel %vm462, %v2840, 0.0
    %2847 = vadd.xlane.f32.xlu0 %v2846
    %v2848 = vpop.xlane.xlu0 %2847
    %v2849 = vsel %vm462, %v2841, 0.0
    %2850 = vadd.xlane.f32.xlu0 %v2849
    %v2851 = vpop.xlane.xlu0 %2850
    %v2852 = vmul.f32 %v2848, %v469
    %v2853 = vmul.f32 %v2851, %v469
    %v2854 = vmul.f32 %v2840, %v2840
    %v2855 = vmul.f32 %v2841, %v2841
    %v2856 = vsel %vm462, %v2854, 0.0
    %2857 = vadd.xlane.f32.xlu0 %v2856
    %v2858 = vpop.xlane.xlu0 %2857
    %v2859 = vsel %vm462, %v2855, 0.0
    %2860 = vadd.xlane.f32.xlu0 %v2859
    %v2861 = vpop.xlane.xlu0 %2860
    %v2862 = vmul.f32 %v2858, %v469
    %v2863 = vmul.f32 %v2861, %v469
    %v2864 = vmul.f32 %v2852, %v2852
    %v2865 = vmul.f32 %v2853, %v2853
    %v2866 = vsub.f32 %v2862, %v2864
    %v2867 = vsub.f32 %v2863, %v2865
    %v2868 = vmax.f32 %v2866, 0.0
    %v2869 = vmax.f32 %v2867, 0.0
    %v2870 = vsub.f32 %v2840, %v2852
    %v2871 = vsub.f32 %v2841, %v2853
    %v2872 = vadd.f32 %v2868, 1e-12
    %v2873 = vadd.f32 %v2869, 1e-12
    %v2874 = vrsqrt.pop %v2872
    %v2875 = vrsqrt.pop %v2873
    %v2876 = vmul.f32 %v2870, %v2874
    %v2877 = vmul.f32 %v2871, %v2875
    %v2879 = vlaneseq
    %v2880 = vshrl.u32 %v2879, 7
    %v2881 = vsub.s32 0, %v2880
    %v2882 = vrot.slane %v2843, %v2881
    %v2884 = vmul.f32 %v2876, %v2882
    %v2885 = vmul.f32 %v2877, %v2882
    %v2887 = vlaneseq
    %v2888 = vshrl.u32 %v2887, 7
    %v2889 = vsub.s32 0, %v2888
    %v2890 = vrot.slane %v2845, %v2889
    %v2892 = vadd.f32 %v2884, %v2890
    %v2893 = vadd.f32 %v2885, %v2890
    %v2894 = vld [vmem:[%s41] sm:$0xff]
    %v2895 = vld [vmem:[%s41 + $0x8] sm:$0xff]
    %v2896 = vld [vmem:[%s41 + $0x10] sm:$0xff]
    %v2897 = vld [vmem:[%s41 + $0x18] sm:$0xff]
    %v2898 = vld [vmem:[%s45] sm:$0x1]
    %v2900 = vlaneseq
    %v2901 = vshrl.u32 %v2900, 7
    %v2902 = vsub.s32 0, %v2901
    %v2903 = vrot.slane %v2898, %v2902
    %v2906 = vsel %vm462, %v2892, 0
    %v2909 = vsel %vm462, %v2893, 0
    %2911 = vmatprep.subr.mxu0 0.0
    %2912 = vmatpush1.msra.mxu0 %v2894
    %2913 = vmatprep.subr.mxu0 0.0
    %2914 = vmatpush1.msra.mxu0 %v2895
    %2915 = vmatprep.subr.mxu0 0.0
    %2916 = vmatpush1.msra.mxu0 %v2896
    %2917 = vmatprep.subr.mxu0 0.0
    %2918 = vmatpush1.msra.mxu0 %v2897
    %2919 = vmatprep.subr.mxu0 0.0
    %2920 = vmatpush1.msra.mxu0 0.0
    %2921 = vmatprep.subr.mxu0 0.0
    %2922 = vmatpush1.msra.mxu0 0.0
    %2923 = vmatprep.subr.mxu0 0.0
    %2924 = vmatpush1.msra.mxu0 0.0
    %2925 = vmatprep.subr.mxu0 0.0
    %2926 = vmatpush1.msra.mxu0 0.0
    %2927 = vmatprep.subr.mxu0 0.0
    %2928 = vmatpush1.msra.mxu0 0.0
    %2929 = vmatprep.subr.mxu0 0.0
    %2930 = vmatpush1.msra.mxu0 0.0
    %2931 = vmatprep.subr.mxu0 0.0
    %2932 = vmatpush1.msra.mxu0 0.0
    %2933 = vmatprep.subr.mxu0 0.0
    %2934 = vmatpush1.msra.mxu0 0.0
    %2935 = vmatprep.subr.mxu0 0.0
    %2936 = vmatpush1.msra.mxu0 0.0
    %2937 = vmatprep.subr.mxu0 0.0
    %2938 = vmatpush1.msra.mxu0 0.0
    %2939 = vmatprep.subr.mxu0 0.0
    %2940 = vmatpush1.msra.mxu0 0.0
    %2941 = vmatprep.subr.mxu0 0.0
    %2942 = vmatpush1.msra.mxu0 0.0
    %2943 = vmatprep.subr.mxu0 0.0
    %2944 = vmatpush1.msra.mxu0 0.0
    %2945 = vmatprep.subr.mxu0 0.0
    %2946 = vmatpush1.msra.mxu0 0.0
    %2947 = vmatprep.subr.mxu0 0.0
    %2948 = vmatpush1.msra.mxu0 0.0
    %2949 = vmatprep.subr.mxu0 0.0
    %2950 = vmatpush1.msra.mxu0 0.0
    %2951 = vmatprep.subr.mxu0 0.0
    %2952 = vmatpush1.msra.mxu0 0.0
    %2953 = vmatprep.subr.mxu0 0.0
    %2954 = vmatpush1.msra.mxu0 0.0
    %2955 = vmatprep.subr.mxu0 0.0
    %2956 = vmatpush1.msra.mxu0 0.0
    %2957 = vmatprep.subr.mxu0 0.0
    %2958 = vmatpush1.msra.mxu0 0.0
    %2959 = vmatprep.subr.mxu0 0.0
    %2960 = vmatpush1.msra.mxu0 0.0
    %2961 = vmatprep.subr.mxu0 0.0
    %2962 = vmatpush1.msra.mxu0 0.0
    %2963 = vmatprep.subr.mxu0 0.0
    %2964 = vmatpush1.msra.mxu0 0.0
    %2965 = vmatprep.subr.mxu0 0.0
    %2966 = vmatpush1.msra.mxu0 0.0
    %2967 = vmatprep.subr.mxu0 0.0
    %2968 = vmatpush1.msra.mxu0 0.0
    %2969 = vmatprep.subr.mxu0 0.0
    %2970 = vmatpush1.msra.mxu0 0.0
    %2971 = vmatprep.subr.mxu0 0.0
    %2972 = vmatpush1.msra.mxu0 0.0
    %2973 = vmatprep.subr.mxu0 0.0
    %2974 = vmatpush1.msra.mxu0 0.0
    %2975 = vmatprep.mubr.f32.mxu0 0.0
    %2976 = vmatmul.mubr.f32.gmra.mrb[0].mxu0 %v2906
    %v2977 = vpop.f32.mrb[0].mxu0
    %v2978 = vadd.f32 %v2903, %v2977
    %v2979 = vpop.f32.mrb[0].mxu0
    %2980 = vmatprep.mubr.f32.mxu0 0.0
    %2981 = vmatmul.mubr.f32.gmra.mrb[0].mxu0 %v2909
    %v2982 = vpop.f32.mrb[0].mxu0
    %v2983 = vadd.f32 %v2903, %v2982
    %v2984 = vpop.f32.mrb[0].mxu0
    %2985 = vdwg.mxu0
    %s2986 = scalar_lea.vmem %s41, 32
    %v2987 = vld [vmem:[%s2986] sm:$0xff]
    %v2988 = vld [vmem:[%s2986 + $0x8] sm:$0xff]
    %v2989 = vld [vmem:[%s2986 + $0x10] sm:$0xff]
    %v2990 = vld [vmem:[%s2986 + $0x18] sm:$0xff]
    %s2991 = scalar_lea.vmem %s45, 1
    %v2992 = vld [vmem:[%s2991] sm:$0x1]
    %v2994 = vlaneseq
    %v2995 = vshrl.u32 %v2994, 7
    %v2996 = vsub.s32 0, %v2995
    %v2997 = vrot.slane %v2992, %v2996
    %2999 = vmatprep.subr.mxu0 0.0
    %3000 = vmatpush1.msra.mxu0 %v2987
    %3001 = vmatprep.subr.mxu0 0.0
    %3002 = vmatpush1.msra.mxu0 %v2988
    %3003 = vmatprep.subr.mxu0 0.0
    %3004 = vmatpush1.msra.mxu0 %v2989
    %3005 = vmatprep.subr.mxu0 0.0
    %3006 = vmatpush1.msra.mxu0 %v2990
    %3007 = vmatprep.subr.mxu0 0.0
    %3008 = vmatpush1.msra.mxu0 0.0
    %3009 = vmatprep.subr.mxu0 0.0
    %3010 = vmatpush1.msra.mxu0 0.0
    %3011 = vmatprep.subr.mxu0 0.0
    %3012 = vmatpush1.msra.mxu0 0.0
    %3013 = vmatprep.subr.mxu0 0.0
    %3014 = vmatpush1.msra.mxu0 0.0
    %3015 = vmatprep.subr.mxu0 0.0
    %3016 = vmatpush1.msra.mxu0 0.0
    %3017 = vmatprep.subr.mxu0 0.0
    %3018 = vmatpush1.msra.mxu0 0.0
    %3019 = vmatprep.subr.mxu0 0.0
    %3020 = vmatpush1.msra.mxu0 0.0
    %3021 = vmatprep.subr.mxu0 0.0
    %3022 = vmatpush1.msra.mxu0 0.0
    %3023 = vmatprep.subr.mxu0 0.0
    %3024 = vmatpush1.msra.mxu0 0.0
    %3025 = vmatprep.subr.mxu0 0.0
    %3026 = vmatpush1.msra.mxu0 0.0
    %3027 = vmatprep.subr.mxu0 0.0
    %3028 = vmatpush1.msra.mxu0 0.0
    %3029 = vmatprep.subr.mxu0 0.0
    %3030 = vmatpush1.msra.mxu0 0.0
    %3031 = vmatprep.subr.mxu0 0.0
    %3032 = vmatpush1.msra.mxu0 0.0
    %3033 = vmatprep.subr.mxu0 0.0
    %3034 = vmatpush1.msra.mxu0 0.0
    %3035 = vmatprep.subr.mxu0 0.0
    %3036 = vmatpush1.msra.mxu0 0.0
    %3037 = vmatprep.subr.mxu0 0.0
    %3038 = vmatpush1.msra.mxu0 0.0
    %3039 = vmatprep.subr.mxu0 0.0
    %3040 = vmatpush1.msra.mxu0 0.0
    %3041 = vmatprep.subr.mxu0 0.0
    %3042 = vmatpush1.msra.mxu0 0.0
    %3043 = vmatprep.subr.mxu0 0.0
    %3044 = vmatpush1.msra.mxu0 0.0
    %3045 = vmatprep.subr.mxu0 0.0
    %3046 = vmatpush1.msra.mxu0 0.0
    %3047 = vmatprep.subr.mxu0 0.0
    %3048 = vmatpush1.msra.mxu0 0.0
    %3049 = vmatprep.subr.mxu0 0.0
    %3050 = vmatpush1.msra.mxu0 0.0
    %3051 = vmatprep.subr.mxu0 0.0
    %3052 = vmatpush1.msra.mxu0 0.0
    %3053 = vmatprep.subr.mxu0 0.0
    %3054 = vmatpush1.msra.mxu0 0.0
    %3055 = vmatprep.subr.mxu0 0.0
    %3056 = vmatpush1.msra.mxu0 0.0
    %3057 = vmatprep.subr.mxu0 0.0
    %3058 = vmatpush1.msra.mxu0 0.0
    %3059 = vmatprep.subr.mxu0 0.0
    %3060 = vmatpush1.msra.mxu0 0.0
    %3061 = vmatprep.subr.mxu0 0.0
    %3062 = vmatpush1.msra.mxu0 0.0
    %3063 = vmatprep.mubr.f32.mxu0 0.0
    %3064 = vmatmul.mubr.f32.gmra.mrb[0].mxu0 %v2906
    %v3065 = vpop.f32.mrb[0].mxu0
    %v3066 = vadd.f32 %v2997, %v3065
    %v3067 = vpop.f32.mrb[0].mxu0
    %3068 = vmatprep.mubr.f32.mxu0 0.0
    %3069 = vmatmul.mubr.f32.gmra.mrb[0].mxu0 %v2909
    %v3070 = vpop.f32.mrb[0].mxu0
    %v3071 = vadd.f32 %v2997, %v3070
    %v3072 = vpop.f32.mrb[0].mxu0
    %3073 = vdwg.mxu0
    %v3076 = vrot.slane %v3066, 7
    %v3077 = vrot.slane %v3071, 7
    %v3080 = vrot.slane %v3066, 5
    %v3081 = vrot.slane %v3071, 5
    %v3084 = vrot.slane %v3066, 3
    %v3085 = vrot.slane %v3071, 3
    %v3088 = vrot.slane %v3066, 1
    %v3089 = vrot.slane %v3071, 1
    %vm3092 = vcmask 1040384
    %v3093 = vsel %vm3092, %v3076, %v3080
    %v3094 = vsel %vm3092, %v3077, %v3081
    %vm3095 = vcmask 1041408
    %v3096 = vsel %vm3095, %v3093, %v3084
    %v3097 = vsel %vm3095, %v3094, %v3085
    %vm3098 = vcmask 1042432
    %v3099 = vsel %vm3098, %v3096, %v3088
    %v3100 = vsel %vm3098, %v3097, %v3089
    %vm3101 = vcmask 1043456
    %v3102 = vsel %vm3101, %v3099, %v3076
    %v3103 = vsel %vm3101, %v3100, %v3077
    %vm3104 = vcmask 1044480
    %v3105 = vsel %vm3104, %v3102, %v3080
    %v3106 = vsel %vm3104, %v3103, %v3081
    %vm3107 = vcmask 1045504
    %v3108 = vsel %vm3107, %v3105, %v3084
    %v3109 = vsel %vm3107, %v3106, %v3085
    %vm3110 = vcmask 1046528
    %v3111 = vsel %vm3110, %v3108, %v3088
    %v3112 = vsel %vm3110, %v3109, %v3089
    %3115 = vrot.lane.b32.xlu0 %v3111, 16
    %v3116 = vpop.permute.xlu0 %3115
    %3117 = vrot.lane.b32.xlu0 %v3112, 16
    %v3118 = vpop.permute.xlu0 %3117
    %3123 = vrot.lane.b32.xlu0 %v2978, 16
    %v3124 = vpop.permute.xlu0 %3123
    %3125 = vrot.lane.b32.xlu0 %v2983, 16
    %v3126 = vpop.permute.xlu0 %3125
    %3129 = vrot.lane.b32.xlu0 %v3111, 32
    %v3130 = vpop.permute.xlu0 %3129
    %3131 = vrot.lane.b32.xlu0 %v3112, 32
    %v3132 = vpop.permute.xlu0 %3131
    %3135 = vrot.lane.b32.xlu0 %v2978, 32
    %v3136 = vpop.permute.xlu0 %3135
    %3137 = vrot.lane.b32.xlu0 %v2983, 32
    %v3138 = vpop.permute.xlu0 %3137
    %3141 = vrot.lane.b32.xlu0 %v3111, 48
    %v3142 = vpop.permute.xlu0 %3141
    %3143 = vrot.lane.b32.xlu0 %v3112, 48
    %v3144 = vpop.permute.xlu0 %3143
    %3147 = vrot.lane.b32.xlu0 %v2978, 48
    %v3148 = vpop.permute.xlu0 %3147
    %3149 = vrot.lane.b32.xlu0 %v2983, 48
    %v3150 = vpop.permute.xlu0 %3149
    %3153 = vrot.lane.b32.xlu0 %v3111, 64
    %v3154 = vpop.permute.xlu0 %3153
    %3155 = vrot.lane.b32.xlu0 %v3112, 64
    %v3156 = vpop.permute.xlu0 %3155
    %v3159 = vsel %vm645, %v2978, %v3116
    %v3160 = vsel %vm645, %v2983, %v3118
    %v3161 = vsel %vm462, %v3159, %v3124
    %v3162 = vsel %vm462, %v3160, %v3126
    %vm3163 = vcmask 392192
    %v3164 = vsel %vm3163, %v3161, %v3130
    %v3165 = vsel %vm3163, %v3162, %v3132
    %v3166 = vsel %vm368, %v3164, %v3136
    %v3167 = vsel %vm368, %v3165, %v3138
    %vm3168 = vcmask 654336
    %v3169 = vsel %vm3168, %v3166, %v3142
    %v3170 = vsel %vm3168, %v3167, %v3144
    %vm3171 = vcmask 785408
    %v3172 = vsel %vm3171, %v3169, %v3148
    %v3173 = vsel %vm3171, %v3170, %v3150
    %vm3174 = vcmask 916480
    %v3175 = vsel %vm3174, %v3172, %v3154
    %v3176 = vsel %vm3174, %v3173, %v3156
    %v3177 = vld [vmem:[%s43] sm:$0xff]
    %v3178 = vld [vmem:[%s43 + $0x8] sm:$0xff]
    %v3179 = vld [vmem:[%s43 + $0x10] sm:$0xff]
    %v3180 = vld [vmem:[%s43 + $0x18] sm:$0xff]
    %v3182 = vsel %vm462, 0.0, 0
    %3184 = vmatprep.subr.mxu0 0.0
    %3185 = vmatpush1.msra.mxu0 %v3177
    %3186 = vmatprep.subr.mxu0 0.0
    %3187 = vmatpush1.msra.mxu0 %v3178
    %3188 = vmatprep.subr.mxu0 0.0
    %3189 = vmatpush1.msra.mxu0 %v3179
    %3190 = vmatprep.subr.mxu0 0.0
    %3191 = vmatpush1.msra.mxu0 %v3180
    %3192 = vmatprep.subr.mxu0 0.0
    %3193 = vmatpush1.msra.mxu0 0.0
    %3194 = vmatprep.subr.mxu0 0.0
    %3195 = vmatpush1.msra.mxu0 0.0
    %3196 = vmatprep.subr.mxu0 0.0
    %3197 = vmatpush1.msra.mxu0 0.0
    %3198 = vmatprep.subr.mxu0 0.0
    %3199 = vmatpush1.msra.mxu0 0.0
    %3200 = vmatprep.subr.mxu0 0.0
    %3201 = vmatpush1.msra.mxu0 0.0
    %3202 = vmatprep.subr.mxu0 0.0
    %3203 = vmatpush1.msra.mxu0 0.0
    %3204 = vmatprep.subr.mxu0 0.0
    %3205 = vmatpush1.msra.mxu0 0.0
    %3206 = vmatprep.subr.mxu0 0.0
    %3207 = vmatpush1.msra.mxu0 0.0
    %3208 = vmatprep.subr.mxu0 0.0
    %3209 = vmatpush1.msra.mxu0 0.0
    %3210 = vmatprep.subr.mxu0 0.0
    %3211 = vmatpush1.msra.mxu0 0.0
    %3212 = vmatprep.subr.mxu0 0.0
    %3213 = vmatpush1.msra.mxu0 0.0
    %3214 = vmatprep.subr.mxu0 0.0
    %3215 = vmatpush1.msra.mxu0 0.0
    %3216 = vmatprep.subr.mxu0 0.0
    %3217 = vmatpush1.msra.mxu0 0.0
    %3218 = vmatprep.subr.mxu0 0.0
    %3219 = vmatpush1.msra.mxu0 0.0
    %3220 = vmatprep.subr.mxu0 0.0
    %3221 = vmatpush1.msra.mxu0 0.0
    %3222 = vmatprep.subr.mxu0 0.0
    %3223 = vmatpush1.msra.mxu0 0.0
    %3224 = vmatprep.subr.mxu0 0.0
    %3225 = vmatpush1.msra.mxu0 0.0
    %3226 = vmatprep.subr.mxu0 0.0
    %3227 = vmatpush1.msra.mxu0 0.0
    %3228 = vmatprep.subr.mxu0 0.0
    %3229 = vmatpush1.msra.mxu0 0.0
    %3230 = vmatprep.subr.mxu0 0.0
    %3231 = vmatpush1.msra.mxu0 0.0
    %3232 = vmatprep.subr.mxu0 0.0
    %3233 = vmatpush1.msra.mxu0 0.0
    %3234 = vmatprep.subr.mxu0 0.0
    %3235 = vmatpush1.msra.mxu0 0.0
    %3236 = vmatprep.subr.mxu0 0.0
    %3237 = vmatpush1.msra.mxu0 0.0
    %3238 = vmatprep.subr.mxu0 0.0
    %3239 = vmatpush1.msra.mxu0 0.0
    %3240 = vmatprep.subr.mxu0 0.0
    %3241 = vmatpush1.msra.mxu0 0.0
    %3242 = vmatprep.subr.mxu0 0.0
    %3243 = vmatpush1.msra.mxu0 0.0
    %3244 = vmatprep.subr.mxu0 0.0
    %3245 = vmatpush1.msra.mxu0 0.0
    %3246 = vmatprep.subr.mxu0 0.0
    %3247 = vmatpush1.msra.mxu0 0.0
    %3248 = vmatprep.mubr.f32.mxu0 0.0
    %3249 = vmatmul.mubr.f32.gmra.mrb[0].mxu0 %v3182
    %v3250 = vpop.f32.mrb[0].mxu0
    %v3251 = vadd.f32 0.0, %v3250
    %v3252 = vpop.f32.mrb[0].mxu0
    %3253 = vdwg.mxu0
    %v3255 = vrot.slane %v3251, 1
    %v3258 = vadd.f32 %v3175, %v3251
    %v3259 = vadd.f32 %v3176, %v3255
    %v3260 = vxor.u32 %v3258, 2147483648
    %v3261 = vxor.u32 %v3259, 2147483648
    %v3262 = vmul.f32 %v3260, 1.442695
    %v3263 = vpow.pop %v3262
    %v3264 = vmul.f32 %v3261, 1.442695
    %v3265 = vpow.pop %v3264
    %v3266 = vadd.f32 %v3263, 1.0
    %v3267 = vadd.f32 %v3265, 1.0
    %v3268 = vrcp.pop %v3266
    %v3269 = vmul.f32 1.0, %v3268
    %v3270 = vrcp.pop %v3267
    %v3271 = vmul.f32 1.0, %v3270
    %v3272 = vtanh.pop %v3258
    %v3273 = vtanh.pop %v3259
    %v3274 = vmul.f32 %v3269, 0.0
    %v3275 = vmul.f32 %v3271, 0.0
    %3278 = vrot.lane.b32.xlu0 %v3272, 32
    %v3279 = vpop.permute.xlu0 %3278
    %3280 = vrot.lane.b32.xlu0 %v3273, 32
    %v3281 = vpop.permute.xlu0 %3280
    %v3284 = vmul.f32 %v3269, %v3279
    %v3285 = vmul.f32 %v3271, %v3281
    %3288 = vrot.lane.b32.xlu0 %v3284, 32
    %v3289 = vpop.permute.xlu0 %3288
    %3290 = vrot.lane.b32.xlu0 %v3285, 32
    %v3291 = vpop.permute.xlu0 %3290
    %v3294 = vadd.f32 %v3274, %v3289
    %v3295 = vadd.f32 %v3275, %v3291
    %v3296 = vtanh.pop %v3294
    %v3297 = vtanh.pop %v3295
    %3300 = vrot.lane.b32.xlu0 %v3296, 32
    %v3301 = vpop.permute.xlu0 %3300
    %3302 = vrot.lane.b32.xlu0 %v3297, 32
    %v3303 = vpop.permute.xlu0 %3302
    %v3306 = vmul.f32 %v3269, %v3301
    %v3307 = vmul.f32 %v3271, %v3303
    %v3310 = vrot.slane %v3307, 7
    %vm3311 = vcmask 1041409
    %v3312 = vsel %vm3311, %v3310, %v3306
    %3313 = vrot.lane.b32.xlu0 %v3312, 64
    %v3314 = vpop.permute.xlu0 %3313
    %v3315 = vsel %vm462, %v3314, 0
    %3317 = vmatprep.subr.mxu0 0.0
    %3318 = vmatpush1.msra.mxu0 %v3177
    %3319 = vmatprep.subr.mxu0 0.0
    %3320 = vmatpush1.msra.mxu0 %v3178
    %3321 = vmatprep.subr.mxu0 0.0
    %3322 = vmatpush1.msra.mxu0 %v3179
    %3323 = vmatprep.subr.mxu0 0.0
    %3324 = vmatpush1.msra.mxu0 %v3180
    %3325 = vmatprep.subr.mxu0 0.0
    %3326 = vmatpush1.msra.mxu0 0.0
    %3327 = vmatprep.subr.mxu0 0.0
    %3328 = vmatpush1.msra.mxu0 0.0
    %3329 = vmatprep.subr.mxu0 0.0
    %3330 = vmatpush1.msra.mxu0 0.0
    %3331 = vmatprep.subr.mxu0 0.0
    %3332 = vmatpush1.msra.mxu0 0.0
    %3333 = vmatprep.subr.mxu0 0.0
    %3334 = vmatpush1.msra.mxu0 0.0
    %3335 = vmatprep.subr.mxu0 0.0
    %3336 = vmatpush1.msra.mxu0 0.0
    %3337 = vmatprep.subr.mxu0 0.0
    %3338 = vmatpush1.msra.mxu0 0.0
    %3339 = vmatprep.subr.mxu0 0.0
    %3340 = vmatpush1.msra.mxu0 0.0
    %3341 = vmatprep.subr.mxu0 0.0
    %3342 = vmatpush1.msra.mxu0 0.0
    %3343 = vmatprep.subr.mxu0 0.0
    %3344 = vmatpush1.msra.mxu0 0.0
    %3345 = vmatprep.subr.mxu0 0.0
    %3346 = vmatpush1.msra.mxu0 0.0
    %3347 = vmatprep.subr.mxu0 0.0
    %3348 = vmatpush1.msra.mxu0 0.0
    %3349 = vmatprep.subr.mxu0 0.0
    %3350 = vmatpush1.msra.mxu0 0.0
    %3351 = vmatprep.subr.mxu0 0.0
    %3352 = vmatpush1.msra.mxu0 0.0
    %3353 = vmatprep.subr.mxu0 0.0
    %3354 = vmatpush1.msra.mxu0 0.0
    %3355 = vmatprep.subr.mxu0 0.0
    %3356 = vmatpush1.msra.mxu0 0.0
    %3357 = vmatprep.subr.mxu0 0.0
    %3358 = vmatpush1.msra.mxu0 0.0
    %3359 = vmatprep.subr.mxu0 0.0
    %3360 = vmatpush1.msra.mxu0 0.0
    %3361 = vmatprep.subr.mxu0 0.0
    %3362 = vmatpush1.msra.mxu0 0.0
    %3363 = vmatprep.subr.mxu0 0.0
    %3364 = vmatpush1.msra.mxu0 0.0
    %3365 = vmatprep.subr.mxu0 0.0
    %3366 = vmatpush1.msra.mxu0 0.0
    %3367 = vmatprep.subr.mxu0 0.0
    %3368 = vmatpush1.msra.mxu0 0.0
    %3369 = vmatprep.subr.mxu0 0.0
    %3370 = vmatpush1.msra.mxu0 0.0
    %3371 = vmatprep.subr.mxu0 0.0
    %3372 = vmatpush1.msra.mxu0 0.0
    %3373 = vmatprep.subr.mxu0 0.0
    %3374 = vmatpush1.msra.mxu0 0.0
    %3375 = vmatprep.subr.mxu0 0.0
    %3376 = vmatpush1.msra.mxu0 0.0
    %3377 = vmatprep.subr.mxu0 0.0
    %3378 = vmatpush1.msra.mxu0 0.0
    %3379 = vmatprep.subr.mxu0 0.0
    %3380 = vmatpush1.msra.mxu0 0.0
    %3381 = vmatprep.mubr.f32.mxu0 0.0
    %3382 = vmatmul.mubr.f32.gmra.mrb[0].mxu0 %v3315
    %v3383 = vpop.f32.mrb[0].mxu0
    %v3384 = vadd.f32 0.0, %v3383
    %v3385 = vpop.f32.mrb[0].mxu0
    %3386 = vdwg.mxu0
    %v3388 = vrot.slane %v3384, 7
    %v3391 = vadd.f32 %v3175, %v3388
    %v3392 = vadd.f32 %v3176, %v3384
    %v3393 = vxor.u32 %v3391, 2147483648
    %v3394 = vxor.u32 %v3392, 2147483648
    %v3395 = vmul.f32 %v3393, 1.442695
    %v3396 = vpow.pop %v3395
    %v3397 = vmul.f32 %v3394, 1.442695
    %v3398 = vpow.pop %v3397
    %v3399 = vadd.f32 %v3396, 1.0
    %v3400 = vadd.f32 %v3398, 1.0
    %v3401 = vrcp.pop %v3399
    %v3402 = vmul.f32 1.0, %v3401
    %v3403 = vrcp.pop %v3400
    %v3404 = vmul.f32 1.0, %v3403
    %v3405 = vtanh.pop %v3391
    %v3406 = vtanh.pop %v3392
    %v3409 = vrot.slane %v3294, 7
    %v3410 = vrot.slane %v3295, 7
    %v3413 = vmul.f32 %v3402, %v3409
    %v3414 = vmul.f32 %v3404, %v3410
    %3417 = vrot.lane.b32.xlu0 %v3405, 32
    %v3418 = vpop.permute.xlu0 %3417
    %3419 = vrot.lane.b32.xlu0 %v3406, 32
    %v3420 = vpop.permute.xlu0 %3419
    %v3423 = vmul.f32 %v3402, %v3418
    %v3424 = vmul.f32 %v3404, %v3420
    %3427 = vrot.lane.b32.xlu0 %v3423, 32
    %v3428 = vpop.permute.xlu0 %3427
    %3429 = vrot.lane.b32.xlu0 %v3424, 32
    %v3430 = vpop.permute.xlu0 %3429
    %v3433 = vadd.f32 %v3413, %v3428
    %v3434 = vadd.f32 %v3414, %v3430
    %v3435 = vtanh.pop %v3433
    %v3436 = vtanh.pop %v3434
    %3439 = vrot.lane.b32.xlu0 %v3435, 32
    %v3440 = vpop.permute.xlu0 %3439
    %3441 = vrot.lane.b32.xlu0 %v3436, 32
    %v3442 = vpop.permute.xlu0 %3441
    %v3445 = vmul.f32 %v3402, %v3440
    %v3446 = vmul.f32 %v3404, %v3442
    %v3449 = vrot.slane %v3445, 1
    %v3450 = vsel %vm3311, %v3446, %v3449
    %3451 = vrot.lane.b32.xlu0 %v3450, 64
    %v3452 = vpop.permute.xlu0 %3451
    %v3453 = vsel %vm462, %v3452, 0
    %3455 = vmatprep.subr.mxu0 0.0
    %3456 = vmatpush1.msra.mxu0 %v3177
    %3457 = vmatprep.subr.mxu0 0.0
    %3458 = vmatpush1.msra.mxu0 %v3178
    %3459 = vmatprep.subr.mxu0 0.0
    %3460 = vmatpush1.msra.mxu0 %v3179
    %3461 = vmatprep.subr.mxu0 0.0
    %3462 = vmatpush1.msra.mxu0 %v3180
    %3463 = vmatprep.subr.mxu0 0.0
    %3464 = vmatpush1.msra.mxu0 0.0
    %3465 = vmatprep.subr.mxu0 0.0
    %3466 = vmatpush1.msra.mxu0 0.0
    %3467 = vmatprep.subr.mxu0 0.0
    %3468 = vmatpush1.msra.mxu0 0.0
    %3469 = vmatprep.subr.mxu0 0.0
    %3470 = vmatpush1.msra.mxu0 0.0
    %3471 = vmatprep.subr.mxu0 0.0
    %3472 = vmatpush1.msra.mxu0 0.0
    %3473 = vmatprep.subr.mxu0 0.0
    %3474 = vmatpush1.msra.mxu0 0.0
    %3475 = vmatprep.subr.mxu0 0.0
    %3476 = vmatpush1.msra.mxu0 0.0
    %3477 = vmatprep.subr.mxu0 0.0
    %3478 = vmatpush1.msra.mxu0 0.0
    %3479 = vmatprep.subr.mxu0 0.0
    %3480 = vmatpush1.msra.mxu0 0.0
    %3481 = vmatprep.subr.mxu0 0.0
    %3482 = vmatpush1.msra.mxu0 0.0
    %3483 = vmatprep.subr.mxu0 0.0
    %3484 = vmatpush1.msra.mxu0 0.0
    %3485 = vmatprep.subr.mxu0 0.0
    %3486 = vmatpush1.msra.mxu0 0.0
    %3487 = vmatprep.subr.mxu0 0.0
    %3488 = vmatpush1.msra.mxu0 0.0
    %3489 = vmatprep.subr.mxu0 0.0
    %3490 = vmatpush1.msra.mxu0 0.0
    %3491 = vmatprep.subr.mxu0 0.0
    %3492 = vmatpush1.msra.mxu0 0.0
    %3493 = vmatprep.subr.mxu0 0.0
    %3494 = vmatpush1.msra.mxu0 0.0
    %3495 = vmatprep.subr.mxu0 0.0
    %3496 = vmatpush1.msra.mxu0 0.0
    %3497 = vmatprep.subr.mxu0 0.0
    %3498 = vmatpush1.msra.mxu0 0.0
    %3499 = vmatprep.subr.mxu0 0.0
    %3500 = vmatpush1.msra.mxu0 0.0
    %3501 = vmatprep.subr.mxu0 0.0
    %3502 = vmatpush1.msra.mxu0 0.0
    %3503 = vmatprep.subr.mxu0 0.0
    %3504 = vmatpush1.msra.mxu0 0.0
    %3505 = vmatprep.subr.mxu0 0.0
    %3506 = vmatpush1.msra.mxu0 0.0
    %3507 = vmatprep.subr.mxu0 0.0
    %3508 = vmatpush1.msra.mxu0 0.0
    %3509 = vmatprep.subr.mxu0 0.0
    %3510 = vmatpush1.msra.mxu0 0.0
    %3511 = vmatprep.subr.mxu0 0.0
    %3512 = vmatpush1.msra.mxu0 0.0
    %3513 = vmatprep.subr.mxu0 0.0
    %3514 = vmatpush1.msra.mxu0 0.0
    %3515 = vmatprep.subr.mxu0 0.0
    %3516 = vmatpush1.msra.mxu0 0.0
    %3517 = vmatprep.subr.mxu0 0.0
    %3518 = vmatpush1.msra.mxu0 0.0
    %3519 = vmatprep.mubr.f32.mxu0 0.0
    %3520 = vmatmul.mubr.f32.gmra.mrb[0].mxu0 %v3453
    %v3521 = vpop.f32.mrb[0].mxu0
    %v3522 = vadd.f32 0.0, %v3521
    %v3523 = vpop.f32.mrb[0].mxu0
    %3524 = vdwg.mxu0
    %v3526 = vrot.slane %v3522, 6
    %v3527 = vrot.slane %v3522, 7
    %v3530 = vadd.f32 %v3175, %v3526
    %v3531 = vadd.f32 %v3176, %v3527
    %v3532 = vxor.u32 %v3530, 2147483648
    %v3533 = vxor.u32 %v3531, 2147483648
    %v3534 = vmul.f32 %v3532, 1.442695
    %v3535 = vpow.pop %v3534
    %v3536 = vmul.f32 %v3533, 1.442695
    %v3537 = vpow.pop %v3536
    %v3538 = vadd.f32 %v3535, 1.0
    %v3539 = vadd.f32 %v3537, 1.0
    %v3540 = vrcp.pop %v3538
    %v3541 = vmul.f32 1.0, %v3540
    %v3542 = vrcp.pop %v3539
    %v3543 = vmul.f32 1.0, %v3542
    %v3544 = vtanh.pop %v3530
    %v3545 = vtanh.pop %v3531
    %v3548 = vrot.slane %v3433, 7
    %v3549 = vrot.slane %v3434, 7
    %v3552 = vmul.f32 %v3541, %v3548
    %v3553 = vmul.f32 %v3543, %v3549
    %3556 = vrot.lane.b32.xlu0 %v3544, 32
    %v3557 = vpop.permute.xlu0 %3556
    %3558 = vrot.lane.b32.xlu0 %v3545, 32
    %v3559 = vpop.permute.xlu0 %3558
    %v3562 = vmul.f32 %v3541, %v3557
    %v3563 = vmul.f32 %v3543, %v3559
    %3566 = vrot.lane.b32.xlu0 %v3562, 32
    %v3567 = vpop.permute.xlu0 %3566
    %3568 = vrot.lane.b32.xlu0 %v3563, 32
    %v3569 = vpop.permute.xlu0 %3568
    %v3572 = vadd.f32 %v3552, %v3567
    %v3573 = vadd.f32 %v3553, %v3569
    %v3574 = vtanh.pop %v3572
    %v3575 = vtanh.pop %v3573
    %3578 = vrot.lane.b32.xlu0 %v3574, 32
    %v3579 = vpop.permute.xlu0 %3578
    %3580 = vrot.lane.b32.xlu0 %v3575, 32
    %v3581 = vpop.permute.xlu0 %3580
    %v3584 = vmul.f32 %v3541, %v3579
    %v3585 = vmul.f32 %v3543, %v3581
    %v3588 = vrot.slane %v3584, 2
    %v3589 = vrot.slane %v3585, 1
    %v3590 = vsel %vm3311, %v3589, %v3588
    %3591 = vrot.lane.b32.xlu0 %v3590, 64
    %v3592 = vpop.permute.xlu0 %3591
    %v3593 = vsel %vm462, %v3592, 0
    %3595 = vmatprep.subr.mxu0 0.0
    %3596 = vmatpush1.msra.mxu0 %v3177
    %3597 = vmatprep.subr.mxu0 0.0
    %3598 = vmatpush1.msra.mxu0 %v3178
    %3599 = vmatprep.subr.mxu0 0.0
    %3600 = vmatpush1.msra.mxu0 %v3179
    %3601 = vmatprep.subr.mxu0 0.0
    %3602 = vmatpush1.msra.mxu0 %v3180
    %3603 = vmatprep.subr.mxu0 0.0
    %3604 = vmatpush1.msra.mxu0 0.0
    %3605 = vmatprep.subr.mxu0 0.0
    %3606 = vmatpush1.msra.mxu0 0.0
    %3607 = vmatprep.subr.mxu0 0.0
    %3608 = vmatpush1.msra.mxu0 0.0
    %3609 = vmatprep.subr.mxu0 0.0
    %3610 = vmatpush1.msra.mxu0 0.0
    %3611 = vmatprep.subr.mxu0 0.0
    %3612 = vmatpush1.msra.mxu0 0.0
    %3613 = vmatprep.subr.mxu0 0.0
    %3614 = vmatpush1.msra.mxu0 0.0
    %3615 = vmatprep.subr.mxu0 0.0
    %3616 = vmatpush1.msra.mxu0 0.0
    %3617 = vmatprep.subr.mxu0 0.0
    %3618 = vmatpush1.msra.mxu0 0.0
    %3619 = vmatprep.subr.mxu0 0.0
    %3620 = vmatpush1.msra.mxu0 0.0
    %3621 = vmatprep.subr.mxu0 0.0
    %3622 = vmatpush1.msra.mxu0 0.0
    %3623 = vmatprep.subr.mxu0 0.0
    %3624 = vmatpush1.msra.mxu0 0.0
    %3625 = vmatprep.subr.mxu0 0.0
    %3626 = vmatpush1.msra.mxu0 0.0
    %3627 = vmatprep.subr.mxu0 0.0
    %3628 = vmatpush1.msra.mxu0 0.0
    %3629 = vmatprep.subr.mxu0 0.0
    %3630 = vmatpush1.msra.mxu0 0.0
    %3631 = vmatprep.subr.mxu0 0.0
    %3632 = vmatpush1.msra.mxu0 0.0
    %3633 = vmatprep.subr.mxu0 0.0
    %3634 = vmatpush1.msra.mxu0 0.0
    %3635 = vmatprep.subr.mxu0 0.0
    %3636 = vmatpush1.msra.mxu0 0.0
    %3637 = vmatprep.subr.mxu0 0.0
    %3638 = vmatpush1.msra.mxu0 0.0
    %3639 = vmatprep.subr.mxu0 0.0
    %3640 = vmatpush1.msra.mxu0 0.0
    %3641 = vmatprep.subr.mxu0 0.0
    %3642 = vmatpush1.msra.mxu0 0.0
    %3643 = vmatprep.subr.mxu0 0.0
    %3644 = vmatpush1.msra.mxu0 0.0
    %3645 = vmatprep.subr.mxu0 0.0
    %3646 = vmatpush1.msra.mxu0 0.0
    %3647 = vmatprep.subr.mxu0 0.0
    %3648 = vmatpush1.msra.mxu0 0.0
    %3649 = vmatprep.subr.mxu0 0.0
    %3650 = vmatpush1.msra.mxu0 0.0
    %3651 = vmatprep.subr.mxu0 0.0
    %3652 = vmatpush1.msra.mxu0 0.0
    %3653 = vmatprep.subr.mxu0 0.0
    %3654 = vmatpush1.msra.mxu0 0.0
    %3655 = vmatprep.subr.mxu0 0.0
    %3656 = vmatpush1.msra.mxu0 0.0
    %3657 = vmatprep.subr.mxu0 0.0
    %3658 = vmatpush1.msra.mxu0 0.0
    %3659 = vmatprep.mubr.f32.mxu0 0.0
    %3660 = vmatmul.mubr.f32.gmra.mrb[0].mxu0 %v3593
    %v3661 = vpop.f32.mrb[0].mxu0
    %v3662 = vadd.f32 0.0, %v3661
    %v3663 = vpop.f32.mrb[0].mxu0
    %3664 = vdwg.mxu0
    %v3666 = vrot.slane %v3662, 5
    %v3667 = vrot.slane %v3662, 6
    %v3670 = vadd.f32 %v3175, %v3666
    %v3671 = vadd.f32 %v3176, %v3667
    %v3672 = vxor.u32 %v3670, 2147483648
    %v3673 = vxor.u32 %v3671, 2147483648
    %v3674 = vmul.f32 %v3672, 1.442695
    %v3675 = vpow.pop %v3674
    %v3676 = vmul.f32 %v3673, 1.442695
    %v3677 = vpow.pop %v3676
    %v3678 = vadd.f32 %v3675, 1.0
    %v3679 = vadd.f32 %v3677, 1.0
    %v3680 = vrcp.pop %v3678
    %v3681 = vmul.f32 1.0, %v3680
    %v3682 = vrcp.pop %v3679
    %v3683 = vmul.f32 1.0, %v3682
    %v3684 = vtanh.pop %v3670
    %v3685 = vtanh.pop %v3671
    %v3688 = vrot.slane %v3572, 7
    %v3689 = vrot.slane %v3573, 7
    %v3692 = vmul.f32 %v3681, %v3688
    %v3693 = vmul.f32 %v3683, %v3689
    %3696 = vrot.lane.b32.xlu0 %v3684, 32
    %v3697 = vpop.permute.xlu0 %3696
    %3698 = vrot.lane.b32.xlu0 %v3685, 32
    %v3699 = vpop.permute.xlu0 %3698
    %v3702 = vmul.f32 %v3681, %v3697
    %v3703 = vmul.f32 %v3683, %v3699
    %3706 = vrot.lane.b32.xlu0 %v3702, 32
    %v3707 = vpop.permute.xlu0 %3706
    %3708 = vrot.lane.b32.xlu0 %v3703, 32
    %v3709 = vpop.permute.xlu0 %3708
    %v3712 = vadd.f32 %v3692, %v3707
    %v3713 = vadd.f32 %v3693, %v3709
    %v3714 = vtanh.pop %v3712
    %v3715 = vtanh.pop %v3713
    %3718 = vrot.lane.b32.xlu0 %v3714, 32
    %v3719 = vpop.permute.xlu0 %3718
    %3720 = vrot.lane.b32.xlu0 %v3715, 32
    %v3721 = vpop.permute.xlu0 %3720
    %v3724 = vmul.f32 %v3681, %v3719
    %v3725 = vmul.f32 %v3683, %v3721
    %v3728 = vrot.slane %v3724, 3
    %v3729 = vrot.slane %v3725, 2
    %v3730 = vsel %vm3311, %v3729, %v3728
    %3731 = vrot.lane.b32.xlu0 %v3730, 64
    %v3732 = vpop.permute.xlu0 %3731
    %v3733 = vsel %vm462, %v3732, 0
    %3735 = vmatprep.subr.mxu0 0.0
    %3736 = vmatpush1.msra.mxu0 %v3177
    %3737 = vmatprep.subr.mxu0 0.0
    %3738 = vmatpush1.msra.mxu0 %v3178
    %3739 = vmatprep.subr.mxu0 0.0
    %3740 = vmatpush1.msra.mxu0 %v3179
    %3741 = vmatprep.subr.mxu0 0.0
    %3742 = vmatpush1.msra.mxu0 %v3180
    %3743 = vmatprep.subr.mxu0 0.0
    %3744 = vmatpush1.msra.mxu0 0.0
    %3745 = vmatprep.subr.mxu0 0.0
    %3746 = vmatpush1.msra.mxu0 0.0
    %3747 = vmatprep.subr.mxu0 0.0
    %3748 = vmatpush1.msra.mxu0 0.0
    %3749 = vmatprep.subr.mxu0 0.0
    %3750 = vmatpush1.msra.mxu0 0.0
    %3751 = vmatprep.subr.mxu0 0.0
    %3752 = vmatpush1.msra.mxu0 0.0
    %3753 = vmatprep.subr.mxu0 0.0
    %3754 = vmatpush1.msra.mxu0 0.0
    %3755 = vmatprep.subr.mxu0 0.0
    %3756 = vmatpush1.msra.mxu0 0.0
    %3757 = vmatprep.subr.mxu0 0.0
    %3758 = vmatpush1.msra.mxu0 0.0
    %3759 = vmatprep.subr.mxu0 0.0
    %3760 = vmatpush1.msra.mxu0 0.0
    %3761 = vmatprep.subr.mxu0 0.0
    %3762 = vmatpush1.msra.mxu0 0.0
    %3763 = vmatprep.subr.mxu0 0.0
    %3764 = vmatpush1.msra.mxu0 0.0
    %3765 = vmatprep.subr.mxu0 0.0
    %3766 = vmatpush1.msra.mxu0 0.0
    %3767 = vmatprep.subr.mxu0 0.0
    %3768 = vmatpush1.msra.mxu0 0.0
    %3769 = vmatprep.subr.mxu0 0.0
    %3770 = vmatpush1.msra.mxu0 0.0
    %3771 = vmatprep.subr.mxu0 0.0
    %3772 = vmatpush1.msra.mxu0 0.0
    %3773 = vmatprep.subr.mxu0 0.0
    %3774 = vmatpush1.msra.mxu0 0.0
    %3775 = vmatprep.subr.mxu0 0.0
    %3776 = vmatpush1.msra.mxu0 0.0
    %3777 = vmatprep.subr.mxu0 0.0
    %3778 = vmatpush1.msra.mxu0 0.0
    %3779 = vmatprep.subr.mxu0 0.0
    %3780 = vmatpush1.msra.mxu0 0.0
    %3781 = vmatprep.subr.mxu0 0.0
    %3782 = vmatpush1.msra.mxu0 0.0
    %3783 = vmatprep.subr.mxu0 0.0
    %3784 = vmatpush1.msra.mxu0 0.0
    %3785 = vmatprep.subr.mxu0 0.0
    %3786 = vmatpush1.msra.mxu0 0.0
    %3787 = vmatprep.subr.mxu0 0.0
    %3788 = vmatpush1.msra.mxu0 0.0
    %3789 = vmatprep.subr.mxu0 0.0
    %3790 = vmatpush1.msra.mxu0 0.0
    %3791 = vmatprep.subr.mxu0 0.0
    %3792 = vmatpush1.msra.mxu0 0.0
    %3793 = vmatprep.subr.mxu0 0.0
    %3794 = vmatpush1.msra.mxu0 0.0
    %3795 = vmatprep.subr.mxu0 0.0
    %3796 = vmatpush1.msra.mxu0 0.0
    %3797 = vmatprep.subr.mxu0 0.0
    %3798 = vmatpush1.msra.mxu0 0.0
    %3799 = vmatprep.mubr.f32.mxu0 0.0
    %3800 = vmatmul.mubr.f32.gmra.mrb[0].mxu0 %v3733
    %v3801 = vpop.f32.mrb[0].mxu0
    %v3802 = vadd.f32 0.0, %v3801
    %v3803 = vpop.f32.mrb[0].mxu0
    %3804 = vdwg.mxu0
    %v3806 = vrot.slane %v3802, 4
    %v3807 = vrot.slane %v3802, 5
    %v3810 = vadd.f32 %v3175, %v3806
    %v3811 = vadd.f32 %v3176, %v3807
    %v3812 = vxor.u32 %v3810, 2147483648
    %v3813 = vxor.u32 %v3811, 2147483648
    %v3814 = vmul.f32 %v3812, 1.442695
    %v3815 = vpow.pop %v3814
    %v3816 = vmul.f32 %v3813, 1.442695
    %v3817 = vpow.pop %v3816
    %v3818 = vadd.f32 %v3815, 1.0
    %v3819 = vadd.f32 %v3817, 1.0
    %v3820 = vrcp.pop %v3818
    %v3821 = vmul.f32 1.0, %v3820
    %v3822 = vrcp.pop %v3819
    %v3823 = vmul.f32 1.0, %v3822
    %v3824 = vtanh.pop %v3810
    %v3825 = vtanh.pop %v3811
    %v3828 = vrot.slane %v3712, 7
    %v3829 = vrot.slane %v3713, 7
    %v3832 = vmul.f32 %v3821, %v3828
    %v3833 = vmul.f32 %v3823, %v3829
    %3836 = vrot.lane.b32.xlu0 %v3824, 32
    %v3837 = vpop.permute.xlu0 %3836
    %3838 = vrot.lane.b32.xlu0 %v3825, 32
    %v3839 = vpop.permute.xlu0 %3838
    %v3842 = vmul.f32 %v3821, %v3837
    %v3843 = vmul.f32 %v3823, %v3839
    %3846 = vrot.lane.b32.xlu0 %v3842, 32
    %v3847 = vpop.permute.xlu0 %3846
    %3848 = vrot.lane.b32.xlu0 %v3843, 32
    %v3849 = vpop.permute.xlu0 %3848
    %v3852 = vadd.f32 %v3832, %v3847
    %v3853 = vadd.f32 %v3833, %v3849
    %v3854 = vtanh.pop %v3852
    %v3855 = vtanh.pop %v3853
    %3858 = vrot.lane.b32.xlu0 %v3854, 32
    %v3859 = vpop.permute.xlu0 %3858
    %3860 = vrot.lane.b32.xlu0 %v3855, 32
    %v3861 = vpop.permute.xlu0 %3860
    %v3864 = vmul.f32 %v3821, %v3859
    %v3865 = vmul.f32 %v3823, %v3861
    %v3868 = vrot.slane %v3864, 4
    %v3869 = vrot.slane %v3865, 3
    %v3870 = vsel %vm3311, %v3869, %v3868
    %3871 = vrot.lane.b32.xlu0 %v3870, 64
    %v3872 = vpop.permute.xlu0 %3871
    %v3873 = vsel %vm462, %v3872, 0
    %3875 = vmatprep.subr.mxu0 0.0
    %3876 = vmatpush1.msra.mxu0 %v3177
    %3877 = vmatprep.subr.mxu0 0.0
    %3878 = vmatpush1.msra.mxu0 %v3178
    %3879 = vmatprep.subr.mxu0 0.0
    %3880 = vmatpush1.msra.mxu0 %v3179
    %3881 = vmatprep.subr.mxu0 0.0
    %3882 = vmatpush1.msra.mxu0 %v3180
    %3883 = vmatprep.subr.mxu0 0.0
    %3884 = vmatpush1.msra.mxu0 0.0
    %3885 = vmatprep.subr.mxu0 0.0
    %3886 = vmatpush1.msra.mxu0 0.0
    %3887 = vmatprep.subr.mxu0 0.0
    %3888 = vmatpush1.msra.mxu0 0.0
    %3889 = vmatprep.subr.mxu0 0.0
    %3890 = vmatpush1.msra.mxu0 0.0
    %3891 = vmatprep.subr.mxu0 0.0
    %3892 = vmatpush1.msra.mxu0 0.0
    %3893 = vmatprep.subr.mxu0 0.0
    %3894 = vmatpush1.msra.mxu0 0.0
    %3895 = vmatprep.subr.mxu0 0.0
    %3896 = vmatpush1.msra.mxu0 0.0
    %3897 = vmatprep.subr.mxu0 0.0
    %3898 = vmatpush1.msra.mxu0 0.0
    %3899 = vmatprep.subr.mxu0 0.0
    %3900 = vmatpush1.msra.mxu0 0.0
    %3901 = vmatprep.subr.mxu0 0.0
    %3902 = vmatpush1.msra.mxu0 0.0
    %3903 = vmatprep.subr.mxu0 0.0
    %3904 = vmatpush1.msra.mxu0 0.0
    %3905 = vmatprep.subr.mxu0 0.0
    %3906 = vmatpush1.msra.mxu0 0.0
    %3907 = vmatprep.subr.mxu0 0.0
    %3908 = vmatpush1.msra.mxu0 0.0
    %3909 = vmatprep.subr.mxu0 0.0
    %3910 = vmatpush1.msra.mxu0 0.0
    %3911 = vmatprep.subr.mxu0 0.0
    %3912 = vmatpush1.msra.mxu0 0.0
    %3913 = vmatprep.subr.mxu0 0.0
    %3914 = vmatpush1.msra.mxu0 0.0
    %3915 = vmatprep.subr.mxu0 0.0
    %3916 = vmatpush1.msra.mxu0 0.0
    %3917 = vmatprep.subr.mxu0 0.0
    %3918 = vmatpush1.msra.mxu0 0.0
    %3919 = vmatprep.subr.mxu0 0.0
    %3920 = vmatpush1.msra.mxu0 0.0
    %3921 = vmatprep.subr.mxu0 0.0
    %3922 = vmatpush1.msra.mxu0 0.0
    %3923 = vmatprep.subr.mxu0 0.0
    %3924 = vmatpush1.msra.mxu0 0.0
    %3925 = vmatprep.subr.mxu0 0.0
    %3926 = vmatpush1.msra.mxu0 0.0
    %3927 = vmatprep.subr.mxu0 0.0
    %3928 = vmatpush1.msra.mxu0 0.0
    %3929 = vmatprep.subr.mxu0 0.0
    %3930 = vmatpush1.msra.mxu0 0.0
    %3931 = vmatprep.subr.mxu0 0.0
    %3932 = vmatpush1.msra.mxu0 0.0
    %3933 = vmatprep.subr.mxu0 0.0
    %3934 = vmatpush1.msra.mxu0 0.0
    %3935 = vmatprep.subr.mxu0 0.0
    %3936 = vmatpush1.msra.mxu0 0.0
    %3937 = vmatprep.subr.mxu0 0.0
    %3938 = vmatpush1.msra.mxu0 0.0
    %3939 = vmatprep.mubr.f32.mxu0 0.0
    %3940 = vmatmul.mubr.f32.gmra.mrb[0].mxu0 %v3873
    %v3941 = vpop.f32.mrb[0].mxu0
    %v3942 = vadd.f32 0.0, %v3941
    %v3943 = vpop.f32.mrb[0].mxu0
    %3944 = vdwg.mxu0
    %v3946 = vrot.slane %v3942, 3
    %v3947 = vrot.slane %v3942, 4
    %v3950 = vadd.f32 %v3175, %v3946
    %v3951 = vadd.f32 %v3176, %v3947
    %v3952 = vxor.u32 %v3950, 2147483648
    %v3953 = vxor.u32 %v3951, 2147483648
    %v3954 = vmul.f32 %v3952, 1.442695
    %v3955 = vpow.pop %v3954
    %v3956 = vmul.f32 %v3953, 1.442695
    %v3957 = vpow.pop %v3956
    %v3958 = vadd.f32 %v3955, 1.0
    %v3959 = vadd.f32 %v3957, 1.0
    %v3960 = vrcp.pop %v3958
    %v3961 = vmul.f32 1.0, %v3960
    %v3962 = vrcp.pop %v3959
    %v3963 = vmul.f32 1.0, %v3962
    %v3964 = vtanh.pop %v3950
    %v3965 = vtanh.pop %v3951
    %v3968 = vrot.slane %v3852, 7
    %v3969 = vrot.slane %v3853, 7
    %v3972 = vmul.f32 %v3961, %v3968
    %v3973 = vmul.f32 %v3963, %v3969
    %3976 = vrot.lane.b32.xlu0 %v3964, 32
    %v3977 = vpop.permute.xlu0 %3976
    %3978 = vrot.lane.b32.xlu0 %v3965, 32
    %v3979 = vpop.permute.xlu0 %3978
    %v3982 = vmul.f32 %v3961, %v3977
    %v3983 = vmul.f32 %v3963, %v3979
    %3986 = vrot.lane.b32.xlu0 %v3982, 32
    %v3987 = vpop.permute.xlu0 %3986
    %3988 = vrot.lane.b32.xlu0 %v3983, 32
    %v3989 = vpop.permute.xlu0 %3988
    %v3992 = vadd.f32 %v3972, %v3987
    %v3993 = vadd.f32 %v3973, %v3989
    %v3994 = vtanh.pop %v3992
    %v3995 = vtanh.pop %v3993
    %3998 = vrot.lane.b32.xlu0 %v3994, 32
    %v3999 = vpop.permute.xlu0 %3998
    %4000 = vrot.lane.b32.xlu0 %v3995, 32
    %v4001 = vpop.permute.xlu0 %4000
    %v4004 = vmul.f32 %v3961, %v3999
    %v4005 = vmul.f32 %v3963, %v4001
    %v4008 = vrot.slane %v4004, 5
    %v4009 = vrot.slane %v4005, 4
    %v4010 = vsel %vm3311, %v4009, %v4008
    %4011 = vrot.lane.b32.xlu0 %v4010, 64
    %v4012 = vpop.permute.xlu0 %4011
    %v4013 = vsel %vm462, %v4012, 0
    %4015 = vmatprep.subr.mxu0 0.0
    %4016 = vmatpush1.msra.mxu0 %v3177
    %4017 = vmatprep.subr.mxu0 0.0
    %4018 = vmatpush1.msra.mxu0 %v3178
    %4019 = vmatprep.subr.mxu0 0.0
    %4020 = vmatpush1.msra.mxu0 %v3179
    %4021 = vmatprep.subr.mxu0 0.0
    %4022 = vmatpush1.msra.mxu0 %v3180
    %4023 = vmatprep.subr.mxu0 0.0
    %4024 = vmatpush1.msra.mxu0 0.0
    %4025 = vmatprep.subr.mxu0 0.0
    %4026 = vmatpush1.msra.mxu0 0.0
    %4027 = vmatprep.subr.mxu0 0.0
    %4028 = vmatpush1.msra.mxu0 0.0
    %4029 = vmatprep.subr.mxu0 0.0
    %4030 = vmatpush1.msra.mxu0 0.0
    %4031 = vmatprep.subr.mxu0 0.0
    %4032 = vmatpush1.msra.mxu0 0.0
    %4033 = vmatprep.subr.mxu0 0.0
    %4034 = vmatpush1.msra.mxu0 0.0
    %4035 = vmatprep.subr.mxu0 0.0
    %4036 = vmatpush1.msra.mxu0 0.0
    %4037 = vmatprep.subr.mxu0 0.0
    %4038 = vmatpush1.msra.mxu0 0.0
    %4039 = vmatprep.subr.mxu0 0.0
    %4040 = vmatpush1.msra.mxu0 0.0
    %4041 = vmatprep.subr.mxu0 0.0
    %4042 = vmatpush1.msra.mxu0 0.0
    %4043 = vmatprep.subr.mxu0 0.0
    %4044 = vmatpush1.msra.mxu0 0.0
    %4045 = vmatprep.subr.mxu0 0.0
    %4046 = vmatpush1.msra.mxu0 0.0
    %4047 = vmatprep.subr.mxu0 0.0
    %4048 = vmatpush1.msra.mxu0 0.0
    %4049 = vmatprep.subr.mxu0 0.0
    %4050 = vmatpush1.msra.mxu0 0.0
    %4051 = vmatprep.subr.mxu0 0.0
    %4052 = vmatpush1.msra.mxu0 0.0
    %4053 = vmatprep.subr.mxu0 0.0
    %4054 = vmatpush1.msra.mxu0 0.0
    %4055 = vmatprep.subr.mxu0 0.0
    %4056 = vmatpush1.msra.mxu0 0.0
    %4057 = vmatprep.subr.mxu0 0.0
    %4058 = vmatpush1.msra.mxu0 0.0
    %4059 = vmatprep.subr.mxu0 0.0
    %4060 = vmatpush1.msra.mxu0 0.0
    %4061 = vmatprep.subr.mxu0 0.0
    %4062 = vmatpush1.msra.mxu0 0.0
    %4063 = vmatprep.subr.mxu0 0.0
    %4064 = vmatpush1.msra.mxu0 0.0
    %4065 = vmatprep.subr.mxu0 0.0
    %4066 = vmatpush1.msra.mxu0 0.0
    %4067 = vmatprep.subr.mxu0 0.0
    %4068 = vmatpush1.msra.mxu0 0.0
    %4069 = vmatprep.subr.mxu0 0.0
    %4070 = vmatpush1.msra.mxu0 0.0
    %4071 = vmatprep.subr.mxu0 0.0
    %4072 = vmatpush1.msra.mxu0 0.0
    %4073 = vmatprep.subr.mxu0 0.0
    %4074 = vmatpush1.msra.mxu0 0.0
    %4075 = vmatprep.subr.mxu0 0.0
    %4076 = vmatpush1.msra.mxu0 0.0
    %4077 = vmatprep.subr.mxu0 0.0
    %4078 = vmatpush1.msra.mxu0 0.0
    %4079 = vmatprep.mubr.f32.mxu0 0.0
    %4080 = vmatmul.mubr.f32.gmra.mrb[0].mxu0 %v4013
    %v4081 = vpop.f32.mrb[0].mxu0
    %v4082 = vadd.f32 0.0, %v4081
    %v4083 = vpop.f32.mrb[0].mxu0
    %4084 = vdwg.mxu0
    %v4086 = vrot.slane %v4082, 2
    %v4087 = vrot.slane %v4082, 3
    %v4090 = vadd.f32 %v3175, %v4086
    %v4091 = vadd.f32 %v3176, %v4087
    %v4092 = vxor.u32 %v4090, 2147483648
    %v4093 = vxor.u32 %v4091, 2147483648
    %v4094 = vmul.f32 %v4092, 1.442695
    %v4095 = vpow.pop %v4094
    %v4096 = vmul.f32 %v4093, 1.442695
    %v4097 = vpow.pop %v4096
    %v4098 = vadd.f32 %v4095, 1.0
    %v4099 = vadd.f32 %v4097, 1.0
    %v4100 = vrcp.pop %v4098
    %v4101 = vmul.f32 1.0, %v4100
    %v4102 = vrcp.pop %v4099
    %v4103 = vmul.f32 1.0, %v4102
    %v4104 = vtanh.pop %v4090
    %v4105 = vtanh.pop %v4091
    %v4108 = vrot.slane %v3992, 7
    %v4109 = vrot.slane %v3993, 7
    %v4112 = vmul.f32 %v4101, %v4108
    %v4113 = vmul.f32 %v4103, %v4109
    %4116 = vrot.lane.b32.xlu0 %v4104, 32
    %v4117 = vpop.permute.xlu0 %4116
    %4118 = vrot.lane.b32.xlu0 %v4105, 32
    %v4119 = vpop.permute.xlu0 %4118
    %v4122 = vmul.f32 %v4101, %v4117
    %v4123 = vmul.f32 %v4103, %v4119
    %4126 = vrot.lane.b32.xlu0 %v4122, 32
    %v4127 = vpop.permute.xlu0 %4126
    %4128 = vrot.lane.b32.xlu0 %v4123, 32
    %v4129 = vpop.permute.xlu0 %4128
    %v4132 = vadd.f32 %v4112, %v4127
    %v4133 = vadd.f32 %v4113, %v4129
    %v4134 = vtanh.pop %v4132
    %v4135 = vtanh.pop %v4133
    %4138 = vrot.lane.b32.xlu0 %v4134, 32
    %v4139 = vpop.permute.xlu0 %4138
    %4140 = vrot.lane.b32.xlu0 %v4135, 32
    %v4141 = vpop.permute.xlu0 %4140
    %v4144 = vmul.f32 %v4101, %v4139
    %v4145 = vmul.f32 %v4103, %v4141
    %v4148 = vrot.slane %v4144, 6
    %v4149 = vrot.slane %v4145, 5
    %v4150 = vsel %vm3311, %v4149, %v4148
    %4151 = vrot.lane.b32.xlu0 %v4150, 64
    %v4152 = vpop.permute.xlu0 %4151
    %v4153 = vsel %vm462, %v4152, 0
    %4155 = vmatprep.subr.mxu0 0.0
    %4156 = vmatpush1.msra.mxu0 %v3177
    %4157 = vmatprep.subr.mxu0 0.0
    %4158 = vmatpush1.msra.mxu0 %v3178
    %4159 = vmatprep.subr.mxu0 0.0
    %4160 = vmatpush1.msra.mxu0 %v3179
    %4161 = vmatprep.subr.mxu0 0.0
    %4162 = vmatpush1.msra.mxu0 %v3180
    %4163 = vmatprep.subr.mxu0 0.0
    %4164 = vmatpush1.msra.mxu0 0.0
    %4165 = vmatprep.subr.mxu0 0.0
    %4166 = vmatpush1.msra.mxu0 0.0
    %4167 = vmatprep.subr.mxu0 0.0
    %4168 = vmatpush1.msra.mxu0 0.0
    %4169 = vmatprep.subr.mxu0 0.0
    %4170 = vmatpush1.msra.mxu0 0.0
    %4171 = vmatprep.subr.mxu0 0.0
    %4172 = vmatpush1.msra.mxu0 0.0
    %4173 = vmatprep.subr.mxu0 0.0
    %4174 = vmatpush1.msra.mxu0 0.0
    %4175 = vmatprep.subr.mxu0 0.0
    %4176 = vmatpush1.msra.mxu0 0.0
    %4177 = vmatprep.subr.mxu0 0.0
    %4178 = vmatpush1.msra.mxu0 0.0
    %4179 = vmatprep.subr.mxu0 0.0
    %4180 = vmatpush1.msra.mxu0 0.0
    %4181 = vmatprep.subr.mxu0 0.0
    %4182 = vmatpush1.msra.mxu0 0.0
    %4183 = vmatprep.subr.mxu0 0.0
    %4184 = vmatpush1.msra.mxu0 0.0
    %4185 = vmatprep.subr.mxu0 0.0
    %4186 = vmatpush1.msra.mxu0 0.0
    %4187 = vmatprep.subr.mxu0 0.0
    %4188 = vmatpush1.msra.mxu0 0.0
    %4189 = vmatprep.subr.mxu0 0.0
    %4190 = vmatpush1.msra.mxu0 0.0
    %4191 = vmatprep.subr.mxu0 0.0
    %4192 = vmatpush1.msra.mxu0 0.0
    %4193 = vmatprep.subr.mxu0 0.0
    %4194 = vmatpush1.msra.mxu0 0.0
    %4195 = vmatprep.subr.mxu0 0.0
    %4196 = vmatpush1.msra.mxu0 0.0
    %4197 = vmatprep.subr.mxu0 0.0
    %4198 = vmatpush1.msra.mxu0 0.0
    %4199 = vmatprep.subr.mxu0 0.0
    %4200 = vmatpush1.msra.mxu0 0.0
    %4201 = vmatprep.subr.mxu0 0.0
    %4202 = vmatpush1.msra.mxu0 0.0
    %4203 = vmatprep.subr.mxu0 0.0
    %4204 = vmatpush1.msra.mxu0 0.0
    %4205 = vmatprep.subr.mxu0 0.0
    %4206 = vmatpush1.msra.mxu0 0.0
    %4207 = vmatprep.subr.mxu0 0.0
    %4208 = vmatpush1.msra.mxu0 0.0
    %4209 = vmatprep.subr.mxu0 0.0
    %4210 = vmatpush1.msra.mxu0 0.0
    %4211 = vmatprep.subr.mxu0 0.0
    %4212 = vmatpush1.msra.mxu0 0.0
    %4213 = vmatprep.subr.mxu0 0.0
    %4214 = vmatpush1.msra.mxu0 0.0
    %4215 = vmatprep.subr.mxu0 0.0
    %4216 = vmatpush1.msra.mxu0 0.0
    %4217 = vmatprep.subr.mxu0 0.0
    %4218 = vmatpush1.msra.mxu0 0.0
    %4219 = vmatprep.mubr.f32.mxu0 0.0
    %4220 = vmatmul.mubr.f32.gmra.mrb[0].mxu0 %v4153
    %v4221 = vpop.f32.mrb[0].mxu0
    %v4222 = vadd.f32 0.0, %v4221
    %v4223 = vpop.f32.mrb[0].mxu0
    %4224 = vdwg.mxu0
    %v4226 = vrot.slane %v4222, 1
    %v4227 = vrot.slane %v4222, 2
    %v4230 = vadd.f32 %v3175, %v4226
    %v4231 = vadd.f32 %v3176, %v4227
    %v4232 = vxor.u32 %v4230, 2147483648
    %v4233 = vxor.u32 %v4231, 2147483648
    %v4234 = vmul.f32 %v4232, 1.442695
    %v4235 = vpow.pop %v4234
    %v4236 = vmul.f32 %v4233, 1.442695
    %v4237 = vpow.pop %v4236
    %v4238 = vadd.f32 %v4235, 1.0
    %v4239 = vadd.f32 %v4237, 1.0
    %v4240 = vrcp.pop %v4238
    %v4241 = vmul.f32 1.0, %v4240
    %v4242 = vrcp.pop %v4239
    %v4243 = vmul.f32 1.0, %v4242
    %v4244 = vtanh.pop %v4230
    %v4245 = vtanh.pop %v4231
    %v4248 = vrot.slane %v4132, 7
    %v4249 = vrot.slane %v4133, 7
    %v4252 = vmul.f32 %v4241, %v4248
    %v4253 = vmul.f32 %v4243, %v4249
    %4256 = vrot.lane.b32.xlu0 %v4244, 32
    %v4257 = vpop.permute.xlu0 %4256
    %4258 = vrot.lane.b32.xlu0 %v4245, 32
    %v4259 = vpop.permute.xlu0 %4258
    %v4262 = vmul.f32 %v4241, %v4257
    %v4263 = vmul.f32 %v4243, %v4259
    %4266 = vrot.lane.b32.xlu0 %v4262, 32
    %v4267 = vpop.permute.xlu0 %4266
    %4268 = vrot.lane.b32.xlu0 %v4263, 32
    %v4269 = vpop.permute.xlu0 %4268
    %v4272 = vadd.f32 %v4252, %v4267
    %v4273 = vadd.f32 %v4253, %v4269
    %v4274 = vtanh.pop %v4272
    %v4275 = vtanh.pop %v4273
    %4278 = vrot.lane.b32.xlu0 %v4274, 32
    %v4279 = vpop.permute.xlu0 %4278
    %4280 = vrot.lane.b32.xlu0 %v4275, 32
    %v4281 = vpop.permute.xlu0 %4280
    %v4284 = vmul.f32 %v4241, %v4279
    %v4285 = vmul.f32 %v4243, %v4281
    %v4289 = vrot.slane %v4284, 7
    %v4290 = vrot.slane %v4285, 6
    %v4291 = vsel %vm3311, %v4290, %v4289
    %4292 = vrot.lane.b32.xlu0 %v4291, 64
    %v4293 = vpop.permute.xlu0 %4292
    %v4295 = vsel %vm645, %v3314, %v4293
    %v4298 = vunpack.c.l.s4 1966171168
    %v4299 = vunpack.c.0.s8 %v4298
    %v4300 = vlaneseq
    %v4301 = vshrl.u32 %v4300, 7
    %v4302 = vsub.s32 %v4299, %v4301
    %v4303 = vrot.slane %v4295, %v4302
    %v4304 = vcombine.high %v4303, %v4303
    %v4306 = vunpack.c.l.s4 1966171168
    %v4307 = vunpack.c.0.s8 %v4306
    %v4308 = vlaneseq
    %v4309 = vshrl.u32 %v4308, 7
    %v4310 = vsub.s32 %v4307, %v4309
    %v4311 = vrot.slane %v4303, %v4310
    %v4313 = vunpack.c.l.s4 1966171168
    %v4314 = vunpack.c.0.s8 %v4313
    %v4315 = vlaneseq
    %v4316 = vshrl.u32 %v4315, 7
    %v4317 = vsub.s32 %v4314, %v4316
    %v4318 = vrot.slane %v4304, %v4317
    %v4321 = vrot.slane %v3446, 7
    %vm4322 = vcmask 1042434
    %v4323 = vsel %vm4322, %v4321, %v3445
    %4324 = vrot.lane.b32.xlu0 %v4323, 64
    %v4325 = vpop.permute.xlu0 %4324
    %v4327 = vrot.slane %v4144, 5
    %v4328 = vrot.slane %v4145, 4
    %v4329 = vsel %vm4322, %v4328, %v4327
    %4330 = vrot.lane.b32.xlu0 %v4329, 64
    %v4331 = vpop.permute.xlu0 %4330
    %v4333 = vsel %vm645, %v4325, %v4331
    %v4336 = vunpack.c.l.s4 1966171168
    %v4337 = vunpack.c.0.s8 %v4336
    %v4338 = vlaneseq
    %v4339 = vshrl.u32 %v4338, 7
    %v4340 = vsub.s32 %v4337, %v4339
    %v4341 = vrot.slane %v4333, %v4340
    %v4342 = vcombine.high %v4341, %v4341
    %v4344 = vunpack.c.l.s4 1966171168
    %v4345 = vunpack.c.0.s8 %v4344
    %v4346 = vlaneseq
    %v4347 = vshrl.u32 %v4346, 7
    %v4348 = vsub.s32 %v4345, %v4347
    %v4349 = vrot.slane %v4341, %v4348
    %v4351 = vunpack.c.l.s4 1966171168
    %v4352 = vunpack.c.0.s8 %v4351
    %v4353 = vlaneseq
    %v4354 = vshrl.u32 %v4353, 7
    %v4355 = vsub.s32 %v4352, %v4354
    %v4356 = vrot.slane %v4342, %v4355
    %v4357 = vcombine.high %v4349, %v4349
    %v4358 = vrot.slane %v3585, 7
    %vm4359 = vcmask 1043459
    %v4360 = vsel %vm4359, %v4358, %v3584
    %4361 = vrot.lane.b32.xlu0 %v4360, 64
    %v4362 = vpop.permute.xlu0 %4361
    %v4364 = vrot.slane %v4004, 3
    %v4365 = vrot.slane %v4005, 2
    %v4366 = vsel %vm4359, %v4365, %v4364
    %4367 = vrot.lane.b32.xlu0 %v4366, 64
    %v4368 = vpop.permute.xlu0 %4367
    %v4370 = vsel %vm645, %v4362, %v4368
    %v4373 = vunpack.c.l.s4 1966171168
    %v4374 = vunpack.c.0.s8 %v4373
    %v4375 = vlaneseq
    %v4376 = vshrl.u32 %v4375, 7
    %v4377 = vsub.s32 %v4374, %v4376
    %v4378 = vrot.slane %v4370, %v4377
    %v4379 = vcombine.high %v4378, %v4378
    %v4381 = vunpack.c.l.s4 1966171168
    %v4382 = vunpack.c.0.s8 %v4381
    %v4383 = vlaneseq
    %v4384 = vshrl.u32 %v4383, 7
    %v4385 = vsub.s32 %v4382, %v4384
    %v4386 = vrot.slane %v4378, %v4385
    %v4388 = vunpack.c.l.s4 1966171168
    %v4389 = vunpack.c.0.s8 %v4388
    %v4390 = vlaneseq
    %v4391 = vshrl.u32 %v4390, 7
    %v4392 = vsub.s32 %v4389, %v4391
    %v4393 = vrot.slane %v4379, %v4392
    %v4394 = vcombine.high %v4386, %v4386
    %v4395 = vcombine.high %v4393, %v4393
    %v4396 = vrot.slane %v3725, 7
    %vm4397 = vcmask 1044484
    %v4398 = vsel %vm4397, %v4396, %v3724
    %4399 = vrot.lane.b32.xlu0 %v4398, 64
    %v4400 = vpop.permute.xlu0 %4399
    %v4402 = vrot.slane %v3864, 1
    %v4403 = vsel %vm4397, %v3865, %v4402
    %4404 = vrot.lane.b32.xlu0 %v4403, 64
    %v4405 = vpop.permute.xlu0 %4404
    %v4407 = vsel %vm645, %v4400, %v4405
    %v4409 = vcombine.high %v4407, %v4407
    %v4411 = vunpack.c.l.s4 1966171168
    %v4412 = vunpack.c.0.s8 %v4411
    %v4413 = vlaneseq
    %v4414 = vshrl.u32 %v4413, 7
    %v4415 = vsub.s32 %v4412, %v4414
    %v4416 = vrot.slane %v4407, %v4415
    %v4418 = vunpack.c.l.s4 1966171168
    %v4419 = vunpack.c.0.s8 %v4418
    %v4420 = vlaneseq
    %v4421 = vshrl.u32 %v4420, 7
    %v4422 = vsub.s32 %v4419, %v4421
    %v4423 = vrot.slane %v4409, %v4422
    %v4424 = vcombine.high %v4416, %v4416
    %v4426 = vunpack.c.l.s4 1966171168
    %v4427 = vunpack.c.0.s8 %v4426
    %v4428 = vlaneseq
    %v4429 = vshrl.u32 %v4428, 7
    %v4430 = vsub.s32 %v4427, %v4429
    %v4431 = vrot.slane %v4423, %v4430
    %v4433 = vunpack.c.l.s4 1966171168
    %v4434 = vunpack.c.0.s8 %v4433
    %v4435 = vlaneseq
    %v4436 = vshrl.u32 %v4435, 7
    %v4437 = vsub.s32 %v4434, %v4436
    %v4438 = vrot.slane %v4424, %v4437
    %v4439 = vcombine.high %v4438, %v4438
    %v4440 = vrot.slane %v3865, 7
    %vm4441 = vcmask 1045509
    %v4442 = vsel %vm4441, %v4440, %v3864
    %4443 = vrot.lane.b32.xlu0 %v4442, 64
    %v4444 = vpop.permute.xlu0 %4443
    %v4446 = vrot.slane %v3724, 7
    %v4447 = vrot.slane %v3725, 6
    %v4448 = vsel %vm4441, %v4447, %v4446
    %4449 = vrot.lane.b32.xlu0 %v4448, 64
    %v4450 = vpop.permute.xlu0 %4449
    %v4452 = vsel %vm645, %v4444, %v4450
    %v4454 = vcombine.high %v4452, %v4452
    %v4456 = vunpack.c.l.s4 1966171168
    %v4457 = vunpack.c.0.s8 %v4456
    %v4458 = vlaneseq
    %v4459 = vshrl.u32 %v4458, 7
    %v4460 = vsub.s32 %v4457, %v4459
    %v4461 = vrot.slane %v4454, %v4460
    %v4462 = vcombine.high %v4461, %v4461
    %v4464 = vunpack.c.l.s4 1966171168
    %v4465 = vunpack.c.0.s8 %v4464
    %v4466 = vlaneseq
    %v4467 = vshrl.u32 %v4466, 7
    %v4468 = vsub.s32 %v4465, %v4467
    %v4469 = vrot.slane %v4461, %v4468
    %v4471 = vunpack.c.l.s4 1966171168
    %v4472 = vunpack.c.0.s8 %v4471
    %v4473 = vlaneseq
    %v4474 = vshrl.u32 %v4473, 7
    %v4475 = vsub.s32 %v4472, %v4474
    %v4476 = vrot.slane %v4462, %v4475
    %v4477 = vrot.slane %v4005, 7
    %vm4478 = vcmask 1046534
    %v4479 = vsel %vm4478, %v4477, %v4004
    %4480 = vrot.lane.b32.xlu0 %v4479, 64
    %v4481 = vpop.permute.xlu0 %4480
    %v4483 = vrot.slane %v3584, 5
    %v4484 = vrot.slane %v3585, 4
    %v4485 = vsel %vm4478, %v4484, %v4483
    %4486 = vrot.lane.b32.xlu0 %v4485, 64
    %v4487 = vpop.permute.xlu0 %4486
    %v4489 = vsel %vm645, %v4481, %v4487
    %v4491 = vcombine.high %v4489, %v4489
    %v4493 = vunpack.c.l.s4 1966171168
    %v4494 = vunpack.c.0.s8 %v4493
    %v4495 = vlaneseq
    %v4496 = vshrl.u32 %v4495, 7
    %v4497 = vsub.s32 %v4494, %v4496
    %v4498 = vrot.slane %v4491, %v4497
    %v4499 = vcombine.high %v4498, %v4498
    %v4501 = vunpack.c.l.s4 1966171168
    %v4502 = vunpack.c.0.s8 %v4501
    %v4503 = vlaneseq
    %v4504 = vshrl.u32 %v4503, 7
    %v4505 = vsub.s32 %v4502, %v4504
    %v4506 = vrot.slane %v4498, %v4505
    %v4508 = vunpack.c.l.s4 1966171168
    %v4509 = vunpack.c.0.s8 %v4508
    %v4510 = vlaneseq
    %v4511 = vshrl.u32 %v4510, 7
    %v4512 = vsub.s32 %v4509, %v4511
    %v4513 = vrot.slane %v4499, %v4512
    %v4514 = vcombine.high %v4506, %v4506
    %v4515 = vrot.slane %v4145, 7
    %vm4516 = vcmask 1047559
    %v4517 = vsel %vm4516, %v4515, %v4144
    %4518 = vrot.lane.b32.xlu0 %v4517, 64
    %v4519 = vpop.permute.xlu0 %4518
    %v4521 = vrot.slane %v3445, 3
    %v4522 = vrot.slane %v3446, 2
    %v4523 = vsel %vm4516, %v4522, %v4521
    %4524 = vrot.lane.b32.xlu0 %v4523, 64
    %v4525 = vpop.permute.xlu0 %4524
    %v4527 = vsel %vm645, %v4519, %v4525
    %v4529 = vcombine.high %v4527, %v4527
    %v4531 = vunpack.c.l.s4 1966171168
    %v4532 = vunpack.c.0.s8 %v4531
    %v4533 = vlaneseq
    %v4534 = vshrl.u32 %v4533, 7
    %v4535 = vsub.s32 %v4532, %v4534
    %v4536 = vrot.slane %v4529, %v4535
    %v4537 = vcombine.high %v4536, %v4536
    %v4539 = vunpack.c.l.s4 1966171168
    %v4540 = vunpack.c.0.s8 %v4539
    %v4541 = vlaneseq
    %v4542 = vshrl.u32 %v4541, 7
    %v4543 = vsub.s32 %v4540, %v4542
    %v4544 = vrot.slane %v4536, %v4543
    %v4546 = vunpack.c.l.s4 1966171168
    %v4547 = vunpack.c.0.s8 %v4546
    %v4548 = vlaneseq
    %v4549 = vshrl.u32 %v4548, 7
    %v4550 = vsub.s32 %v4547, %v4549
    %v4551 = vrot.slane %v4537, %v4550
    %v4552 = vcombine.high %v4544, %v4544
    %v4553 = vcombine.high %v4551, %v4551
    %v4554 = vrot.slane %v4285, 7
    %4555 = vrot.lane.b32.xlu0 %v4284, 64
    %v4556 = vpop.permute.xlu0 %4555
    %4557 = vrot.lane.b32.xlu0 %v4554, 64
    %v4558 = vpop.permute.xlu0 %4557
    %v4561 = vrot.slane %v3306, 1
    %4562 = vrot.lane.b32.xlu0 %v4561, 64
    %v4563 = vpop.permute.xlu0 %4562
    %4564 = vrot.lane.b32.xlu0 %v3307, 64
    %v4565 = vpop.permute.xlu0 %4564
    %v4568 = vsel %vm645, %v4556, %v4563
    %v4569 = vsel %vm645, %v4558, %v4565
    %v4572 = vcombine.high %v4568, %v4568
    %v4574 = vunpack.c.l.s4 1966171168
    %v4575 = vunpack.c.0.s8 %v4574
    %v4576 = vlaneseq
    %v4577 = vshrl.u32 %v4576, 7
    %v4578 = vsub.s32 %v4575, %v4577
    %v4579 = vrot.slane %v4572, %v4578
    %v4580 = vcombine.high %v4579, %v4579
    %v4582 = vunpack.c.l.s4 1966171168
    %v4583 = vunpack.c.0.s8 %v4582
    %v4584 = vlaneseq
    %v4585 = vshrl.u32 %v4584, 7
    %v4586 = vsub.s32 %v4583, %v4585
    %v4587 = vrot.slane %v4580, %v4586
    %v4588 = vcombine.high %v4587, %v4587
    %v4590 = vunpack.c.l.s4 1966171168
    %v4591 = vunpack.c.0.s8 %v4590
    %v4592 = vlaneseq
    %v4593 = vshrl.u32 %v4592, 7
    %v4594 = vsub.s32 %v4591, %v4593
    %v4595 = vrot.slane %v4569, %v4594
    %v4597 = vunpack.c.l.s4 1966171168
    %v4598 = vunpack.c.0.s8 %v4597
    %v4599 = vlaneseq
    %v4600 = vshrl.u32 %v4599, 7
    %v4601 = vsub.s32 %v4598, %v4600
    %v4602 = vrot.slane %v4595, %v4601
    %v4603 = vlaneseq
    %v4604 = vshrl.u32 %v4603, 7
    %v4605 = vsub.s32 0, %v4604
    %v4606 = vrot.slane %v4356, %v4605
    %v4607 = vlaneseq
    %v4608 = vshrl.u32 %v4607, 7
    %v4609 = vsub.s32 0, %v4608
    %v4610 = vrot.slane %v4357, %v4609
    %v4613 = vlaneseq
    %v4614 = vshrl.u32 %v4613, 7
    %v4615 = vsub.s32 0, %v4614
    %v4616 = vrot.slane %v4394, %v4615
    %v4617 = vlaneseq
    %v4618 = vshrl.u32 %v4617, 7
    %v4619 = vsub.s32 0, %v4618
    %v4620 = vrot.slane %v4395, %v4619
    %v4623 = vlaneseq
    %v4624 = vshrl.u32 %v4623, 7
    %v4625 = vsub.s32 0, %v4624
    %v4626 = vrot.slane %v4439, %v4625
    %v4627 = vlaneseq
    %v4628 = vshrl.u32 %v4627, 7
    %v4629 = vsub.s32 0, %v4628
    %v4630 = vrot.slane %v4431, %v4629
    %v4633 = vlaneseq
    %v4634 = vshrl.u32 %v4633, 7
    %v4635 = vsub.s32 0, %v4634
    %v4636 = vrot.slane %v4469, %v4635
    %v4637 = vlaneseq
    %v4638 = vshrl.u32 %v4637, 7
    %v4639 = vsub.s32 0, %v4638
    %v4640 = vrot.slane %v4476, %v4639
    %v4643 = vlaneseq
    %v4644 = vshrl.u32 %v4643, 7
    %v4645 = vsub.s32 0, %v4644
    %v4646 = vrot.slane %v4513, %v4645
    %v4647 = vlaneseq
    %v4648 = vshrl.u32 %v4647, 7
    %v4649 = vsub.s32 0, %v4648
    %v4650 = vrot.slane %v4514, %v4649
    %v4653 = vlaneseq
    %v4654 = vshrl.u32 %v4653, 7
    %v4655 = vsub.s32 0, %v4654
    %v4656 = vrot.slane %v4552, %v4655
    %v4657 = vlaneseq
    %v4658 = vshrl.u32 %v4657, 7
    %v4659 = vsub.s32 0, %v4658
    %v4660 = vrot.slane %v4553, %v4659
    %v4663 = vlaneseq
    %v4664 = vshrl.u32 %v4663, 7
    %v4665 = vsub.s32 0, %v4664
    %v4666 = vrot.slane %v4588, %v4665
    %v4667 = vlaneseq
    %v4668 = vshrl.u32 %v4667, 7
    %v4669 = vsub.s32 0, %v4668
    %v4670 = vrot.slane %v4602, %v4669
    %v4673 = vsel %vm3092, %v4311, %v4606
    %v4674 = vsel %vm3092, %v4318, %v4610
    %v4675 = vsel %vm3095, %v4673, %v4616
    %v4676 = vsel %vm3095, %v4674, %v4620
    %v4677 = vsel %vm3098, %v4675, %v4626
    %v4678 = vsel %vm3098, %v4676, %v4630
    %v4679 = vsel %vm3101, %v4677, %v4636
    %v4680 = vsel %vm3101, %v4678, %v4640
    %v4681 = vsel %vm3104, %v4679, %v4646
    %v4682 = vsel %vm3104, %v4680, %v4650
    %v4683 = vsel %vm3107, %v4681, %v4656
    %v4684 = vsel %vm3107, %v4682, %v4660
    %v4685 = vsel %vm3110, %v4683, %v4666
    %v4686 = vsel %vm3110, %v4684, %v4670
    %v4687 = vld [vmem:[%s47] sm:$0xff]
    %v4688 = vld [vmem:[%s47 + $0x8] sm:$0xff]
    %v4689 = vld [vmem:[%s47 + $0x10] sm:$0xff]
    %v4690 = vld [vmem:[%s47 + $0x18] sm:$0xff]
    %v4691 = vld [vmem:[%s51] sm:$0x1]
    %v4693 = vlaneseq
    %v4694 = vshrl.u32 %v4693, 7
    %v4695 = vsub.s32 0, %v4694
    %v4696 = vrot.slane %v4691, %v4695
    %v4699 = vsel %vm462, %v4685, 0
    %v4702 = vsel %vm462, %v4686, 0
    %4704 = vmatprep.subr.mxu0 0.0
    %4705 = vmatpush1.msra.mxu0 %v4687
    %4706 = vmatprep.subr.mxu0 0.0
    %4707 = vmatpush1.msra.mxu0 %v4688
    %4708 = vmatprep.subr.mxu0 0.0
    %4709 = vmatpush1.msra.mxu0 %v4689
    %4710 = vmatprep.subr.mxu0 0.0
    %4711 = vmatpush1.msra.mxu0 %v4690
    %4712 = vmatprep.subr.mxu0 0.0
    %4713 = vmatpush1.msra.mxu0 0.0
    %4714 = vmatprep.subr.mxu0 0.0
    %4715 = vmatpush1.msra.mxu0 0.0
    %4716 = vmatprep.subr.mxu0 0.0
    %4717 = vmatpush1.msra.mxu0 0.0
    %4718 = vmatprep.subr.mxu0 0.0
    %4719 = vmatpush1.msra.mxu0 0.0
    %4720 = vmatprep.subr.mxu0 0.0
    %4721 = vmatpush1.msra.mxu0 0.0
    %4722 = vmatprep.subr.mxu0 0.0
    %4723 = vmatpush1.msra.mxu0 0.0
    %4724 = vmatprep.subr.mxu0 0.0
    %4725 = vmatpush1.msra.mxu0 0.0
    %4726 = vmatprep.subr.mxu0 0.0
    %4727 = vmatpush1.msra.mxu0 0.0
    %4728 = vmatprep.subr.mxu0 0.0
    %4729 = vmatpush1.msra.mxu0 0.0
    %4730 = vmatprep.subr.mxu0 0.0
    %4731 = vmatpush1.msra.mxu0 0.0
    %4732 = vmatprep.subr.mxu0 0.0
    %4733 = vmatpush1.msra.mxu0 0.0
    %4734 = vmatprep.subr.mxu0 0.0
    %4735 = vmatpush1.msra.mxu0 0.0
    %4736 = vmatprep.subr.mxu0 0.0
    %4737 = vmatpush1.msra.mxu0 0.0
    %4738 = vmatprep.subr.mxu0 0.0
    %4739 = vmatpush1.msra.mxu0 0.0
    %4740 = vmatprep.subr.mxu0 0.0
    %4741 = vmatpush1.msra.mxu0 0.0
    %4742 = vmatprep.subr.mxu0 0.0
    %4743 = vmatpush1.msra.mxu0 0.0
    %4744 = vmatprep.subr.mxu0 0.0
    %4745 = vmatpush1.msra.mxu0 0.0
    %4746 = vmatprep.subr.mxu0 0.0
    %4747 = vmatpush1.msra.mxu0 0.0
    %4748 = vmatprep.subr.mxu0 0.0
    %4749 = vmatpush1.msra.mxu0 0.0
    %4750 = vmatprep.subr.mxu0 0.0
    %4751 = vmatpush1.msra.mxu0 0.0
    %4752 = vmatprep.subr.mxu0 0.0
    %4753 = vmatpush1.msra.mxu0 0.0
    %4754 = vmatprep.subr.mxu0 0.0
    %4755 = vmatpush1.msra.mxu0 0.0
    %4756 = vmatprep.subr.mxu0 0.0
    %4757 = vmatpush1.msra.mxu0 0.0
    %4758 = vmatprep.subr.mxu0 0.0
    %4759 = vmatpush1.msra.mxu0 0.0
    %4760 = vmatprep.subr.mxu0 0.0
    %4761 = vmatpush1.msra.mxu0 0.0
    %4762 = vmatprep.subr.mxu0 0.0
    %4763 = vmatpush1.msra.mxu0 0.0
    %4764 = vmatprep.subr.mxu0 0.0
    %4765 = vmatpush1.msra.mxu0 0.0
    %4766 = vmatprep.subr.mxu0 0.0
    %4767 = vmatpush1.msra.mxu0 0.0
    %4768 = vmatprep.mubr.f32.mxu0 0.0
    %4769 = vmatmul.mubr.f32.gmra.mrb[0].mxu0 %v4699
    %v4770 = vpop.f32.mrb[0].mxu0
    %v4771 = vadd.f32 %v4696, %v4770
    %v4772 = vpop.f32.mrb[0].mxu0
    %4773 = vmatprep.mubr.f32.mxu0 0.0
    %4774 = vmatmul.mubr.f32.gmra.mrb[0].mxu0 %v4702
    %v4775 = vpop.f32.mrb[0].mxu0
    %v4776 = vadd.f32 %v4696, %v4775
    %v4777 = vpop.f32.mrb[0].mxu0
    %4778 = vdwg.mxu0
    %s4779 = scalar_lea.vmem %s47, 32
    %v4780 = vld [vmem:[%s4779] sm:$0xff]
    %v4781 = vld [vmem:[%s4779 + $0x8] sm:$0xff]
    %v4782 = vld [vmem:[%s4779 + $0x10] sm:$0xff]
    %v4783 = vld [vmem:[%s4779 + $0x18] sm:$0xff]
    %s4784 = scalar_lea.vmem %s51, 1
    %v4785 = vld [vmem:[%s4784] sm:$0x1]
    %v4787 = vlaneseq
    %v4788 = vshrl.u32 %v4787, 7
    %v4789 = vsub.s32 0, %v4788
    %v4790 = vrot.slane %v4785, %v4789
    %4792 = vmatprep.subr.mxu0 0.0
    %4793 = vmatpush1.msra.mxu0 %v4780
    %4794 = vmatprep.subr.mxu0 0.0
    %4795 = vmatpush1.msra.mxu0 %v4781
    %4796 = vmatprep.subr.mxu0 0.0
    %4797 = vmatpush1.msra.mxu0 %v4782
    %4798 = vmatprep.subr.mxu0 0.0
    %4799 = vmatpush1.msra.mxu0 %v4783
    %4800 = vmatprep.subr.mxu0 0.0
    %4801 = vmatpush1.msra.mxu0 0.0
    %4802 = vmatprep.subr.mxu0 0.0
    %4803 = vmatpush1.msra.mxu0 0.0
    %4804 = vmatprep.subr.mxu0 0.0
    %4805 = vmatpush1.msra.mxu0 0.0
    %4806 = vmatprep.subr.mxu0 0.0
    %4807 = vmatpush1.msra.mxu0 0.0
    %4808 = vmatprep.subr.mxu0 0.0
    %4809 = vmatpush1.msra.mxu0 0.0
    %4810 = vmatprep.subr.mxu0 0.0
    %4811 = vmatpush1.msra.mxu0 0.0
    %4812 = vmatprep.subr.mxu0 0.0
    %4813 = vmatpush1.msra.mxu0 0.0
    %4814 = vmatprep.subr.mxu0 0.0
    %4815 = vmatpush1.msra.mxu0 0.0
    %4816 = vmatprep.subr.mxu0 0.0
    %4817 = vmatpush1.msra.mxu0 0.0
    %4818 = vmatprep.subr.mxu0 0.0
    %4819 = vmatpush1.msra.mxu0 0.0
    %4820 = vmatprep.subr.mxu0 0.0
    %4821 = vmatpush1.msra.mxu0 0.0
    %4822 = vmatprep.subr.mxu0 0.0
    %4823 = vmatpush1.msra.mxu0 0.0
    %4824 = vmatprep.subr.mxu0 0.0
    %4825 = vmatpush1.msra.mxu0 0.0
    %4826 = vmatprep.subr.mxu0 0.0
    %4827 = vmatpush1.msra.mxu0 0.0
    %4828 = vmatprep.subr.mxu0 0.0
    %4829 = vmatpush1.msra.mxu0 0.0
    %4830 = vmatprep.subr.mxu0 0.0
    %4831 = vmatpush1.msra.mxu0 0.0
    %4832 = vmatprep.subr.mxu0 0.0
    %4833 = vmatpush1.msra.mxu0 0.0
    %4834 = vmatprep.subr.mxu0 0.0
    %4835 = vmatpush1.msra.mxu0 0.0
    %4836 = vmatprep.subr.mxu0 0.0
    %4837 = vmatpush1.msra.mxu0 0.0
    %4838 = vmatprep.subr.mxu0 0.0
    %4839 = vmatpush1.msra.mxu0 0.0
    %4840 = vmatprep.subr.mxu0 0.0
    %4841 = vmatpush1.msra.mxu0 0.0
    %4842 = vmatprep.subr.mxu0 0.0
    %4843 = vmatpush1.msra.mxu0 0.0
    %4844 = vmatprep.subr.mxu0 0.0
    %4845 = vmatpush1.msra.mxu0 0.0
    %4846 = vmatprep.subr.mxu0 0.0
    %4847 = vmatpush1.msra.mxu0 0.0
    %4848 = vmatprep.subr.mxu0 0.0
    %4849 = vmatpush1.msra.mxu0 0.0
    %4850 = vmatprep.subr.mxu0 0.0
    %4851 = vmatpush1.msra.mxu0 0.0
    %4852 = vmatprep.subr.mxu0 0.0
    %4853 = vmatpush1.msra.mxu0 0.0
    %4854 = vmatprep.subr.mxu0 0.0
    %4855 = vmatpush1.msra.mxu0 0.0
    %4856 = vmatprep.mubr.f32.mxu0 0.0
    %4857 = vmatmul.mubr.f32.gmra.mrb[0].mxu0 %v4699
    %v4858 = vpop.f32.mrb[0].mxu0
    %v4859 = vadd.f32 %v4790, %v4858
    %v4860 = vpop.f32.mrb[0].mxu0
    %4861 = vmatprep.mubr.f32.mxu0 0.0
    %4862 = vmatmul.mubr.f32.gmra.mrb[0].mxu0 %v4702
    %v4863 = vpop.f32.mrb[0].mxu0
    %v4864 = vadd.f32 %v4790, %v4863
    %v4865 = vpop.f32.mrb[0].mxu0
    %4866 = vdwg.mxu0
    %v4869 = vrot.slane %v4859, 7
    %v4870 = vrot.slane %v4864, 7
    %v4873 = vrot.slane %v4859, 5
    %v4874 = vrot.slane %v4864, 5
    %v4877 = vrot.slane %v4859, 3
    %v4878 = vrot.slane %v4864, 3
    %v4881 = vrot.slane %v4859, 1
    %v4882 = vrot.slane %v4864, 1
    %v4885 = vsel %vm3092, %v4869, %v4873
    %v4886 = vsel %vm3092, %v4870, %v4874
    %v4887 = vsel %vm3095, %v4885, %v4877
    %v4888 = vsel %vm3095, %v4886, %v4878
    %v4889 = vsel %vm3098, %v4887, %v4881
    %v4890 = vsel %vm3098, %v4888, %v4882
    %v4891 = vsel %vm3101, %v4889, %v4869
    %v4892 = vsel %vm3101, %v4890, %v4870
    %v4893 = vsel %vm3104, %v4891, %v4873
    %v4894 = vsel %vm3104, %v4892, %v4874
    %v4895 = vsel %vm3107, %v4893, %v4877
    %v4896 = vsel %vm3107, %v4894, %v4878
    %v4897 = vsel %vm3110, %v4895, %v4881
    %v4898 = vsel %vm3110, %v4896, %v4882
    %4901 = vrot.lane.b32.xlu0 %v4897, 16
    %v4902 = vpop.permute.xlu0 %4901
    %4903 = vrot.lane.b32.xlu0 %v4898, 16
    %v4904 = vpop.permute.xlu0 %4903
    %4909 = vrot.lane.b32.xlu0 %v4771, 16
    %v4910 = vpop.permute.xlu0 %4909
    %4911 = vrot.lane.b32.xlu0 %v4776, 16
    %v4912 = vpop.permute.xlu0 %4911
    %4915 = vrot.lane.b32.xlu0 %v4897, 32
    %v4916 = vpop.permute.xlu0 %4915
    %4917 = vrot.lane.b32.xlu0 %v4898, 32
    %v4918 = vpop.permute.xlu0 %4917
    %4921 = vrot.lane.b32.xlu0 %v4771, 32
    %v4922 = vpop.permute.xlu0 %4921
    %4923 = vrot.lane.b32.xlu0 %v4776, 32
    %v4924 = vpop.permute.xlu0 %4923
    %4927 = vrot.lane.b32.xlu0 %v4897, 48
    %v4928 = vpop.permute.xlu0 %4927
    %4929 = vrot.lane.b32.xlu0 %v4898, 48
    %v4930 = vpop.permute.xlu0 %4929
    %4933 = vrot.lane.b32.xlu0 %v4771, 48
    %v4934 = vpop.permute.xlu0 %4933
    %4935 = vrot.lane.b32.xlu0 %v4776, 48
    %v4936 = vpop.permute.xlu0 %4935
    %4939 = vrot.lane.b32.xlu0 %v4897, 64
    %v4940 = vpop.permute.xlu0 %4939
    %4941 = vrot.lane.b32.xlu0 %v4898, 64
    %v4942 = vpop.permute.xlu0 %4941
    %v4945 = vsel %vm645, %v4771, %v4902
    %v4946 = vsel %vm645, %v4776, %v4904
    %v4947 = vsel %vm462, %v4945, %v4910
    %v4948 = vsel %vm462, %v4946, %v4912
    %v4949 = vsel %vm3163, %v4947, %v4916
    %v4950 = vsel %vm3163, %v4948, %v4918
    %v4951 = vsel %vm368, %v4949, %v4922
    %v4952 = vsel %vm368, %v4950, %v4924
    %v4953 = vsel %vm3168, %v4951, %v4928
    %v4954 = vsel %vm3168, %v4952, %v4930
    %v4955 = vsel %vm3171, %v4953, %v4934
    %v4956 = vsel %vm3171, %v4954, %v4936
    %v4957 = vsel %vm3174, %v4955, %v4940
    %v4958 = vsel %vm3174, %v4956, %v4942
    %v4959 = vld [vmem:[#allocation22] sm:$0xff]
    %v4960 = vld [vmem:[#allocation22 + $0x8] sm:$0xff]
    %v4961 = vld [vmem:[#allocation22 + $0x10] sm:$0xff]
    %v4962 = vld [vmem:[#allocation22 + $0x18] sm:$0xff]
    %4963 = vmatprep.subr.mxu0 0.0
    %4964 = vmatpush1.msra.mxu0 %v4959
    %4965 = vmatprep.subr.mxu0 0.0
    %4966 = vmatpush1.msra.mxu0 %v4960
    %4967 = vmatprep.subr.mxu0 0.0
    %4968 = vmatpush1.msra.mxu0 %v4961
    %4969 = vmatprep.subr.mxu0 0.0
    %4970 = vmatpush1.msra.mxu0 %v4962
    %4971 = vmatprep.subr.mxu0 0.0
    %4972 = vmatpush1.msra.mxu0 0.0
    %4973 = vmatprep.subr.mxu0 0.0
    %4974 = vmatpush1.msra.mxu0 0.0
    %4975 = vmatprep.subr.mxu0 0.0
    %4976 = vmatpush1.msra.mxu0 0.0
    %4977 = vmatprep.subr.mxu0 0.0
    %4978 = vmatpush1.msra.mxu0 0.0
    %4979 = vmatprep.subr.mxu0 0.0
    %4980 = vmatpush1.msra.mxu0 0.0
    %4981 = vmatprep.subr.mxu0 0.0
    %4982 = vmatpush1.msra.mxu0 0.0
    %4983 = vmatprep.subr.mxu0 0.0
    %4984 = vmatpush1.msra.mxu0 0.0
    %4985 = vmatprep.subr.mxu0 0.0
    %4986 = vmatpush1.msra.mxu0 0.0
    %4987 = vmatprep.subr.mxu0 0.0
    %4988 = vmatpush1.msra.mxu0 0.0
    %4989 = vmatprep.subr.mxu0 0.0
    %4990 = vmatpush1.msra.mxu0 0.0
    %4991 = vmatprep.subr.mxu0 0.0
    %4992 = vmatpush1.msra.mxu0 0.0
    %4993 = vmatprep.subr.mxu0 0.0
    %4994 = vmatpush1.msra.mxu0 0.0
    %4995 = vmatprep.subr.mxu0 0.0
    %4996 = vmatpush1.msra.mxu0 0.0
    %4997 = vmatprep.subr.mxu0 0.0
    %4998 = vmatpush1.msra.mxu0 0.0
    %4999 = vmatprep.subr.mxu0 0.0
    %5000 = vmatpush1.msra.mxu0 0.0
    %5001 = vmatprep.subr.mxu0 0.0
    %5002 = vmatpush1.msra.mxu0 0.0
    %5003 = vmatprep.subr.mxu0 0.0
    %5004 = vmatpush1.msra.mxu0 0.0
    %5005 = vmatprep.subr.mxu0 0.0
    %5006 = vmatpush1.msra.mxu0 0.0
    %5007 = vmatprep.subr.mxu0 0.0
    %5008 = vmatpush1.msra.mxu0 0.0
    %5009 = vmatprep.subr.mxu0 0.0
    %5010 = vmatpush1.msra.mxu0 0.0
    %5011 = vmatprep.subr.mxu0 0.0
    %5012 = vmatpush1.msra.mxu0 0.0
    %5013 = vmatprep.subr.mxu0 0.0
    %5014 = vmatpush1.msra.mxu0 0.0
    %5015 = vmatprep.subr.mxu0 0.0
    %5016 = vmatpush1.msra.mxu0 0.0
    %5017 = vmatprep.subr.mxu0 0.0
    %5018 = vmatpush1.msra.mxu0 0.0
    %5019 = vmatprep.subr.mxu0 0.0
    %5020 = vmatpush1.msra.mxu0 0.0
    %5021 = vmatprep.subr.mxu0 0.0
    %5022 = vmatpush1.msra.mxu0 0.0
    %5023 = vmatprep.subr.mxu0 0.0
    %5024 = vmatpush1.msra.mxu0 0.0
    %5025 = vmatprep.subr.mxu0 0.0
    %5026 = vmatpush1.msra.mxu0 0.0
    %5027 = vmatprep.mubr.f32.mxu0 0.0
    %5028 = vmatmul.mubr.f32.gmra.mrb[0].mxu0 %v3182
    %v5029 = vpop.f32.mrb[0].mxu0
    %v5030 = vadd.f32 0.0, %v5029
    %v5031 = vpop.f32.mrb[0].mxu0
    %5032 = vdwg.mxu0
    %v5034 = vrot.slane %v5030, 1
    %v5037 = vadd.f32 %v4957, %v5030
    %v5038 = vadd.f32 %v4958, %v5034
    %v5039 = vxor.u32 %v5037, 2147483648
    %v5040 = vxor.u32 %v5038, 2147483648
    %v5041 = vmul.f32 %v5039, 1.442695
    %v5042 = vpow.pop %v5041
    %v5043 = vmul.f32 %v5040, 1.442695
    %v5044 = vpow.pop %v5043
    %v5045 = vadd.f32 %v5042, 1.0
    %v5046 = vadd.f32 %v5044, 1.0
    %v5047 = vrcp.pop %v5045
    %v5048 = vmul.f32 1.0, %v5047
    %v5049 = vrcp.pop %v5046
    %v5050 = vmul.f32 1.0, %v5049
    %v5051 = vtanh.pop %v5037
    %v5052 = vtanh.pop %v5038
    %v5053 = vmul.f32 %v5048, 0.0
    %v5054 = vmul.f32 %v5050, 0.0
    %5057 = vrot.lane.b32.xlu0 %v5051, 32
    %v5058 = vpop.permute.xlu0 %5057
    %5059 = vrot.lane.b32.xlu0 %v5052, 32
    %v5060 = vpop.permute.xlu0 %5059
    %v5063 = vmul.f32 %v5048, %v5058
    %v5064 = vmul.f32 %v5050, %v5060
    %5067 = vrot.lane.b32.xlu0 %v5063, 32
    %v5068 = vpop.permute.xlu0 %5067
    %5069 = vrot.lane.b32.xlu0 %v5064, 32
    %v5070 = vpop.permute.xlu0 %5069
    %v5073 = vadd.f32 %v5053, %v5068
    %v5074 = vadd.f32 %v5054, %v5070
    %v5075 = vtanh.pop %v5073
    %v5076 = vtanh.pop %v5074
    %5079 = vrot.lane.b32.xlu0 %v5075, 32
    %v5080 = vpop.permute.xlu0 %5079
    %5081 = vrot.lane.b32.xlu0 %v5076, 32
    %v5082 = vpop.permute.xlu0 %5081
    %v5085 = vmul.f32 %v5048, %v5080
    %v5086 = vmul.f32 %v5050, %v5082
    %v5089 = vrot.slane %v5086, 7
    %v5090 = vsel %vm3311, %v5089, %v5085
    %5091 = vrot.lane.b32.xlu0 %v5090, 64
    %v5092 = vpop.permute.xlu0 %5091
    %v5093 = vsel %vm462, %v5092, 0
    %5095 = vmatprep.subr.mxu0 0.0
    %5096 = vmatpush1.msra.mxu0 %v4959
    %5097 = vmatprep.subr.mxu0 0.0
    %5098 = vmatpush1.msra.mxu0 %v4960
    %5099 = vmatprep.subr.mxu0 0.0
    %5100 = vmatpush1.msra.mxu0 %v4961
    %5101 = vmatprep.subr.mxu0 0.0
    %5102 = vmatpush1.msra.mxu0 %v4962
    %5103 = vmatprep.subr.mxu0 0.0
    %5104 = vmatpush1.msra.mxu0 0.0
    %5105 = vmatprep.subr.mxu0 0.0
    %5106 = vmatpush1.msra.mxu0 0.0
    %5107 = vmatprep.subr.mxu0 0.0
    %5108 = vmatpush1.msra.mxu0 0.0
    %5109 = vmatprep.subr.mxu0 0.0
    %5110 = vmatpush1.msra.mxu0 0.0
    %5111 = vmatprep.subr.mxu0 0.0
    %5112 = vmatpush1.msra.mxu0 0.0
    %5113 = vmatprep.subr.mxu0 0.0
    %5114 = vmatpush1.msra.mxu0 0.0
    %5115 = vmatprep.subr.mxu0 0.0
    %5116 = vmatpush1.msra.mxu0 0.0
    %5117 = vmatprep.subr.mxu0 0.0
    %5118 = vmatpush1.msra.mxu0 0.0
    %5119 = vmatprep.subr.mxu0 0.0
    %5120 = vmatpush1.msra.mxu0 0.0
    %5121 = vmatprep.subr.mxu0 0.0
    %5122 = vmatpush1.msra.mxu0 0.0
    %5123 = vmatprep.subr.mxu0 0.0
    %5124 = vmatpush1.msra.mxu0 0.0
    %5125 = vmatprep.subr.mxu0 0.0
    %5126 = vmatpush1.msra.mxu0 0.0
    %5127 = vmatprep.subr.mxu0 0.0
    %5128 = vmatpush1.msra.mxu0 0.0
    %5129 = vmatprep.subr.mxu0 0.0
    %5130 = vmatpush1.msra.mxu0 0.0
    %5131 = vmatprep.subr.mxu0 0.0
    %5132 = vmatpush1.msra.mxu0 0.0
    %5133 = vmatprep.subr.mxu0 0.0
    %5134 = vmatpush1.msra.mxu0 0.0
    %5135 = vmatprep.subr.mxu0 0.0
    %5136 = vmatpush1.msra.mxu0 0.0
    %5137 = vmatprep.subr.mxu0 0.0
    %5138 = vmatpush1.msra.mxu0 0.0
    %5139 = vmatprep.subr.mxu0 0.0
    %5140 = vmatpush1.msra.mxu0 0.0
    %5141 = vmatprep.subr.mxu0 0.0
    %5142 = vmatpush1.msra.mxu0 0.0
    %5143 = vmatprep.subr.mxu0 0.0
    %5144 = vmatpush1.msra.mxu0 0.0
    %5145 = vmatprep.subr.mxu0 0.0
    %5146 = vmatpush1.msra.mxu0 0.0
    %5147 = vmatprep.subr.mxu0 0.0
    %5148 = vmatpush1.msra.mxu0 0.0
    %5149 = vmatprep.subr.mxu0 0.0
    %5150 = vmatpush1.msra.mxu0 0.0
    %5151 = vmatprep.subr.mxu0 0.0
    %5152 = vmatpush1.msra.mxu0 0.0
    %5153 = vmatprep.subr.mxu0 0.0
    %5154 = vmatpush1.msra.mxu0 0.0
    %5155 = vmatprep.subr.mxu0 0.0
    %5156 = vmatpush1.msra.mxu0 0.0
    %5157 = vmatprep.subr.mxu0 0.0
    %5158 = vmatpush1.msra.mxu0 0.0
    %5159 = vmatprep.mubr.f32.mxu0 0.0
    %5160 = vmatmul.mubr.f32.gmra.mrb[0].mxu0 %v5093
    %v5161 = vpop.f32.mrb[0].mxu0
    %v5162 = vadd.f32 0.0, %v5161
    %v5163 = vpop.f32.mrb[0].mxu0
    %5164 = vdwg.mxu0
    %v5166 = vrot.slane %v5162, 7
    %v5169 = vadd.f32 %v4957, %v5166
    %v5170 = vadd.f32 %v4958, %v5162
    %v5171 = vxor.u32 %v5169, 2147483648
    %v5172 = vxor.u32 %v5170, 2147483648
    %v5173 = vmul.f32 %v5171, 1.442695
    %v5174 = vpow.pop %v5173
    %v5175 = vmul.f32 %v5172, 1.442695
    %v5176 = vpow.pop %v5175
    %v5177 = vadd.f32 %v5174, 1.0
    %v5178 = vadd.f32 %v5176, 1.0
    %v5179 = vrcp.pop %v5177
    %v5180 = vmul.f32 1.0, %v5179
    %v5181 = vrcp.pop %v5178
    %v5182 = vmul.f32 1.0, %v5181
    %v5183 = vtanh.pop %v5169
    %v5184 = vtanh.pop %v5170
    %v5187 = vrot.slane %v5073, 7
    %v5188 = vrot.slane %v5074, 7
    %v5191 = vmul.f32 %v5180, %v5187
    %v5192 = vmul.f32 %v5182, %v5188
    %5195 = vrot.lane.b32.xlu0 %v5183, 32
    %v5196 = vpop.permute.xlu0 %5195
    %5197 = vrot.lane.b32.xlu0 %v5184, 32
    %v5198 = vpop.permute.xlu0 %5197
    %v5201 = vmul.f32 %v5180, %v5196
    %v5202 = vmul.f32 %v5182, %v5198
    %5205 = vrot.lane.b32.xlu0 %v5201, 32
    %v5206 = vpop.permute.xlu0 %5205
    %5207 = vrot.lane.b32.xlu0 %v5202, 32
    %v5208 = vpop.permute.xlu0 %5207
    %v5211 = vadd.f32 %v5191, %v5206
    %v5212 = vadd.f32 %v5192, %v5208
    %v5213 = vtanh.pop %v5211
    %v5214 = vtanh.pop %v5212
    %5217 = vrot.lane.b32.xlu0 %v5213, 32
    %v5218 = vpop.permute.xlu0 %5217
    %5219 = vrot.lane.b32.xlu0 %v5214, 32
    %v5220 = vpop.permute.xlu0 %5219
    %v5223 = vmul.f32 %v5180, %v5218
    %v5224 = vmul.f32 %v5182, %v5220
    %v5227 = vrot.slane %v5223, 1
    %v5228 = vsel %vm3311, %v5224, %v5227
    %5229 = vrot.lane.b32.xlu0 %v5228, 64
    %v5230 = vpop.permute.xlu0 %5229
    %v5231 = vsel %vm462, %v5230, 0
    %5233 = vmatprep.subr.mxu0 0.0
    %5234 = vmatpush1.msra.mxu0 %v4959
    %5235 = vmatprep.subr.mxu0 0.0
    %5236 = vmatpush1.msra.mxu0 %v4960
    %5237 = vmatprep.subr.mxu0 0.0
    %5238 = vmatpush1.msra.mxu0 %v4961
    %5239 = vmatprep.subr.mxu0 0.0
    %5240 = vmatpush1.msra.mxu0 %v4962
    %5241 = vmatprep.subr.mxu0 0.0
    %5242 = vmatpush1.msra.mxu0 0.0
    %5243 = vmatprep.subr.mxu0 0.0
    %5244 = vmatpush1.msra.mxu0 0.0
    %5245 = vmatprep.subr.mxu0 0.0
    %5246 = vmatpush1.msra.mxu0 0.0
    %5247 = vmatprep.subr.mxu0 0.0
    %5248 = vmatpush1.msra.mxu0 0.0
    %5249 = vmatprep.subr.mxu0 0.0
    %5250 = vmatpush1.msra.mxu0 0.0
    %5251 = vmatprep.subr.mxu0 0.0
    %5252 = vmatpush1.msra.mxu0 0.0
    %5253 = vmatprep.subr.mxu0 0.0
    %5254 = vmatpush1.msra.mxu0 0.0
    %5255 = vmatprep.subr.mxu0 0.0
    %5256 = vmatpush1.msra.mxu0 0.0
    %5257 = vmatprep.subr.mxu0 0.0
    %5258 = vmatpush1.msra.mxu0 0.0
    %5259 = vmatprep.subr.mxu0 0.0
    %5260 = vmatpush1.msra.mxu0 0.0
    %5261 = vmatprep.subr.mxu0 0.0
    %5262 = vmatpush1.msra.mxu0 0.0
    %5263 = vmatprep.subr.mxu0 0.0
    %5264 = vmatpush1.msra.mxu0 0.0
    %5265 = vmatprep.subr.mxu0 0.0
    %5266 = vmatpush1.msra.mxu0 0.0
    %5267 = vmatprep.subr.mxu0 0.0
    %5268 = vmatpush1.msra.mxu0 0.0
    %5269 = vmatprep.subr.mxu0 0.0
    %5270 = vmatpush1.msra.mxu0 0.0
    %5271 = vmatprep.subr.mxu0 0.0
    %5272 = vmatpush1.msra.mxu0 0.0
    %5273 = vmatprep.subr.mxu0 0.0
    %5274 = vmatpush1.msra.mxu0 0.0
    %5275 = vmatprep.subr.mxu0 0.0
    %5276 = vmatpush1.msra.mxu0 0.0
    %5277 = vmatprep.subr.mxu0 0.0
    %5278 = vmatpush1.msra.mxu0 0.0
    %5279 = vmatprep.subr.mxu0 0.0
    %5280 = vmatpush1.msra.mxu0 0.0
    %5281 = vmatprep.subr.mxu0 0.0
    %5282 = vmatpush1.msra.mxu0 0.0
    %5283 = vmatprep.subr.mxu0 0.0
    %5284 = vmatpush1.msra.mxu0 0.0
    %5285 = vmatprep.subr.mxu0 0.0
    %5286 = vmatpush1.msra.mxu0 0.0
    %5287 = vmatprep.subr.mxu0 0.0
    %5288 = vmatpush1.msra.mxu0 0.0
    %5289 = vmatprep.subr.mxu0 0.0
    %5290 = vmatpush1.msra.mxu0 0.0
    %5291 = vmatprep.subr.mxu0 0.0
    %5292 = vmatpush1.msra.mxu0 0.0
    %5293 = vmatprep.subr.mxu0 0.0
    %5294 = vmatpush1.msra.mxu0 0.0
    %5295 = vmatprep.subr.mxu0 0.0
    %5296 = vmatpush1.msra.mxu0 0.0
    %5297 = vmatprep.mubr.f32.mxu0 0.0
    %5298 = vmatmul.mubr.f32.gmra.mrb[0].mxu0 %v5231
    %v5299 = vpop.f32.mrb[0].mxu0
    %v5300 = vadd.f32 0.0, %v5299
    %v5301 = vpop.f32.mrb[0].mxu0
    %5302 = vdwg.mxu0
    %v5304 = vrot.slane %v5300, 6
    %v5305 = vrot.slane %v5300, 7
    %v5308 = vadd.f32 %v4957, %v5304
    %v5309 = vadd.f32 %v4958, %v5305
    %v5310 = vxor.u32 %v5308, 2147483648
    %v5311 = vxor.u32 %v5309, 2147483648
    %v5312 = vmul.f32 %v5310, 1.442695
    %v5313 = vpow.pop %v5312
    %v5314 = vmul.f32 %v5311, 1.442695
    %v5315 = vpow.pop %v5314
    %v5316 = vadd.f32 %v5313, 1.0
    %v5317 = vadd.f32 %v5315, 1.0
    %v5318 = vrcp.pop %v5316
    %v5319 = vmul.f32 1.0, %v5318
    %v5320 = vrcp.pop %v5317
    %v5321 = vmul.f32 1.0, %v5320
    %v5322 = vtanh.pop %v5308
    %v5323 = vtanh.pop %v5309
    %v5326 = vrot.slane %v5211, 7
    %v5327 = vrot.slane %v5212, 7
    %v5330 = vmul.f32 %v5319, %v5326
    %v5331 = vmul.f32 %v5321, %v5327
    %5334 = vrot.lane.b32.xlu0 %v5322, 32
    %v5335 = vpop.permute.xlu0 %5334
    %5336 = vrot.lane.b32.xlu0 %v5323, 32
    %v5337 = vpop.permute.xlu0 %5336
    %v5340 = vmul.f32 %v5319, %v5335
    %v5341 = vmul.f32 %v5321, %v5337
    %5344 = vrot.lane.b32.xlu0 %v5340, 32
    %v5345 = vpop.permute.xlu0 %5344
    %5346 = vrot.lane.b32.xlu0 %v5341, 32
    %v5347 = vpop.permute.xlu0 %5346
    %v5350 = vadd.f32 %v5330, %v5345
    %v5351 = vadd.f32 %v5331, %v5347
    %v5352 = vtanh.pop %v5350
    %v5353 = vtanh.pop %v5351
    %5356 = vrot.lane.b32.xlu0 %v5352, 32
    %v5357 = vpop.permute.xlu0 %5356
    %5358 = vrot.lane.b32.xlu0 %v5353, 32
    %v5359 = vpop.permute.xlu0 %5358
    %v5362 = vmul.f32 %v5319, %v5357
    %v5363 = vmul.f32 %v5321, %v5359
    %v5366 = vrot.slane %v5362, 2
    %v5367 = vrot.slane %v5363, 1
    %v5368 = vsel %vm3311, %v5367, %v5366
    %5369 = vrot.lane.b32.xlu0 %v5368, 64
    %v5370 = vpop.permute.xlu0 %5369
    %v5371 = vsel %vm462, %v5370, 0
    %5373 = vmatprep.subr.mxu0 0.0
    %5374 = vmatpush1.msra.mxu0 %v4959
    %5375 = vmatprep.subr.mxu0 0.0
    %5376 = vmatpush1.msra.mxu0 %v4960
    %5377 = vmatprep.subr.mxu0 0.0
    %5378 = vmatpush1.msra.mxu0 %v4961
    %5379 = vmatprep.subr.mxu0 0.0
    %5380 = vmatpush1.msra.mxu0 %v4962
    %5381 = vmatprep.subr.mxu0 0.0
    %5382 = vmatpush1.msra.mxu0 0.0
    %5383 = vmatprep.subr.mxu0 0.0
    %5384 = vmatpush1.msra.mxu0 0.0
    %5385 = vmatprep.subr.mxu0 0.0
    %5386 = vmatpush1.msra.mxu0 0.0
    %5387 = vmatprep.subr.mxu0 0.0
    %5388 = vmatpush1.msra.mxu0 0.0
    %5389 = vmatprep.subr.mxu0 0.0
    %5390 = vmatpush1.msra.mxu0 0.0
    %5391 = vmatprep.subr.mxu0 0.0
    %5392 = vmatpush1.msra.mxu0 0.0
    %5393 = vmatprep.subr.mxu0 0.0
    %5394 = vmatpush1.msra.mxu0 0.0
    %5395 = vmatprep.subr.mxu0 0.0
    %5396 = vmatpush1.msra.mxu0 0.0
    %5397 = vmatprep.subr.mxu0 0.0
    %5398 = vmatpush1.msra.mxu0 0.0
    %5399 = vmatprep.subr.mxu0 0.0
    %5400 = vmatpush1.msra.mxu0 0.0
    %5401 = vmatprep.subr.mxu0 0.0
    %5402 = vmatpush1.msra.mxu0 0.0
    %5403 = vmatprep.subr.mxu0 0.0
    %5404 = vmatpush1.msra.mxu0 0.0
    %5405 = vmatprep.subr.mxu0 0.0
    %5406 = vmatpush1.msra.mxu0 0.0
    %5407 = vmatprep.subr.mxu0 0.0
    %5408 = vmatpush1.msra.mxu0 0.0
    %5409 = vmatprep.subr.mxu0 0.0
    %5410 = vmatpush1.msra.mxu0 0.0
    %5411 = vmatprep.subr.mxu0 0.0
    %5412 = vmatpush1.msra.mxu0 0.0
    %5413 = vmatprep.subr.mxu0 0.0
    %5414 = vmatpush1.msra.mxu0 0.0
    %5415 = vmatprep.subr.mxu0 0.0
    %5416 = vmatpush1.msra.mxu0 0.0
    %5417 = vmatprep.subr.mxu0 0.0
    %5418 = vmatpush1.msra.mxu0 0.0
    %5419 = vmatprep.subr.mxu0 0.0
    %5420 = vmatpush1.msra.mxu0 0.0
    %5421 = vmatprep.subr.mxu0 0.0
    %5422 = vmatpush1.msra.mxu0 0.0
    %5423 = vmatprep.subr.mxu0 0.0
    %5424 = vmatpush1.msra.mxu0 0.0
    %5425 = vmatprep.subr.mxu0 0.0
    %5426 = vmatpush1.msra.mxu0 0.0
    %5427 = vmatprep.subr.mxu0 0.0
    %5428 = vmatpush1.msra.mxu0 0.0
    %5429 = vmatprep.subr.mxu0 0.0
    %5430 = vmatpush1.msra.mxu0 0.0
    %5431 = vmatprep.subr.mxu0 0.0
    %5432 = vmatpush1.msra.mxu0 0.0
    %5433 = vmatprep.subr.mxu0 0.0
    %5434 = vmatpush1.msra.mxu0 0.0
    %5435 = vmatprep.subr.mxu0 0.0
    %5436 = vmatpush1.msra.mxu0 0.0
    %5437 = vmatprep.mubr.f32.mxu0 0.0
    %5438 = vmatmul.mubr.f32.gmra.mrb[0].mxu0 %v5371
    %v5439 = vpop.f32.mrb[0].mxu0
    %v5440 = vadd.f32 0.0, %v5439
    %v5441 = vpop.f32.mrb[0].mxu0
    %5442 = vdwg.mxu0
    %v5444 = vrot.slane %v5440, 5
    %v5445 = vrot.slane %v5440, 6
    %v5448 = vadd.f32 %v4957, %v5444
    %v5449 = vadd.f32 %v4958, %v5445
    %v5450 = vxor.u32 %v5448, 2147483648
    %v5451 = vxor.u32 %v5449, 2147483648
    %v5452 = vmul.f32 %v5450, 1.442695
    %v5453 = vpow.pop %v5452
    %v5454 = vmul.f32 %v5451, 1.442695
    %v5455 = vpow.pop %v5454
    %v5456 = vadd.f32 %v5453, 1.0
    %v5457 = vadd.f32 %v5455, 1.0
    %v5458 = vrcp.pop %v5456
    %v5459 = vmul.f32 1.0, %v5458
    %v5460 = vrcp.pop %v5457
    %v5461 = vmul.f32 1.0, %v5460
    %v5462 = vtanh.pop %v5448
    %v5463 = vtanh.pop %v5449
    %v5466 = vrot.slane %v5350, 7
    %v5467 = vrot.slane %v5351, 7
    %v5470 = vmul.f32 %v5459, %v5466
    %v5471 = vmul.f32 %v5461, %v5467
    %5474 = vrot.lane.b32.xlu0 %v5462, 32
    %v5475 = vpop.permute.xlu0 %5474
    %5476 = vrot.lane.b32.xlu0 %v5463, 32
    %v5477 = vpop.permute.xlu0 %5476
    %v5480 = vmul.f32 %v5459, %v5475
    %v5481 = vmul.f32 %v5461, %v5477
    %5484 = vrot.lane.b32.xlu0 %v5480, 32
    %v5485 = vpop.permute.xlu0 %5484
    %5486 = vrot.lane.b32.xlu0 %v5481, 32
    %v5487 = vpop.permute.xlu0 %5486
    %v5490 = vadd.f32 %v5470, %v5485
    %v5491 = vadd.f32 %v5471, %v5487
    %v5492 = vtanh.pop %v5490
    %v5493 = vtanh.pop %v5491
    %5496 = vrot.lane.b32.xlu0 %v5492, 32
    %v5497 = vpop.permute.xlu0 %5496
    %5498 = vrot.lane.b32.xlu0 %v5493, 32
    %v5499 = vpop.permute.xlu0 %5498
    %v5502 = vmul.f32 %v5459, %v5497
    %v5503 = vmul.f32 %v5461, %v5499
    %v5506 = vrot.slane %v5502, 3
    %v5507 = vrot.slane %v5503, 2
    %v5508 = vsel %vm3311, %v5507, %v5506
    %5509 = vrot.lane.b32.xlu0 %v5508, 64
    %v5510 = vpop.permute.xlu0 %5509
    %v5511 = vsel %vm462, %v5510, 0
    %5513 = vmatprep.subr.mxu0 0.0
    %5514 = vmatpush1.msra.mxu0 %v4959
    %5515 = vmatprep.subr.mxu0 0.0
    %5516 = vmatpush1.msra.mxu0 %v4960
    %5517 = vmatprep.subr.mxu0 0.0
    %5518 = vmatpush1.msra.mxu0 %v4961
    %5519 = vmatprep.subr.mxu0 0.0
    %5520 = vmatpush1.msra.mxu0 %v4962
    %5521 = vmatprep.subr.mxu0 0.0
    %5522 = vmatpush1.msra.mxu0 0.0
    %5523 = vmatprep.subr.mxu0 0.0
    %5524 = vmatpush1.msra.mxu0 0.0
    %5525 = vmatprep.subr.mxu0 0.0
    %5526 = vmatpush1.msra.mxu0 0.0
    %5527 = vmatprep.subr.mxu0 0.0
    %5528 = vmatpush1.msra.mxu0 0.0
    %5529 = vmatprep.subr.mxu0 0.0
    %5530 = vmatpush1.msra.mxu0 0.0
    %5531 = vmatprep.subr.mxu0 0.0
    %5532 = vmatpush1.msra.mxu0 0.0
    %5533 = vmatprep.subr.mxu0 0.0
    %5534 = vmatpush1.msra.mxu0 0.0
    %5535 = vmatprep.subr.mxu0 0.0
    %5536 = vmatpush1.msra.mxu0 0.0
    %5537 = vmatprep.subr.mxu0 0.0
    %5538 = vmatpush1.msra.mxu0 0.0
    %5539 = vmatprep.subr.mxu0 0.0
    %5540 = vmatpush1.msra.mxu0 0.0
    %5541 = vmatprep.subr.mxu0 0.0
    %5542 = vmatpush1.msra.mxu0 0.0
    %5543 = vmatprep.subr.mxu0 0.0
    %5544 = vmatpush1.msra.mxu0 0.0
    %5545 = vmatprep.subr.mxu0 0.0
    %5546 = vmatpush1.msra.mxu0 0.0
    %5547 = vmatprep.subr.mxu0 0.0
    %5548 = vmatpush1.msra.mxu0 0.0
    %5549 = vmatprep.subr.mxu0 0.0
    %5550 = vmatpush1.msra.mxu0 0.0
    %5551 = vmatprep.subr.mxu0 0.0
    %5552 = vmatpush1.msra.mxu0 0.0
    %5553 = vmatprep.subr.mxu0 0.0
    %5554 = vmatpush1.msra.mxu0 0.0
    %5555 = vmatprep.subr.mxu0 0.0
    %5556 = vmatpush1.msra.mxu0 0.0
    %5557 = vmatprep.subr.mxu0 0.0
    %5558 = vmatpush1.msra.mxu0 0.0
    %5559 = vmatprep.subr.mxu0 0.0
    %5560 = vmatpush1.msra.mxu0 0.0
    %5561 = vmatprep.subr.mxu0 0.0
    %5562 = vmatpush1.msra.mxu0 0.0
    %5563 = vmatprep.subr.mxu0 0.0
    %5564 = vmatpush1.msra.mxu0 0.0
    %5565 = vmatprep.subr.mxu0 0.0
    %5566 = vmatpush1.msra.mxu0 0.0
    %5567 = vmatprep.subr.mxu0 0.0
    %5568 = vmatpush1.msra.mxu0 0.0
    %5569 = vmatprep.subr.mxu0 0.0
    %5570 = vmatpush1.msra.mxu0 0.0
    %5571 = vmatprep.subr.mxu0 0.0
    %5572 = vmatpush1.msra.mxu0 0.0
    %5573 = vmatprep.subr.mxu0 0.0
    %5574 = vmatpush1.msra.mxu0 0.0
    %5575 = vmatprep.subr.mxu0 0.0
    %5576 = vmatpush1.msra.mxu0 0.0
    %5577 = vmatprep.mubr.f32.mxu0 0.0
    %5578 = vmatmul.mubr.f32.gmra.mrb[0].mxu0 %v5511
    %v5579 = vpop.f32.mrb[0].mxu0
    %v5580 = vadd.f32 0.0, %v5579
    %v5581 = vpop.f32.mrb[0].mxu0
    %5582 = vdwg.mxu0
    %v5584 = vrot.slane %v5580, 4
    %v5585 = vrot.slane %v5580, 5
    %v5588 = vadd.f32 %v4957, %v5584
    %v5589 = vadd.f32 %v4958, %v5585
    %v5590 = vxor.u32 %v5588, 2147483648
    %v5591 = vxor.u32 %v5589, 2147483648
    %v5592 = vmul.f32 %v5590, 1.442695
    %v5593 = vpow.pop %v5592
    %v5594 = vmul.f32 %v5591, 1.442695
    %v5595 = vpow.pop %v5594
    %v5596 = vadd.f32 %v5593, 1.0
    %v5597 = vadd.f32 %v5595, 1.0
    %v5598 = vrcp.pop %v5596
    %v5599 = vmul.f32 1.0, %v5598
    %v5600 = vrcp.pop %v5597
    %v5601 = vmul.f32 1.0, %v5600
    %v5602 = vtanh.pop %v5588
    %v5603 = vtanh.pop %v5589
    %v5606 = vrot.slane %v5490, 7
    %v5607 = vrot.slane %v5491, 7
    %v5610 = vmul.f32 %v5599, %v5606
    %v5611 = vmul.f32 %v5601, %v5607
    %5614 = vrot.lane.b32.xlu0 %v5602, 32
    %v5615 = vpop.permute.xlu0 %5614
    %5616 = vrot.lane.b32.xlu0 %v5603, 32
    %v5617 = vpop.permute.xlu0 %5616
    %v5620 = vmul.f32 %v5599, %v5615
    %v5621 = vmul.f32 %v5601, %v5617
    %5624 = vrot.lane.b32.xlu0 %v5620, 32
    %v5625 = vpop.permute.xlu0 %5624
    %5626 = vrot.lane.b32.xlu0 %v5621, 32
    %v5627 = vpop.permute.xlu0 %5626
    %v5630 = vadd.f32 %v5610, %v5625
    %v5631 = vadd.f32 %v5611, %v5627
    %v5632 = vtanh.pop %v5630
    %v5633 = vtanh.pop %v5631
    %5636 = vrot.lane.b32.xlu0 %v5632, 32
    %v5637 = vpop.permute.xlu0 %5636
    %5638 = vrot.lane.b32.xlu0 %v5633, 32
    %v5639 = vpop.permute.xlu0 %5638
    %v5642 = vmul.f32 %v5599, %v5637
    %v5643 = vmul.f32 %v5601, %v5639
    %v5646 = vrot.slane %v5642, 4
    %v5647 = vrot.slane %v5643, 3
    %v5648 = vsel %vm3311, %v5647, %v5646
    %5649 = vrot.lane.b32.xlu0 %v5648, 64
    %v5650 = vpop.permute.xlu0 %5649
    %v5651 = vsel %vm462, %v5650, 0
    %5653 = vmatprep.subr.mxu0 0.0
    %5654 = vmatpush1.msra.mxu0 %v4959
    %5655 = vmatprep.subr.mxu0 0.0
    %5656 = vmatpush1.msra.mxu0 %v4960
    %5657 = vmatprep.subr.mxu0 0.0
    %5658 = vmatpush1.msra.mxu0 %v4961
    %5659 = vmatprep.subr.mxu0 0.0
    %5660 = vmatpush1.msra.mxu0 %v4962
    %5661 = vmatprep.subr.mxu0 0.0
    %5662 = vmatpush1.msra.mxu0 0.0
    %5663 = vmatprep.subr.mxu0 0.0
    %5664 = vmatpush1.msra.mxu0 0.0
    %5665 = vmatprep.subr.mxu0 0.0
    %5666 = vmatpush1.msra.mxu0 0.0
    %5667 = vmatprep.subr.mxu0 0.0
    %5668 = vmatpush1.msra.mxu0 0.0
    %5669 = vmatprep.subr.mxu0 0.0
    %5670 = vmatpush1.msra.mxu0 0.0
    %5671 = vmatprep.subr.mxu0 0.0
    %5672 = vmatpush1.msra.mxu0 0.0
    %5673 = vmatprep.subr.mxu0 0.0
    %5674 = vmatpush1.msra.mxu0 0.0
    %5675 = vmatprep.subr.mxu0 0.0
    %5676 = vmatpush1.msra.mxu0 0.0
    %5677 = vmatprep.subr.mxu0 0.0
    %5678 = vmatpush1.msra.mxu0 0.0
    %5679 = vmatprep.subr.mxu0 0.0
    %5680 = vmatpush1.msra.mxu0 0.0
    %5681 = vmatprep.subr.mxu0 0.0
    %5682 = vmatpush1.msra.mxu0 0.0
    %5683 = vmatprep.subr.mxu0 0.0
    %5684 = vmatpush1.msra.mxu0 0.0
    %5685 = vmatprep.subr.mxu0 0.0
    %5686 = vmatpush1.msra.mxu0 0.0
    %5687 = vmatprep.subr.mxu0 0.0
    %5688 = vmatpush1.msra.mxu0 0.0
    %5689 = vmatprep.subr.mxu0 0.0
    %5690 = vmatpush1.msra.mxu0 0.0
    %5691 = vmatprep.subr.mxu0 0.0
    %5692 = vmatpush1.msra.mxu0 0.0
    %5693 = vmatprep.subr.mxu0 0.0
    %5694 = vmatpush1.msra.mxu0 0.0
    %5695 = vmatprep.subr.mxu0 0.0
    %5696 = vmatpush1.msra.mxu0 0.0
    %5697 = vmatprep.subr.mxu0 0.0
    %5698 = vmatpush1.msra.mxu0 0.0
    %5699 = vmatprep.subr.mxu0 0.0
    %5700 = vmatpush1.msra.mxu0 0.0
    %5701 = vmatprep.subr.mxu0 0.0
    %5702 = vmatpush1.msra.mxu0 0.0
    %5703 = vmatprep.subr.mxu0 0.0
    %5704 = vmatpush1.msra.mxu0 0.0
    %5705 = vmatprep.subr.mxu0 0.0
    %5706 = vmatpush1.msra.mxu0 0.0
    %5707 = vmatprep.subr.mxu0 0.0
    %5708 = vmatpush1.msra.mxu0 0.0
    %5709 = vmatprep.subr.mxu0 0.0
    %5710 = vmatpush1.msra.mxu0 0.0
    %5711 = vmatprep.subr.mxu0 0.0
    %5712 = vmatpush1.msra.mxu0 0.0
    %5713 = vmatprep.subr.mxu0 0.0
    %5714 = vmatpush1.msra.mxu0 0.0
    %5715 = vmatprep.subr.mxu0 0.0
    %5716 = vmatpush1.msra.mxu0 0.0
    %5717 = vmatprep.mubr.f32.mxu0 0.0
    %5718 = vmatmul.mubr.f32.gmra.mrb[0].mxu0 %v5651
    %v5719 = vpop.f32.mrb[0].mxu0
    %v5720 = vadd.f32 0.0, %v5719
    %v5721 = vpop.f32.mrb[0].mxu0
    %5722 = vdwg.mxu0
    %v5724 = vrot.slane %v5720, 3
    %v5725 = vrot.slane %v5720, 4
    %v5728 = vadd.f32 %v4957, %v5724
    %v5729 = vadd.f32 %v4958, %v5725
    %v5730 = vxor.u32 %v5728, 2147483648
    %v5731 = vxor.u32 %v5729, 2147483648
    %v5732 = vmul.f32 %v5730, 1.442695
    %v5733 = vpow.pop %v5732
    %v5734 = vmul.f32 %v5731, 1.442695
    %v5735 = vpow.pop %v5734
    %v5736 = vadd.f32 %v5733, 1.0
    %v5737 = vadd.f32 %v5735, 1.0
    %v5738 = vrcp.pop %v5736
    %v5739 = vmul.f32 1.0, %v5738
    %v5740 = vrcp.pop %v5737
    %v5741 = vmul.f32 1.0, %v5740
    %v5742 = vtanh.pop %v5728
    %v5743 = vtanh.pop %v5729
    %v5746 = vrot.slane %v5630, 7
    %v5747 = vrot.slane %v5631, 7
    %v5750 = vmul.f32 %v5739, %v5746
    %v5751 = vmul.f32 %v5741, %v5747
    %5754 = vrot.lane.b32.xlu0 %v5742, 32
    %v5755 = vpop.permute.xlu0 %5754
    %5756 = vrot.lane.b32.xlu0 %v5743, 32
    %v5757 = vpop.permute.xlu0 %5756
    %v5760 = vmul.f32 %v5739, %v5755
    %v5761 = vmul.f32 %v5741, %v5757
    %5764 = vrot.lane.b32.xlu0 %v5760, 32
    %v5765 = vpop.permute.xlu0 %5764
    %5766 = vrot.lane.b32.xlu0 %v5761, 32
    %v5767 = vpop.permute.xlu0 %5766
    %v5770 = vadd.f32 %v5750, %v5765
    %v5771 = vadd.f32 %v5751, %v5767
    %v5772 = vtanh.pop %v5770
    %v5773 = vtanh.pop %v5771
    %5776 = vrot.lane.b32.xlu0 %v5772, 32
    %v5777 = vpop.permute.xlu0 %5776
    %5778 = vrot.lane.b32.xlu0 %v5773, 32
    %v5779 = vpop.permute.xlu0 %5778
    %v5782 = vmul.f32 %v5739, %v5777
    %v5783 = vmul.f32 %v5741, %v5779
    %v5786 = vrot.slane %v5782, 5
    %v5787 = vrot.slane %v5783, 4
    %v5788 = vsel %vm3311, %v5787, %v5786
    %5789 = vrot.lane.b32.xlu0 %v5788, 64
    %v5790 = vpop.permute.xlu0 %5789
    %v5791 = vsel %vm462, %v5790, 0
    %5793 = vmatprep.subr.mxu0 0.0
    %5794 = vmatpush1.msra.mxu0 %v4959
    %5795 = vmatprep.subr.mxu0 0.0
    %5796 = vmatpush1.msra.mxu0 %v4960
    %5797 = vmatprep.subr.mxu0 0.0
    %5798 = vmatpush1.msra.mxu0 %v4961
    %5799 = vmatprep.subr.mxu0 0.0
    %5800 = vmatpush1.msra.mxu0 %v4962
    %5801 = vmatprep.subr.mxu0 0.0
    %5802 = vmatpush1.msra.mxu0 0.0
    %5803 = vmatprep.subr.mxu0 0.0
    %5804 = vmatpush1.msra.mxu0 0.0
    %5805 = vmatprep.subr.mxu0 0.0
    %5806 = vmatpush1.msra.mxu0 0.0
    %5807 = vmatprep.subr.mxu0 0.0
    %5808 = vmatpush1.msra.mxu0 0.0
    %5809 = vmatprep.subr.mxu0 0.0
    %5810 = vmatpush1.msra.mxu0 0.0
    %5811 = vmatprep.subr.mxu0 0.0
    %5812 = vmatpush1.msra.mxu0 0.0
    %5813 = vmatprep.subr.mxu0 0.0
    %5814 = vmatpush1.msra.mxu0 0.0
    %5815 = vmatprep.subr.mxu0 0.0
    %5816 = vmatpush1.msra.mxu0 0.0
    %5817 = vmatprep.subr.mxu0 0.0
    %5818 = vmatpush1.msra.mxu0 0.0
    %5819 = vmatprep.subr.mxu0 0.0
    %5820 = vmatpush1.msra.mxu0 0.0
    %5821 = vmatprep.subr.mxu0 0.0
    %5822 = vmatpush1.msra.mxu0 0.0
    %5823 = vmatprep.subr.mxu0 0.0
    %5824 = vmatpush1.msra.mxu0 0.0
    %5825 = vmatprep.subr.mxu0 0.0
    %5826 = vmatpush1.msra.mxu0 0.0
    %5827 = vmatprep.subr.mxu0 0.0
    %5828 = vmatpush1.msra.mxu0 0.0
    %5829 = vmatprep.subr.mxu0 0.0
    %5830 = vmatpush1.msra.mxu0 0.0
    %5831 = vmatprep.subr.mxu0 0.0
    %5832 = vmatpush1.msra.mxu0 0.0
    %5833 = vmatprep.subr.mxu0 0.0
    %5834 = vmatpush1.msra.mxu0 0.0
    %5835 = vmatprep.subr.mxu0 0.0
    %5836 = vmatpush1.msra.mxu0 0.0
    %5837 = vmatprep.subr.mxu0 0.0
    %5838 = vmatpush1.msra.mxu0 0.0
    %5839 = vmatprep.subr.mxu0 0.0
    %5840 = vmatpush1.msra.mxu0 0.0
    %5841 = vmatprep.subr.mxu0 0.0
    %5842 = vmatpush1.msra.mxu0 0.0
    %5843 = vmatprep.subr.mxu0 0.0
    %5844 = vmatpush1.msra.mxu0 0.0
    %5845 = vmatprep.subr.mxu0 0.0
    %5846 = vmatpush1.msra.mxu0 0.0
    %5847 = vmatprep.subr.mxu0 0.0
    %5848 = vmatpush1.msra.mxu0 0.0
    %5849 = vmatprep.subr.mxu0 0.0
    %5850 = vmatpush1.msra.mxu0 0.0
    %5851 = vmatprep.subr.mxu0 0.0
    %5852 = vmatpush1.msra.mxu0 0.0
    %5853 = vmatprep.subr.mxu0 0.0
    %5854 = vmatpush1.msra.mxu0 0.0
    %5855 = vmatprep.subr.mxu0 0.0
    %5856 = vmatpush1.msra.mxu0 0.0
    %5857 = vmatprep.mubr.f32.mxu0 0.0
    %5858 = vmatmul.mubr.f32.gmra.mrb[0].mxu0 %v5791
    %v5859 = vpop.f32.mrb[0].mxu0
    %v5860 = vadd.f32 0.0, %v5859
    %v5861 = vpop.f32.mrb[0].mxu0
    %5862 = vdwg.mxu0
    %v5864 = vrot.slane %v5860, 2
    %v5865 = vrot.slane %v5860, 3
    %v5868 = vadd.f32 %v4957, %v5864
    %v5869 = vadd.f32 %v4958, %v5865
    %v5870 = vxor.u32 %v5868, 2147483648
    %v5871 = vxor.u32 %v5869, 2147483648
    %v5872 = vmul.f32 %v5870, 1.442695
    %v5873 = vpow.pop %v5872
    %v5874 = vmul.f32 %v5871, 1.442695
    %v5875 = vpow.pop %v5874
    %v5876 = vadd.f32 %v5873, 1.0
    %v5877 = vadd.f32 %v5875, 1.0
    %v5878 = vrcp.pop %v5876
    %v5879 = vmul.f32 1.0, %v5878
    %v5880 = vrcp.pop %v5877
    %v5881 = vmul.f32 1.0, %v5880
    %v5882 = vtanh.pop %v5868
    %v5883 = vtanh.pop %v5869
    %v5886 = vrot.slane %v5770, 7
    %v5887 = vrot.slane %v5771, 7
    %v5890 = vmul.f32 %v5879, %v5886
    %v5891 = vmul.f32 %v5881, %v5887
    %5894 = vrot.lane.b32.xlu0 %v5882, 32
    %v5895 = vpop.permute.xlu0 %5894
    %5896 = vrot.lane.b32.xlu0 %v5883, 32
    %v5897 = vpop.permute.xlu0 %5896
    %v5900 = vmul.f32 %v5879, %v5895
    %v5901 = vmul.f32 %v5881, %v5897
    %5904 = vrot.lane.b32.xlu0 %v5900, 32
    %v5905 = vpop.permute.xlu0 %5904
    %5906 = vrot.lane.b32.xlu0 %v5901, 32
    %v5907 = vpop.permute.xlu0 %5906
    %v5910 = vadd.f32 %v5890, %v5905
    %v5911 = vadd.f32 %v5891, %v5907
    %v5912 = vtanh.pop %v5910
    %v5913 = vtanh.pop %v5911
    %5916 = vrot.lane.b32.xlu0 %v5912, 32
    %v5917 = vpop.permute.xlu0 %5916
    %5918 = vrot.lane.b32.xlu0 %v5913, 32
    %v5919 = vpop.permute.xlu0 %5918
    %v5922 = vmul.f32 %v5879, %v5917
    %v5923 = vmul.f32 %v5881, %v5919
    %v5926 = vrot.slane %v5922, 6
    %v5927 = vrot.slane %v5923, 5
    %v5928 = vsel %vm3311, %v5927, %v5926
    %5929 = vrot.lane.b32.xlu0 %v5928, 64
    %v5930 = vpop.permute.xlu0 %5929
    %v5931 = vsel %vm462, %v5930, 0
    %5933 = vmatprep.subr.mxu0 0.0
    %5934 = vmatpush1.msra.mxu0 %v4959
    %5935 = vmatprep.subr.mxu0 0.0
    %5936 = vmatpush1.msra.mxu0 %v4960
    %5937 = vmatprep.subr.mxu0 0.0
    %5938 = vmatpush1.msra.mxu0 %v4961
    %5939 = vmatprep.subr.mxu0 0.0
    %5940 = vmatpush1.msra.mxu0 %v4962
    %5941 = vmatprep.subr.mxu0 0.0
    %5942 = vmatpush1.msra.mxu0 0.0
    %5943 = vmatprep.subr.mxu0 0.0
    %5944 = vmatpush1.msra.mxu0 0.0
    %5945 = vmatprep.subr.mxu0 0.0
    %5946 = vmatpush1.msra.mxu0 0.0
    %5947 = vmatprep.subr.mxu0 0.0
    %5948 = vmatpush1.msra.mxu0 0.0
    %5949 = vmatprep.subr.mxu0 0.0
    %5950 = vmatpush1.msra.mxu0 0.0
    %5951 = vmatprep.subr.mxu0 0.0
    %5952 = vmatpush1.msra.mxu0 0.0
    %5953 = vmatprep.subr.mxu0 0.0
    %5954 = vmatpush1.msra.mxu0 0.0
    %5955 = vmatprep.subr.mxu0 0.0
    %5956 = vmatpush1.msra.mxu0 0.0
    %5957 = vmatprep.subr.mxu0 0.0
    %5958 = vmatpush1.msra.mxu0 0.0
    %5959 = vmatprep.subr.mxu0 0.0
    %5960 = vmatpush1.msra.mxu0 0.0
    %5961 = vmatprep.subr.mxu0 0.0
    %5962 = vmatpush1.msra.mxu0 0.0
    %5963 = vmatprep.subr.mxu0 0.0
    %5964 = vmatpush1.msra.mxu0 0.0
    %5965 = vmatprep.subr.mxu0 0.0
    %5966 = vmatpush1.msra.mxu0 0.0
    %5967 = vmatprep.subr.mxu0 0.0
    %5968 = vmatpush1.msra.mxu0 0.0
    %5969 = vmatprep.subr.mxu0 0.0
    %5970 = vmatpush1.msra.mxu0 0.0
    %5971 = vmatprep.subr.mxu0 0.0
    %5972 = vmatpush1.msra.mxu0 0.0
    %5973 = vmatprep.subr.mxu0 0.0
    %5974 = vmatpush1.msra.mxu0 0.0
    %5975 = vmatprep.subr.mxu0 0.0
    %5976 = vmatpush1.msra.mxu0 0.0
    %5977 = vmatprep.subr.mxu0 0.0
    %5978 = vmatpush1.msra.mxu0 0.0
    %5979 = vmatprep.subr.mxu0 0.0
    %5980 = vmatpush1.msra.mxu0 0.0
    %5981 = vmatprep.subr.mxu0 0.0
    %5982 = vmatpush1.msra.mxu0 0.0
    %5983 = vmatprep.subr.mxu0 0.0
    %5984 = vmatpush1.msra.mxu0 0.0
    %5985 = vmatprep.subr.mxu0 0.0
    %5986 = vmatpush1.msra.mxu0 0.0
    %5987 = vmatprep.subr.mxu0 0.0
    %5988 = vmatpush1.msra.mxu0 0.0
    %5989 = vmatprep.subr.mxu0 0.0
    %5990 = vmatpush1.msra.mxu0 0.0
    %5991 = vmatprep.subr.mxu0 0.0
    %5992 = vmatpush1.msra.mxu0 0.0
    %5993 = vmatprep.subr.mxu0 0.0
    %5994 = vmatpush1.msra.mxu0 0.0
    %5995 = vmatprep.subr.mxu0 0.0
    %5996 = vmatpush1.msra.mxu0 0.0
    %5997 = vmatprep.mubr.f32.mxu0 0.0
    %5998 = vmatmul.mubr.f32.gmra.mrb[0].mxu0 %v5931
    %v5999 = vpop.f32.mrb[0].mxu0
    %v6000 = vadd.f32 0.0, %v5999
    %v6001 = vpop.f32.mrb[0].mxu0
    %6002 = vdwg.mxu0
    %v6004 = vrot.slane %v6000, 1
    %v6005 = vrot.slane %v6000, 2
    %v6008 = vadd.f32 %v4957, %v6004
    %v6009 = vadd.f32 %v4958, %v6005
    %v6010 = vxor.u32 %v6008, 2147483648
    %v6011 = vxor.u32 %v6009, 2147483648
    %v6012 = vmul.f32 %v6010, 1.442695
    %v6013 = vpow.pop %v6012
    %v6014 = vmul.f32 %v6011, 1.442695
    %v6015 = vpow.pop %v6014
    %v6016 = vadd.f32 %v6013, 1.0
    %v6017 = vadd.f32 %v6015, 1.0
    %v6018 = vrcp.pop %v6016
    %v6019 = vmul.f32 1.0, %v6018
    %v6020 = vrcp.pop %v6017
    %v6021 = vmul.f32 1.0, %v6020
    %v6022 = vtanh.pop %v6008
    %v6023 = vtanh.pop %v6009
    %v6026 = vrot.slane %v5910, 7
    %v6027 = vrot.slane %v5911, 7
    %v6030 = vmul.f32 %v6019, %v6026
    %v6031 = vmul.f32 %v6021, %v6027
    %6034 = vrot.lane.b32.xlu0 %v6022, 32
    %v6035 = vpop.permute.xlu0 %6034
    %6036 = vrot.lane.b32.xlu0 %v6023, 32
    %v6037 = vpop.permute.xlu0 %6036
    %v6040 = vmul.f32 %v6019, %v6035
    %v6041 = vmul.f32 %v6021, %v6037
    %6044 = vrot.lane.b32.xlu0 %v6040, 32
    %v6045 = vpop.permute.xlu0 %6044
    %6046 = vrot.lane.b32.xlu0 %v6041, 32
    %v6047 = vpop.permute.xlu0 %6046
    %v6050 = vadd.f32 %v6030, %v6045
    %v6051 = vadd.f32 %v6031, %v6047
    %v6052 = vtanh.pop %v6050
    %v6053 = vtanh.pop %v6051
    %6056 = vrot.lane.b32.xlu0 %v6052, 32
    %v6057 = vpop.permute.xlu0 %6056
    %6058 = vrot.lane.b32.xlu0 %v6053, 32
    %v6059 = vpop.permute.xlu0 %6058
    %v6062 = vmul.f32 %v6019, %v6057
    %v6063 = vmul.f32 %v6021, %v6059
    %v6067 = vrot.slane %v6062, 7
    %v6068 = vrot.slane %v6063, 6
    %v6069 = vsel %vm3311, %v6068, %v6067
    %6070 = vrot.lane.b32.xlu0 %v6069, 64
    %v6071 = vpop.permute.xlu0 %6070
    %v6073 = vsel %vm645, %v5092, %v6071
    %v6076 = vunpack.c.l.s4 1966171168
    %v6077 = vunpack.c.0.s8 %v6076
    %v6078 = vlaneseq
    %v6079 = vshrl.u32 %v6078, 7
    %v6080 = vsub.s32 %v6077, %v6079
    %v6081 = vrot.slane %v6073, %v6080
    %v6082 = vcombine.high %v6081, %v6081
    %v6084 = vunpack.c.l.s4 1966171168
    %v6085 = vunpack.c.0.s8 %v6084
    %v6086 = vlaneseq
    %v6087 = vshrl.u32 %v6086, 7
    %v6088 = vsub.s32 %v6085, %v6087
    %v6089 = vrot.slane %v6081, %v6088
    %v6091 = vunpack.c.l.s4 1966171168
    %v6092 = vunpack.c.0.s8 %v6091
    %v6093 = vlaneseq
    %v6094 = vshrl.u32 %v6093, 7
    %v6095 = vsub.s32 %v6092, %v6094
    %v6096 = vrot.slane %v6082, %v6095
    %v6099 = vrot.slane %v5224, 7
    %v6100 = vsel %vm4322, %v6099, %v5223
    %6101 = vrot.lane.b32.xlu0 %v6100, 64
    %v6102 = vpop.permute.xlu0 %6101
    %v6104 = vrot.slane %v5922, 5
    %v6105 = vrot.slane %v5923, 4
    %v6106 = vsel %vm4322, %v6105, %v6104
    %6107 = vrot.lane.b32.xlu0 %v6106, 64
    %v6108 = vpop.permute.xlu0 %6107
    %v6110 = vsel %vm645, %v6102, %v6108
    %v6113 = vunpack.c.l.s4 1966171168
    %v6114 = vunpack.c.0.s8 %v6113
    %v6115 = vlaneseq
    %v6116 = vshrl.u32 %v6115, 7
    %v6117 = vsub.s32 %v6114, %v6116
    %v6118 = vrot.slane %v6110, %v6117
    %v6119 = vcombine.high %v6118, %v6118
    %v6121 = vunpack.c.l.s4 1966171168
    %v6122 = vunpack.c.0.s8 %v6121
    %v6123 = vlaneseq
    %v6124 = vshrl.u32 %v6123, 7
    %v6125 = vsub.s32 %v6122, %v6124
    %v6126 = vrot.slane %v6118, %v6125
    %v6128 = vunpack.c.l.s4 1966171168
    %v6129 = vunpack.c.0.s8 %v6128
    %v6130 = vlaneseq
    %v6131 = vshrl.u32 %v6130, 7
    %v6132 = vsub.s32 %v6129, %v6131
    %v6133 = vrot.slane %v6119, %v6132
    %v6134 = vcombine.high %v6126, %v6126
    %v6135 = vrot.slane %v5363, 7
    %v6136 = vsel %vm4359, %v6135, %v5362
    %6137 = vrot.lane.b32.xlu0 %v6136, 64
    %v6138 = vpop.permute.xlu0 %6137
    %v6140 = vrot.slane %v5782, 3
    %v6141 = vrot.slane %v5783, 2
    %v6142 = vsel %vm4359, %v6141, %v6140
    %6143 = vrot.lane.b32.xlu0 %v6142, 64
    %v6144 = vpop.permute.xlu0 %6143
    %v6146 = vsel %vm645, %v6138, %v6144
    %v6149 = vunpack.c.l.s4 1966171168
    %v6150 = vunpack.c.0.s8 %v6149
    %v6151 = vlaneseq
    %v6152 = vshrl.u32 %v6151, 7
    %v6153 = vsub.s32 %v6150, %v6152
    %v6154 = vrot.slane %v6146, %v6153
    %v6155 = vcombine.high %v6154, %v6154
    %v6157 = vunpack.c.l.s4 1966171168
    %v6158 = vunpack.c.0.s8 %v6157
    %v6159 = vlaneseq
    %v6160 = vshrl.u32 %v6159, 7
    %v6161 = vsub.s32 %v6158, %v6160
    %v6162 = vrot.slane %v6154, %v6161
    %v6164 = vunpack.c.l.s4 1966171168
    %v6165 = vunpack.c.0.s8 %v6164
    %v6166 = vlaneseq
    %v6167 = vshrl.u32 %v6166, 7
    %v6168 = vsub.s32 %v6165, %v6167
    %v6169 = vrot.slane %v6155, %v6168
    %v6170 = vcombine.high %v6162, %v6162
    %v6171 = vcombine.high %v6169, %v6169
    %v6172 = vrot.slane %v5503, 7
    %v6173 = vsel %vm4397, %v6172, %v5502
    %6174 = vrot.lane.b32.xlu0 %v6173, 64
    %v6175 = vpop.permute.xlu0 %6174
    %v6177 = vrot.slane %v5642, 1
    %v6178 = vsel %vm4397, %v5643, %v6177
    %6179 = vrot.lane.b32.xlu0 %v6178, 64
    %v6180 = vpop.permute.xlu0 %6179
    %v6182 = vsel %vm645, %v6175, %v6180
    %v6184 = vcombine.high %v6182, %v6182
    %v6186 = vunpack.c.l.s4 1966171168
    %v6187 = vunpack.c.0.s8 %v6186
    %v6188 = vlaneseq
    %v6189 = vshrl.u32 %v6188, 7
    %v6190 = vsub.s32 %v6187, %v6189
    %v6191 = vrot.slane %v6182, %v6190
    %v6193 = vunpack.c.l.s4 1966171168
    %v6194 = vunpack.c.0.s8 %v6193
    %v6195 = vlaneseq
    %v6196 = vshrl.u32 %v6195, 7
    %v6197 = vsub.s32 %v6194, %v6196
    %v6198 = vrot.slane %v6184, %v6197
    %v6199 = vcombine.high %v6191, %v6191
    %v6201 = vunpack.c.l.s4 1966171168
    %v6202 = vunpack.c.0.s8 %v6201
    %v6203 = vlaneseq
    %v6204 = vshrl.u32 %v6203, 7
    %v6205 = vsub.s32 %v6202, %v6204
    %v6206 = vrot.slane %v6198, %v6205
    %v6208 = vunpack.c.l.s4 1966171168
    %v6209 = vunpack.c.0.s8 %v6208
    %v6210 = vlaneseq
    %v6211 = vshrl.u32 %v6210, 7
    %v6212 = vsub.s32 %v6209, %v6211
    %v6213 = vrot.slane %v6199, %v6212
    %v6214 = vcombine.high %v6213, %v6213
    %v6215 = vrot.slane %v5643, 7
    %v6216 = vsel %vm4441, %v6215, %v5642
    %6217 = vrot.lane.b32.xlu0 %v6216, 64
    %v6218 = vpop.permute.xlu0 %6217
    %v6220 = vrot.slane %v5502, 7
    %v6221 = vrot.slane %v5503, 6
    %v6222 = vsel %vm4441, %v6221, %v6220
    %6223 = vrot.lane.b32.xlu0 %v6222, 64
    %v6224 = vpop.permute.xlu0 %6223
    %v6226 = vsel %vm645, %v6218, %v6224
    %v6228 = vcombine.high %v6226, %v6226
    %v6230 = vunpack.c.l.s4 1966171168
    %v6231 = vunpack.c.0.s8 %v6230
    %v6232 = vlaneseq
    %v6233 = vshrl.u32 %v6232, 7
    %v6234 = vsub.s32 %v6231, %v6233
    %v6235 = vrot.slane %v6228, %v6234
    %v6236 = vcombine.high %v6235, %v6235
    %v6238 = vunpack.c.l.s4 1966171168
    %v6239 = vunpack.c.0.s8 %v6238
    %v6240 = vlaneseq
    %v6241 = vshrl.u32 %v6240, 7
    %v6242 = vsub.s32 %v6239, %v6241
    %v6243 = vrot.slane %v6235, %v6242
    %v6245 = vunpack.c.l.s4 1966171168
    %v6246 = vunpack.c.0.s8 %v6245
    %v6247 = vlaneseq
    %v6248 = vshrl.u32 %v6247, 7
    %v6249 = vsub.s32 %v6246, %v6248
    %v6250 = vrot.slane %v6236, %v6249
    %v6251 = vrot.slane %v5783, 7
    %v6252 = vsel %vm4478, %v6251, %v5782
    %6253 = vrot.lane.b32.xlu0 %v6252, 64
    %v6254 = vpop.permute.xlu0 %6253
    %v6256 = vrot.slane %v5362, 5
    %v6257 = vrot.slane %v5363, 4
    %v6258 = vsel %vm4478, %v6257, %v6256
    %6259 = vrot.lane.b32.xlu0 %v6258, 64
    %v6260 = vpop.permute.xlu0 %6259
    %v6262 = vsel %vm645, %v6254, %v6260
    %v6264 = vcombine.high %v6262, %v6262
    %v6266 = vunpack.c.l.s4 1966171168
    %v6267 = vunpack.c.0.s8 %v6266
    %v6268 = vlaneseq
    %v6269 = vshrl.u32 %v6268, 7
    %v6270 = vsub.s32 %v6267, %v6269
    %v6271 = vrot.slane %v6264, %v6270
    %v6272 = vcombine.high %v6271, %v6271
    %v6274 = vunpack.c.l.s4 1966171168
    %v6275 = vunpack.c.0.s8 %v6274
    %v6276 = vlaneseq
    %v6277 = vshrl.u32 %v6276, 7
    %v6278 = vsub.s32 %v6275, %v6277
    %v6279 = vrot.slane %v6271, %v6278
    %v6281 = vunpack.c.l.s4 1966171168
    %v6282 = vunpack.c.0.s8 %v6281
    %v6283 = vlaneseq
    %v6284 = vshrl.u32 %v6283, 7
    %v6285 = vsub.s32 %v6282, %v6284
    %v6286 = vrot.slane %v6272, %v6285
    %v6287 = vcombine.high %v6279, %v6279
    %v6288 = vrot.slane %v5923, 7
    %v6289 = vsel %vm4516, %v6288, %v5922
    %6290 = vrot.lane.b32.xlu0 %v6289, 64
    %v6291 = vpop.permute.xlu0 %6290
    %v6293 = vrot.slane %v5223, 3
    %v6294 = vrot.slane %v5224, 2
    %v6295 = vsel %vm4516, %v6294, %v6293
    %6296 = vrot.lane.b32.xlu0 %v6295, 64
    %v6297 = vpop.permute.xlu0 %6296
    %v6299 = vsel %vm645, %v6291, %v6297
    %v6301 = vcombine.high %v6299, %v6299
    %v6303 = vunpack.c.l.s4 1966171168
    %v6304 = vunpack.c.0.s8 %v6303
    %v6305 = vlaneseq
    %v6306 = vshrl.u32 %v6305, 7
    %v6307 = vsub.s32 %v6304, %v6306
    %v6308 = vrot.slane %v6301, %v6307
    %v6309 = vcombine.high %v6308, %v6308
    %v6311 = vunpack.c.l.s4 1966171168
    %v6312 = vunpack.c.0.s8 %v6311
    %v6313 = vlaneseq
    %v6314 = vshrl.u32 %v6313, 7
    %v6315 = vsub.s32 %v6312, %v6314
    %v6316 = vrot.slane %v6308, %v6315
    %v6318 = vunpack.c.l.s4 1966171168
    %v6319 = vunpack.c.0.s8 %v6318
    %v6320 = vlaneseq
    %v6321 = vshrl.u32 %v6320, 7
    %v6322 = vsub.s32 %v6319, %v6321
    %v6323 = vrot.slane %v6309, %v6322
    %v6324 = vcombine.high %v6316, %v6316
    %v6325 = vcombine.high %v6323, %v6323
    %v6326 = vrot.slane %v6063, 7
    %6327 = vrot.lane.b32.xlu0 %v6062, 64
    %v6328 = vpop.permute.xlu0 %6327
    %6329 = vrot.lane.b32.xlu0 %v6326, 64
    %v6330 = vpop.permute.xlu0 %6329
    %v6333 = vrot.slane %v5085, 1
    %6334 = vrot.lane.b32.xlu0 %v6333, 64
    %v6335 = vpop.permute.xlu0 %6334
    %6336 = vrot.lane.b32.xlu0 %v5086, 64
    %v6337 = vpop.permute.xlu0 %6336
    %v6340 = vsel %vm645, %v6328, %v6335
    %v6341 = vsel %vm645, %v6330, %v6337
    %v6344 = vcombine.high %v6340, %v6340
    %v6346 = vunpack.c.l.s4 1966171168
    %v6347 = vunpack.c.0.s8 %v6346
    %v6348 = vlaneseq
    %v6349 = vshrl.u32 %v6348, 7
    %v6350 = vsub.s32 %v6347, %v6349
    %v6351 = vrot.slane %v6344, %v6350
    %v6352 = vcombine.high %v6351, %v6351
    %v6354 = vunpack.c.l.s4 1966171168
    %v6355 = vunpack.c.0.s8 %v6354
    %v6356 = vlaneseq
    %v6357 = vshrl.u32 %v6356, 7
    %v6358 = vsub.s32 %v6355, %v6357
    %v6359 = vrot.slane %v6352, %v6358
    %v6360 = vcombine.high %v6359, %v6359
    %v6362 = vunpack.c.l.s4 1966171168
    %v6363 = vunpack.c.0.s8 %v6362
    %v6364 = vlaneseq
    %v6365 = vshrl.u32 %v6364, 7
    %v6366 = vsub.s32 %v6363, %v6365
    %v6367 = vrot.slane %v6341, %v6366
    %v6369 = vunpack.c.l.s4 1966171168
    %v6370 = vunpack.c.0.s8 %v6369
    %v6371 = vlaneseq
    %v6372 = vshrl.u32 %v6371, 7
    %v6373 = vsub.s32 %v6370, %v6372
    %v6374 = vrot.slane %v6367, %v6373
    %v6375 = vlaneseq
    %v6376 = vshrl.u32 %v6375, 7
    %v6377 = vsub.s32 0, %v6376
    %v6378 = vrot.slane %v6133, %v6377
    %v6379 = vlaneseq
    %v6380 = vshrl.u32 %v6379, 7
    %v6381 = vsub.s32 0, %v6380
    %v6382 = vrot.slane %v6134, %v6381
    %v6385 = vlaneseq
    %v6386 = vshrl.u32 %v6385, 7
    %v6387 = vsub.s32 0, %v6386
    %v6388 = vrot.slane %v6170, %v6387
    %v6389 = vlaneseq
    %v6390 = vshrl.u32 %v6389, 7
    %v6391 = vsub.s32 0, %v6390
    %v6392 = vrot.slane %v6171, %v6391
    %v6395 = vlaneseq
    %v6396 = vshrl.u32 %v6395, 7
    %v6397 = vsub.s32 0, %v6396
    %v6398 = vrot.slane %v6214, %v6397
    %v6399 = vlaneseq
    %v6400 = vshrl.u32 %v6399, 7
    %v6401 = vsub.s32 0, %v6400
    %v6402 = vrot.slane %v6206, %v6401
    %v6405 = vlaneseq
    %v6406 = vshrl.u32 %v6405, 7
    %v6407 = vsub.s32 0, %v6406
    %v6408 = vrot.slane %v6243, %v6407
    %v6409 = vlaneseq
    %v6410 = vshrl.u32 %v6409, 7
    %v6411 = vsub.s32 0, %v6410
    %v6412 = vrot.slane %v6250, %v6411
    %v6415 = vlaneseq
    %v6416 = vshrl.u32 %v6415, 7
    %v6417 = vsub.s32 0, %v6416
    %v6418 = vrot.slane %v6286, %v6417
    %v6419 = vlaneseq
    %v6420 = vshrl.u32 %v6419, 7
    %v6421 = vsub.s32 0, %v6420
    %v6422 = vrot.slane %v6287, %v6421
    %v6425 = vlaneseq
    %v6426 = vshrl.u32 %v6425, 7
    %v6427 = vsub.s32 0, %v6426
    %v6428 = vrot.slane %v6324, %v6427
    %v6429 = vlaneseq
    %v6430 = vshrl.u32 %v6429, 7
    %v6431 = vsub.s32 0, %v6430
    %v6432 = vrot.slane %v6325, %v6431
    %v6435 = vlaneseq
    %v6436 = vshrl.u32 %v6435, 7
    %v6437 = vsub.s32 0, %v6436
    %v6438 = vrot.slane %v6360, %v6437
    %v6439 = vlaneseq
    %v6440 = vshrl.u32 %v6439, 7
    %v6441 = vsub.s32 0, %v6440
    %v6442 = vrot.slane %v6374, %v6441
    %v6445 = vsel %vm3092, %v6089, %v6378
    %v6446 = vsel %vm3092, %v6096, %v6382
    %v6447 = vsel %vm3095, %v6445, %v6388
    %v6448 = vsel %vm3095, %v6446, %v6392
    %v6449 = vsel %vm3098, %v6447, %v6398
    %v6450 = vsel %vm3098, %v6448, %v6402
    %v6451 = vsel %vm3101, %v6449, %v6408
    %v6452 = vsel %vm3101, %v6450, %v6412
    %v6453 = vsel %vm3104, %v6451, %v6418
    %v6454 = vsel %vm3104, %v6452, %v6422
    %v6455 = vsel %vm3107, %v6453, %v6428
    %v6456 = vsel %vm3107, %v6454, %v6432
    %v6457 = vsel %vm3110, %v6455, %v6438
    %v6458 = vsel %vm3110, %v6456, %v6442
    %v6459 = vsel %vm462, %v6457, 0.0
    %v6460 = vrot.slane %v6459, 4
    %v6461 = vadd.f32 %v6459, %v6460
    %v6462 = vrot.slane %v6461, 2
    %v6463 = vadd.f32 %v6461, %v6462
    %v6464 = vrot.slane %v6463, 1
    %v6465 = vadd.f32 %v6463, %v6464
    %v6466 = vsel %vm462, %v6458, 0.0
    %v6467 = vrot.slane %v6466, 4
    %v6468 = vadd.f32 %v6466, %v6467
    %v6469 = vrot.slane %v6468, 2
    %v6470 = vadd.f32 %v6468, %v6469
    %v6471 = vrot.slane %v6470, 1
    %v6472 = vadd.f32 %v6470, %v6471
    %v6473 = vrcp.pop 8.0
    %v6474 = vmul.f32 %v6465, %v6473
    %v6475 = vmul.f32 %v6472, %v6473
    %v6476 = vld [vmem:[%s53] sm:$0xff]
    %v6477 = vld [vmem:[%s53 + $0x8] sm:$0xff]
    %v6478 = vld [vmem:[%s53 + $0x10] sm:$0xff]
    %v6479 = vld [vmem:[%s53 + $0x18] sm:$0xff]
    %v6482 = vsel %vm3311, %v6475, %v6474
    %v6483 = vsel %vm462, %v6482, 0
    %6485 = vmatprep.subr.mxu0 0.0
    %6486 = vmatpush1.msra.mxu0 %v6476
    %6487 = vmatprep.subr.mxu0 0.0
    %6488 = vmatpush1.msra.mxu0 %v6477
    %6489 = vmatprep.subr.mxu0 0.0
    %6490 = vmatpush1.msra.mxu0 %v6478
    %6491 = vmatprep.subr.mxu0 0.0
    %6492 = vmatpush1.msra.mxu0 %v6479
    %6493 = vmatprep.subr.mxu0 0.0
    %6494 = vmatpush1.msra.mxu0 0.0
    %6495 = vmatprep.subr.mxu0 0.0
    %6496 = vmatpush1.msra.mxu0 0.0
    %6497 = vmatprep.subr.mxu0 0.0
    %6498 = vmatpush1.msra.mxu0 0.0
    %6499 = vmatprep.subr.mxu0 0.0
    %6500 = vmatpush1.msra.mxu0 0.0
    %6501 = vmatprep.subr.mxu0 0.0
    %6502 = vmatpush1.msra.mxu0 0.0
    %6503 = vmatprep.subr.mxu0 0.0
    %6504 = vmatpush1.msra.mxu0 0.0
    %6505 = vmatprep.subr.mxu0 0.0
    %6506 = vmatpush1.msra.mxu0 0.0
    %6507 = vmatprep.subr.mxu0 0.0
    %6508 = vmatpush1.msra.mxu0 0.0
    %6509 = vmatprep.subr.mxu0 0.0
    %6510 = vmatpush1.msra.mxu0 0.0
    %6511 = vmatprep.subr.mxu0 0.0
    %6512 = vmatpush1.msra.mxu0 0.0
    %6513 = vmatprep.subr.mxu0 0.0
    %6514 = vmatpush1.msra.mxu0 0.0
    %6515 = vmatprep.subr.mxu0 0.0
    %6516 = vmatpush1.msra.mxu0 0.0
    %6517 = vmatprep.subr.mxu0 0.0
    %6518 = vmatpush1.msra.mxu0 0.0
    %6519 = vmatprep.subr.mxu0 0.0
    %6520 = vmatpush1.msra.mxu0 0.0
    %6521 = vmatprep.subr.mxu0 0.0
    %6522 = vmatpush1.msra.mxu0 0.0
    %6523 = vmatprep.subr.mxu0 0.0
    %6524 = vmatpush1.msra.mxu0 0.0
    %6525 = vmatprep.subr.mxu0 0.0
    %6526 = vmatpush1.msra.mxu0 0.0
    %6527 = vmatprep.subr.mxu0 0.0
    %6528 = vmatpush1.msra.mxu0 0.0
    %6529 = vmatprep.subr.mxu0 0.0
    %6530 = vmatpush1.msra.mxu0 0.0
    %6531 = vmatprep.subr.mxu0 0.0
    %6532 = vmatpush1.msra.mxu0 0.0
    %6533 = vmatprep.subr.mxu0 0.0
    %6534 = vmatpush1.msra.mxu0 0.0
    %6535 = vmatprep.subr.mxu0 0.0
    %6536 = vmatpush1.msra.mxu0 0.0
    %6537 = vmatprep.subr.mxu0 0.0
    %6538 = vmatpush1.msra.mxu0 0.0
    %6539 = vmatprep.subr.mxu0 0.0
    %6540 = vmatpush1.msra.mxu0 0.0
    %6541 = vmatprep.subr.mxu0 0.0
    %6542 = vmatpush1.msra.mxu0 0.0
    %6543 = vmatprep.subr.mxu0 0.0
    %6544 = vmatpush1.msra.mxu0 0.0
    %6545 = vmatprep.subr.mxu0 0.0
    %6546 = vmatpush1.msra.mxu0 0.0
    %6547 = vmatprep.subr.mxu0 0.0
    %6548 = vmatpush1.msra.mxu0 0.0
    %6549 = vmatprep.mubr.f32.mxu0 0.0
    %6550 = vmatmul.mubr.f32.gmra.mrb[0].mxu0 %v6483
    %v6551 = vpop.f32.mrb[0].mxu0
    %v6552 = vadd.f32 0.0, %v6551
    %v6553 = vpop.f32.mrb[0].mxu0
    %6554 = vdwg.mxu0
    %v6555 = vmax.f32 %v6552, 0.0
    %v6556 = vld [vmem:[%s55] sm:$0x3]
    %vm6557 = vcmask 15360
    %v6559 = vsel %vm6557, %v6555, 0
    %v6562 = vsel %vm3095, %v6556, 0
    %6564 = vmatprep.subr.mxu0 0.0
    %6565 = vmatpush1.msra.mxu0 %v6562
    %6566 = vmatprep.subr.mxu0 0.0
    %6567 = vmatpush1.msra.mxu0 0.0
    %6568 = vmatprep.subr.mxu0 0.0
    %6569 = vmatpush1.msra.mxu0 0.0
    %6570 = vmatprep.subr.mxu0 0.0
    %6571 = vmatpush1.msra.mxu0 0.0
    %6572 = vmatprep.subr.mxu0 0.0
    %6573 = vmatpush1.msra.mxu0 0.0
    %6574 = vmatprep.subr.mxu0 0.0
    %6575 = vmatpush1.msra.mxu0 0.0
    %6576 = vmatprep.subr.mxu0 0.0
    %6577 = vmatpush1.msra.mxu0 0.0
    %6578 = vmatprep.subr.mxu0 0.0
    %6579 = vmatpush1.msra.mxu0 0.0
    %6580 = vmatprep.subr.mxu0 0.0
    %6581 = vmatpush1.msra.mxu0 0.0
    %6582 = vmatprep.subr.mxu0 0.0
    %6583 = vmatpush1.msra.mxu0 0.0
    %6584 = vmatprep.subr.mxu0 0.0
    %6585 = vmatpush1.msra.mxu0 0.0
    %6586 = vmatprep.subr.mxu0 0.0
    %6587 = vmatpush1.msra.mxu0 0.0
    %6588 = vmatprep.subr.mxu0 0.0
    %6589 = vmatpush1.msra.mxu0 0.0
    %6590 = vmatprep.subr.mxu0 0.0
    %6591 = vmatpush1.msra.mxu0 0.0
    %6592 = vmatprep.subr.mxu0 0.0
    %6593 = vmatpush1.msra.mxu0 0.0
    %6594 = vmatprep.subr.mxu0 0.0
    %6595 = vmatpush1.msra.mxu0 0.0
    %6596 = vmatprep.subr.mxu0 0.0
    %6597 = vmatpush1.msra.mxu0 0.0
    %6598 = vmatprep.subr.mxu0 0.0
    %6599 = vmatpush1.msra.mxu0 0.0
    %6600 = vmatprep.subr.mxu0 0.0
    %6601 = vmatpush1.msra.mxu0 0.0
    %6602 = vmatprep.subr.mxu0 0.0
    %6603 = vmatpush1.msra.mxu0 0.0
    %6604 = vmatprep.subr.mxu0 0.0
    %6605 = vmatpush1.msra.mxu0 0.0
    %6606 = vmatprep.subr.mxu0 0.0
    %6607 = vmatpush1.msra.mxu0 0.0
    %6608 = vmatprep.subr.mxu0 0.0
    %6609 = vmatpush1.msra.mxu0 0.0
    %6610 = vmatprep.subr.mxu0 0.0
    %6611 = vmatpush1.msra.mxu0 0.0
    %6612 = vmatprep.subr.mxu0 0.0
    %6613 = vmatpush1.msra.mxu0 0.0
    %6614 = vmatprep.subr.mxu0 0.0
    %6615 = vmatpush1.msra.mxu0 0.0
    %6616 = vmatprep.subr.mxu0 0.0
    %6617 = vmatpush1.msra.mxu0 0.0
    %6618 = vmatprep.subr.mxu0 0.0
    %6619 = vmatpush1.msra.mxu0 0.0
    %6620 = vmatprep.subr.mxu0 0.0
    %6621 = vmatpush1.msra.mxu0 0.0
    %6622 = vmatprep.subr.mxu0 0.0
    %6623 = vmatpush1.msra.mxu0 0.0
    %6624 = vmatprep.subr.mxu0 0.0
    %6625 = vmatpush1.msra.mxu0 0.0
    %6626 = vmatprep.subr.mxu0 0.0
    %6627 = vmatpush1.msra.mxu0 0.0
    %6628 = vmatprep.mubr.f32.mxu0 0.0
    %6629 = vmatmul.mubr.f32.gmra.mrb[0].mxu0 %v6559
    %v6630 = vpop.f32.mrb[0].mxu0
    %v6631 = vadd.f32 0.0, %v6630
    %v6632 = vpop.f32.mrb[0].mxu0
    %6633 = vdwg.mxu0
    %v6634 = vxor.u32 %v6631, 2147483648
    %v6635 = vmul.f32 %v6634, 1.442695
    %v6636 = vpow.pop %v6635
    %v6637 = vadd.f32 %v6636, 1.0
    %v6638 = vrcp.pop %v6637
    %v6639 = vmul.f32 1.0, %v6638
    %v6642 = vunpack.c.l.s4 1966171168
    %v6643 = vunpack.c.0.s8 %v6642
    %v6644 = vlaneseq
    %v6645 = vshrl.u32 %v6644, 7
    %v6646 = vsub.s32 %v6643, %v6645
    %v6647 = vrot.slane %v6639, %v6646
    %v6648 = vcombine.high %v6647, %v6647
    %v6650 = vunpack.c.l.s4 1966171168
    %v6651 = vunpack.c.0.s8 %v6650
    %v6652 = vlaneseq
    %v6653 = vshrl.u32 %v6652, 7
    %v6654 = vsub.s32 %v6651, %v6653
    %v6655 = vrot.slane %v6647, %v6654
    %v6657 = vunpack.c.l.s4 1966171168
    %v6658 = vunpack.c.0.s8 %v6657
    %v6659 = vlaneseq
    %v6660 = vshrl.u32 %v6659, 7
    %v6661 = vsub.s32 %v6658, %v6660
    %v6662 = vrot.slane %v6648, %v6661
    %v6663 = vlaneseq
    %v6664 = vshrl.u32 %v6663, 7
    %v6665 = vsub.s32 0, %v6664
    %v6666 = vrot.slane %v6655, %v6665
    %v6667 = vlaneseq
    %v6668 = vshrl.u32 %v6667, 7
    %v6669 = vsub.s32 0, %v6668
    %v6670 = vrot.slane %v6662, %v6669
    %v6673 = vmul.f32 %v6457, %v6666
    %v6674 = vmul.f32 %v6458, %v6670
    %v6675 = vld [vmem:[%s57] sm:$0xff]
    %v6676 = vld [vmem:[%s57 + $0x8] sm:$0xff]
    %v6677 = vld [vmem:[%s57 + $0x10] sm:$0xff]
    %v6678 = vld [vmem:[%s57 + $0x18] sm:$0xff]
    %v6679 = vld [vmem:[%s59] sm:$0x1]
    %v6681 = vlaneseq
    %v6682 = vshrl.u32 %v6681, 7
    %v6683 = vsub.s32 0, %v6682
    %v6684 = vrot.slane %v6679, %v6683
    %v6687 = vsel %vm462, %v6673, 0
    %v6690 = vsel %vm462, %v6674, 0
    %6692 = vmatprep.subr.mxu0 0.0
    %6693 = vmatpush1.msra.mxu0 %v6675
    %6694 = vmatprep.subr.mxu0 0.0
    %6695 = vmatpush1.msra.mxu0 %v6676
    %6696 = vmatprep.subr.mxu0 0.0
    %6697 = vmatpush1.msra.mxu0 %v6677
    %6698 = vmatprep.subr.mxu0 0.0
    %6699 = vmatpush1.msra.mxu0 %v6678
    %6700 = vmatprep.subr.mxu0 0.0
    %6701 = vmatpush1.msra.mxu0 0.0
    %6702 = vmatprep.subr.mxu0 0.0
    %6703 = vmatpush1.msra.mxu0 0.0
    %6704 = vmatprep.subr.mxu0 0.0
    %6705 = vmatpush1.msra.mxu0 0.0
    %6706 = vmatprep.subr.mxu0 0.0
    %6707 = vmatpush1.msra.mxu0 0.0
    %6708 = vmatprep.subr.mxu0 0.0
    %6709 = vmatpush1.msra.mxu0 0.0
    %6710 = vmatprep.subr.mxu0 0.0
    %6711 = vmatpush1.msra.mxu0 0.0
    %6712 = vmatprep.subr.mxu0 0.0
    %6713 = vmatpush1.msra.mxu0 0.0
    %6714 = vmatprep.subr.mxu0 0.0
    %6715 = vmatpush1.msra.mxu0 0.0
    %6716 = vmatprep.subr.mxu0 0.0
    %6717 = vmatpush1.msra.mxu0 0.0
    %6718 = vmatprep.subr.mxu0 0.0
    %6719 = vmatpush1.msra.mxu0 0.0
    %6720 = vmatprep.subr.mxu0 0.0
    %6721 = vmatpush1.msra.mxu0 0.0
    %6722 = vmatprep.subr.mxu0 0.0
    %6723 = vmatpush1.msra.mxu0 0.0
    %6724 = vmatprep.subr.mxu0 0.0
    %6725 = vmatpush1.msra.mxu0 0.0
    %6726 = vmatprep.subr.mxu0 0.0
    %6727 = vmatpush1.msra.mxu0 0.0
    %6728 = vmatprep.subr.mxu0 0.0
    %6729 = vmatpush1.msra.mxu0 0.0
    %6730 = vmatprep.subr.mxu0 0.0
    %6731 = vmatpush1.msra.mxu0 0.0
    %6732 = vmatprep.subr.mxu0 0.0
    %6733 = vmatpush1.msra.mxu0 0.0
    %6734 = vmatprep.subr.mxu0 0.0
    %6735 = vmatpush1.msra.mxu0 0.0
    %6736 = vmatprep.subr.mxu0 0.0
    %6737 = vmatpush1.msra.mxu0 0.0
    %6738 = vmatprep.subr.mxu0 0.0
    %6739 = vmatpush1.msra.mxu0 0.0
    %6740 = vmatprep.subr.mxu0 0.0
    %6741 = vmatpush1.msra.mxu0 0.0
    %6742 = vmatprep.subr.mxu0 0.0
    %6743 = vmatpush1.msra.mxu0 0.0
    %6744 = vmatprep.subr.mxu0 0.0
    %6745 = vmatpush1.msra.mxu0 0.0
    %6746 = vmatprep.subr.mxu0 0.0
    %6747 = vmatpush1.msra.mxu0 0.0
    %6748 = vmatprep.subr.mxu0 0.0
    %6749 = vmatpush1.msra.mxu0 0.0
    %6750 = vmatprep.subr.mxu0 0.0
    %6751 = vmatpush1.msra.mxu0 0.0
    %6752 = vmatprep.subr.mxu0 0.0
    %6753 = vmatpush1.msra.mxu0 0.0
    %6754 = vmatprep.subr.mxu0 0.0
    %6755 = vmatpush1.msra.mxu0 0.0
    %6756 = vmatprep.mubr.f32.mxu0 0.0
    %6757 = vmatmul.mubr.f32.gmra.mrb[0].mxu0 %v6687
    %v6758 = vpop.f32.mrb[0].mxu0
    %v6759 = vadd.f32 %v6684, %v6758
    %v6760 = vpop.f32.mrb[0].mxu0
    %6761 = vmatprep.mubr.f32.mxu0 0.0
    %6762 = vmatmul.mubr.f32.gmra.mrb[0].mxu0 %v6690
    %v6763 = vpop.f32.mrb[0].mxu0
    %v6764 = vadd.f32 %v6684, %v6763
    %v6765 = vpop.f32.mrb[0].mxu0
    %6766 = vdwg.mxu0
    %v6767 = vld [vmem:[#allocation23] sm:$0x1]
    %v6768 = vld [vmem:[#allocation25] sm:$0xff]
    %v6769 = vld [vmem:[#allocation26] sm:$0x1]
    %v6770 = vld [vmem:[%s5] sm:$0x3]
    %6771 = vset.pattern.permute.xlu0 0
    %6772 = vperm.xlu0 %6771, %v6770
    %v6773 = vpop.permute.xlu0 %6772
    %vm6774 = vcmp.eq.s32.totalorder %v347, %v6773
    %v6775 = vsel %vm6774, 1, 0
    %v6776 = vcvt.s32.f32 %v6775
    %v6778 = vlaneseq
    %v6779 = vshrl.u32 %v6778, 7
    %v6780 = vsub.s32 0, %v6779
    %v6781 = vrot.slane %v6767, %v6780
    %v6785 = vrot.slane %v6764, 7
    %v6786 = vsel %vm3311, %v6785, %v6759
    %v6788 = vadd.f32 %v6781, %v6786
    %v6789 = vmul.f32 %v6788, %v6776
    %vm6790 = vcmask 58368
    %v6791 = vsel %vm6790, %v6789, 0.0
    %6792 = vadd.xlane.f32.xlu0 %v6791
    %v6793 = vpop.xlane.xlu0 %6792
    %6794 = vset.pattern.permute.xlu0 1
    %6795 = vperm.xlu0 %6794, %v6770
    %v6796 = vpop.permute.xlu0 %6795
    %vm6797 = vcmp.eq.s32.totalorder %v347, %v6796
    %v6798 = vsel %vm6797, 1, 0
    %v6799 = vcvt.s32.f32 %v6798
    %v6801 = vsel %vm799, %v6776, 0
    %6803 = vmatprep.subr.mxu0 0.0
    %6804 = vmatpush1.msra.mxu0 %v6768
    %6805 = vmatprep.subr.mxu0 0.0
    %6806 = vmatpush1.msra.mxu0 0.0
    %6807 = vmatprep.subr.mxu0 0.0
    %6808 = vmatpush1.msra.mxu0 0.0
    %6809 = vmatprep.subr.mxu0 0.0
    %6810 = vmatpush1.msra.mxu0 0.0
    %6811 = vmatprep.subr.mxu0 0.0
    %6812 = vmatpush1.msra.mxu0 0.0
    %6813 = vmatprep.subr.mxu0 0.0
    %6814 = vmatpush1.msra.mxu0 0.0
    %6815 = vmatprep.subr.mxu0 0.0
    %6816 = vmatpush1.msra.mxu0 0.0
    %6817 = vmatprep.subr.mxu0 0.0
    %6818 = vmatpush1.msra.mxu0 0.0
    %6819 = vmatprep.subr.mxu0 0.0
    %6820 = vmatpush1.msra.mxu0 0.0
    %6821 = vmatprep.subr.mxu0 0.0
    %6822 = vmatpush1.msra.mxu0 0.0
    %6823 = vmatprep.subr.mxu0 0.0
    %6824 = vmatpush1.msra.mxu0 0.0
    %6825 = vmatprep.subr.mxu0 0.0
    %6826 = vmatpush1.msra.mxu0 0.0
    %6827 = vmatprep.subr.mxu0 0.0
    %6828 = vmatpush1.msra.mxu0 0.0
    %6829 = vmatprep.subr.mxu0 0.0
    %6830 = vmatpush1.msra.mxu0 0.0
    %6831 = vmatprep.subr.mxu0 0.0
    %6832 = vmatpush1.msra.mxu0 0.0
    %6833 = vmatprep.subr.mxu0 0.0
    %6834 = vmatpush1.msra.mxu0 0.0
    %6835 = vmatprep.subr.mxu0 0.0
    %6836 = vmatpush1.msra.mxu0 0.0
    %6837 = vmatprep.subr.mxu0 0.0
    %6838 = vmatpush1.msra.mxu0 0.0
    %6839 = vmatprep.subr.mxu0 0.0
    %6840 = vmatpush1.msra.mxu0 0.0
    %6841 = vmatprep.subr.mxu0 0.0
    %6842 = vmatpush1.msra.mxu0 0.0
    %6843 = vmatprep.subr.mxu0 0.0
    %6844 = vmatpush1.msra.mxu0 0.0
    %6845 = vmatprep.subr.mxu0 0.0
    %6846 = vmatpush1.msra.mxu0 0.0
    %6847 = vmatprep.subr.mxu0 0.0
    %6848 = vmatpush1.msra.mxu0 0.0
    %6849 = vmatprep.subr.mxu0 0.0
    %6850 = vmatpush1.msra.mxu0 0.0
    %6851 = vmatprep.subr.mxu0 0.0
    %6852 = vmatpush1.msra.mxu0 0.0
    %6853 = vmatprep.subr.mxu0 0.0
    %6854 = vmatpush1.msra.mxu0 0.0
    %6855 = vmatprep.subr.mxu0 0.0
    %6856 = vmatpush1.msra.mxu0 0.0
    %6857 = vmatprep.subr.mxu0 0.0
    %6858 = vmatpush1.msra.mxu0 0.0
    %6859 = vmatprep.subr.mxu0 0.0
    %6860 = vmatpush1.msra.mxu0 0.0
    %6861 = vmatprep.subr.mxu0 0.0
    %6862 = vmatpush1.msra.mxu0 0.0
    %6863 = vmatprep.subr.mxu0 0.0
    %6864 = vmatpush1.msra.mxu0 0.0
    %6865 = vmatprep.subr.mxu0 0.0
    %6866 = vmatpush1.msra.mxu0 0.0
    %6867 = vmatprep.mubr.f32.mxu0 0.0
    %6868 = vmatmul.mubr.f32.gmra.mrb[0].mxu0 %v6801
    %v6869 = vpop.f32.mrb[0].mxu0
    %v6870 = vadd.f32 0.0, %v6869
    %v6871 = vpop.f32.mrb[0].mxu0
    %6872 = vdwg.mxu0
    %v6873 = vmul.f32 %v6870, %v6799
    %v6874 = vsel %vm6790, %v6873, 0.0
    %6875 = vadd.xlane.f32.xlu0 %v6874
    %v6876 = vpop.xlane.xlu0 %6875
    %v6878 = vrot.slane %v6799, 7
    %v6881 = vmul.f32 %v6759, %v6878
    %v6882 = vmul.f32 %v6764, %v6799
    %v6885 = vrot.slane %v6882, 7
    %v6886 = vsel %vm4322, %v6885, %v6881
    %vm6888 = vcmask 59393
    %v6889 = vsel %vm6888, %v6886, 0.0
    %6890 = vadd.xlane.f32.xlu0 %v6889
    %v6891 = vpop.xlane.xlu0 %6890
    %v6893 = vrot.slane %v6891, 1
    %v6895 = vadd.f32 %v6876, %v6893
    %6897 = vrot.lane.b32.xlu0 %v6895, 1
    %v6898 = vpop.permute.xlu0 %6897
    %v6900 = vmul.f32 %v512, %v6898
    %v6901 = vadd.f32 %v6793, %v6900
    %v6902 = vlaneseq
    %v6903 = vshrl.u32 %v6902, 7
    %v6904 = vsub.s32 0, %v6903
    %v6905 = vrot.slane %v6788, %v6904
    %6907 = vbcast.lane.b32.xlu0 %v6905, 256
    %v6908 = vpop.permute.xlu0 %6907
    %v6909 = vlaneseq
    %v6910 = vshrl.u32 %v6909, 7
    %v6911 = vsub.s32 1, %v6910
    %v6912 = vrot.slane %v6788, %v6911
    %6914 = vbcast.lane.b32.xlu0 %v6912, 256
    %v6915 = vpop.permute.xlu0 %6914
    %v6916 = vadd.f32 %v6908, %v6768
    %v6917 = vadd.f32 %v6915, %v6768
    %v6918 = vlaneseq
    %v6919 = vshrl.u32 %v6918, 7
    %v6920 = vsub.s32 1, %v6919
    %v6921 = vrot.slane %v6759, %v6920
    %v6922 = vlaneseq
    %v6923 = vshrl.u32 %v6922, 7
    %v6924 = vsub.s32 1, %v6923
    %v6925 = vrot.slane %v6764, %v6924
    %v6926 = vadd.f32 %v6916, %v6921
    %v6927 = vadd.f32 %v6917, %v6925
    %v6928 = vsel %vm799, %v6926, -inf
    %v6929 = vrot.slane %v6928, 4
    %v6930 = vmax.f32 %v6928, %v6929
    %v6931 = vrot.slane %v6930, 2
    %v6932 = vmax.f32 %v6930, %v6931
    %v6933 = vrot.slane %v6932, 1
    %v6934 = vmax.f32 %v6932, %v6933
    %v6935 = vsel %vm799, %v6927, -inf
    %v6936 = vrot.slane %v6935, 4
    %v6937 = vmax.f32 %v6935, %v6936
    %v6938 = vrot.slane %v6937, 2
    %v6939 = vmax.f32 %v6937, %v6938
    %v6940 = vrot.slane %v6939, 1
    %v6941 = vmax.f32 %v6939, %v6940
    %v6942 = vsub.f32 %v6926, %v6934
    %v6943 = vsub.f32 %v6927, %v6941
    %v6944 = vmul.f32 %v6942, 1.442695
    %v6945 = vpow.pop %v6944
    %v6946 = vmul.f32 %v6943, 1.442695
    %v6947 = vpow.pop %v6946
    %v6948 = vsel %vm799, %v6945, 0.0
    %v6949 = vrot.slane %v6948, 4
    %v6950 = vadd.f32 %v6948, %v6949
    %v6951 = vrot.slane %v6950, 2
    %v6952 = vadd.f32 %v6950, %v6951
    %v6953 = vrot.slane %v6952, 1
    %v6954 = vadd.f32 %v6952, %v6953
    %v6955 = vsel %vm799, %v6947, 0.0
    %v6956 = vrot.slane %v6955, 4
    %v6957 = vadd.f32 %v6955, %v6956
    %v6958 = vrot.slane %v6957, 2
    %v6959 = vadd.f32 %v6957, %v6958
    %v6960 = vrot.slane %v6959, 1
    %v6961 = vadd.f32 %v6959, %v6960
    %v6962 = vlog2.pop %v6954
    %v6963 = vmul.f32 %v6962, 0.6931472
    %v6964 = vlog2.pop %v6961
    %v6965 = vmul.f32 %v6964, 0.6931472
    %v6966 = vadd.f32 %v6934, %v6963
    %v6967 = vadd.f32 %v6941, %v6965
    %vm6968 = vcmp.gt.f32.partialorder %v512, 0.0
    %v6969 = vsel %vm6968, 1, 0
    %6970 = vset.pattern.permute.xlu0 1
    %6971 = vperm.xlu0 %6970, %v6969
    %v6972 = vpop.permute.xlu0 %6971
    %vm6973 = vcmp.eq.s32.totalorder %v6972, 1
    %v6976 = vsel %vm3311, %v6967, %v6966
    %v6978 = vsel %vm6973, %v6976, %v6788
    %v6979 = vsel %vm6973, %v6799, %v6776
    %6980 = vset.pattern.permute.xlu0 2
    %6981 = vperm.xlu0 %6980, %v6770
    %v6982 = vpop.permute.xlu0 %6981
    %vm6983 = vcmp.eq.s32.totalorder %v347, %v6982
    %v6984 = vsel %vm6983, 1, 0
    %v6985 = vcvt.s32.f32 %v6984
    %v6987 = vsel %vm799, %v6979, 0
    %6989 = vmatprep.subr.mxu0 0.0
    %6990 = vmatpush1.msra.mxu0 %v6768
    %6991 = vmatprep.subr.mxu0 0.0
    %6992 = vmatpush1.msra.mxu0 0.0
    %6993 = vmatprep.subr.mxu0 0.0
    %6994 = vmatpush1.msra.mxu0 0.0
    %6995 = vmatprep.subr.mxu0 0.0
    %6996 = vmatpush1.msra.mxu0 0.0
    %6997 = vmatprep.subr.mxu0 0.0
    %6998 = vmatpush1.msra.mxu0 0.0
    %6999 = vmatprep.subr.mxu0 0.0
    %7000 = vmatpush1.msra.mxu0 0.0
    %7001 = vmatprep.subr.mxu0 0.0
    %7002 = vmatpush1.msra.mxu0 0.0
    %7003 = vmatprep.subr.mxu0 0.0
    %7004 = vmatpush1.msra.mxu0 0.0
    %7005 = vmatprep.subr.mxu0 0.0
    %7006 = vmatpush1.msra.mxu0 0.0
    %7007 = vmatprep.subr.mxu0 0.0
    %7008 = vmatpush1.msra.mxu0 0.0
    %7009 = vmatprep.subr.mxu0 0.0
    %7010 = vmatpush1.msra.mxu0 0.0
    %7011 = vmatprep.subr.mxu0 0.0
    %7012 = vmatpush1.msra.mxu0 0.0
    %7013 = vmatprep.subr.mxu0 0.0
    %7014 = vmatpush1.msra.mxu0 0.0
    %7015 = vmatprep.subr.mxu0 0.0
    %7016 = vmatpush1.msra.mxu0 0.0
    %7017 = vmatprep.subr.mxu0 0.0
    %7018 = vmatpush1.msra.mxu0 0.0
    %7019 = vmatprep.subr.mxu0 0.0
    %7020 = vmatpush1.msra.mxu0 0.0
    %7021 = vmatprep.subr.mxu0 0.0
    %7022 = vmatpush1.msra.mxu0 0.0
    %7023 = vmatprep.subr.mxu0 0.0
    %7024 = vmatpush1.msra.mxu0 0.0
    %7025 = vmatprep.subr.mxu0 0.0
    %7026 = vmatpush1.msra.mxu0 0.0
    %7027 = vmatprep.subr.mxu0 0.0
    %7028 = vmatpush1.msra.mxu0 0.0
    %7029 = vmatprep.subr.mxu0 0.0
    %7030 = vmatpush1.msra.mxu0 0.0
    %7031 = vmatprep.subr.mxu0 0.0
    %7032 = vmatpush1.msra.mxu0 0.0
    %7033 = vmatprep.subr.mxu0 0.0
    %7034 = vmatpush1.msra.mxu0 0.0
    %7035 = vmatprep.subr.mxu0 0.0
    %7036 = vmatpush1.msra.mxu0 0.0
    %7037 = vmatprep.subr.mxu0 0.0
    %7038 = vmatpush1.msra.mxu0 0.0
    %7039 = vmatprep.subr.mxu0 0.0
    %7040 = vmatpush1.msra.mxu0 0.0
    %7041 = vmatprep.subr.mxu0 0.0
    %7042 = vmatpush1.msra.mxu0 0.0
    %7043 = vmatprep.subr.mxu0 0.0
    %7044 = vmatpush1.msra.mxu0 0.0
    %7045 = vmatprep.subr.mxu0 0.0
    %7046 = vmatpush1.msra.mxu0 0.0
    %7047 = vmatprep.subr.mxu0 0.0
    %7048 = vmatpush1.msra.mxu0 0.0
    %7049 = vmatprep.subr.mxu0 0.0
    %7050 = vmatpush1.msra.mxu0 0.0
    %7051 = vmatprep.subr.mxu0 0.0
    %7052 = vmatpush1.msra.mxu0 0.0
    %7053 = vmatprep.mubr.f32.mxu0 0.0
    %7054 = vmatmul.mubr.f32.gmra.mrb[0].mxu0 %v6987
    %v7055 = vpop.f32.mrb[0].mxu0
    %v7056 = vadd.f32 0.0, %v7055
    %v7057 = vpop.f32.mrb[0].mxu0
    %7058 = vdwg.mxu0
    %v7059 = vmul.f32 %v7056, %v6985
    %v7060 = vsel %vm6790, %v7059, 0.0
    %7061 = vadd.xlane.f32.xlu0 %v7060
    %v7062 = vpop.xlane.xlu0 %7061
    %v7064 = vrot.slane %v6985, 6
    %v7065 = vrot.slane %v6985, 7
    %v7068 = vmul.f32 %v6759, %v7064
    %v7069 = vmul.f32 %v6764, %v7065
    %v7072 = vrot.slane %v7069, 7
    %v7073 = vsel %vm4359, %v7072, %v7068
    %vm7075 = vcmask 60418
    %v7076 = vsel %vm7075, %v7073, 0.0
    %7077 = vadd.xlane.f32.xlu0 %v7076
    %v7078 = vpop.xlane.xlu0 %7077
    %v7080 = vrot.slane %v7078, 2
    %v7082 = vadd.f32 %v7062, %v7080
    %7084 = vrot.lane.b32.xlu0 %v7082, 2
    %v7085 = vpop.permute.xlu0 %7084
    %v7087 = vmul.f32 %v512, %v7085
    %7089 = vrot.lane.b32.xlu0 %v7087, 127
    %v7090 = vpop.permute.xlu0 %7089
    %v7092 = vadd.f32 %v6901, %v7090
    %v7093 = vlaneseq
    %v7094 = vshrl.u32 %v7093, 7
    %v7095 = vsub.s32 0, %v7094
    %v7096 = vrot.slane %v6978, %v7095
    %7098 = vbcast.lane.b32.xlu0 %v7096, 256
    %v7099 = vpop.permute.xlu0 %7098
    %v7100 = vlaneseq
    %v7101 = vshrl.u32 %v7100, 7
    %v7102 = vsub.s32 1, %v7101
    %v7103 = vrot.slane %v6978, %v7102
    %7105 = vbcast.lane.b32.xlu0 %v7103, 256
    %v7106 = vpop.permute.xlu0 %7105
    %v7107 = vadd.f32 %v7099, %v6768
    %v7108 = vadd.f32 %v7106, %v6768
    %v7109 = vlaneseq
    %v7110 = vshrl.u32 %v7109, 7
    %v7111 = vsub.s32 2, %v7110
    %v7112 = vrot.slane %v6759, %v7111
    %v7113 = vlaneseq
    %v7114 = vshrl.u32 %v7113, 7
    %v7115 = vsub.s32 2, %v7114
    %v7116 = vrot.slane %v6764, %v7115
    %v7117 = vadd.f32 %v7107, %v7112
    %v7118 = vadd.f32 %v7108, %v7116
    %v7119 = vsel %vm799, %v7117, -inf
    %v7120 = vrot.slane %v7119, 4
    %v7121 = vmax.f32 %v7119, %v7120
    %v7122 = vrot.slane %v7121, 2
    %v7123 = vmax.f32 %v7121, %v7122
    %v7124 = vrot.slane %v7123, 1
    %v7125 = vmax.f32 %v7123, %v7124
    %v7126 = vsel %vm799, %v7118, -inf
    %v7127 = vrot.slane %v7126, 4
    %v7128 = vmax.f32 %v7126, %v7127
    %v7129 = vrot.slane %v7128, 2
    %v7130 = vmax.f32 %v7128, %v7129
    %v7131 = vrot.slane %v7130, 1
    %v7132 = vmax.f32 %v7130, %v7131
    %v7133 = vsub.f32 %v7117, %v7125
    %v7134 = vsub.f32 %v7118, %v7132
    %v7135 = vmul.f32 %v7133, 1.442695
    %v7136 = vpow.pop %v7135
    %v7137 = vmul.f32 %v7134, 1.442695
    %v7138 = vpow.pop %v7137
    %v7139 = vsel %vm799, %v7136, 0.0
    %v7140 = vrot.slane %v7139, 4
    %v7141 = vadd.f32 %v7139, %v7140
    %v7142 = vrot.slane %v7141, 2
    %v7143 = vadd.f32 %v7141, %v7142
    %v7144 = vrot.slane %v7143, 1
    %v7145 = vadd.f32 %v7143, %v7144
    %v7146 = vsel %vm799, %v7138, 0.0
    %v7147 = vrot.slane %v7146, 4
    %v7148 = vadd.f32 %v7146, %v7147
    %v7149 = vrot.slane %v7148, 2
    %v7150 = vadd.f32 %v7148, %v7149
    %v7151 = vrot.slane %v7150, 1
    %v7152 = vadd.f32 %v7150, %v7151
    %v7153 = vlog2.pop %v7145
    %v7154 = vmul.f32 %v7153, 0.6931472
    %v7155 = vlog2.pop %v7152
    %v7156 = vmul.f32 %v7155, 0.6931472
    %v7157 = vadd.f32 %v7125, %v7154
    %v7158 = vadd.f32 %v7132, %v7156
    %7159 = vset.pattern.permute.xlu0 2
    %7160 = vperm.xlu0 %7159, %v6969
    %v7161 = vpop.permute.xlu0 %7160
    %vm7162 = vcmp.eq.s32.totalorder %v7161, 1
    %v7165 = vsel %vm3311, %v7158, %v7157
    %v7167 = vsel %vm7162, %v7165, %v6978
    %v7168 = vsel %vm7162, %v6985, %v6979
    %7169 = vset.pattern.permute.xlu0 3
    %7170 = vperm.xlu0 %7169, %v6770
    %v7171 = vpop.permute.xlu0 %7170
    %vm7172 = vcmp.eq.s32.totalorder %v347, %v7171
    %v7173 = vsel %vm7172, 1, 0
    %v7174 = vcvt.s32.f32 %v7173
    %v7176 = vsel %vm799, %v7168, 0
    %7178 = vmatprep.subr.mxu0 0.0
    %7179 = vmatpush1.msra.mxu0 %v6768
    %7180 = vmatprep.subr.mxu0 0.0
    %7181 = vmatpush1.msra.mxu0 0.0
    %7182 = vmatprep.subr.mxu0 0.0
    %7183 = vmatpush1.msra.mxu0 0.0
    %7184 = vmatprep.subr.mxu0 0.0
    %7185 = vmatpush1.msra.mxu0 0.0
    %7186 = vmatprep.subr.mxu0 0.0
    %7187 = vmatpush1.msra.mxu0 0.0
    %7188 = vmatprep.subr.mxu0 0.0
    %7189 = vmatpush1.msra.mxu0 0.0
    %7190 = vmatprep.subr.mxu0 0.0
    %7191 = vmatpush1.msra.mxu0 0.0
    %7192 = vmatprep.subr.mxu0 0.0
    %7193 = vmatpush1.msra.mxu0 0.0
    %7194 = vmatprep.subr.mxu0 0.0
    %7195 = vmatpush1.msra.mxu0 0.0
    %7196 = vmatprep.subr.mxu0 0.0
    %7197 = vmatpush1.msra.mxu0 0.0
    %7198 = vmatprep.subr.mxu0 0.0
    %7199 = vmatpush1.msra.mxu0 0.0
    %7200 = vmatprep.subr.mxu0 0.0
    %7201 = vmatpush1.msra.mxu0 0.0
    %7202 = vmatprep.subr.mxu0 0.0
    %7203 = vmatpush1.msra.mxu0 0.0
    %7204 = vmatprep.subr.mxu0 0.0
    %7205 = vmatpush1.msra.mxu0 0.0
    %7206 = vmatprep.subr.mxu0 0.0
    %7207 = vmatpush1.msra.mxu0 0.0
    %7208 = vmatprep.subr.mxu0 0.0
    %7209 = vmatpush1.msra.mxu0 0.0
    %7210 = vmatprep.subr.mxu0 0.0
    %7211 = vmatpush1.msra.mxu0 0.0
    %7212 = vmatprep.subr.mxu0 0.0
    %7213 = vmatpush1.msra.mxu0 0.0
    %7214 = vmatprep.subr.mxu0 0.0
    %7215 = vmatpush1.msra.mxu0 0.0
    %7216 = vmatprep.subr.mxu0 0.0
    %7217 = vmatpush1.msra.mxu0 0.0
    %7218 = vmatprep.subr.mxu0 0.0
    %7219 = vmatpush1.msra.mxu0 0.0
    %7220 = vmatprep.subr.mxu0 0.0
    %7221 = vmatpush1.msra.mxu0 0.0
    %7222 = vmatprep.subr.mxu0 0.0
    %7223 = vmatpush1.msra.mxu0 0.0
    %7224 = vmatprep.subr.mxu0 0.0
    %7225 = vmatpush1.msra.mxu0 0.0
    %7226 = vmatprep.subr.mxu0 0.0
    %7227 = vmatpush1.msra.mxu0 0.0
    %7228 = vmatprep.subr.mxu0 0.0
    %7229 = vmatpush1.msra.mxu0 0.0
    %7230 = vmatprep.subr.mxu0 0.0
    %7231 = vmatpush1.msra.mxu0 0.0
    %7232 = vmatprep.subr.mxu0 0.0
    %7233 = vmatpush1.msra.mxu0 0.0
    %7234 = vmatprep.subr.mxu0 0.0
    %7235 = vmatpush1.msra.mxu0 0.0
    %7236 = vmatprep.subr.mxu0 0.0
    %7237 = vmatpush1.msra.mxu0 0.0
    %7238 = vmatprep.subr.mxu0 0.0
    %7239 = vmatpush1.msra.mxu0 0.0
    %7240 = vmatprep.subr.mxu0 0.0
    %7241 = vmatpush1.msra.mxu0 0.0
    %7242 = vmatprep.mubr.f32.mxu0 0.0
    %7243 = vmatmul.mubr.f32.gmra.mrb[0].mxu0 %v7176
    %v7244 = vpop.f32.mrb[0].mxu0
    %v7245 = vadd.f32 0.0, %v7244
    %v7246 = vpop.f32.mrb[0].mxu0
    %7247 = vdwg.mxu0
    %v7248 = vmul.f32 %v7245, %v7174
    %v7249 = vsel %vm6790, %v7248, 0.0
    %7250 = vadd.xlane.f32.xlu0 %v7249
    %v7251 = vpop.xlane.xlu0 %7250
    %v7253 = vrot.slane %v7174, 5
    %v7254 = vrot.slane %v7174, 6
    %v7257 = vmul.f32 %v6759, %v7253
    %v7258 = vmul.f32 %v6764, %v7254
    %v7261 = vrot.slane %v7258, 7
    %v7262 = vsel %vm4397, %v7261, %v7257
    %vm7264 = vcmask 61443
    %v7265 = vsel %vm7264, %v7262, 0.0
    %7266 = vadd.xlane.f32.xlu0 %v7265
    %v7267 = vpop.xlane.xlu0 %7266
    %v7269 = vrot.slane %v7267, 3
    %v7271 = vadd.f32 %v7251, %v7269
    %7273 = vrot.lane.b32.xlu0 %v7271, 3
    %v7274 = vpop.permute.xlu0 %7273
    %v7276 = vmul.f32 %v512, %v7274
    %7278 = vrot.lane.b32.xlu0 %v7276, 126
    %v7279 = vpop.permute.xlu0 %7278
    %v7281 = vadd.f32 %v7092, %v7279
    %v7282 = vlaneseq
    %v7283 = vshrl.u32 %v7282, 7
    %v7284 = vsub.s32 0, %v7283
    %v7285 = vrot.slane %v7167, %v7284
    %7287 = vbcast.lane.b32.xlu0 %v7285, 256
    %v7288 = vpop.permute.xlu0 %7287
    %v7289 = vlaneseq
    %v7290 = vshrl.u32 %v7289, 7
    %v7291 = vsub.s32 1, %v7290
    %v7292 = vrot.slane %v7167, %v7291
    %7294 = vbcast.lane.b32.xlu0 %v7292, 256
    %v7295 = vpop.permute.xlu0 %7294
    %v7296 = vadd.f32 %v7288, %v6768
    %v7297 = vadd.f32 %v7295, %v6768
    %v7298 = vlaneseq
    %v7299 = vshrl.u32 %v7298, 7
    %v7300 = vsub.s32 3, %v7299
    %v7301 = vrot.slane %v6759, %v7300
    %v7302 = vlaneseq
    %v7303 = vshrl.u32 %v7302, 7
    %v7304 = vsub.s32 3, %v7303
    %v7305 = vrot.slane %v6764, %v7304
    %v7306 = vadd.f32 %v7296, %v7301
    %v7307 = vadd.f32 %v7297, %v7305
    %v7308 = vsel %vm799, %v7306, -inf
    %v7309 = vrot.slane %v7308, 4
    %v7310 = vmax.f32 %v7308, %v7309
    %v7311 = vrot.slane %v7310, 2
    %v7312 = vmax.f32 %v7310, %v7311
    %v7313 = vrot.slane %v7312, 1
    %v7314 = vmax.f32 %v7312, %v7313
    %v7315 = vsel %vm799, %v7307, -inf
    %v7316 = vrot.slane %v7315, 4
    %v7317 = vmax.f32 %v7315, %v7316
    %v7318 = vrot.slane %v7317, 2
    %v7319 = vmax.f32 %v7317, %v7318
    %v7320 = vrot.slane %v7319, 1
    %v7321 = vmax.f32 %v7319, %v7320
    %v7322 = vsub.f32 %v7306, %v7314
    %v7323 = vsub.f32 %v7307, %v7321
    %v7324 = vmul.f32 %v7322, 1.442695
    %v7325 = vpow.pop %v7324
    %v7326 = vmul.f32 %v7323, 1.442695
    %v7327 = vpow.pop %v7326
    %v7328 = vsel %vm799, %v7325, 0.0
    %v7329 = vrot.slane %v7328, 4
    %v7330 = vadd.f32 %v7328, %v7329
    %v7331 = vrot.slane %v7330, 2
    %v7332 = vadd.f32 %v7330, %v7331
    %v7333 = vrot.slane %v7332, 1
    %v7334 = vadd.f32 %v7332, %v7333
    %v7335 = vsel %vm799, %v7327, 0.0
    %v7336 = vrot.slane %v7335, 4
    %v7337 = vadd.f32 %v7335, %v7336
    %v7338 = vrot.slane %v7337, 2
    %v7339 = vadd.f32 %v7337, %v7338
    %v7340 = vrot.slane %v7339, 1
    %v7341 = vadd.f32 %v7339, %v7340
    %v7342 = vlog2.pop %v7334
    %v7343 = vmul.f32 %v7342, 0.6931472
    %v7344 = vlog2.pop %v7341
    %v7345 = vmul.f32 %v7344, 0.6931472
    %v7346 = vadd.f32 %v7314, %v7343
    %v7347 = vadd.f32 %v7321, %v7345
    %7348 = vset.pattern.permute.xlu0 3
    %7349 = vperm.xlu0 %7348, %v6969
    %v7350 = vpop.permute.xlu0 %7349
    %vm7351 = vcmp.eq.s32.totalorder %v7350, 1
    %v7354 = vsel %vm3311, %v7347, %v7346
    %v7356 = vsel %vm7351, %v7354, %v7167
    %v7357 = vsel %vm7351, %v7174, %v7168
    %7358 = vset.pattern.permute.xlu0 4
    %7359 = vperm.xlu0 %7358, %v6770
    %v7360 = vpop.permute.xlu0 %7359
    %vm7361 = vcmp.eq.s32.totalorder %v347, %v7360
    %v7362 = vsel %vm7361, 1, 0
    %v7363 = vcvt.s32.f32 %v7362
    %v7365 = vsel %vm799, %v7357, 0
    %7367 = vmatprep.subr.mxu0 0.0
    %7368 = vmatpush1.msra.mxu0 %v6768
    %7369 = vmatprep.subr.mxu0 0.0
    %7370 = vmatpush1.msra.mxu0 0.0
    %7371 = vmatprep.subr.mxu0 0.0
    %7372 = vmatpush1.msra.mxu0 0.0
    %7373 = vmatprep.subr.mxu0 0.0
    %7374 = vmatpush1.msra.mxu0 0.0
    %7375 = vmatprep.subr.mxu0 0.0
    %7376 = vmatpush1.msra.mxu0 0.0
    %7377 = vmatprep.subr.mxu0 0.0
    %7378 = vmatpush1.msra.mxu0 0.0
    %7379 = vmatprep.subr.mxu0 0.0
    %7380 = vmatpush1.msra.mxu0 0.0
    %7381 = vmatprep.subr.mxu0 0.0
    %7382 = vmatpush1.msra.mxu0 0.0
    %7383 = vmatprep.subr.mxu0 0.0
    %7384 = vmatpush1.msra.mxu0 0.0
    %7385 = vmatprep.subr.mxu0 0.0
    %7386 = vmatpush1.msra.mxu0 0.0
    %7387 = vmatprep.subr.mxu0 0.0
    %7388 = vmatpush1.msra.mxu0 0.0
    %7389 = vmatprep.subr.mxu0 0.0
    %7390 = vmatpush1.msra.mxu0 0.0
    %7391 = vmatprep.subr.mxu0 0.0
    %7392 = vmatpush1.msra.mxu0 0.0
    %7393 = vmatprep.subr.mxu0 0.0
    %7394 = vmatpush1.msra.mxu0 0.0
    %7395 = vmatprep.subr.mxu0 0.0
    %7396 = vmatpush1.msra.mxu0 0.0
    %7397 = vmatprep.subr.mxu0 0.0
    %7398 = vmatpush1.msra.mxu0 0.0
    %7399 = vmatprep.subr.mxu0 0.0
    %7400 = vmatpush1.msra.mxu0 0.0
    %7401 = vmatprep.subr.mxu0 0.0
    %7402 = vmatpush1.msra.mxu0 0.0
    %7403 = vmatprep.subr.mxu0 0.0
    %7404 = vmatpush1.msra.mxu0 0.0
    %7405 = vmatprep.subr.mxu0 0.0
    %7406 = vmatpush1.msra.mxu0 0.0
    %7407 = vmatprep.subr.mxu0 0.0
    %7408 = vmatpush1.msra.mxu0 0.0
    %7409 = vmatprep.subr.mxu0 0.0
    %7410 = vmatpush1.msra.mxu0 0.0
    %7411 = vmatprep.subr.mxu0 0.0
    %7412 = vmatpush1.msra.mxu0 0.0
    %7413 = vmatprep.subr.mxu0 0.0
    %7414 = vmatpush1.msra.mxu0 0.0
    %7415 = vmatprep.subr.mxu0 0.0
    %7416 = vmatpush1.msra.mxu0 0.0
    %7417 = vmatprep.subr.mxu0 0.0
    %7418 = vmatpush1.msra.mxu0 0.0
    %7419 = vmatprep.subr.mxu0 0.0
    %7420 = vmatpush1.msra.mxu0 0.0
    %7421 = vmatprep.subr.mxu0 0.0
    %7422 = vmatpush1.msra.mxu0 0.0
    %7423 = vmatprep.subr.mxu0 0.0
    %7424 = vmatpush1.msra.mxu0 0.0
    %7425 = vmatprep.subr.mxu0 0.0
    %7426 = vmatpush1.msra.mxu0 0.0
    %7427 = vmatprep.subr.mxu0 0.0
    %7428 = vmatpush1.msra.mxu0 0.0
    %7429 = vmatprep.subr.mxu0 0.0
    %7430 = vmatpush1.msra.mxu0 0.0
    %7431 = vmatprep.mubr.f32.mxu0 0.0
    %7432 = vmatmul.mubr.f32.gmra.mrb[0].mxu0 %v7365
    %v7433 = vpop.f32.mrb[0].mxu0
    %v7434 = vadd.f32 0.0, %v7433
    %v7435 = vpop.f32.mrb[0].mxu0
    %7436 = vdwg.mxu0
    %v7437 = vmul.f32 %v7434, %v7363
    %v7438 = vsel %vm6790, %v7437, 0.0
    %7439 = vadd.xlane.f32.xlu0 %v7438
    %v7440 = vpop.xlane.xlu0 %7439
    %v7442 = vrot.slane %v7363, 4
    %v7443 = vrot.slane %v7363, 5
    %v7446 = vmul.f32 %v6759, %v7442
    %v7447 = vmul.f32 %v6764, %v7443
    %v7450 = vrot.slane %v7447, 7
    %v7451 = vsel %vm4441, %v7450, %v7446
    %vm7453 = vcmask 62468
    %v7454 = vsel %vm7453, %v7451, 0.0
    %7455 = vadd.xlane.f32.xlu0 %v7454
    %v7456 = vpop.xlane.xlu0 %7455
    %v7458 = vrot.slane %v7456, 4
    %v7460 = vadd.f32 %v7440, %v7458
    %7462 = vrot.lane.b32.xlu0 %v7460, 4
    %v7463 = vpop.permute.xlu0 %7462
    %v7465 = vmul.f32 %v512, %v7463
    %7467 = vrot.lane.b32.xlu0 %v7465, 125
    %v7468 = vpop.permute.xlu0 %7467
    %v7470 = vadd.f32 %v7281, %v7468
    %v7471 = vlaneseq
    %v7472 = vshrl.u32 %v7471, 7
    %v7473 = vsub.s32 0, %v7472
    %v7474 = vrot.slane %v7356, %v7473
    %7476 = vbcast.lane.b32.xlu0 %v7474, 256
    %v7477 = vpop.permute.xlu0 %7476
    %v7478 = vlaneseq
    %v7479 = vshrl.u32 %v7478, 7
    %v7480 = vsub.s32 1, %v7479
    %v7481 = vrot.slane %v7356, %v7480
    %7483 = vbcast.lane.b32.xlu0 %v7481, 256
    %v7484 = vpop.permute.xlu0 %7483
    %v7485 = vadd.f32 %v7477, %v6768
    %v7486 = vadd.f32 %v7484, %v6768
    %v7487 = vlaneseq
    %v7488 = vshrl.u32 %v7487, 7
    %v7489 = vsub.s32 4, %v7488
    %v7490 = vrot.slane %v6759, %v7489
    %v7491 = vlaneseq
    %v7492 = vshrl.u32 %v7491, 7
    %v7493 = vsub.s32 4, %v7492
    %v7494 = vrot.slane %v6764, %v7493
    %v7495 = vadd.f32 %v7485, %v7490
    %v7496 = vadd.f32 %v7486, %v7494
    %v7497 = vsel %vm799, %v7495, -inf
    %v7498 = vrot.slane %v7497, 4
    %v7499 = vmax.f32 %v7497, %v7498
    %v7500 = vrot.slane %v7499, 2
    %v7501 = vmax.f32 %v7499, %v7500
    %v7502 = vrot.slane %v7501, 1
    %v7503 = vmax.f32 %v7501, %v7502
    %v7504 = vsel %vm799, %v7496, -inf
    %v7505 = vrot.slane %v7504, 4
    %v7506 = vmax.f32 %v7504, %v7505
    %v7507 = vrot.slane %v7506, 2
    %v7508 = vmax.f32 %v7506, %v7507
    %v7509 = vrot.slane %v7508, 1
    %v7510 = vmax.f32 %v7508, %v7509
    %v7511 = vsub.f32 %v7495, %v7503
    %v7512 = vsub.f32 %v7496, %v7510
    %v7513 = vmul.f32 %v7511, 1.442695
    %v7514 = vpow.pop %v7513
    %v7515 = vmul.f32 %v7512, 1.442695
    %v7516 = vpow.pop %v7515
    %v7517 = vsel %vm799, %v7514, 0.0
    %v7518 = vrot.slane %v7517, 4
    %v7519 = vadd.f32 %v7517, %v7518
    %v7520 = vrot.slane %v7519, 2
    %v7521 = vadd.f32 %v7519, %v7520
    %v7522 = vrot.slane %v7521, 1
    %v7523 = vadd.f32 %v7521, %v7522
    %v7524 = vsel %vm799, %v7516, 0.0
    %v7525 = vrot.slane %v7524, 4
    %v7526 = vadd.f32 %v7524, %v7525
    %v7527 = vrot.slane %v7526, 2
    %v7528 = vadd.f32 %v7526, %v7527
    %v7529 = vrot.slane %v7528, 1
    %v7530 = vadd.f32 %v7528, %v7529
    %v7531 = vlog2.pop %v7523
    %v7532 = vmul.f32 %v7531, 0.6931472
    %v7533 = vlog2.pop %v7530
    %v7534 = vmul.f32 %v7533, 0.6931472
    %v7535 = vadd.f32 %v7503, %v7532
    %v7536 = vadd.f32 %v7510, %v7534
    %7537 = vset.pattern.permute.xlu0 4
    %7538 = vperm.xlu0 %7537, %v6969
    %v7539 = vpop.permute.xlu0 %7538
    %vm7540 = vcmp.eq.s32.totalorder %v7539, 1
    %v7543 = vsel %vm3311, %v7536, %v7535
    %v7545 = vsel %vm7540, %v7543, %v7356
    %v7546 = vsel %vm7540, %v7363, %v7357
    %7547 = vset.pattern.permute.xlu0 5
    %7548 = vperm.xlu0 %7547, %v6770
    %v7549 = vpop.permute.xlu0 %7548
    %vm7550 = vcmp.eq.s32.totalorder %v347, %v7549
    %v7551 = vsel %vm7550, 1, 0
    %v7552 = vcvt.s32.f32 %v7551
    %v7554 = vsel %vm799, %v7546, 0
    %7556 = vmatprep.subr.mxu0 0.0
    %7557 = vmatpush1.msra.mxu0 %v6768
    %7558 = vmatprep.subr.mxu0 0.0
    %7559 = vmatpush1.msra.mxu0 0.0
    %7560 = vmatprep.subr.mxu0 0.0
    %7561 = vmatpush1.msra.mxu0 0.0
    %7562 = vmatprep.subr.mxu0 0.0
    %7563 = vmatpush1.msra.mxu0 0.0
    %7564 = vmatprep.subr.mxu0 0.0
    %7565 = vmatpush1.msra.mxu0 0.0
    %7566 = vmatprep.subr.mxu0 0.0
    %7567 = vmatpush1.msra.mxu0 0.0
    %7568 = vmatprep.subr.mxu0 0.0
    %7569 = vmatpush1.msra.mxu0 0.0
    %7570 = vmatprep.subr.mxu0 0.0
    %7571 = vmatpush1.msra.mxu0 0.0
    %7572 = vmatprep.subr.mxu0 0.0
    %7573 = vmatpush1.msra.mxu0 0.0
    %7574 = vmatprep.subr.mxu0 0.0
    %7575 = vmatpush1.msra.mxu0 0.0
    %7576 = vmatprep.subr.mxu0 0.0
    %7577 = vmatpush1.msra.mxu0 0.0
    %7578 = vmatprep.subr.mxu0 0.0
    %7579 = vmatpush1.msra.mxu0 0.0
    %7580 = vmatprep.subr.mxu0 0.0
    %7581 = vmatpush1.msra.mxu0 0.0
    %7582 = vmatprep.subr.mxu0 0.0
    %7583 = vmatpush1.msra.mxu0 0.0
    %7584 = vmatprep.subr.mxu0 0.0
    %7585 = vmatpush1.msra.mxu0 0.0
    %7586 = vmatprep.subr.mxu0 0.0
    %7587 = vmatpush1.msra.mxu0 0.0
    %7588 = vmatprep.subr.mxu0 0.0
    %7589 = vmatpush1.msra.mxu0 0.0
    %7590 = vmatprep.subr.mxu0 0.0
    %7591 = vmatpush1.msra.mxu0 0.0
    %7592 = vmatprep.subr.mxu0 0.0
    %7593 = vmatpush1.msra.mxu0 0.0
    %7594 = vmatprep.subr.mxu0 0.0
    %7595 = vmatpush1.msra.mxu0 0.0
    %7596 = vmatprep.subr.mxu0 0.0
    %7597 = vmatpush1.msra.mxu0 0.0
    %7598 = vmatprep.subr.mxu0 0.0
    %7599 = vmatpush1.msra.mxu0 0.0
    %7600 = vmatprep.subr.mxu0 0.0
    %7601 = vmatpush1.msra.mxu0 0.0
    %7602 = vmatprep.subr.mxu0 0.0
    %7603 = vmatpush1.msra.mxu0 0.0
    %7604 = vmatprep.subr.mxu0 0.0
    %7605 = vmatpush1.msra.mxu0 0.0
    %7606 = vmatprep.subr.mxu0 0.0
    %7607 = vmatpush1.msra.mxu0 0.0
    %7608 = vmatprep.subr.mxu0 0.0
    %7609 = vmatpush1.msra.mxu0 0.0
    %7610 = vmatprep.subr.mxu0 0.0
    %7611 = vmatpush1.msra.mxu0 0.0
    %7612 = vmatprep.subr.mxu0 0.0
    %7613 = vmatpush1.msra.mxu0 0.0
    %7614 = vmatprep.subr.mxu0 0.0
    %7615 = vmatpush1.msra.mxu0 0.0
    %7616 = vmatprep.subr.mxu0 0.0
    %7617 = vmatpush1.msra.mxu0 0.0
    %7618 = vmatprep.subr.mxu0 0.0
    %7619 = vmatpush1.msra.mxu0 0.0
    %7620 = vmatprep.mubr.f32.mxu0 0.0
    %7621 = vmatmul.mubr.f32.gmra.mrb[0].mxu0 %v7554
    %v7622 = vpop.f32.mrb[0].mxu0
    %v7623 = vadd.f32 0.0, %v7622
    %v7624 = vpop.f32.mrb[0].mxu0
    %7625 = vdwg.mxu0
    %v7626 = vmul.f32 %v7623, %v7552
    %v7627 = vsel %vm6790, %v7626, 0.0
    %7628 = vadd.xlane.f32.xlu0 %v7627
    %v7629 = vpop.xlane.xlu0 %7628
    %v7631 = vrot.slane %v7552, 3
    %v7632 = vrot.slane %v7552, 4
    %v7635 = vmul.f32 %v6759, %v7631
    %v7636 = vmul.f32 %v6764, %v7632
    %v7639 = vrot.slane %v7636, 7
    %v7640 = vsel %vm4478, %v7639, %v7635
    %vm7642 = vcmask 63493
    %v7643 = vsel %vm7642, %v7640, 0.0
    %7644 = vadd.xlane.f32.xlu0 %v7643
    %v7645 = vpop.xlane.xlu0 %7644
    %v7647 = vrot.slane %v7645, 5
    %v7649 = vadd.f32 %v7629, %v7647
    %7651 = vrot.lane.b32.xlu0 %v7649, 5
    %v7652 = vpop.permute.xlu0 %7651
    %v7654 = vmul.f32 %v512, %v7652
    %7656 = vrot.lane.b32.xlu0 %v7654, 124
    %v7657 = vpop.permute.xlu0 %7656
    %v7659 = vadd.f32 %v7470, %v7657
    %v7660 = vlaneseq
    %v7661 = vshrl.u32 %v7660, 7
    %v7662 = vsub.s32 0, %v7661
    %v7663 = vrot.slane %v7545, %v7662
    %7665 = vbcast.lane.b32.xlu0 %v7663, 256
    %v7666 = vpop.permute.xlu0 %7665
    %v7667 = vlaneseq
    %v7668 = vshrl.u32 %v7667, 7
    %v7669 = vsub.s32 1, %v7668
    %v7670 = vrot.slane %v7545, %v7669
    %7672 = vbcast.lane.b32.xlu0 %v7670, 256
    %v7673 = vpop.permute.xlu0 %7672
    %v7674 = vadd.f32 %v7666, %v6768
    %v7675 = vadd.f32 %v7673, %v6768
    %v7676 = vlaneseq
    %v7677 = vshrl.u32 %v7676, 7
    %v7678 = vsub.s32 5, %v7677
    %v7679 = vrot.slane %v6759, %v7678
    %v7680 = vlaneseq
    %v7681 = vshrl.u32 %v7680, 7
    %v7682 = vsub.s32 5, %v7681
    %v7683 = vrot.slane %v6764, %v7682
    %v7684 = vadd.f32 %v7674, %v7679
    %v7685 = vadd.f32 %v7675, %v7683
    %v7686 = vsel %vm799, %v7684, -inf
    %v7687 = vrot.slane %v7686, 4
    %v7688 = vmax.f32 %v7686, %v7687
    %v7689 = vrot.slane %v7688, 2
    %v7690 = vmax.f32 %v7688, %v7689
    %v7691 = vrot.slane %v7690, 1
    %v7692 = vmax.f32 %v7690, %v7691
    %v7693 = vsel %vm799, %v7685, -inf
    %v7694 = vrot.slane %v7693, 4
    %v7695 = vmax.f32 %v7693, %v7694
    %v7696 = vrot.slane %v7695, 2
    %v7697 = vmax.f32 %v7695, %v7696
    %v7698 = vrot.slane %v7697, 1
    %v7699 = vmax.f32 %v7697, %v7698
    %v7700 = vsub.f32 %v7684, %v7692
    %v7701 = vsub.f32 %v7685, %v7699
    %v7702 = vmul.f32 %v7700, 1.442695
    %v7703 = vpow.pop %v7702
    %v7704 = vmul.f32 %v7701, 1.442695
    %v7705 = vpow.pop %v7704
    %v7706 = vsel %vm799, %v7703, 0.0
    %v7707 = vrot.slane %v7706, 4
    %v7708 = vadd.f32 %v7706, %v7707
    %v7709 = vrot.slane %v7708, 2
    %v7710 = vadd.f32 %v7708, %v7709
    %v7711 = vrot.slane %v7710, 1
    %v7712 = vadd.f32 %v7710, %v7711
    %v7713 = vsel %vm799, %v7705, 0.0
    %v7714 = vrot.slane %v7713, 4
    %v7715 = vadd.f32 %v7713, %v7714
    %v7716 = vrot.slane %v7715, 2
    %v7717 = vadd.f32 %v7715, %v7716
    %v7718 = vrot.slane %v7717, 1
    %v7719 = vadd.f32 %v7717, %v7718
    %v7720 = vlog2.pop %v7712
    %v7721 = vmul.f32 %v7720, 0.6931472
    %v7722 = vlog2.pop %v7719
    %v7723 = vmul.f32 %v7722, 0.6931472
    %v7724 = vadd.f32 %v7692, %v7721
    %v7725 = vadd.f32 %v7699, %v7723
    %7726 = vset.pattern.permute.xlu0 5
    %7727 = vperm.xlu0 %7726, %v6969
    %v7728 = vpop.permute.xlu0 %7727
    %vm7729 = vcmp.eq.s32.totalorder %v7728, 1
    %v7732 = vsel %vm3311, %v7725, %v7724
    %v7734 = vsel %vm7729, %v7732, %v7545
    %v7735 = vsel %vm7729, %v7552, %v7546
    %7736 = vset.pattern.permute.xlu0 6
    %7737 = vperm.xlu0 %7736, %v6770
    %v7738 = vpop.permute.xlu0 %7737
    %vm7739 = vcmp.eq.s32.totalorder %v347, %v7738
    %v7740 = vsel %vm7739, 1, 0
    %v7741 = vcvt.s32.f32 %v7740
    %v7743 = vsel %vm799, %v7735, 0
    %7745 = vmatprep.subr.mxu0 0.0
    %7746 = vmatpush1.msra.mxu0 %v6768
    %7747 = vmatprep.subr.mxu0 0.0
    %7748 = vmatpush1.msra.mxu0 0.0
    %7749 = vmatprep.subr.mxu0 0.0
    %7750 = vmatpush1.msra.mxu0 0.0
    %7751 = vmatprep.subr.mxu0 0.0
    %7752 = vmatpush1.msra.mxu0 0.0
    %7753 = vmatprep.subr.mxu0 0.0
    %7754 = vmatpush1.msra.mxu0 0.0
    %7755 = vmatprep.subr.mxu0 0.0
    %7756 = vmatpush1.msra.mxu0 0.0
    %7757 = vmatprep.subr.mxu0 0.0
    %7758 = vmatpush1.msra.mxu0 0.0
    %7759 = vmatprep.subr.mxu0 0.0
    %7760 = vmatpush1.msra.mxu0 0.0
    %7761 = vmatprep.subr.mxu0 0.0
    %7762 = vmatpush1.msra.mxu0 0.0
    %7763 = vmatprep.subr.mxu0 0.0
    %7764 = vmatpush1.msra.mxu0 0.0
    %7765 = vmatprep.subr.mxu0 0.0
    %7766 = vmatpush1.msra.mxu0 0.0
    %7767 = vmatprep.subr.mxu0 0.0
    %7768 = vmatpush1.msra.mxu0 0.0
    %7769 = vmatprep.subr.mxu0 0.0
    %7770 = vmatpush1.msra.mxu0 0.0
    %7771 = vmatprep.subr.mxu0 0.0
    %7772 = vmatpush1.msra.mxu0 0.0
    %7773 = vmatprep.subr.mxu0 0.0
    %7774 = vmatpush1.msra.mxu0 0.0
    %7775 = vmatprep.subr.mxu0 0.0
    %7776 = vmatpush1.msra.mxu0 0.0
    %7777 = vmatprep.subr.mxu0 0.0
    %7778 = vmatpush1.msra.mxu0 0.0
    %7779 = vmatprep.subr.mxu0 0.0
    %7780 = vmatpush1.msra.mxu0 0.0
    %7781 = vmatprep.subr.mxu0 0.0
    %7782 = vmatpush1.msra.mxu0 0.0
    %7783 = vmatprep.subr.mxu0 0.0
    %7784 = vmatpush1.msra.mxu0 0.0
    %7785 = vmatprep.subr.mxu0 0.0
    %7786 = vmatpush1.msra.mxu0 0.0
    %7787 = vmatprep.subr.mxu0 0.0
    %7788 = vmatpush1.msra.mxu0 0.0
    %7789 = vmatprep.subr.mxu0 0.0
    %7790 = vmatpush1.msra.mxu0 0.0
    %7791 = vmatprep.subr.mxu0 0.0
    %7792 = vmatpush1.msra.mxu0 0.0
    %7793 = vmatprep.subr.mxu0 0.0
    %7794 = vmatpush1.msra.mxu0 0.0
    %7795 = vmatprep.subr.mxu0 0.0
    %7796 = vmatpush1.msra.mxu0 0.0
    %7797 = vmatprep.subr.mxu0 0.0
    %7798 = vmatpush1.msra.mxu0 0.0
    %7799 = vmatprep.subr.mxu0 0.0
    %7800 = vmatpush1.msra.mxu0 0.0
    %7801 = vmatprep.subr.mxu0 0.0
    %7802 = vmatpush1.msra.mxu0 0.0
    %7803 = vmatprep.subr.mxu0 0.0
    %7804 = vmatpush1.msra.mxu0 0.0
    %7805 = vmatprep.subr.mxu0 0.0
    %7806 = vmatpush1.msra.mxu0 0.0
    %7807 = vmatprep.subr.mxu0 0.0
    %7808 = vmatpush1.msra.mxu0 0.0
    %7809 = vmatprep.mubr.f32.mxu0 0.0
    %7810 = vmatmul.mubr.f32.gmra.mrb[0].mxu0 %v7743
    %v7811 = vpop.f32.mrb[0].mxu0
    %v7812 = vadd.f32 0.0, %v7811
    %v7813 = vpop.f32.mrb[0].mxu0
    %7814 = vdwg.mxu0
    %v7815 = vmul.f32 %v7812, %v7741
    %v7816 = vsel %vm6790, %v7815, 0.0
    %7817 = vadd.xlane.f32.xlu0 %v7816
    %v7818 = vpop.xlane.xlu0 %7817
    %v7820 = vrot.slane %v7741, 2
    %v7821 = vrot.slane %v7741, 3
    %v7824 = vmul.f32 %v6759, %v7820
    %v7825 = vmul.f32 %v6764, %v7821
    %v7828 = vrot.slane %v7825, 7
    %v7829 = vsel %vm4516, %v7828, %v7824
    %vm7831 = vcmask 64518
    %v7832 = vsel %vm7831, %v7829, 0.0
    %7833 = vadd.xlane.f32.xlu0 %v7832
    %v7834 = vpop.xlane.xlu0 %7833
    %v7836 = vrot.slane %v7834, 6
    %v7838 = vadd.f32 %v7818, %v7836
    %7840 = vrot.lane.b32.xlu0 %v7838, 6
    %v7841 = vpop.permute.xlu0 %7840
    %v7843 = vmul.f32 %v512, %v7841
    %7845 = vrot.lane.b32.xlu0 %v7843, 123
    %v7846 = vpop.permute.xlu0 %7845
    %v7848 = vadd.f32 %v7659, %v7846
    %v7849 = vlaneseq
    %v7850 = vshrl.u32 %v7849, 7
    %v7851 = vsub.s32 0, %v7850
    %v7852 = vrot.slane %v7734, %v7851
    %7854 = vbcast.lane.b32.xlu0 %v7852, 256
    %v7855 = vpop.permute.xlu0 %7854
    %v7856 = vlaneseq
    %v7857 = vshrl.u32 %v7856, 7
    %v7858 = vsub.s32 1, %v7857
    %v7859 = vrot.slane %v7734, %v7858
    %7861 = vbcast.lane.b32.xlu0 %v7859, 256
    %v7862 = vpop.permute.xlu0 %7861
    %v7863 = vadd.f32 %v7855, %v6768
    %v7864 = vadd.f32 %v7862, %v6768
    %v7865 = vlaneseq
    %v7866 = vshrl.u32 %v7865, 7
    %v7867 = vsub.s32 6, %v7866
    %v7868 = vrot.slane %v6759, %v7867
    %v7869 = vlaneseq
    %v7870 = vshrl.u32 %v7869, 7
    %v7871 = vsub.s32 6, %v7870
    %v7872 = vrot.slane %v6764, %v7871
    %v7873 = vadd.f32 %v7863, %v7868
    %v7874 = vadd.f32 %v7864, %v7872
    %v7875 = vsel %vm799, %v7873, -inf
    %v7876 = vrot.slane %v7875, 4
    %v7877 = vmax.f32 %v7875, %v7876
    %v7878 = vrot.slane %v7877, 2
    %v7879 = vmax.f32 %v7877, %v7878
    %v7880 = vrot.slane %v7879, 1
    %v7881 = vmax.f32 %v7879, %v7880
    %v7882 = vsel %vm799, %v7874, -inf
    %v7883 = vrot.slane %v7882, 4
    %v7884 = vmax.f32 %v7882, %v7883
    %v7885 = vrot.slane %v7884, 2
    %v7886 = vmax.f32 %v7884, %v7885
    %v7887 = vrot.slane %v7886, 1
    %v7888 = vmax.f32 %v7886, %v7887
    %v7889 = vsub.f32 %v7873, %v7881
    %v7890 = vsub.f32 %v7874, %v7888
    %v7891 = vmul.f32 %v7889, 1.442695
    %v7892 = vpow.pop %v7891
    %v7893 = vmul.f32 %v7890, 1.442695
    %v7894 = vpow.pop %v7893
    %v7895 = vsel %vm799, %v7892, 0.0
    %v7896 = vrot.slane %v7895, 4
    %v7897 = vadd.f32 %v7895, %v7896
    %v7898 = vrot.slane %v7897, 2
    %v7899 = vadd.f32 %v7897, %v7898
    %v7900 = vrot.slane %v7899, 1
    %v7901 = vadd.f32 %v7899, %v7900
    %v7902 = vsel %vm799, %v7894, 0.0
    %v7903 = vrot.slane %v7902, 4
    %v7904 = vadd.f32 %v7902, %v7903
    %v7905 = vrot.slane %v7904, 2
    %v7906 = vadd.f32 %v7904, %v7905
    %v7907 = vrot.slane %v7906, 1
    %v7908 = vadd.f32 %v7906, %v7907
    %v7909 = vlog2.pop %v7901
    %v7910 = vmul.f32 %v7909, 0.6931472
    %v7911 = vlog2.pop %v7908
    %v7912 = vmul.f32 %v7911, 0.6931472
    %v7913 = vadd.f32 %v7881, %v7910
    %v7914 = vadd.f32 %v7888, %v7912
    %7915 = vset.pattern.permute.xlu0 6
    %7916 = vperm.xlu0 %7915, %v6969
    %v7917 = vpop.permute.xlu0 %7916
    %vm7918 = vcmp.eq.s32.totalorder %v7917, 1
    %v7921 = vsel %vm3311, %v7914, %v7913
    %v7923 = vsel %vm7918, %v7921, %v7734
    %v7924 = vsel %vm7918, %v7741, %v7735
    %7925 = vset.pattern.permute.xlu0 7
    %7926 = vperm.xlu0 %7925, %v6770
    %v7927 = vpop.permute.xlu0 %7926
    %vm7928 = vcmp.eq.s32.totalorder %v347, %v7927
    %v7929 = vsel %vm7928, 1, 0
    %v7930 = vcvt.s32.f32 %v7929
    %v7932 = vsel %vm799, %v7924, 0
    %7934 = vmatprep.subr.mxu0 0.0
    %7935 = vmatpush1.msra.mxu0 %v6768
    %7936 = vmatprep.subr.mxu0 0.0
    %7937 = vmatpush1.msra.mxu0 0.0
    %7938 = vmatprep.subr.mxu0 0.0
    %7939 = vmatpush1.msra.mxu0 0.0
    %7940 = vmatprep.subr.mxu0 0.0
    %7941 = vmatpush1.msra.mxu0 0.0
    %7942 = vmatprep.subr.mxu0 0.0
    %7943 = vmatpush1.msra.mxu0 0.0
    %7944 = vmatprep.subr.mxu0 0.0
    %7945 = vmatpush1.msra.mxu0 0.0
    %7946 = vmatprep.subr.mxu0 0.0
    %7947 = vmatpush1.msra.mxu0 0.0
    %7948 = vmatprep.subr.mxu0 0.0
    %7949 = vmatpush1.msra.mxu0 0.0
    %7950 = vmatprep.subr.mxu0 0.0
    %7951 = vmatpush1.msra.mxu0 0.0
    %7952 = vmatprep.subr.mxu0 0.0
    %7953 = vmatpush1.msra.mxu0 0.0
    %7954 = vmatprep.subr.mxu0 0.0
    %7955 = vmatpush1.msra.mxu0 0.0
    %7956 = vmatprep.subr.mxu0 0.0
    %7957 = vmatpush1.msra.mxu0 0.0
    %7958 = vmatprep.subr.mxu0 0.0
    %7959 = vmatpush1.msra.mxu0 0.0
    %7960 = vmatprep.subr.mxu0 0.0
    %7961 = vmatpush1.msra.mxu0 0.0
    %7962 = vmatprep.subr.mxu0 0.0
    %7963 = vmatpush1.msra.mxu0 0.0
    %7964 = vmatprep.subr.mxu0 0.0
    %7965 = vmatpush1.msra.mxu0 0.0
    %7966 = vmatprep.subr.mxu0 0.0
    %7967 = vmatpush1.msra.mxu0 0.0
    %7968 = vmatprep.subr.mxu0 0.0
    %7969 = vmatpush1.msra.mxu0 0.0
    %7970 = vmatprep.subr.mxu0 0.0
    %7971 = vmatpush1.msra.mxu0 0.0
    %7972 = vmatprep.subr.mxu0 0.0
    %7973 = vmatpush1.msra.mxu0 0.0
    %7974 = vmatprep.subr.mxu0 0.0
    %7975 = vmatpush1.msra.mxu0 0.0
    %7976 = vmatprep.subr.mxu0 0.0
    %7977 = vmatpush1.msra.mxu0 0.0
    %7978 = vmatprep.subr.mxu0 0.0
    %7979 = vmatpush1.msra.mxu0 0.0
    %7980 = vmatprep.subr.mxu0 0.0
    %7981 = vmatpush1.msra.mxu0 0.0
    %7982 = vmatprep.subr.mxu0 0.0
    %7983 = vmatpush1.msra.mxu0 0.0
    %7984 = vmatprep.subr.mxu0 0.0
    %7985 = vmatpush1.msra.mxu0 0.0
    %7986 = vmatprep.subr.mxu0 0.0
    %7987 = vmatpush1.msra.mxu0 0.0
    %7988 = vmatprep.subr.mxu0 0.0
    %7989 = vmatpush1.msra.mxu0 0.0
    %7990 = vmatprep.subr.mxu0 0.0
    %7991 = vmatpush1.msra.mxu0 0.0
    %7992 = vmatprep.subr.mxu0 0.0
    %7993 = vmatpush1.msra.mxu0 0.0
    %7994 = vmatprep.subr.mxu0 0.0
    %7995 = vmatpush1.msra.mxu0 0.0
    %7996 = vmatprep.subr.mxu0 0.0
    %7997 = vmatpush1.msra.mxu0 0.0
    %7998 = vmatprep.mubr.f32.mxu0 0.0
    %7999 = vmatmul.mubr.f32.gmra.mrb[0].mxu0 %v7932
    %v8000 = vpop.f32.mrb[0].mxu0
    %v8001 = vadd.f32 0.0, %v8000
    %v8002 = vpop.f32.mrb[0].mxu0
    %8003 = vdwg.mxu0
    %v8004 = vmul.f32 %v8001, %v7930
    %v8005 = vsel %vm6790, %v8004, 0.0
    %8006 = vadd.xlane.f32.xlu0 %v8005
    %v8007 = vpop.xlane.xlu0 %8006
    %v8009 = vrot.slane %v7930, 1
    %v8010 = vrot.slane %v7930, 2
    %v8013 = vmul.f32 %v6759, %v8009
    %v8014 = vmul.f32 %v6764, %v8010
    %v8017 = vrot.slane %v8014, 7
    %vm8020 = vcmask 64519
    %v8021 = vsel %vm8020, %v8013, 0.0
    %8022 = vadd.xlane.f32.xlu0 %v8021
    %v8023 = vpop.xlane.xlu0 %8022
    %vm8024 = vcmask 57344
    %v8025 = vsel %vm8024, %v8017, 0.0
    %8026 = vadd.xlane.f32.xlu0 %v8025
    %v8027 = vpop.xlane.xlu0 %8026
    %v8030 = vrot.slane %v8023, 7
    %v8031 = vrot.slane %v8027, 7
    %v8032 = vsel %vm3092, %v8030, %v8031
    %v8034 = vadd.f32 %v8007, %v8032
    %8036 = vrot.lane.b32.xlu0 %v8034, 7
    %v8037 = vpop.permute.xlu0 %8036
    %v8039 = vmul.f32 %v512, %v8037
    %8041 = vrot.lane.b32.xlu0 %v8039, 122
    %v8042 = vpop.permute.xlu0 %8041
    %v8044 = vadd.f32 %v7848, %v8042
    %v8045 = vlaneseq
    %v8046 = vshrl.u32 %v8045, 7
    %v8047 = vsub.s32 0, %v8046
    %v8048 = vrot.slane %v7923, %v8047
    %8050 = vbcast.lane.b32.xlu0 %v8048, 256
    %v8051 = vpop.permute.xlu0 %8050
    %v8052 = vlaneseq
    %v8053 = vshrl.u32 %v8052, 7
    %v8054 = vsub.s32 1, %v8053
    %v8055 = vrot.slane %v7923, %v8054
    %8057 = vbcast.lane.b32.xlu0 %v8055, 256
    %v8058 = vpop.permute.xlu0 %8057
    %v8059 = vadd.f32 %v8051, %v6768
    %v8060 = vadd.f32 %v8058, %v6768
    %v8061 = vlaneseq
    %v8062 = vshrl.u32 %v8061, 7
    %v8063 = vsub.s32 7, %v8062
    %v8064 = vrot.slane %v6759, %v8063
    %v8065 = vlaneseq
    %v8066 = vshrl.u32 %v8065, 7
    %v8067 = vsub.s32 7, %v8066
    %v8068 = vrot.slane %v6764, %v8067
    %v8069 = vadd.f32 %v8059, %v8064
    %v8070 = vadd.f32 %v8060, %v8068
    %v8071 = vsel %vm799, %v8069, -inf
    %v8072 = vrot.slane %v8071, 4
    %v8073 = vmax.f32 %v8071, %v8072
    %v8074 = vrot.slane %v8073, 2
    %v8075 = vmax.f32 %v8073, %v8074
    %v8076 = vrot.slane %v8075, 1
    %v8077 = vmax.f32 %v8075, %v8076
    %v8078 = vsel %vm799, %v8070, -inf
    %v8079 = vrot.slane %v8078, 4
    %v8080 = vmax.f32 %v8078, %v8079
    %v8081 = vrot.slane %v8080, 2
    %v8082 = vmax.f32 %v8080, %v8081
    %v8083 = vrot.slane %v8082, 1
    %v8084 = vmax.f32 %v8082, %v8083
    %v8085 = vsub.f32 %v8069, %v8077
    %v8086 = vsub.f32 %v8070, %v8084
    %v8087 = vmul.f32 %v8085, 1.442695
    %v8088 = vpow.pop %v8087
    %v8089 = vmul.f32 %v8086, 1.442695
    %v8090 = vpow.pop %v8089
    %v8091 = vsel %vm799, %v8088, 0.0
    %v8092 = vrot.slane %v8091, 4
    %v8093 = vadd.f32 %v8091, %v8092
    %v8094 = vrot.slane %v8093, 2
    %v8095 = vadd.f32 %v8093, %v8094
    %v8096 = vrot.slane %v8095, 1
    %v8097 = vadd.f32 %v8095, %v8096
    %v8098 = vsel %vm799, %v8090, 0.0
    %v8099 = vrot.slane %v8098, 4
    %v8100 = vadd.f32 %v8098, %v8099
    %v8101 = vrot.slane %v8100, 2
    %v8102 = vadd.f32 %v8100, %v8101
    %v8103 = vrot.slane %v8102, 1
    %v8104 = vadd.f32 %v8102, %v8103
    %v8105 = vlog2.pop %v8097
    %v8106 = vmul.f32 %v8105, 0.6931472
    %v8107 = vlog2.pop %v8104
    %v8108 = vmul.f32 %v8107, 0.6931472
    %v8109 = vadd.f32 %v8077, %v8106
    %v8110 = vadd.f32 %v8084, %v8108
    %8111 = vset.pattern.permute.xlu0 7
    %8112 = vperm.xlu0 %8111, %v6969
    %v8113 = vpop.permute.xlu0 %8112
    %vm8114 = vcmp.eq.s32.totalorder %v8113, 1
    %v8117 = vsel %vm3311, %v8110, %v8109
    %v8119 = vsel %vm8114, %v8117, %v7923
    %v8120 = vsel %vm8114, %v7930, %v7924
    %v8122 = vlaneseq
    %v8123 = vshrl.u32 %v8122, 7
    %v8124 = vsub.s32 0, %v8123
    %v8125 = vrot.slane %v6769, %v8124
    %v8127 = vmul.f32 %v8125, %v8120
    %v8128 = vsel %vm6790, %v8127, 0.0
    %8129 = vadd.xlane.f32.xlu0 %v8128
    %v8130 = vpop.xlane.xlu0 %8129
    %v8131 = vadd.f32 %v8044, %v8130
    %v8132 = vadd.f32 %v8119, %v8125
    %v8133 = vsel %vm6790, %v8132, -inf
    %8134 = vmax.xlane.f32.xlu0 %v8133
    %v8135 = vpop.xlane.xlu0 %8134
    %v8136 = vsub.f32 %v8132, %v8135
    %v8137 = vmul.f32 %v8136, 1.442695
    %v8138 = vpow.pop %v8137
    %v8139 = vsel %vm6790, %v8138, 0.0
    %8140 = vadd.xlane.f32.xlu0 %v8139
    %v8141 = vpop.xlane.xlu0 %8140
    %v8142 = vlog2.pop %v8141
    %v8143 = vmul.f32 %v8142, 0.6931472
    %v8144 = vadd.f32 %v8135, %v8143
    %v8145 = vsub.f32 %v8131, %v8144
    %vm8146 = vcmask 9224
    %v8147 = vsel %vm8146, %v8145, 0.0
    %v8148 = vrot.slane %v8147, 4
    %v8149 = vadd.f32 %v8147, %v8148
    %v8150 = vrot.slane %v8149, 2
    %v8151 = vadd.f32 %v8149, %v8150
    %v8152 = vrot.slane %v8151, 1
    %v8153 = vadd.f32 %v8151, %v8152
    %v8154 = vrcp.pop 2.0
    %v8155 = vmul.f32 %v8153, %v8154
    %v8156 = vsub.f32 0.0, %v8155
    %8158 = vrot.lane.b32.xlu0 %v8156, 127
    %v8159 = vpop.permute.xlu0 %8158
    %vm8161 = vcmask 0
    %8162 = vst.msk [vmem:[#allocation28] sm:$0x1] %vm8161, %v8159
    // Predicated region
    $region198: #{forward.1} parent=1 // pred_check
      _
    $region199: #{forward.1} parent=1 // pred_check_branch
      %8164 = sbr.rel (0) target = $region201
    $region200: #{forward.1} parent=1 // pred_region
      %s8166 = ssub.s32 16, 16
      %8167 = vsyncadd [#allocation4], %s8166
      %s8169 = sshll.u32 [#allocation28], 4
      %s8170 = int_to_ptr.vmem [resolvable:$true] %s8169
      %8172 = dma.vmem_to_hbm [thread:$0]  %s8170, 16, %s67, [#allocation4]
    $region201: #{forward.1} parent=1 // pred_fallthru
      _
    // Predicated region
    $region202: #{forward.1} parent=1 // pred_check
      _
    $region203: #{forward.1} parent=1 // pred_check_branch
      %8174 = sbr.rel (0) target = $region205
    $region204: #{forward.1} parent=1 // pred_region
      %8175 = dma.done [#allocation4], 16
    $region205: #{forward.1} parent=1 // pred_fallthru
      _
    %8176 = vsyncpa [#allocation3], 1
    %8177 = vsyncpa [#allocation6], 1
    %8178 = vsyncpa [#allocation9], 1
    %8179 = vsyncpa [#allocation12], 1
    %8180 = vsyncpa [#allocation15], 1
    %8181 = vsyncpa [#allocation18], 1
    %8182 = vsyncpa [#allocation21], 1
    %8183 = vsyncpa [#allocation24], 1
    %8184 = vsyncpa [#allocation27], 1
    %8185 = vsyncpa [#allocation4], 1

</llo_original>
